<compile_context>
chip_gen: v7x
topology: tpu7x:2x2x1
jax: 0.10.0
libtpu: 0.0.40
codegen_flags: <defaults>
</compile_context>

<pallas_src>
import functools

import jax
import jax.numpy as jnp
from jax import lax
from jax.experimental import pallas as pl
from jax.experimental.pallas import tpu as pltpu


# ----------------------------- config (small) -------------------------------
MAX_FEATURES = 100                    # vocab size
EMBED_SIZE   = 128                    # embedding dim
LSTM_UNITS   = 64                     # hidden per direction
SEQ_LEN      = 16
BATCH        = 8                      # multiple of 8 (one sublane group)
DENSE1       = 4 * LSTM_UNITS         # cat(max_pool, avg_pool)
DENSE2       = 128
DENSE3       = 64
NUM_AUX      = 6
FEATURES_SZ  = 0
VOCAB_PAD    = ((MAX_FEATURES + 127) // 128) * 128   # pad vocab to lane width


def _vmem_spec():
    # whole-array block resident in VMEM (everything here is tiny)
    return pl.BlockSpec(memory_space=pltpu.MemorySpace.VMEM)


# ------------------------------ fused kernel --------------------------------
def bilstm_fused_kernel(ids_ref, ew1_ref, whh1_ref, wih2_ref, b2_ref, whh2_ref,
                        hw1_ref, hw2_ref, wout_ref, hbias_ref,
                        out_ref,
                        gx1_scr, h1_scr, gx2tm_scr, gx2_scr,
                        *, seq_len, batch, hidden, vocab2):
    f32 = jnp.float32
    S, B, H = seq_len, batch, hidden
    B2 = 2 * B
    H2, H3, H4 = 2 * H, 3 * H, 4 * H

    # ---- embedding gather fused with layer-1 input projection --------------
    # ids already carry the +VOCAB_PAD offset for the backward direction and
    # are ordered step-major [fwd t ; bwd S-1-t], so this single one-hot
    # matmul directly emits every step's contiguous (2B, 4H) gate tile with
    # both per-direction biases folded in (one-hot rows sum to 1).
    ids = ids_ref[...]                                            # (S*2B, 1) i32
    onehot = (ids == lax.broadcasted_iota(jnp.int32, (S * B2, vocab2), 1)
              ).astype(f32)                                       # (S*2B, 2Vp)
    gx1_scr[...] = jnp.dot(onehot, ew1_ref[...],
                           preferred_element_type=f32)            # (S*2B, 4H)

    # ---- loop invariants hoisted out of the recurrences ---------------------
    whh1 = whh1_ref[...]                                          # (2H, 4H)
    whh2 = whh2_ref[...]                                          # (2H, 4H)
    row = lax.broadcasted_iota(jnp.int32, (B2, 1), 0)
    m_fwd = (row < B).astype(f32)                                 # (2B, 1)
    m_bwd = 1.0 - m_fwd

    def cell(gx_t, h_pad, c, whh):
        # gate column order inside each direction: [i | f | o | g]
        gates = gx_t + jnp.dot(h_pad, whh, preferred_element_type=f32)  # (2B,4H)
        # sigmoid(x) = 0.5*tanh(0.5*x) + 0.5  (single EUP op class per step)
        sio = 0.5 * jnp.tanh(0.5 * gates[:, :H3]) + 0.5           # i, f, o
        g = jnp.tanh(gates[:, H3:])
        c_new = sio[:, H:H2] * c + sio[:, :H] * g
        h_new = sio[:, H2:] * jnp.tanh(c_new)                     # (2B, H)
        # padded layout: fwd rows [h | 0], bwd rows [0 | h] so one matmul
        # against [Whh_f ; Whh_b] keeps the directions separate.
        h_pad_new = jnp.concatenate([h_new * m_fwd, h_new * m_bwd], axis=1)
        return h_pad_new, c_new

    # ---- BiLSTM layer 1: fwd & bwd fused, fully unrolled recurrence ---------
    h1_scr[...] = jnp.zeros_like(h1_scr)
    h_pad = jnp.zeros((B2, H2), f32)
    c = jnp.zeros((B2, H), f32)
    for t in range(S):                        # S small & static -> unroll
        h_pad, c = cell(gx1_scr[t * B2:(t + 1) * B2, :], h_pad, c, whh1)
        # full-128-lane accumulating stores (padded halves are zero)
        h1_scr[t * B:(t + 1) * B, :] += h_pad[:B]                 # fwd @ t
        h1_scr[(S - 1 - t) * B:(S - t) * B, :] += h_pad[B:]       # bwd @ S-1-t

    # ---- layer-2 input projection (one matmul) + step-major reorder ---------
    gx2tm_scr[...] = (jnp.dot(h1_scr[...], wih2_ref[...],
                              preferred_element_type=f32)
                      + b2_ref[...])                              # (S*B, 8H)
    for t in range(S):                        # full-vreg-aligned copies
        gx2_scr[t * B2:t * B2 + B, :] = gx2tm_scr[t * B:(t + 1) * B, :H4]
        gx2_scr[t * B2 + B:(t + 1) * B2, :] = \
            gx2tm_scr[(S - 1 - t) * B:(S - t) * B, H4:]

    # ---- BiLSTM layer 2 with max/avg pooling accumulated on the fly ---------
    h_pad = jnp.zeros((B2, H2), f32)
    c = jnp.zeros((B2, H), f32)
    psum = jnp.zeros((B2, H2), f32)
    pmax = jnp.full((B2, H2), -jnp.inf, f32)
    for t in range(S):
        h_pad, c = cell(gx2_scr[t * B2:(t + 1) * B2, :], h_pad, c, whh2)
        psum = psum + h_pad                                       # full-lane VPU
        pmax = jnp.maximum(pmax, h_pad)

    # padded halves are exactly zero, so fwd/bwd combine is a plain add
    max_pool = pmax[:B] + pmax[B:]                                # (B, 2H)
    avg_pool = (psum[:B] + psum[B:]) * (1.0 / S)                  # (B, 2H)
    h_conc = jnp.concatenate([max_pool, avg_pool], axis=1)        # (B, 4H)

    # ---- dense head (biases packed into one (3,128) array) ------------------
    z1 = jnp.maximum(jnp.dot(h_conc, hw1_ref[...], preferred_element_type=f32)
                     + hbias_ref[0:1, :DENSE2], 0.0)
    z2 = jnp.maximum(jnp.dot(z1, hw2_ref[...], preferred_element_type=f32)
                     + hbias_ref[1:2, :DENSE3], 0.0)
    out_ref[...] = (jnp.dot(z2, wout_ref[...], preferred_element_type=f32)
                    + hbias_ref[2:3, :1 + NUM_AUX])


# ------------------------------ forward wrapper ------------------------------
@jax.jit
def bilstm_forward(params, x_ids, features):
    del features  # features_size = 0 in the reference configuration
    # batch_first (B,S) ids -> step-major fused ids (S*2B, 1):
    #   block t rows 0:B  = ids[:, t]            (forward direction)
    #   block t rows B:2B = ids[:, S-1-t] + Vp   (backward direction table)
    ids = jnp.clip(x_ids.astype(jnp.int32), 0, MAX_FEATURES - 1)
    fwd = jnp.transpose(ids)                                      # (S, B)
    bwd = jnp.transpose(ids[:, ::-1]) + VOCAB_PAD                 # (S, B)
    ids_sm = jnp.stack([fwd, bwd], axis=1).reshape(SEQ_LEN * 2 * BATCH, 1)

    kernel = functools.partial(bilstm_fused_kernel, seq_len=SEQ_LEN,
                               batch=BATCH, hidden=LSTM_UNITS,
                               vocab2=2 * VOCAB_PAD)
    return pl.pallas_call(
        kernel,
        out_shape=jax.ShapeDtypeStruct((BATCH, 1 + NUM_AUX), jnp.float32),
        in_specs=[_vmem_spec()] * 10,
        out_specs=_vmem_spec(),
        scratch_shapes=[
            pltpu.VMEM((SEQ_LEN * 2 * BATCH, 4 * LSTM_UNITS), jnp.float32),  # gx1 step-major
            pltpu.VMEM((SEQ_LEN * BATCH, 2 * LSTM_UNITS), jnp.float32),      # h1 time-major
            pltpu.VMEM((SEQ_LEN * BATCH, 8 * LSTM_UNITS), jnp.float32),      # gx2 time-major
            pltpu.VMEM((SEQ_LEN * 2 * BATCH, 4 * LSTM_UNITS), jnp.float32),  # gx2 step-major
        ],
    )(ids_sm, params["lstm1_ew"], params["lstm1_whh"],
      params["lstm2_wih"], params["lstm2_b"], params["lstm2_whh"],
      params["head_w1"], params["head_w2"], params["head_wout"],
      params["head_bias"])


# ------------------------------ parameters ----------------------------------
def _lstm_dir_params(key, in_dim, hidden):
    ks = jax.random.split(key, 4)
    s = hidden ** -0.5
    # gate column order inside each direction: [i | f | o | g]
    # NOTE: importing real nn.LSTM weights would require permuting PyTorch's
    # [i|f|g|o] columns into this order.
    w_ih = jax.random.uniform(ks[0], (in_dim, 4 * hidden), jnp.float32, -s, s)
    w_hh = jax.random.uniform(ks[1], (hidden, 4 * hidden), jnp.float32, -s, s)
    b_ih = jax.random.uniform(ks[2], (4 * hidden,), jnp.float32, -s, s)
    b_hh = jax.random.uniform(ks[3], (4 * hidden,), jnp.float32, -s, s)
    return w_ih, w_hh, b_ih + b_hh


def _linear_params(key, fan_in, fan_out):
    kw, kb = jax.random.split(key)
    s = fan_in ** -0.5
    w = jax.random.uniform(kw, (fan_in, fan_out), jnp.float32, -s, s)
    b = jax.random.uniform(kb, (fan_out,), jnp.float32, -s, s)
    return w, b


def init_params(key):
    keys = jax.random.split(key, 10)
    H = LSTM_UNITS
    hp = lax.Precision.HIGHEST

    emb = jax.random.normal(keys[0], (MAX_FEATURES, EMBED_SIZE), jnp.float32)
    wih1f, whh1f, b1f = _lstm_dir_params(keys[1], EMBED_SIZE, H)
    wih1b, whh1b, b1b = _lstm_dir_params(keys[2], EMBED_SIZE, H)
    wih2f, whh2f, b2f = _lstm_dir_params(keys[3], 2 * H, H)
    wih2b, whh2b, b2b = _lstm_dir_params(keys[4], 2 * H, H)

    # ---- pack for the fused kernel (done once, at init) ----
    emb_pad = jnp.zeros((VOCAB_PAD, EMBED_SIZE), jnp.float32)\
        .at[:MAX_FEATURES].set(emb)
    # embedding gather folded into layer-1 input projection; the fwd and bwd
    # tables are stacked along rows so the in-kernel one-hot matmul emits the
    # step-major gate rows directly (bwd ids are offset by VOCAB_PAD):
    #   lstm1_ew[v]       = emb[v] @ Wih_f + (b_ih_f + b_hh_f)
    #   lstm1_ew[Vp + v]  = emb[v] @ Wih_b + (b_ih_b + b_hh_b)
    ew_f = jnp.dot(emb_pad, wih1f, precision=hp) + b1f[None, :]    # (Vp, 4H)
    ew_b = jnp.dot(emb_pad, wih1b, precision=hp) + b1b[None, :]    # (Vp, 4H)
    lstm1_ew = jnp.concatenate([ew_f, ew_b], axis=0)               # (2Vp, 4H)
    lstm1_whh = jnp.concatenate([whh1f, whh1b], axis=0)            # (2H, 4H)

    lstm2_wih = jnp.concatenate([wih2f, wih2b], axis=1)            # (2H, 8H)
    lstm2_b = jnp.concatenate([b2f, b2b])[None, :]                 # (1, 8H)
    lstm2_whh = jnp.concatenate([whh2f, whh2b], axis=0)            # (2H, 4H)

    w1, bh1 = _linear_params(keys[5], DENSE1, DENSE2)
    w2, bh2 = _linear_params(keys[6], DENSE2, DENSE3)
    wo, bo = _linear_params(keys[7], DENSE3 + FEATURES_SZ, 1)
    wa, ba = _linear_params(keys[8], DENSE3 + FEATURES_SZ, NUM_AUX)
    wout = jnp.concatenate([wo, wa], axis=1)                       # (D3, 1+AUX)
    bout = jnp.concatenate([bo, ba])                               # (1+AUX,)
    # pack the three head biases into one lane-padded array (one DMA)
    head_bias = (jnp.zeros((3, 128), jnp.float32)
                 .at[0, :DENSE2].set(bh1)
                 .at[1, :DENSE3].set(bh2)
                 .at[2, :1 + NUM_AUX].set(bout))

    return dict(
        lstm1_ew=lstm1_ew, lstm1_whh=lstm1_whh,
        lstm2_wih=lstm2_wih, lstm2_b=lstm2_b, lstm2_whh=lstm2_whh,
        head_w1=w1, head_w2=w2, head_wout=wout, head_bias=head_bias,
    )


# ------------------------- pure-JAX reference (check) ------------------------
def reference_forward(params, x_ids):
    S, B, H, Vp = SEQ_LEN, BATCH, LSTM_UNITS, VOCAB_PAD
    hp = lax.Precision.HIGHEST

    def run_dir(gx, whh):
        # gx: (S, B, 4H) pre-projected inputs (+bias), already in scan order
        def step(carry, gx_t):
            h, c = carry
            gates = gx_t + jnp.dot(h, whh, precision=hp)
            i = jax.nn.sigmoid(gates[:, :H])
            f = jax.nn.sigmoid(gates[:, H:2 * H])
            o = jax.nn.sigmoid(gates[:, 2 * H:3 * H])
            g = jnp.tanh(gates[:, 3 * H:])
            c = f * c + i * g
            h = o * jnp.tanh(c)
            return (h, c), h
        z = jnp.zeros((B, H), jnp.float32)
        _, hs = lax.scan(step, (z, z), gx)
        return hs                                                  # (S, B, H)

    def bilayer(gx, whh):
        hf = run_dir(gx[..., :4 * H], whh[:H])
        hb = jnp.flip(run_dir(jnp.flip(gx[..., 4 * H:], axis=0), whh[H:]), axis=0)
        return jnp.concatenate([hf, hb], axis=-1)                  # (S, B, 2H)

    ids = jnp.transpose(x_ids).astype(jnp.int32)                   # (S, B)
    ew = params["lstm1_ew"]
    gx1 = jnp.concatenate([ew[ids], ew[ids + Vp]], axis=-1)        # (S, B, 8H)
    h1 = bilayer(gx1, params["lstm1_whh"])
    gx2 = jnp.einsum("sbf,fg->sbg", h1, params["lstm2_wih"],
                     precision=hp) + params["lstm2_b"]
    h2 = bilayer(gx2, params["lstm2_whh"])

    max_pool = jnp.max(h2, axis=0)
    avg_pool = jnp.mean(h2, axis=0)
    h_conc = jnp.concatenate([max_pool, avg_pool], axis=1)
    hb = params["head_bias"]
    z1 = jax.nn.relu(jnp.dot(h_conc, params["head_w1"], precision=hp)
                     + hb[0:1, :DENSE2])
    z2 = jax.nn.relu(jnp.dot(z1, params["head_w2"], precision=hp)
                     + hb[1:2, :DENSE3])
    return jnp.dot(z2, params["head_wout"], precision=hp) + hb[2:3, :1 + NUM_AUX]


# ------------------------------ main -----------------------------------------
if __name__ == "__main__":
    key = jax.random.PRNGKey(0)
    k_param, k_x = jax.random.split(key)
    params = init_params(k_param)

    x_ids = jax.random.randint(k_x, (BATCH, SEQ_LEN), 0, MAX_FEATURES,
                               dtype=jnp.int32)
    features = jnp.zeros((BATCH, FEATURES_SZ), jnp.float32)

    out = bilstm_forward(params, x_ids, features)
    jax.block_until_ready(out)
    assert out.shape == (BATCH, 1 + NUM_AUX), out.shape
    assert out.dtype == jnp.float32
    assert bool(jnp.all(jnp.isfinite(out)))

    ref = reference_forward(params, x_ids)
    max_diff = float(jnp.max(jnp.abs(out - ref)))
    assert jnp.allclose(out, ref, atol=3e-2, rtol=3e-2), \
        f"kernel/reference mismatch, max abs diff = {max_diff}"

    print("KERNEL_OK")
</pallas_src>

<mosaic_0001>
module attributes {stable_mosaic.version = 11 : i64} {
  func.func @bilstm_fused_kernel(%arg0: memref<256x1xi32, #tpu.memory_space<vmem>>, %arg1: memref<256x256xf32, #tpu.memory_space<vmem>>, %arg2: memref<128x256xf32, #tpu.memory_space<vmem>>, %arg3: memref<128x512xf32, #tpu.memory_space<vmem>>, %arg4: memref<1x512xf32, #tpu.memory_space<vmem>>, %arg5: memref<128x256xf32, #tpu.memory_space<vmem>>, %arg6: memref<256x128xf32, #tpu.memory_space<vmem>>, %arg7: memref<128x64xf32, #tpu.memory_space<vmem>>, %arg8: memref<64x7xf32, #tpu.memory_space<vmem>>, %arg9: memref<3x128xf32, #tpu.memory_space<vmem>>, %arg10: memref<8x7xf32, #tpu.memory_space<vmem>>, %arg11: memref<256x256xf32, #tpu.memory_space<vmem>>, %arg12: memref<128x128xf32, #tpu.memory_space<vmem>>, %arg13: memref<128x512xf32, #tpu.memory_space<vmem>>, %arg14: memref<256x256xf32, #tpu.memory_space<vmem>>) attributes {dimension_semantics = [], scalar_prefetch = 0 : i64, scratch_operands = 4 : i64, tpu.core_type = #tpu.core_type<tc>} {
    %c0 = arith.constant 0 : index
    %c0_0 = arith.constant 0 : index
    %0 = vector.load %arg0[%c0, %c0_0] : memref<256x1xi32, #tpu.memory_space<vmem>>, vector<256x1xi32>
    %1 = tpu.iota {dimensions = array<i32: 1>} : vector<256x256xi32>
    %2 = vector.broadcast %0 : vector<256x1xi32> to vector<256x256xi32>
    %3 = arith.cmpi eq, %2, %1 : vector<256x256xi32>
    %4 = arith.extui %3 : vector<256x256xi1> to vector<256x256xi32>
    %5 = arith.sitofp %4 : vector<256x256xi32> to vector<256x256xf32>
    %c0_1 = arith.constant 0 : index
    %c0_2 = arith.constant 0 : index
    %6 = vector.load %arg1[%c0_1, %c0_2] : memref<256x256xf32, #tpu.memory_space<vmem>>, vector<256x256xf32>
    %cst = arith.constant dense<0.000000e+00> : vector<256x256xf32>
    %7 = tpu.matmul %5, %6, %cst {dimension_numbers = #tpu.dot_dimension_numbers<[1], [0], [0], [1], [0, 0, 1, 1], [], []>} : vector<256x256xf32>, vector<256x256xf32>, vector<256x256xf32> -> vector<256x256xf32>
    %c0_3 = arith.constant 0 : index
    %c0_4 = arith.constant 0 : index
    %8 = vector.load %arg11[%c0_3, %c0_4] : memref<256x256xf32, #tpu.memory_space<vmem>>, vector<256x256xf32>
    tpu.vector_store %arg11[%c0_3, %c0_4], %7 {strides = array<i32>} : memref<256x256xf32, #tpu.memory_space<vmem>>, vector<256x256xf32>,
    %c0_5 = arith.constant 0 : index
    %c0_6 = arith.constant 0 : index
    %9 = vector.load %arg2[%c0_5, %c0_6] : memref<128x256xf32, #tpu.memory_space<vmem>>, vector<128x256xf32>
    %c0_7 = arith.constant 0 : index
    %c0_8 = arith.constant 0 : index
    %10 = vector.load %arg5[%c0_7, %c0_8] : memref<128x256xf32, #tpu.memory_space<vmem>>, vector<128x256xf32>
    %11 = tpu.iota {dimensions = array<i32: 0>} : vector<16x1xi32>
    %c8_i32 = arith.constant 8 : i32
    %12 = vector.broadcast %c8_i32 : i32 to vector<16x1xi32>
    %13 = arith.cmpi slt, %11, %12 : vector<16x1xi32>
    %14 = arith.extui %13 : vector<16x1xi1> to vector<16x1xi32>
    %15 = arith.sitofp %14 : vector<16x1xi32> to vector<16x1xf32>
    %cst_9 = arith.constant 1.000000e+00 : f32
    %16 = vector.broadcast %cst_9 : f32 to vector<16x1xf32>
    %17 = arith.subf %16, %15 : vector<16x1xf32>
    %cst_10 = arith.constant 0.000000e+00 : f32
    %18 = vector.broadcast %cst_10 : f32 to vector<128x128xf32>
    %c0_11 = arith.constant 0 : index
    %c0_12 = arith.constant 0 : index
    %19 = vector.load %arg12[%c0_11, %c0_12] : memref<128x128xf32, #tpu.memory_space<vmem>>, vector<128x128xf32>
    tpu.vector_store %arg12[%c0_11, %c0_12], %18 {strides = array<i32>} : memref<128x128xf32, #tpu.memory_space<vmem>>, vector<128x128xf32>,
    %cst_13 = arith.constant 0.000000e+00 : f32
    %20 = vector.broadcast %cst_13 : f32 to vector<16x128xf32>
    %cst_14 = arith.constant 0.000000e+00 : f32
    %21 = vector.broadcast %cst_14 : f32 to vector<16x64xf32>
    %c0_15 = arith.constant 0 : index
    %c0_16 = arith.constant 0 : index
    %22 = vector.load %arg11[%c0_15, %c0_16] : memref<256x256xf32, #tpu.memory_space<vmem>>, vector<16x256xf32>
    %cst_17 = arith.constant dense<0.000000e+00> : vector<16x256xf32>
    %23 = tpu.matmul %20, %9, %cst_17 {dimension_numbers = #tpu.dot_dimension_numbers<[1], [0], [0], [1], [0, 0, 1, 1], [], []>} : vector<16x128xf32>, vector<128x256xf32>, vector<16x256xf32> -> vector<16x256xf32>
    %24 = arith.addf %22, %23 : vector<16x256xf32>
    %25 = vector.extract_strided_slice %24 {offsets = [0, 0], sizes = [16, 192], strides = [1, 1]} : vector<16x256xf32> to vector<16x192xf32>
    %cst_18 = arith.constant 5.000000e-01 : f32
    %26 = vector.broadcast %cst_18 : f32 to vector<16x192xf32>
    %27 = arith.mulf %26, %25 : vector<16x192xf32>
    %28 = math.tanh %27 : vector<16x192xf32>
    %cst_19 = arith.constant 5.000000e-01 : f32
    %29 = vector.broadcast %cst_19 : f32 to vector<16x192xf32>
    %30 = arith.mulf %29, %28 : vector<16x192xf32>
    %cst_20 = arith.constant 5.000000e-01 : f32
    %31 = vector.broadcast %cst_20 : f32 to vector<16x192xf32>
    %32 = arith.addf %30, %31 : vector<16x192xf32>
    %33 = vector.extract_strided_slice %24 {offsets = [0, 192], sizes = [16, 64], strides = [1, 1]} : vector<16x256xf32> to vector<16x64xf32>
    %34 = math.tanh %33 : vector<16x64xf32>
    %35 = vector.extract_strided_slice %32 {offsets = [0, 64], sizes = [16, 64], strides = [1, 1]} : vector<16x192xf32> to vector<16x64xf32>
    %36 = arith.mulf %35, %21 : vector<16x64xf32>
    %37 = vector.extract_strided_slice %32 {offsets = [0, 0], sizes = [16, 64], strides = [1, 1]} : vector<16x192xf32> to vector<16x64xf32>
    %38 = arith.mulf %37, %34 : vector<16x64xf32>
    %39 = arith.addf %36, %38 : vector<16x64xf32>
    %40 = vector.extract_strided_slice %32 {offsets = [0, 128], sizes = [16, 64], strides = [1, 1]} : vector<16x192xf32> to vector<16x64xf32>
    %41 = math.tanh %39 : vector<16x64xf32>
    %42 = arith.mulf %40, %41 : vector<16x64xf32>
    %43 = vector.broadcast %15 : vector<16x1xf32> to vector<16x64xf32>
    %44 = arith.mulf %42, %43 : vector<16x64xf32>
    %45 = vector.broadcast %17 : vector<16x1xf32> to vector<16x64xf32>
    %46 = arith.mulf %42, %45 : vector<16x64xf32>
    %47 = tpu.concatenate %44, %46 in 1 : vector<16x64xf32>, vector<16x64xf32> -> vector<16x128xf32>
    %c0_21 = arith.constant 0 : index
    %c0_22 = arith.constant 0 : index
    %48 = vector.load %arg12[%c0_21, %c0_22] : memref<128x128xf32, #tpu.memory_space<vmem>>, vector<8x128xf32>
    %49 = vector.extract_strided_slice %47 {offsets = [0, 0], sizes = [8, 128], strides = [1, 1]} : vector<16x128xf32> to vector<8x128xf32>
    %50 = arith.addf %48, %49 : vector<8x128xf32>
    %c0_23 = arith.constant 0 : index
    %c0_24 = arith.constant 0 : index
    %51 = vector.load %arg12[%c0_23, %c0_24] : memref<128x128xf32, #tpu.memory_space<vmem>>, vector<8x128xf32>
    tpu.vector_store %arg12[%c0_23, %c0_24], %50 {strides = array<i32>} : memref<128x128xf32, #tpu.memory_space<vmem>>, vector<8x128xf32>,
    %c120 = arith.constant 120 : index
    %c0_25 = arith.constant 0 : index
    %52 = vector.load %arg12[%c120, %c0_25] : memref<128x128xf32, #tpu.memory_space<vmem>>, vector<8x128xf32>
    %53 = vector.extract_strided_slice %47 {offsets = [8, 0], sizes = [8, 128], strides = [1, 1]} : vector<16x128xf32> to vector<8x128xf32>
    %54 = arith.addf %52, %53 : vector<8x128xf32>
    %c120_26 = arith.constant 120 : index
    %c0_27 = arith.constant 0 : index
    %55 = vector.load %arg12[%c120_26, %c0_27] : memref<128x128xf32, #tpu.memory_space<vmem>>, vector<8x128xf32>
    tpu.vector_store %arg12[%c120_26, %c0_27], %54 {strides = array<i32>} : memref<128x128xf32, #tpu.memory_space<vmem>>, vector<8x128xf32>,
    %c16 = arith.constant 16 : index
    %c0_28 = arith.constant 0 : index
    %56 = vector.load %arg11[%c16, %c0_28] : memref<256x256xf32, #tpu.memory_space<vmem>>, vector<16x256xf32>
    %cst_29 = arith.constant dense<0.000000e+00> : vector<16x256xf32>
    %57 = tpu.matmul %47, %9, %cst_29 {dimension_numbers = #tpu.dot_dimension_numbers<[1], [0], [0], [1], [0, 0, 1, 1], [], []>} : vector<16x128xf32>, vector<128x256xf32>, vector<16x256xf32> -> vector<16x256xf32>
    %58 = arith.addf %56, %57 : vector<16x256xf32>
    %59 = vector.extract_strided_slice %58 {offsets = [0, 0], sizes = [16, 192], strides = [1, 1]} : vector<16x256xf32> to vector<16x192xf32>
    %cst_30 = arith.constant 5.000000e-01 : f32
    %60 = vector.broadcast %cst_30 : f32 to vector<16x192xf32>
    %61 = arith.mulf %60, %59 : vector<16x192xf32>
    %62 = math.tanh %61 : vector<16x192xf32>
    %cst_31 = arith.constant 5.000000e-01 : f32
    %63 = vector.broadcast %cst_31 : f32 to vector<16x192xf32>
    %64 = arith.mulf %63, %62 : vector<16x192xf32>
    %cst_32 = arith.constant 5.000000e-01 : f32
    %65 = vector.broadcast %cst_32 : f32 to vector<16x192xf32>
    %66 = arith.addf %64, %65 : vector<16x192xf32>
    %67 = vector.extract_strided_slice %58 {offsets = [0, 192], sizes = [16, 64], strides = [1, 1]} : vector<16x256xf32> to vector<16x64xf32>
    %68 = math.tanh %67 : vector<16x64xf32>
    %69 = vector.extract_strided_slice %66 {offsets = [0, 64], sizes = [16, 64], strides = [1, 1]} : vector<16x192xf32> to vector<16x64xf32>
    %70 = arith.mulf %69, %39 : vector<16x64xf32>
    %71 = vector.extract_strided_slice %66 {offsets = [0, 0], sizes = [16, 64], strides = [1, 1]} : vector<16x192xf32> to vector<16x64xf32>
    %72 = arith.mulf %71, %68 : vector<16x64xf32>
    %73 = arith.addf %70, %72 : vector<16x64xf32>
    %74 = vector.extract_strided_slice %66 {offsets = [0, 128], sizes = [16, 64], strides = [1, 1]} : vector<16x192xf32> to vector<16x64xf32>
    %75 = math.tanh %73 : vector<16x64xf32>
    %76 = arith.mulf %74, %75 : vector<16x64xf32>
    %77 = vector.broadcast %15 : vector<16x1xf32> to vector<16x64xf32>
    %78 = arith.mulf %76, %77 : vector<16x64xf32>
    %79 = vector.broadcast %17 : vector<16x1xf32> to vector<16x64xf32>
    %80 = arith.mulf %76, %79 : vector<16x64xf32>
    %81 = tpu.concatenate %78, %80 in 1 : vector<16x64xf32>, vector<16x64xf32> -> vector<16x128xf32>
    %c8 = arith.constant 8 : index
    %c0_33 = arith.constant 0 : index
    %82 = vector.load %arg12[%c8, %c0_33] : memref<128x128xf32, #tpu.memory_space<vmem>>, vector<8x128xf32>
    %83 = vector.extract_strided_slice %81 {offsets = [0, 0], sizes = [8, 128], strides = [1, 1]} : vector<16x128xf32> to vector<8x128xf32>
    %84 = arith.addf %82, %83 : vector<8x128xf32>
    %c8_34 = arith.constant 8 : index
    %c0_35 = arith.constant 0 : index
    %85 = vector.load %arg12[%c8_34, %c0_35] : memref<128x128xf32, #tpu.memory_space<vmem>>, vector<8x128xf32>
    tpu.vector_store %arg12[%c8_34, %c0_35], %84 {strides = array<i32>} : memref<128x128xf32, #tpu.memory_space<vmem>>, vector<8x128xf32>,
    %c112 = arith.constant 112 : index
    %c0_36 = arith.constant 0 : index
    %86 = vector.load %arg12[%c112, %c0_36] : memref<128x128xf32, #tpu.memory_space<vmem>>, vector<8x128xf32>
    %87 = vector.extract_strided_slice %81 {offsets = [8, 0], sizes = [8, 128], strides = [1, 1]} : vector<16x128xf32> to vector<8x128xf32>
    %88 = arith.addf %86, %87 : vector<8x128xf32>
    %c112_37 = arith.constant 112 : index
    %c0_38 = arith.constant 0 : index
    %89 = vector.load %arg12[%c112_37, %c0_38] : memref<128x128xf32, #tpu.memory_space<vmem>>, vector<8x128xf32>
    tpu.vector_store %arg12[%c112_37, %c0_38], %88 {strides = array<i32>} : memref<128x128xf32, #tpu.memory_space<vmem>>, vector<8x128xf32>,
    %c32 = arith.constant 32 : index
    %c0_39 = arith.constant 0 : index
    %90 = vector.load %arg11[%c32, %c0_39] : memref<256x256xf32, #tpu.memory_space<vmem>>, vector<16x256xf32>
    %cst_40 = arith.constant dense<0.000000e+00> : vector<16x256xf32>
    %91 = tpu.matmul %81, %9, %cst_40 {dimension_numbers = #tpu.dot_dimension_numbers<[1], [0], [0], [1], [0, 0, 1, 1], [], []>} : vector<16x128xf32>, vector<128x256xf32>, vector<16x256xf32> -> vector<16x256xf32>
    %92 = arith.addf %90, %91 : vector<16x256xf32>
    %93 = vector.extract_strided_slice %92 {offsets = [0, 0], sizes = [16, 192], strides = [1, 1]} : vector<16x256xf32> to vector<16x192xf32>
    %cst_41 = arith.constant 5.000000e-01 : f32
    %94 = vector.broadcast %cst_41 : f32 to vector<16x192xf32>
    %95 = arith.mulf %94, %93 : vector<16x192xf32>
    %96 = math.tanh %95 : vector<16x192xf32>
    %cst_42 = arith.constant 5.000000e-01 : f32
    %97 = vector.broadcast %cst_42 : f32 to vector<16x192xf32>
    %98 = arith.mulf %97, %96 : vector<16x192xf32>
    %cst_43 = arith.constant 5.000000e-01 : f32
    %99 = vector.broadcast %cst_43 : f32 to vector<16x192xf32>
    %100 = arith.addf %98, %99 : vector<16x192xf32>
    %101 = vector.extract_strided_slice %92 {offsets = [0, 192], sizes = [16, 64], strides = [1, 1]} : vector<16x256xf32> to vector<16x64xf32>
    %102 = math.tanh %101 : vector<16x64xf32>
    %103 = vector.extract_strided_slice %100 {offsets = [0, 64], sizes = [16, 64], strides = [1, 1]} : vector<16x192xf32> to vector<16x64xf32>
    %104 = arith.mulf %103, %73 : vector<16x64xf32>
    %105 = vector.extract_strided_slice %100 {offsets = [0, 0], sizes = [16, 64], strides = [1, 1]} : vector<16x192xf32> to vector<16x64xf32>
    %106 = arith.mulf %105, %102 : vector<16x64xf32>
    %107 = arith.addf %104, %106 : vector<16x64xf32>
    %108 = vector.extract_strided_slice %100 {offsets = [0, 128], sizes = [16, 64], strides = [1, 1]} : vector<16x192xf32> to vector<16x64xf32>
    %109 = math.tanh %107 : vector<16x64xf32>
    %110 = arith.mulf %108, %109 : vector<16x64xf32>
    %111 = vector.broadcast %15 : vector<16x1xf32> to vector<16x64xf32>
    %112 = arith.mulf %110, %111 : vector<16x64xf32>
    %113 = vector.broadcast %17 : vector<16x1xf32> to vector<16x64xf32>
    %114 = arith.mulf %110, %113 : vector<16x64xf32>
    %115 = tpu.concatenate %112, %114 in 1 : vector<16x64xf32>, vector<16x64xf32> -> vector<16x128xf32>
    %c16_44 = arith.constant 16 : index
    %c0_45 = arith.constant 0 : index
    %116 = vector.load %arg12[%c16_44, %c0_45] : memref<128x128xf32, #tpu.memory_space<vmem>>, vector<8x128xf32>
    %117 = vector.extract_strided_slice %115 {offsets = [0, 0], sizes = [8, 128], strides = [1, 1]} : vector<16x128xf32> to vector<8x128xf32>
    %118 = arith.addf %116, %117 : vector<8x128xf32>
    %c16_46 = arith.constant 16 : index
    %c0_47 = arith.constant 0 : index
    %119 = vector.load %arg12[%c16_46, %c0_47] : memref<128x128xf32, #tpu.memory_space<vmem>>, vector<8x128xf32>
    tpu.vector_store %arg12[%c16_46, %c0_47], %118 {strides = array<i32>} : memref<128x128xf32, #tpu.memory_space<vmem>>, vector<8x128xf32>,
    %c104 = arith.constant 104 : index
    %c0_48 = arith.constant 0 : index
    %120 = vector.load %arg12[%c104, %c0_48] : memref<128x128xf32, #tpu.memory_space<vmem>>, vector<8x128xf32>
    %121 = vector.extract_strided_slice %115 {offsets = [8, 0], sizes = [8, 128], strides = [1, 1]} : vector<16x128xf32> to vector<8x128xf32>
    %122 = arith.addf %120, %121 : vector<8x128xf32>
    %c104_49 = arith.constant 104 : index
    %c0_50 = arith.constant 0 : index
    %123 = vector.load %arg12[%c104_49, %c0_50] : memref<128x128xf32, #tpu.memory_space<vmem>>, vector<8x128xf32>
    tpu.vector_store %arg12[%c104_49, %c0_50], %122 {strides = array<i32>} : memref<128x128xf32, #tpu.memory_space<vmem>>, vector<8x128xf32>,
    %c48 = arith.constant 48 : index
    %c0_51 = arith.constant 0 : index
    %124 = vector.load %arg11[%c48, %c0_51] : memref<256x256xf32, #tpu.memory_space<vmem>>, vector<16x256xf32>
    %cst_52 = arith.constant dense<0.000000e+00> : vector<16x256xf32>
    %125 = tpu.matmul %115, %9, %cst_52 {dimension_numbers = #tpu.dot_dimension_numbers<[1], [0], [0], [1], [0, 0, 1, 1], [], []>} : vector<16x128xf32>, vector<128x256xf32>, vector<16x256xf32> -> vector<16x256xf32>
    %126 = arith.addf %124, %125 : vector<16x256xf32>
    %127 = vector.extract_strided_slice %126 {offsets = [0, 0], sizes = [16, 192], strides = [1, 1]} : vector<16x256xf32> to vector<16x192xf32>
    %cst_53 = arith.constant 5.000000e-01 : f32
    %128 = vector.broadcast %cst_53 : f32 to vector<16x192xf32>
    %129 = arith.mulf %128, %127 : vector<16x192xf32>
    %130 = math.tanh %129 : vector<16x192xf32>
    %cst_54 = arith.constant 5.000000e-01 : f32
    %131 = vector.broadcast %cst_54 : f32 to vector<16x192xf32>
    %132 = arith.mulf %131, %130 : vector<16x192xf32>
    %cst_55 = arith.constant 5.000000e-01 : f32
    %133 = vector.broadcast %cst_55 : f32 to vector<16x192xf32>
    %134 = arith.addf %132, %133 : vector<16x192xf32>
    %135 = vector.extract_strided_slice %126 {offsets = [0, 192], sizes = [16, 64], strides = [1, 1]} : vector<16x256xf32> to vector<16x64xf32>
    %136 = math.tanh %135 : vector<16x64xf32>
    %137 = vector.extract_strided_slice %134 {offsets = [0, 64], sizes = [16, 64], strides = [1, 1]} : vector<16x192xf32> to vector<16x64xf32>
    %138 = arith.mulf %137, %107 : vector<16x64xf32>
    %139 = vector.extract_strided_slice %134 {offsets = [0, 0], sizes = [16, 64], strides = [1, 1]} : vector<16x192xf32> to vector<16x64xf32>
    %140 = arith.mulf %139, %136 : vector<16x64xf32>
    %141 = arith.addf %138, %140 : vector<16x64xf32>
    %142 = vector.extract_strided_slice %134 {offsets = [0, 128], sizes = [16, 64], strides = [1, 1]} : vector<16x192xf32> to vector<16x64xf32>
    %143 = math.tanh %141 : vector<16x64xf32>
    %144 = arith.mulf %142, %143 : vector<16x64xf32>
    %145 = vector.broadcast %15 : vector<16x1xf32> to vector<16x64xf32>
    %146 = arith.mulf %144, %145 : vector<16x64xf32>
    %147 = vector.broadcast %17 : vector<16x1xf32> to vector<16x64xf32>
    %148 = arith.mulf %144, %147 : vector<16x64xf32>
    %149 = tpu.concatenate %146, %148 in 1 : vector<16x64xf32>, vector<16x64xf32> -> vector<16x128xf32>
    %c24 = arith.constant 24 : index
    %c0_56 = arith.constant 0 : index
    %150 = vector.load %arg12[%c24, %c0_56] : memref<128x128xf32, #tpu.memory_space<vmem>>, vector<8x128xf32>
    %151 = vector.extract_strided_slice %149 {offsets = [0, 0], sizes = [8, 128], strides = [1, 1]} : vector<16x128xf32> to vector<8x128xf32>
    %152 = arith.addf %150, %151 : vector<8x128xf32>
    %c24_57 = arith.constant 24 : index
    %c0_58 = arith.constant 0 : index
    %153 = vector.load %arg12[%c24_57, %c0_58] : memref<128x128xf32, #tpu.memory_space<vmem>>, vector<8x128xf32>
    tpu.vector_store %arg12[%c24_57, %c0_58], %152 {strides = array<i32>} : memref<128x128xf32, #tpu.memory_space<vmem>>, vector<8x128xf32>,
    %c96 = arith.constant 96 : index
    %c0_59 = arith.constant 0 : index
    %154 = vector.load %arg12[%c96, %c0_59] : memref<128x128xf32, #tpu.memory_space<vmem>>, vector<8x128xf32>
    %155 = vector.extract_strided_slice %149 {offsets = [8, 0], sizes = [8, 128], strides = [1, 1]} : vector<16x128xf32> to vector<8x128xf32>
    %156 = arith.addf %154, %155 : vector<8x128xf32>
    %c96_60 = arith.constant 96 : index
    %c0_61 = arith.constant 0 : index
    %157 = vector.load %arg12[%c96_60, %c0_61] : memref<128x128xf32, #tpu.memory_space<vmem>>, vector<8x128xf32>
    tpu.vector_store %arg12[%c96_60, %c0_61], %156 {strides = array<i32>} : memref<128x128xf32, #tpu.memory_space<vmem>>, vector<8x128xf32>,
    %c64 = arith.constant 64 : index
    %c0_62 = arith.constant 0 : index
    %158 = vector.load %arg11[%c64, %c0_62] : memref<256x256xf32, #tpu.memory_space<vmem>>, vector<16x256xf32>
    %cst_63 = arith.constant dense<0.000000e+00> : vector<16x256xf32>
    %159 = tpu.matmul %149, %9, %cst_63 {dimension_numbers = #tpu.dot_dimension_numbers<[1], [0], [0], [1], [0, 0, 1, 1], [], []>} : vector<16x128xf32>, vector<128x256xf32>, vector<16x256xf32> -> vector<16x256xf32>
    %160 = arith.addf %158, %159 : vector<16x256xf32>
    %161 = vector.extract_strided_slice %160 {offsets = [0, 0], sizes = [16, 192], strides = [1, 1]} : vector<16x256xf32> to vector<16x192xf32>
    %cst_64 = arith.constant 5.000000e-01 : f32
    %162 = vector.broadcast %cst_64 : f32 to vector<16x192xf32>
    %163 = arith.mulf %162, %161 : vector<16x192xf32>
    %164 = math.tanh %163 : vector<16x192xf32>
    %cst_65 = arith.constant 5.000000e-01 : f32
    %165 = vector.broadcast %cst_65 : f32 to vector<16x192xf32>
    %166 = arith.mulf %165, %164 : vector<16x192xf32>
    %cst_66 = arith.constant 5.000000e-01 : f32
    %167 = vector.broadcast %cst_66 : f32 to vector<16x192xf32>
    %168 = arith.addf %166, %167 : vector<16x192xf32>
    %169 = vector.extract_strided_slice %160 {offsets = [0, 192], sizes = [16, 64], strides = [1, 1]} : vector<16x256xf32> to vector<16x64xf32>
    %170 = math.tanh %169 : vector<16x64xf32>
    %171 = vector.extract_strided_slice %168 {offsets = [0, 64], sizes = [16, 64], strides = [1, 1]} : vector<16x192xf32> to vector<16x64xf32>
    %172 = arith.mulf %171, %141 : vector<16x64xf32>
    %173 = vector.extract_strided_slice %168 {offsets = [0, 0], sizes = [16, 64], strides = [1, 1]} : vector<16x192xf32> to vector<16x64xf32>
    %174 = arith.mulf %173, %170 : vector<16x64xf32>
    %175 = arith.addf %172, %174 : vector<16x64xf32>
    %176 = vector.extract_strided_slice %168 {offsets = [0, 128], sizes = [16, 64], strides = [1, 1]} : vector<16x192xf32> to vector<16x64xf32>
    %177 = math.tanh %175 : vector<16x64xf32>
    %178 = arith.mulf %176, %177 : vector<16x64xf32>
    %179 = vector.broadcast %15 : vector<16x1xf32> to vector<16x64xf32>
    %180 = arith.mulf %178, %179 : vector<16x64xf32>
    %181 = vector.broadcast %17 : vector<16x1xf32> to vector<16x64xf32>
    %182 = arith.mulf %178, %181 : vector<16x64xf32>
    %183 = tpu.concatenate %180, %182 in 1 : vector<16x64xf32>, vector<16x64xf32> -> vector<16x128xf32>
    %c32_67 = arith.constant 32 : index
    %c0_68 = arith.constant 0 : index
    %184 = vector.load %arg12[%c32_67, %c0_68] : memref<128x128xf32, #tpu.memory_space<vmem>>, vector<8x128xf32>
    %185 = vector.extract_strided_slice %183 {offsets = [0, 0], sizes = [8, 128], strides = [1, 1]} : vector<16x128xf32> to vector<8x128xf32>
    %186 = arith.addf %184, %185 : vector<8x128xf32>
    %c32_69 = arith.constant 32 : index
    %c0_70 = arith.constant 0 : index
    %187 = vector.load %arg12[%c32_69, %c0_70] : memref<128x128xf32, #tpu.memory_space<vmem>>, vector<8x128xf32>
    tpu.vector_store %arg12[%c32_69, %c0_70], %186 {strides = array<i32>} : memref<128x128xf32, #tpu.memory_space<vmem>>, vector<8x128xf32>,
    %c88 = arith.constant 88 : index
    %c0_71 = arith.constant 0 : index
    %188 = vector.load %arg12[%c88, %c0_71] : memref<128x128xf32, #tpu.memory_space<vmem>>, vector<8x128xf32>
    %189 = vector.extract_strided_slice %183 {offsets = [8, 0], sizes = [8, 128], strides = [1, 1]} : vector<16x128xf32> to vector<8x128xf32>
    %190 = arith.addf %188, %189 : vector<8x128xf32>
    %c88_72 = arith.constant 88 : index
    %c0_73 = arith.constant 0 : index
    %191 = vector.load %arg12[%c88_72, %c0_73] : memref<128x128xf32, #tpu.memory_space<vmem>>, vector<8x128xf32>
    tpu.vector_store %arg12[%c88_72, %c0_73], %190 {strides = array<i32>} : memref<128x128xf32, #tpu.memory_space<vmem>>, vector<8x128xf32>,
    %c80 = arith.constant 80 : index
    %c0_74 = arith.constant 0 : index
    %192 = vector.load %arg11[%c80, %c0_74] : memref<256x256xf32, #tpu.memory_space<vmem>>, vector<16x256xf32>
    %cst_75 = arith.constant dense<0.000000e+00> : vector<16x256xf32>
    %193 = tpu.matmul %183, %9, %cst_75 {dimension_numbers = #tpu.dot_dimension_numbers<[1], [0], [0], [1], [0, 0, 1, 1], [], []>} : vector<16x128xf32>, vector<128x256xf32>, vector<16x256xf32> -> vector<16x256xf32>
    %194 = arith.addf %192, %193 : vector<16x256xf32>
    %195 = vector.extract_strided_slice %194 {offsets = [0, 0], sizes = [16, 192], strides = [1, 1]} : vector<16x256xf32> to vector<16x192xf32>
    %cst_76 = arith.constant 5.000000e-01 : f32
    %196 = vector.broadcast %cst_76 : f32 to vector<16x192xf32>
    %197 = arith.mulf %196, %195 : vector<16x192xf32>
    %198 = math.tanh %197 : vector<16x192xf32>
    %cst_77 = arith.constant 5.000000e-01 : f32
    %199 = vector.broadcast %cst_77 : f32 to vector<16x192xf32>
    %200 = arith.mulf %199, %198 : vector<16x192xf32>
    %cst_78 = arith.constant 5.000000e-01 : f32
    %201 = vector.broadcast %cst_78 : f32 to vector<16x192xf32>
    %202 = arith.addf %200, %201 : vector<16x192xf32>
    %203 = vector.extract_strided_slice %194 {offsets = [0, 192], sizes = [16, 64], strides = [1, 1]} : vector<16x256xf32> to vector<16x64xf32>
    %204 = math.tanh %203 : vector<16x64xf32>
    %205 = vector.extract_strided_slice %202 {offsets = [0, 64], sizes = [16, 64], strides = [1, 1]} : vector<16x192xf32> to vector<16x64xf32>
    %206 = arith.mulf %205, %175 : vector<16x64xf32>
    %207 = vector.extract_strided_slice %202 {offsets = [0, 0], sizes = [16, 64], strides = [1, 1]} : vector<16x192xf32> to vector<16x64xf32>
    %208 = arith.mulf %207, %204 : vector<16x64xf32>
    %209 = arith.addf %206, %208 : vector<16x64xf32>
    %210 = vector.extract_strided_slice %202 {offsets = [0, 128], sizes = [16, 64], strides = [1, 1]} : vector<16x192xf32> to vector<16x64xf32>
    %211 = math.tanh %209 : vector<16x64xf32>
    %212 = arith.mulf %210, %211 : vector<16x64xf32>
    %213 = vector.broadcast %15 : vector<16x1xf32> to vector<16x64xf32>
    %214 = arith.mulf %212, %213 : vector<16x64xf32>
    %215 = vector.broadcast %17 : vector<16x1xf32> to vector<16x64xf32>
    %216 = arith.mulf %212, %215 : vector<16x64xf32>
    %217 = tpu.concatenate %214, %216 in 1 : vector<16x64xf32>, vector<16x64xf32> -> vector<16x128xf32>
    %c40 = arith.constant 40 : index
    %c0_79 = arith.constant 0 : index
    %218 = vector.load %arg12[%c40, %c0_79] : memref<128x128xf32, #tpu.memory_space<vmem>>, vector<8x128xf32>
    %219 = vector.extract_strided_slice %217 {offsets = [0, 0], sizes = [8, 128], strides = [1, 1]} : vector<16x128xf32> to vector<8x128xf32>
    %220 = arith.addf %218, %219 : vector<8x128xf32>
    %c40_80 = arith.constant 40 : index
    %c0_81 = arith.constant 0 : index
    %221 = vector.load %arg12[%c40_80, %c0_81] : memref<128x128xf32, #tpu.memory_space<vmem>>, vector<8x128xf32>
    tpu.vector_store %arg12[%c40_80, %c0_81], %220 {strides = array<i32>} : memref<128x128xf32, #tpu.memory_space<vmem>>, vector<8x128xf32>,
    %c80_82 = arith.constant 80 : index
    %c0_83 = arith.constant 0 : index
    %222 = vector.load %arg12[%c80_82, %c0_83] : memref<128x128xf32, #tpu.memory_space<vmem>>, vector<8x128xf32>
    %223 = vector.extract_strided_slice %217 {offsets = [8, 0], sizes = [8, 128], strides = [1, 1]} : vector<16x128xf32> to vector<8x128xf32>
    %224 = arith.addf %222, %223 : vector<8x128xf32>
    %c80_84 = arith.constant 80 : index
    %c0_85 = arith.constant 0 : index
    %225 = vector.load %arg12[%c80_84, %c0_85] : memref<128x128xf32, #tpu.memory_space<vmem>>, vector<8x128xf32>
    tpu.vector_store %arg12[%c80_84, %c0_85], %224 {strides = array<i32>} : memref<128x128xf32, #tpu.memory_space<vmem>>, vector<8x128xf32>,
    %c96_86 = arith.constant 96 : index
    %c0_87 = arith.constant 0 : index
    %226 = vector.load %arg11[%c96_86, %c0_87] : memref<256x256xf32, #tpu.memory_space<vmem>>, vector<16x256xf32>
    %cst_88 = arith.constant dense<0.000000e+00> : vector<16x256xf32>
    %227 = tpu.matmul %217, %9, %cst_88 {dimension_numbers = #tpu.dot_dimension_numbers<[1], [0], [0], [1], [0, 0, 1, 1], [], []>} : vector<16x128xf32>, vector<128x256xf32>, vector<16x256xf32> -> vector<16x256xf32>
    %228 = arith.addf %226, %227 : vector<16x256xf32>
    %229 = vector.extract_strided_slice %228 {offsets = [0, 0], sizes = [16, 192], strides = [1, 1]} : vector<16x256xf32> to vector<16x192xf32>
    %cst_89 = arith.constant 5.000000e-01 : f32
    %230 = vector.broadcast %cst_89 : f32 to vector<16x192xf32>
    %231 = arith.mulf %230, %229 : vector<16x192xf32>
    %232 = math.tanh %231 : vector<16x192xf32>
    %cst_90 = arith.constant 5.000000e-01 : f32
    %233 = vector.broadcast %cst_90 : f32 to vector<16x192xf32>
    %234 = arith.mulf %233, %232 : vector<16x192xf32>
    %cst_91 = arith.constant 5.000000e-01 : f32
    %235 = vector.broadcast %cst_91 : f32 to vector<16x192xf32>
    %236 = arith.addf %234, %235 : vector<16x192xf32>
    %237 = vector.extract_strided_slice %228 {offsets = [0, 192], sizes = [16, 64], strides = [1, 1]} : vector<16x256xf32> to vector<16x64xf32>
    %238 = math.tanh %237 : vector<16x64xf32>
    %239 = vector.extract_strided_slice %236 {offsets = [0, 64], sizes = [16, 64], strides = [1, 1]} : vector<16x192xf32> to vector<16x64xf32>
    %240 = arith.mulf %239, %209 : vector<16x64xf32>
    %241 = vector.extract_strided_slice %236 {offsets = [0, 0], sizes = [16, 64], strides = [1, 1]} : vector<16x192xf32> to vector<16x64xf32>
    %242 = arith.mulf %241, %238 : vector<16x64xf32>
    %243 = arith.addf %240, %242 : vector<16x64xf32>
    %244 = vector.extract_strided_slice %236 {offsets = [0, 128], sizes = [16, 64], strides = [1, 1]} : vector<16x192xf32> to vector<16x64xf32>
    %245 = math.tanh %243 : vector<16x64xf32>
    %246 = arith.mulf %244, %245 : vector<16x64xf32>
    %247 = vector.broadcast %15 : vector<16x1xf32> to vector<16x64xf32>
    %248 = arith.mulf %246, %247 : vector<16x64xf32>
    %249 = vector.broadcast %17 : vector<16x1xf32> to vector<16x64xf32>
    %250 = arith.mulf %246, %249 : vector<16x64xf32>
    %251 = tpu.concatenate %248, %250 in 1 : vector<16x64xf32>, vector<16x64xf32> -> vector<16x128xf32>
    %c48_92 = arith.constant 48 : index
    %c0_93 = arith.constant 0 : index
    %252 = vector.load %arg12[%c48_92, %c0_93] : memref<128x128xf32, #tpu.memory_space<vmem>>, vector<8x128xf32>
    %253 = vector.extract_strided_slice %251 {offsets = [0, 0], sizes = [8, 128], strides = [1, 1]} : vector<16x128xf32> to vector<8x128xf32>
    %254 = arith.addf %252, %253 : vector<8x128xf32>
    %c48_94 = arith.constant 48 : index
    %c0_95 = arith.constant 0 : index
    %255 = vector.load %arg12[%c48_94, %c0_95] : memref<128x128xf32, #tpu.memory_space<vmem>>, vector<8x128xf32>
    tpu.vector_store %arg12[%c48_94, %c0_95], %254 {strides = array<i32>} : memref<128x128xf32, #tpu.memory_space<vmem>>, vector<8x128xf32>,
    %c72 = arith.constant 72 : index
    %c0_96 = arith.constant 0 : index
    %256 = vector.load %arg12[%c72, %c0_96] : memref<128x128xf32, #tpu.memory_space<vmem>>, vector<8x128xf32>
    %257 = vector.extract_strided_slice %251 {offsets = [8, 0], sizes = [8, 128], strides = [1, 1]} : vector<16x128xf32> to vector<8x128xf32>
    %258 = arith.addf %256, %257 : vector<8x128xf32>
    %c72_97 = arith.constant 72 : index
    %c0_98 = arith.constant 0 : index
    %259 = vector.load %arg12[%c72_97, %c0_98] : memref<128x128xf32, #tpu.memory_space<vmem>>, vector<8x128xf32>
    tpu.vector_store %arg12[%c72_97, %c0_98], %258 {strides = array<i32>} : memref<128x128xf32, #tpu.memory_space<vmem>>, vector<8x128xf32>,
    %c112_99 = arith.constant 112 : index
    %c0_100 = arith.constant 0 : index
    %260 = vector.load %arg11[%c112_99, %c0_100] : memref<256x256xf32, #tpu.memory_space<vmem>>, vector<16x256xf32>
    %cst_101 = arith.constant dense<0.000000e+00> : vector<16x256xf32>
    %261 = tpu.matmul %251, %9, %cst_101 {dimension_numbers = #tpu.dot_dimension_numbers<[1], [0], [0], [1], [0, 0, 1, 1], [], []>} : vector<16x128xf32>, vector<128x256xf32>, vector<16x256xf32> -> vector<16x256xf32>
    %262 = arith.addf %260, %261 : vector<16x256xf32>
    %263 = vector.extract_strided_slice %262 {offsets = [0, 0], sizes = [16, 192], strides = [1, 1]} : vector<16x256xf32> to vector<16x192xf32>
    %cst_102 = arith.constant 5.000000e-01 : f32
    %264 = vector.broadcast %cst_102 : f32 to vector<16x192xf32>
    %265 = arith.mulf %264, %263 : vector<16x192xf32>
    %266 = math.tanh %265 : vector<16x192xf32>
    %cst_103 = arith.constant 5.000000e-01 : f32
    %267 = vector.broadcast %cst_103 : f32 to vector<16x192xf32>
    %268 = arith.mulf %267, %266 : vector<16x192xf32>
    %cst_104 = arith.constant 5.000000e-01 : f32
    %269 = vector.broadcast %cst_104 : f32 to vector<16x192xf32>
    %270 = arith.addf %268, %269 : vector<16x192xf32>
    %271 = vector.extract_strided_slice %262 {offsets = [0, 192], sizes = [16, 64], strides = [1, 1]} : vector<16x256xf32> to vector<16x64xf32>
    %272 = math.tanh %271 : vector<16x64xf32>
    %273 = vector.extract_strided_slice %270 {offsets = [0, 64], sizes = [16, 64], strides = [1, 1]} : vector<16x192xf32> to vector<16x64xf32>
    %274 = arith.mulf %273, %243 : vector<16x64xf32>
    %275 = vector.extract_strided_slice %270 {offsets = [0, 0], sizes = [16, 64], strides = [1, 1]} : vector<16x192xf32> to vector<16x64xf32>
    %276 = arith.mulf %275, %272 : vector<16x64xf32>
    %277 = arith.addf %274, %276 : vector<16x64xf32>
    %278 = vector.extract_strided_slice %270 {offsets = [0, 128], sizes = [16, 64], strides = [1, 1]} : vector<16x192xf32> to vector<16x64xf32>
    %279 = math.tanh %277 : vector<16x64xf32>
    %280 = arith.mulf %278, %279 : vector<16x64xf32>
    %281 = vector.broadcast %15 : vector<16x1xf32> to vector<16x64xf32>
    %282 = arith.mulf %280, %281 : vector<16x64xf32>
    %283 = vector.broadcast %17 : vector<16x1xf32> to vector<16x64xf32>
    %284 = arith.mulf %280, %283 : vector<16x64xf32>
    %285 = tpu.concatenate %282, %284 in 1 : vector<16x64xf32>, vector<16x64xf32> -> vector<16x128xf32>
    %c56 = arith.constant 56 : index
    %c0_105 = arith.constant 0 : index
    %286 = vector.load %arg12[%c56, %c0_105] : memref<128x128xf32, #tpu.memory_space<vmem>>, vector<8x128xf32>
    %287 = vector.extract_strided_slice %285 {offsets = [0, 0], sizes = [8, 128], strides = [1, 1]} : vector<16x128xf32> to vector<8x128xf32>
    %288 = arith.addf %286, %287 : vector<8x128xf32>
    %c56_106 = arith.constant 56 : index
    %c0_107 = arith.constant 0 : index
    %289 = vector.load %arg12[%c56_106, %c0_107] : memref<128x128xf32, #tpu.memory_space<vmem>>, vector<8x128xf32>
    tpu.vector_store %arg12[%c56_106, %c0_107], %288 {strides = array<i32>} : memref<128x128xf32, #tpu.memory_space<vmem>>, vector<8x128xf32>,
    %c64_108 = arith.constant 64 : index
    %c0_109 = arith.constant 0 : index
    %290 = vector.load %arg12[%c64_108, %c0_109] : memref<128x128xf32, #tpu.memory_space<vmem>>, vector<8x128xf32>
    %291 = vector.extract_strided_slice %285 {offsets = [8, 0], sizes = [8, 128], strides = [1, 1]} : vector<16x128xf32> to vector<8x128xf32>
    %292 = arith.addf %290, %291 : vector<8x128xf32>
    %c64_110 = arith.constant 64 : index
    %c0_111 = arith.constant 0 : index
    %293 = vector.load %arg12[%c64_110, %c0_111] : memref<128x128xf32, #tpu.memory_space<vmem>>, vector<8x128xf32>
    tpu.vector_store %arg12[%c64_110, %c0_111], %292 {strides = array<i32>} : memref<128x128xf32, #tpu.memory_space<vmem>>, vector<8x128xf32>,
    %c128 = arith.constant 128 : index
    %c0_112 = arith.constant 0 : index
    %294 = vector.load %arg11[%c128, %c0_112] : memref<256x256xf32, #tpu.memory_space<vmem>>, vector<16x256xf32>
    %cst_113 = arith.constant dense<0.000000e+00> : vector<16x256xf32>
    %295 = tpu.matmul %285, %9, %cst_113 {dimension_numbers = #tpu.dot_dimension_numbers<[1], [0], [0], [1], [0, 0, 1, 1], [], []>} : vector<16x128xf32>, vector<128x256xf32>, vector<16x256xf32> -> vector<16x256xf32>
    %296 = arith.addf %294, %295 : vector<16x256xf32>
    %297 = vector.extract_strided_slice %296 {offsets = [0, 0], sizes = [16, 192], strides = [1, 1]} : vector<16x256xf32> to vector<16x192xf32>
    %cst_114 = arith.constant 5.000000e-01 : f32
    %298 = vector.broadcast %cst_114 : f32 to vector<16x192xf32>
    %299 = arith.mulf %298, %297 : vector<16x192xf32>
    %300 = math.tanh %299 : vector<16x192xf32>
    %cst_115 = arith.constant 5.000000e-01 : f32
    %301 = vector.broadcast %cst_115 : f32 to vector<16x192xf32>
    %302 = arith.mulf %301, %300 : vector<16x192xf32>
    %cst_116 = arith.constant 5.000000e-01 : f32
    %303 = vector.broadcast %cst_116 : f32 to vector<16x192xf32>
    %304 = arith.addf %302, %303 : vector<16x192xf32>
    %305 = vector.extract_strided_slice %296 {offsets = [0, 192], sizes = [16, 64], strides = [1, 1]} : vector<16x256xf32> to vector<16x64xf32>
    %306 = math.tanh %305 : vector<16x64xf32>
    %307 = vector.extract_strided_slice %304 {offsets = [0, 64], sizes = [16, 64], strides = [1, 1]} : vector<16x192xf32> to vector<16x64xf32>
    %308 = arith.mulf %307, %277 : vector<16x64xf32>
    %309 = vector.extract_strided_slice %304 {offsets = [0, 0], sizes = [16, 64], strides = [1, 1]} : vector<16x192xf32> to vector<16x64xf32>
    %310 = arith.mulf %309, %306 : vector<16x64xf32>
    %311 = arith.addf %308, %310 : vector<16x64xf32>
    %312 = vector.extract_strided_slice %304 {offsets = [0, 128], sizes = [16, 64], strides = [1, 1]} : vector<16x192xf32> to vector<16x64xf32>
    %313 = math.tanh %311 : vector<16x64xf32>
    %314 = arith.mulf %312, %313 : vector<16x64xf32>
    %315 = vector.broadcast %15 : vector<16x1xf32> to vector<16x64xf32>
    %316 = arith.mulf %314, %315 : vector<16x64xf32>
    %317 = vector.broadcast %17 : vector<16x1xf32> to vector<16x64xf32>
    %318 = arith.mulf %314, %317 : vector<16x64xf32>
    %319 = tpu.concatenate %316, %318 in 1 : vector<16x64xf32>, vector<16x64xf32> -> vector<16x128xf32>
    %c64_117 = arith.constant 64 : index
    %c0_118 = arith.constant 0 : index
    %320 = vector.load %arg12[%c64_117, %c0_118] : memref<128x128xf32, #tpu.memory_space<vmem>>, vector<8x128xf32>
    %321 = vector.extract_strided_slice %319 {offsets = [0, 0], sizes = [8, 128], strides = [1, 1]} : vector<16x128xf32> to vector<8x128xf32>
    %322 = arith.addf %320, %321 : vector<8x128xf32>
    %c64_119 = arith.constant 64 : index
    %c0_120 = arith.constant 0 : index
    %323 = vector.load %arg12[%c64_119, %c0_120] : memref<128x128xf32, #tpu.memory_space<vmem>>, vector<8x128xf32>
    tpu.vector_store %arg12[%c64_119, %c0_120], %322 {strides = array<i32>} : memref<128x128xf32, #tpu.memory_space<vmem>>, vector<8x128xf32>,
    %c56_121 = arith.constant 56 : index
    %c0_122 = arith.constant 0 : index
    %324 = vector.load %arg12[%c56_121, %c0_122] : memref<128x128xf32, #tpu.memory_space<vmem>>, vector<8x128xf32>
    %325 = vector.extract_strided_slice %319 {offsets = [8, 0], sizes = [8, 128], strides = [1, 1]} : vector<16x128xf32> to vector<8x128xf32>
    %326 = arith.addf %324, %325 : vector<8x128xf32>
    %c56_123 = arith.constant 56 : index
    %c0_124 = arith.constant 0 : index
    %327 = vector.load %arg12[%c56_123, %c0_124] : memref<128x128xf32, #tpu.memory_space<vmem>>, vector<8x128xf32>
    tpu.vector_store %arg12[%c56_123, %c0_124], %326 {strides = array<i32>} : memref<128x128xf32, #tpu.memory_space<vmem>>, vector<8x128xf32>,
    %c144 = arith.constant 144 : index
    %c0_125 = arith.constant 0 : index
    %328 = vector.load %arg11[%c144, %c0_125] : memref<256x256xf32, #tpu.memory_space<vmem>>, vector<16x256xf32>
    %cst_126 = arith.constant dense<0.000000e+00> : vector<16x256xf32>
    %329 = tpu.matmul %319, %9, %cst_126 {dimension_numbers = #tpu.dot_dimension_numbers<[1], [0], [0], [1], [0, 0, 1, 1], [], []>} : vector<16x128xf32>, vector<128x256xf32>, vector<16x256xf32> -> vector<16x256xf32>
    %330 = arith.addf %328, %329 : vector<16x256xf32>
    %331 = vector.extract_strided_slice %330 {offsets = [0, 0], sizes = [16, 192], strides = [1, 1]} : vector<16x256xf32> to vector<16x192xf32>
    %cst_127 = arith.constant 5.000000e-01 : f32
    %332 = vector.broadcast %cst_127 : f32 to vector<16x192xf32>
    %333 = arith.mulf %332, %331 : vector<16x192xf32>
    %334 = math.tanh %333 : vector<16x192xf32>
    %cst_128 = arith.constant 5.000000e-01 : f32
    %335 = vector.broadcast %cst_128 : f32 to vector<16x192xf32>
    %336 = arith.mulf %335, %334 : vector<16x192xf32>
    %cst_129 = arith.constant 5.000000e-01 : f32
    %337 = vector.broadcast %cst_129 : f32 to vector<16x192xf32>
    %338 = arith.addf %336, %337 : vector<16x192xf32>
    %339 = vector.extract_strided_slice %330 {offsets = [0, 192], sizes = [16, 64], strides = [1, 1]} : vector<16x256xf32> to vector<16x64xf32>
    %340 = math.tanh %339 : vector<16x64xf32>
    %341 = vector.extract_strided_slice %338 {offsets = [0, 64], sizes = [16, 64], strides = [1, 1]} : vector<16x192xf32> to vector<16x64xf32>
    %342 = arith.mulf %341, %311 : vector<16x64xf32>
    %343 = vector.extract_strided_slice %338 {offsets = [0, 0], sizes = [16, 64], strides = [1, 1]} : vector<16x192xf32> to vector<16x64xf32>
    %344 = arith.mulf %343, %340 : vector<16x64xf32>
    %345 = arith.addf %342, %344 : vector<16x64xf32>
    %346 = vector.extract_strided_slice %338 {offsets = [0, 128], sizes = [16, 64], strides = [1, 1]} : vector<16x192xf32> to vector<16x64xf32>
    %347 = math.tanh %345 : vector<16x64xf32>
    %348 = arith.mulf %346, %347 : vector<16x64xf32>
    %349 = vector.broadcast %15 : vector<16x1xf32> to vector<16x64xf32>
    %350 = arith.mulf %348, %349 : vector<16x64xf32>
    %351 = vector.broadcast %17 : vector<16x1xf32> to vector<16x64xf32>
    %352 = arith.mulf %348, %351 : vector<16x64xf32>
    %353 = tpu.concatenate %350, %352 in 1 : vector<16x64xf32>, vector<16x64xf32> -> vector<16x128xf32>
    %c72_130 = arith.constant 72 : index
    %c0_131 = arith.constant 0 : index
    %354 = vector.load %arg12[%c72_130, %c0_131] : memref<128x128xf32, #tpu.memory_space<vmem>>, vector<8x128xf32>
    %355 = vector.extract_strided_slice %353 {offsets = [0, 0], sizes = [8, 128], strides = [1, 1]} : vector<16x128xf32> to vector<8x128xf32>
    %356 = arith.addf %354, %355 : vector<8x128xf32>
    %c72_132 = arith.constant 72 : index
    %c0_133 = arith.constant 0 : index
    %357 = vector.load %arg12[%c72_132, %c0_133] : memref<128x128xf32, #tpu.memory_space<vmem>>, vector<8x128xf32>
    tpu.vector_store %arg12[%c72_132, %c0_133], %356 {strides = array<i32>} : memref<128x128xf32, #tpu.memory_space<vmem>>, vector<8x128xf32>,
    %c48_134 = arith.constant 48 : index
    %c0_135 = arith.constant 0 : index
    %358 = vector.load %arg12[%c48_134, %c0_135] : memref<128x128xf32, #tpu.memory_space<vmem>>, vector<8x128xf32>
    %359 = vector.extract_strided_slice %353 {offsets = [8, 0], sizes = [8, 128], strides = [1, 1]} : vector<16x128xf32> to vector<8x128xf32>
    %360 = arith.addf %358, %359 : vector<8x128xf32>
    %c48_136 = arith.constant 48 : index
    %c0_137 = arith.constant 0 : index
    %361 = vector.load %arg12[%c48_136, %c0_137] : memref<128x128xf32, #tpu.memory_space<vmem>>, vector<8x128xf32>
    tpu.vector_store %arg12[%c48_136, %c0_137], %360 {strides = array<i32>} : memref<128x128xf32, #tpu.memory_space<vmem>>, vector<8x128xf32>,
    %c160 = arith.constant 160 : index
    %c0_138 = arith.constant 0 : index
    %362 = vector.load %arg11[%c160, %c0_138] : memref<256x256xf32, #tpu.memory_space<vmem>>, vector<16x256xf32>
    %cst_139 = arith.constant dense<0.000000e+00> : vector<16x256xf32>
    %363 = tpu.matmul %353, %9, %cst_139 {dimension_numbers = #tpu.dot_dimension_numbers<[1], [0], [0], [1], [0, 0, 1, 1], [], []>} : vector<16x128xf32>, vector<128x256xf32>, vector<16x256xf32> -> vector<16x256xf32>
    %364 = arith.addf %362, %363 : vector<16x256xf32>
    %365 = vector.extract_strided_slice %364 {offsets = [0, 0], sizes = [16, 192], strides = [1, 1]} : vector<16x256xf32> to vector<16x192xf32>
    %cst_140 = arith.constant 5.000000e-01 : f32
    %366 = vector.broadcast %cst_140 : f32 to vector<16x192xf32>
    %367 = arith.mulf %366, %365 : vector<16x192xf32>
    %368 = math.tanh %367 : vector<16x192xf32>
    %cst_141 = arith.constant 5.000000e-01 : f32
    %369 = vector.broadcast %cst_141 : f32 to vector<16x192xf32>
    %370 = arith.mulf %369, %368 : vector<16x192xf32>
    %cst_142 = arith.constant 5.000000e-01 : f32
    %371 = vector.broadcast %cst_142 : f32 to vector<16x192xf32>
    %372 = arith.addf %370, %371 : vector<16x192xf32>
    %373 = vector.extract_strided_slice %364 {offsets = [0, 192], sizes = [16, 64], strides = [1, 1]} : vector<16x256xf32> to vector<16x64xf32>
    %374 = math.tanh %373 : vector<16x64xf32>
    %375 = vector.extract_strided_slice %372 {offsets = [0, 64], sizes = [16, 64], strides = [1, 1]} : vector<16x192xf32> to vector<16x64xf32>
    %376 = arith.mulf %375, %345 : vector<16x64xf32>
    %377 = vector.extract_strided_slice %372 {offsets = [0, 0], sizes = [16, 64], strides = [1, 1]} : vector<16x192xf32> to vector<16x64xf32>
    %378 = arith.mulf %377, %374 : vector<16x64xf32>
    %379 = arith.addf %376, %378 : vector<16x64xf32>
    %380 = vector.extract_strided_slice %372 {offsets = [0, 128], sizes = [16, 64], strides = [1, 1]} : vector<16x192xf32> to vector<16x64xf32>
    %381 = math.tanh %379 : vector<16x64xf32>
    %382 = arith.mulf %380, %381 : vector<16x64xf32>
    %383 = vector.broadcast %15 : vector<16x1xf32> to vector<16x64xf32>
    %384 = arith.mulf %382, %383 : vector<16x64xf32>
    %385 = vector.broadcast %17 : vector<16x1xf32> to vector<16x64xf32>
    %386 = arith.mulf %382, %385 : vector<16x64xf32>
    %387 = tpu.concatenate %384, %386 in 1 : vector<16x64xf32>, vector<16x64xf32> -> vector<16x128xf32>
    %c80_143 = arith.constant 80 : index
    %c0_144 = arith.constant 0 : index
    %388 = vector.load %arg12[%c80_143, %c0_144] : memref<128x128xf32, #tpu.memory_space<vmem>>, vector<8x128xf32>
    %389 = vector.extract_strided_slice %387 {offsets = [0, 0], sizes = [8, 128], strides = [1, 1]} : vector<16x128xf32> to vector<8x128xf32>
    %390 = arith.addf %388, %389 : vector<8x128xf32>
    %c80_145 = arith.constant 80 : index
    %c0_146 = arith.constant 0 : index
    %391 = vector.load %arg12[%c80_145, %c0_146] : memref<128x128xf32, #tpu.memory_space<vmem>>, vector<8x128xf32>
    tpu.vector_store %arg12[%c80_145, %c0_146], %390 {strides = array<i32>} : memref<128x128xf32, #tpu.memory_space<vmem>>, vector<8x128xf32>,
    %c40_147 = arith.constant 40 : index
    %c0_148 = arith.constant 0 : index
    %392 = vector.load %arg12[%c40_147, %c0_148] : memref<128x128xf32, #tpu.memory_space<vmem>>, vector<8x128xf32>
    %393 = vector.extract_strided_slice %387 {offsets = [8, 0], sizes = [8, 128], strides = [1, 1]} : vector<16x128xf32> to vector<8x128xf32>
    %394 = arith.addf %392, %393 : vector<8x128xf32>
    %c40_149 = arith.constant 40 : index
    %c0_150 = arith.constant 0 : index
    %395 = vector.load %arg12[%c40_149, %c0_150] : memref<128x128xf32, #tpu.memory_space<vmem>>, vector<8x128xf32>
    tpu.vector_store %arg12[%c40_149, %c0_150], %394 {strides = array<i32>} : memref<128x128xf32, #tpu.memory_space<vmem>>, vector<8x128xf32>,
    %c176 = arith.constant 176 : index
    %c0_151 = arith.constant 0 : index
    %396 = vector.load %arg11[%c176, %c0_151] : memref<256x256xf32, #tpu.memory_space<vmem>>, vector<16x256xf32>
    %cst_152 = arith.constant dense<0.000000e+00> : vector<16x256xf32>
    %397 = tpu.matmul %387, %9, %cst_152 {dimension_numbers = #tpu.dot_dimension_numbers<[1], [0], [0], [1], [0, 0, 1, 1], [], []>} : vector<16x128xf32>, vector<128x256xf32>, vector<16x256xf32> -> vector<16x256xf32>
    %398 = arith.addf %396, %397 : vector<16x256xf32>
    %399 = vector.extract_strided_slice %398 {offsets = [0, 0], sizes = [16, 192], strides = [1, 1]} : vector<16x256xf32> to vector<16x192xf32>
    %cst_153 = arith.constant 5.000000e-01 : f32
    %400 = vector.broadcast %cst_153 : f32 to vector<16x192xf32>
    %401 = arith.mulf %400, %399 : vector<16x192xf32>
    %402 = math.tanh %401 : vector<16x192xf32>
    %cst_154 = arith.constant 5.000000e-01 : f32
    %403 = vector.broadcast %cst_154 : f32 to vector<16x192xf32>
    %404 = arith.mulf %403, %402 : vector<16x192xf32>
    %cst_155 = arith.constant 5.000000e-01 : f32
    %405 = vector.broadcast %cst_155 : f32 to vector<16x192xf32>
    %406 = arith.addf %404, %405 : vector<16x192xf32>
    %407 = vector.extract_strided_slice %398 {offsets = [0, 192], sizes = [16, 64], strides = [1, 1]} : vector<16x256xf32> to vector<16x64xf32>
    %408 = math.tanh %407 : vector<16x64xf32>
    %409 = vector.extract_strided_slice %406 {offsets = [0, 64], sizes = [16, 64], strides = [1, 1]} : vector<16x192xf32> to vector<16x64xf32>
    %410 = arith.mulf %409, %379 : vector<16x64xf32>
    %411 = vector.extract_strided_slice %406 {offsets = [0, 0], sizes = [16, 64], strides = [1, 1]} : vector<16x192xf32> to vector<16x64xf32>
    %412 = arith.mulf %411, %408 : vector<16x64xf32>
    %413 = arith.addf %410, %412 : vector<16x64xf32>
    %414 = vector.extract_strided_slice %406 {offsets = [0, 128], sizes = [16, 64], strides = [1, 1]} : vector<16x192xf32> to vector<16x64xf32>
    %415 = math.tanh %413 : vector<16x64xf32>
    %416 = arith.mulf %414, %415 : vector<16x64xf32>
    %417 = vector.broadcast %15 : vector<16x1xf32> to vector<16x64xf32>
    %418 = arith.mulf %416, %417 : vector<16x64xf32>
    %419 = vector.broadcast %17 : vector<16x1xf32> to vector<16x64xf32>
    %420 = arith.mulf %416, %419 : vector<16x64xf32>
    %421 = tpu.concatenate %418, %420 in 1 : vector<16x64xf32>, vector<16x64xf32> -> vector<16x128xf32>
    %c88_156 = arith.constant 88 : index
    %c0_157 = arith.constant 0 : index
    %422 = vector.load %arg12[%c88_156, %c0_157] : memref<128x128xf32, #tpu.memory_space<vmem>>, vector<8x128xf32>
    %423 = vector.extract_strided_slice %421 {offsets = [0, 0], sizes = [8, 128], strides = [1, 1]} : vector<16x128xf32> to vector<8x128xf32>
    %424 = arith.addf %422, %423 : vector<8x128xf32>
    %c88_158 = arith.constant 88 : index
    %c0_159 = arith.constant 0 : index
    %425 = vector.load %arg12[%c88_158, %c0_159] : memref<128x128xf32, #tpu.memory_space<vmem>>, vector<8x128xf32>
    tpu.vector_store %arg12[%c88_158, %c0_159], %424 {strides = array<i32>} : memref<128x128xf32, #tpu.memory_space<vmem>>, vector<8x128xf32>,
    %c32_160 = arith.constant 32 : index
    %c0_161 = arith.constant 0 : index
    %426 = vector.load %arg12[%c32_160, %c0_161] : memref<128x128xf32, #tpu.memory_space<vmem>>, vector<8x128xf32>
    %427 = vector.extract_strided_slice %421 {offsets = [8, 0], sizes = [8, 128], strides = [1, 1]} : vector<16x128xf32> to vector<8x128xf32>
    %428 = arith.addf %426, %427 : vector<8x128xf32>
    %c32_162 = arith.constant 32 : index
    %c0_163 = arith.constant 0 : index
    %429 = vector.load %arg12[%c32_162, %c0_163] : memref<128x128xf32, #tpu.memory_space<vmem>>, vector<8x128xf32>
    tpu.vector_store %arg12[%c32_162, %c0_163], %428 {strides = array<i32>} : memref<128x128xf32, #tpu.memory_space<vmem>>, vector<8x128xf32>,
    %c192 = arith.constant 192 : index
    %c0_164 = arith.constant 0 : index
    %430 = vector.load %arg11[%c192, %c0_164] : memref<256x256xf32, #tpu.memory_space<vmem>>, vector<16x256xf32>
    %cst_165 = arith.constant dense<0.000000e+00> : vector<16x256xf32>
    %431 = tpu.matmul %421, %9, %cst_165 {dimension_numbers = #tpu.dot_dimension_numbers<[1], [0], [0], [1], [0, 0, 1, 1], [], []>} : vector<16x128xf32>, vector<128x256xf32>, vector<16x256xf32> -> vector<16x256xf32>
    %432 = arith.addf %430, %431 : vector<16x256xf32>
    %433 = vector.extract_strided_slice %432 {offsets = [0, 0], sizes = [16, 192], strides = [1, 1]} : vector<16x256xf32> to vector<16x192xf32>
    %cst_166 = arith.constant 5.000000e-01 : f32
    %434 = vector.broadcast %cst_166 : f32 to vector<16x192xf32>
    %435 = arith.mulf %434, %433 : vector<16x192xf32>
    %436 = math.tanh %435 : vector<16x192xf32>
    %cst_167 = arith.constant 5.000000e-01 : f32
    %437 = vector.broadcast %cst_167 : f32 to vector<16x192xf32>
    %438 = arith.mulf %437, %436 : vector<16x192xf32>
    %cst_168 = arith.constant 5.000000e-01 : f32
    %439 = vector.broadcast %cst_168 : f32 to vector<16x192xf32>
    %440 = arith.addf %438, %439 : vector<16x192xf32>
    %441 = vector.extract_strided_slice %432 {offsets = [0, 192], sizes = [16, 64], strides = [1, 1]} : vector<16x256xf32> to vector<16x64xf32>
    %442 = math.tanh %441 : vector<16x64xf32>
    %443 = vector.extract_strided_slice %440 {offsets = [0, 64], sizes = [16, 64], strides = [1, 1]} : vector<16x192xf32> to vector<16x64xf32>
    %444 = arith.mulf %443, %413 : vector<16x64xf32>
    %445 = vector.extract_strided_slice %440 {offsets = [0, 0], sizes = [16, 64], strides = [1, 1]} : vector<16x192xf32> to vector<16x64xf32>
    %446 = arith.mulf %445, %442 : vector<16x64xf32>
    %447 = arith.addf %444, %446 : vector<16x64xf32>
    %448 = vector.extract_strided_slice %440 {offsets = [0, 128], sizes = [16, 64], strides = [1, 1]} : vector<16x192xf32> to vector<16x64xf32>
    %449 = math.tanh %447 : vector<16x64xf32>
    %450 = arith.mulf %448, %449 : vector<16x64xf32>
    %451 = vector.broadcast %15 : vector<16x1xf32> to vector<16x64xf32>
    %452 = arith.mulf %450, %451 : vector<16x64xf32>
    %453 = vector.broadcast %17 : vector<16x1xf32> to vector<16x64xf32>
    %454 = arith.mulf %450, %453 : vector<16x64xf32>
    %455 = tpu.concatenate %452, %454 in 1 : vector<16x64xf32>, vector<16x64xf32> -> vector<16x128xf32>
    %c96_169 = arith.constant 96 : index
    %c0_170 = arith.constant 0 : index
    %456 = vector.load %arg12[%c96_169, %c0_170] : memref<128x128xf32, #tpu.memory_space<vmem>>, vector<8x128xf32>
    %457 = vector.extract_strided_slice %455 {offsets = [0, 0], sizes = [8, 128], strides = [1, 1]} : vector<16x128xf32> to vector<8x128xf32>
    %458 = arith.addf %456, %457 : vector<8x128xf32>
    %c96_171 = arith.constant 96 : index
    %c0_172 = arith.constant 0 : index
    %459 = vector.load %arg12[%c96_171, %c0_172] : memref<128x128xf32, #tpu.memory_space<vmem>>, vector<8x128xf32>
    tpu.vector_store %arg12[%c96_171, %c0_172], %458 {strides = array<i32>} : memref<128x128xf32, #tpu.memory_space<vmem>>, vector<8x128xf32>,
    %c24_173 = arith.constant 24 : index
    %c0_174 = arith.constant 0 : index
    %460 = vector.load %arg12[%c24_173, %c0_174] : memref<128x128xf32, #tpu.memory_space<vmem>>, vector<8x128xf32>
    %461 = vector.extract_strided_slice %455 {offsets = [8, 0], sizes = [8, 128], strides = [1, 1]} : vector<16x128xf32> to vector<8x128xf32>
    %462 = arith.addf %460, %461 : vector<8x128xf32>
    %c24_175 = arith.constant 24 : index
    %c0_176 = arith.constant 0 : index
    %463 = vector.load %arg12[%c24_175, %c0_176] : memref<128x128xf32, #tpu.memory_space<vmem>>, vector<8x128xf32>
    tpu.vector_store %arg12[%c24_175, %c0_176], %462 {strides = array<i32>} : memref<128x128xf32, #tpu.memory_space<vmem>>, vector<8x128xf32>,
    %c208 = arith.constant 208 : index
    %c0_177 = arith.constant 0 : index
    %464 = vector.load %arg11[%c208, %c0_177] : memref<256x256xf32, #tpu.memory_space<vmem>>, vector<16x256xf32>
    %cst_178 = arith.constant dense<0.000000e+00> : vector<16x256xf32>
    %465 = tpu.matmul %455, %9, %cst_178 {dimension_numbers = #tpu.dot_dimension_numbers<[1], [0], [0], [1], [0, 0, 1, 1], [], []>} : vector<16x128xf32>, vector<128x256xf32>, vector<16x256xf32> -> vector<16x256xf32>
    %466 = arith.addf %464, %465 : vector<16x256xf32>
    %467 = vector.extract_strided_slice %466 {offsets = [0, 0], sizes = [16, 192], strides = [1, 1]} : vector<16x256xf32> to vector<16x192xf32>
    %cst_179 = arith.constant 5.000000e-01 : f32
    %468 = vector.broadcast %cst_179 : f32 to vector<16x192xf32>
    %469 = arith.mulf %468, %467 : vector<16x192xf32>
    %470 = math.tanh %469 : vector<16x192xf32>
    %cst_180 = arith.constant 5.000000e-01 : f32
    %471 = vector.broadcast %cst_180 : f32 to vector<16x192xf32>
    %472 = arith.mulf %471, %470 : vector<16x192xf32>
    %cst_181 = arith.constant 5.000000e-01 : f32
    %473 = vector.broadcast %cst_181 : f32 to vector<16x192xf32>
    %474 = arith.addf %472, %473 : vector<16x192xf32>
    %475 = vector.extract_strided_slice %466 {offsets = [0, 192], sizes = [16, 64], strides = [1, 1]} : vector<16x256xf32> to vector<16x64xf32>
    %476 = math.tanh %475 : vector<16x64xf32>
    %477 = vector.extract_strided_slice %474 {offsets = [0, 64], sizes = [16, 64], strides = [1, 1]} : vector<16x192xf32> to vector<16x64xf32>
    %478 = arith.mulf %477, %447 : vector<16x64xf32>
    %479 = vector.extract_strided_slice %474 {offsets = [0, 0], sizes = [16, 64], strides = [1, 1]} : vector<16x192xf32> to vector<16x64xf32>
    %480 = arith.mulf %479, %476 : vector<16x64xf32>
    %481 = arith.addf %478, %480 : vector<16x64xf32>
    %482 = vector.extract_strided_slice %474 {offsets = [0, 128], sizes = [16, 64], strides = [1, 1]} : vector<16x192xf32> to vector<16x64xf32>
    %483 = math.tanh %481 : vector<16x64xf32>
    %484 = arith.mulf %482, %483 : vector<16x64xf32>
    %485 = vector.broadcast %15 : vector<16x1xf32> to vector<16x64xf32>
    %486 = arith.mulf %484, %485 : vector<16x64xf32>
    %487 = vector.broadcast %17 : vector<16x1xf32> to vector<16x64xf32>
    %488 = arith.mulf %484, %487 : vector<16x64xf32>
    %489 = tpu.concatenate %486, %488 in 1 : vector<16x64xf32>, vector<16x64xf32> -> vector<16x128xf32>
    %c104_182 = arith.constant 104 : index
    %c0_183 = arith.constant 0 : index
    %490 = vector.load %arg12[%c104_182, %c0_183] : memref<128x128xf32, #tpu.memory_space<vmem>>, vector<8x128xf32>
    %491 = vector.extract_strided_slice %489 {offsets = [0, 0], sizes = [8, 128], strides = [1, 1]} : vector<16x128xf32> to vector<8x128xf32>
    %492 = arith.addf %490, %491 : vector<8x128xf32>
    %c104_184 = arith.constant 104 : index
    %c0_185 = arith.constant 0 : index
    %493 = vector.load %arg12[%c104_184, %c0_185] : memref<128x128xf32, #tpu.memory_space<vmem>>, vector<8x128xf32>
    tpu.vector_store %arg12[%c104_184, %c0_185], %492 {strides = array<i32>} : memref<128x128xf32, #tpu.memory_space<vmem>>, vector<8x128xf32>,
    %c16_186 = arith.constant 16 : index
    %c0_187 = arith.constant 0 : index
    %494 = vector.load %arg12[%c16_186, %c0_187] : memref<128x128xf32, #tpu.memory_space<vmem>>, vector<8x128xf32>
    %495 = vector.extract_strided_slice %489 {offsets = [8, 0], sizes = [8, 128], strides = [1, 1]} : vector<16x128xf32> to vector<8x128xf32>
    %496 = arith.addf %494, %495 : vector<8x128xf32>
    %c16_188 = arith.constant 16 : index
    %c0_189 = arith.constant 0 : index
    %497 = vector.load %arg12[%c16_188, %c0_189] : memref<128x128xf32, #tpu.memory_space<vmem>>, vector<8x128xf32>
    tpu.vector_store %arg12[%c16_188, %c0_189], %496 {strides = array<i32>} : memref<128x128xf32, #tpu.memory_space<vmem>>, vector<8x128xf32>,
    %c224 = arith.constant 224 : index
    %c0_190 = arith.constant 0 : index
    %498 = vector.load %arg11[%c224, %c0_190] : memref<256x256xf32, #tpu.memory_space<vmem>>, vector<16x256xf32>
    %cst_191 = arith.constant dense<0.000000e+00> : vector<16x256xf32>
    %499 = tpu.matmul %489, %9, %cst_191 {dimension_numbers = #tpu.dot_dimension_numbers<[1], [0], [0], [1], [0, 0, 1, 1], [], []>} : vector<16x128xf32>, vector<128x256xf32>, vector<16x256xf32> -> vector<16x256xf32>
    %500 = arith.addf %498, %499 : vector<16x256xf32>
    %501 = vector.extract_strided_slice %500 {offsets = [0, 0], sizes = [16, 192], strides = [1, 1]} : vector<16x256xf32> to vector<16x192xf32>
    %cst_192 = arith.constant 5.000000e-01 : f32
    %502 = vector.broadcast %cst_192 : f32 to vector<16x192xf32>
    %503 = arith.mulf %502, %501 : vector<16x192xf32>
    %504 = math.tanh %503 : vector<16x192xf32>
    %cst_193 = arith.constant 5.000000e-01 : f32
    %505 = vector.broadcast %cst_193 : f32 to vector<16x192xf32>
    %506 = arith.mulf %505, %504 : vector<16x192xf32>
    %cst_194 = arith.constant 5.000000e-01 : f32
    %507 = vector.broadcast %cst_194 : f32 to vector<16x192xf32>
    %508 = arith.addf %506, %507 : vector<16x192xf32>
    %509 = vector.extract_strided_slice %500 {offsets = [0, 192], sizes = [16, 64], strides = [1, 1]} : vector<16x256xf32> to vector<16x64xf32>
    %510 = math.tanh %509 : vector<16x64xf32>
    %511 = vector.extract_strided_slice %508 {offsets = [0, 64], sizes = [16, 64], strides = [1, 1]} : vector<16x192xf32> to vector<16x64xf32>
    %512 = arith.mulf %511, %481 : vector<16x64xf32>
    %513 = vector.extract_strided_slice %508 {offsets = [0, 0], sizes = [16, 64], strides = [1, 1]} : vector<16x192xf32> to vector<16x64xf32>
    %514 = arith.mulf %513, %510 : vector<16x64xf32>
    %515 = arith.addf %512, %514 : vector<16x64xf32>
    %516 = vector.extract_strided_slice %508 {offsets = [0, 128], sizes = [16, 64], strides = [1, 1]} : vector<16x192xf32> to vector<16x64xf32>
    %517 = math.tanh %515 : vector<16x64xf32>
    %518 = arith.mulf %516, %517 : vector<16x64xf32>
    %519 = vector.broadcast %15 : vector<16x1xf32> to vector<16x64xf32>
    %520 = arith.mulf %518, %519 : vector<16x64xf32>
    %521 = vector.broadcast %17 : vector<16x1xf32> to vector<16x64xf32>
    %522 = arith.mulf %518, %521 : vector<16x64xf32>
    %523 = tpu.concatenate %520, %522 in 1 : vector<16x64xf32>, vector<16x64xf32> -> vector<16x128xf32>
    %c112_195 = arith.constant 112 : index
    %c0_196 = arith.constant 0 : index
    %524 = vector.load %arg12[%c112_195, %c0_196] : memref<128x128xf32, #tpu.memory_space<vmem>>, vector<8x128xf32>
    %525 = vector.extract_strided_slice %523 {offsets = [0, 0], sizes = [8, 128], strides = [1, 1]} : vector<16x128xf32> to vector<8x128xf32>
    %526 = arith.addf %524, %525 : vector<8x128xf32>
    %c112_197 = arith.constant 112 : index
    %c0_198 = arith.constant 0 : index
    %527 = vector.load %arg12[%c112_197, %c0_198] : memref<128x128xf32, #tpu.memory_space<vmem>>, vector<8x128xf32>
    tpu.vector_store %arg12[%c112_197, %c0_198], %526 {strides = array<i32>} : memref<128x128xf32, #tpu.memory_space<vmem>>, vector<8x128xf32>,
    %c8_199 = arith.constant 8 : index
    %c0_200 = arith.constant 0 : index
    %528 = vector.load %arg12[%c8_199, %c0_200] : memref<128x128xf32, #tpu.memory_space<vmem>>, vector<8x128xf32>
    %529 = vector.extract_strided_slice %523 {offsets = [8, 0], sizes = [8, 128], strides = [1, 1]} : vector<16x128xf32> to vector<8x128xf32>
    %530 = arith.addf %528, %529 : vector<8x128xf32>
    %c8_201 = arith.constant 8 : index
    %c0_202 = arith.constant 0 : index
    %531 = vector.load %arg12[%c8_201, %c0_202] : memref<128x128xf32, #tpu.memory_space<vmem>>, vector<8x128xf32>
    tpu.vector_store %arg12[%c8_201, %c0_202], %530 {strides = array<i32>} : memref<128x128xf32, #tpu.memory_space<vmem>>, vector<8x128xf32>,
    %c240 = arith.constant 240 : index
    %c0_203 = arith.constant 0 : index
    %532 = vector.load %arg11[%c240, %c0_203] : memref<256x256xf32, #tpu.memory_space<vmem>>, vector<16x256xf32>
    %cst_204 = arith.constant dense<0.000000e+00> : vector<16x256xf32>
    %533 = tpu.matmul %523, %9, %cst_204 {dimension_numbers = #tpu.dot_dimension_numbers<[1], [0], [0], [1], [0, 0, 1, 1], [], []>} : vector<16x128xf32>, vector<128x256xf32>, vector<16x256xf32> -> vector<16x256xf32>
    %534 = arith.addf %532, %533 : vector<16x256xf32>
    %535 = vector.extract_strided_slice %534 {offsets = [0, 0], sizes = [16, 192], strides = [1, 1]} : vector<16x256xf32> to vector<16x192xf32>
    %cst_205 = arith.constant 5.000000e-01 : f32
    %536 = vector.broadcast %cst_205 : f32 to vector<16x192xf32>
    %537 = arith.mulf %536, %535 : vector<16x192xf32>
    %538 = math.tanh %537 : vector<16x192xf32>
    %cst_206 = arith.constant 5.000000e-01 : f32
    %539 = vector.broadcast %cst_206 : f32 to vector<16x192xf32>
    %540 = arith.mulf %539, %538 : vector<16x192xf32>
    %cst_207 = arith.constant 5.000000e-01 : f32
    %541 = vector.broadcast %cst_207 : f32 to vector<16x192xf32>
    %542 = arith.addf %540, %541 : vector<16x192xf32>
    %543 = vector.extract_strided_slice %534 {offsets = [0, 192], sizes = [16, 64], strides = [1, 1]} : vector<16x256xf32> to vector<16x64xf32>
    %544 = math.tanh %543 : vector<16x64xf32>
    %545 = vector.extract_strided_slice %542 {offsets = [0, 64], sizes = [16, 64], strides = [1, 1]} : vector<16x192xf32> to vector<16x64xf32>
    %546 = arith.mulf %545, %515 : vector<16x64xf32>
    %547 = vector.extract_strided_slice %542 {offsets = [0, 0], sizes = [16, 64], strides = [1, 1]} : vector<16x192xf32> to vector<16x64xf32>
    %548 = arith.mulf %547, %544 : vector<16x64xf32>
    %549 = arith.addf %546, %548 : vector<16x64xf32>
    %550 = vector.extract_strided_slice %542 {offsets = [0, 128], sizes = [16, 64], strides = [1, 1]} : vector<16x192xf32> to vector<16x64xf32>
    %551 = math.tanh %549 : vector<16x64xf32>
    %552 = arith.mulf %550, %551 : vector<16x64xf32>
    %553 = vector.broadcast %15 : vector<16x1xf32> to vector<16x64xf32>
    %554 = arith.mulf %552, %553 : vector<16x64xf32>
    %555 = vector.broadcast %17 : vector<16x1xf32> to vector<16x64xf32>
    %556 = arith.mulf %552, %555 : vector<16x64xf32>
    %557 = tpu.concatenate %554, %556 in 1 : vector<16x64xf32>, vector<16x64xf32> -> vector<16x128xf32>
    %c120_208 = arith.constant 120 : index
    %c0_209 = arith.constant 0 : index
    %558 = vector.load %arg12[%c120_208, %c0_209] : memref<128x128xf32, #tpu.memory_space<vmem>>, vector<8x128xf32>
    %559 = vector.extract_strided_slice %557 {offsets = [0, 0], sizes = [8, 128], strides = [1, 1]} : vector<16x128xf32> to vector<8x128xf32>
    %560 = arith.addf %558, %559 : vector<8x128xf32>
    %c120_210 = arith.constant 120 : index
    %c0_211 = arith.constant 0 : index
    %561 = vector.load %arg12[%c120_210, %c0_211] : memref<128x128xf32, #tpu.memory_space<vmem>>, vector<8x128xf32>
    tpu.vector_store %arg12[%c120_210, %c0_211], %560 {strides = array<i32>} : memref<128x128xf32, #tpu.memory_space<vmem>>, vector<8x128xf32>,
    %c0_212 = arith.constant 0 : index
    %c0_213 = arith.constant 0 : index
    %562 = vector.load %arg12[%c0_212, %c0_213] : memref<128x128xf32, #tpu.memory_space<vmem>>, vector<8x128xf32>
    %563 = vector.extract_strided_slice %557 {offsets = [8, 0], sizes = [8, 128], strides = [1, 1]} : vector<16x128xf32> to vector<8x128xf32>
    %564 = arith.addf %562, %563 : vector<8x128xf32>
    %c0_214 = arith.constant 0 : index
    %c0_215 = arith.constant 0 : index
    %565 = vector.load %arg12[%c0_214, %c0_215] : memref<128x128xf32, #tpu.memory_space<vmem>>, vector<8x128xf32>
    tpu.vector_store %arg12[%c0_214, %c0_215], %564 {strides = array<i32>} : memref<128x128xf32, #tpu.memory_space<vmem>>, vector<8x128xf32>,
    %c0_216 = arith.constant 0 : index
    %c0_217 = arith.constant 0 : index
    %566 = vector.load %arg12[%c0_216, %c0_217] : memref<128x128xf32, #tpu.memory_space<vmem>>, vector<128x128xf32>
    %c0_218 = arith.constant 0 : index
    %c0_219 = arith.constant 0 : index
    %567 = vector.load %arg3[%c0_218, %c0_219] : memref<128x512xf32, #tpu.memory_space<vmem>>, vector<128x512xf32>
    %cst_220 = arith.constant dense<0.000000e+00> : vector<128x512xf32>
    %568 = tpu.matmul %566, %567, %cst_220 {dimension_numbers = #tpu.dot_dimension_numbers<[1], [0], [0], [1], [0, 0, 1, 1], [], []>} : vector<128x128xf32>, vector<128x512xf32>, vector<128x512xf32> -> vector<128x512xf32>
    %c0_221 = arith.constant 0 : index
    %c0_222 = arith.constant 0 : index
    %569 = vector.load %arg4[%c0_221, %c0_222] : memref<1x512xf32, #tpu.memory_space<vmem>>, vector<1x512xf32>
    %570 = vector.broadcast %569 : vector<1x512xf32> to vector<128x512xf32>
    %571 = arith.addf %568, %570 : vector<128x512xf32>
    %c0_223 = arith.constant 0 : index
    %c0_224 = arith.constant 0 : index
    %572 = vector.load %arg13[%c0_223, %c0_224] : memref<128x512xf32, #tpu.memory_space<vmem>>, vector<128x512xf32>
    tpu.vector_store %arg13[%c0_223, %c0_224], %571 {strides = array<i32>} : memref<128x512xf32, #tpu.memory_space<vmem>>, vector<128x512xf32>,
    %c0_225 = arith.constant 0 : index
    %c0_226 = arith.constant 0 : index
    %573 = vector.load %arg13[%c0_225, %c0_226] : memref<128x512xf32, #tpu.memory_space<vmem>>, vector<8x256xf32>
    %c0_227 = arith.constant 0 : index
    %c0_228 = arith.constant 0 : index
    %574 = vector.load %arg14[%c0_227, %c0_228] : memref<256x256xf32, #tpu.memory_space<vmem>>, vector<8x256xf32>
    tpu.vector_store %arg14[%c0_227, %c0_228], %573 {strides = array<i32>} : memref<256x256xf32, #tpu.memory_space<vmem>>, vector<8x256xf32>,
    %c120_229 = arith.constant 120 : index
    %c256 = arith.constant 256 : index
    %575 = vector.load %arg13[%c120_229, %c256] : memref<128x512xf32, #tpu.memory_space<vmem>>, vector<8x256xf32>
    %c8_230 = arith.constant 8 : index
    %c0_231 = arith.constant 0 : index
    %576 = vector.load %arg14[%c8_230, %c0_231] : memref<256x256xf32, #tpu.memory_space<vmem>>, vector<8x256xf32>
    tpu.vector_store %arg14[%c8_230, %c0_231], %575 {strides = array<i32>} : memref<256x256xf32, #tpu.memory_space<vmem>>, vector<8x256xf32>,
    %c8_232 = arith.constant 8 : index
    %c0_233 = arith.constant 0 : index
    %577 = vector.load %arg13[%c8_232, %c0_233] : memref<128x512xf32, #tpu.memory_space<vmem>>, vector<8x256xf32>
    %c16_234 = arith.constant 16 : index
    %c0_235 = arith.constant 0 : index
    %578 = vector.load %arg14[%c16_234, %c0_235] : memref<256x256xf32, #tpu.memory_space<vmem>>, vector<8x256xf32>
    tpu.vector_store %arg14[%c16_234, %c0_235], %577 {strides = array<i32>} : memref<256x256xf32, #tpu.memory_space<vmem>>, vector<8x256xf32>,
    %c112_236 = arith.constant 112 : index
    %c256_237 = arith.constant 256 : index
    %579 = vector.load %arg13[%c112_236, %c256_237] : memref<128x512xf32, #tpu.memory_space<vmem>>, vector<8x256xf32>
    %c24_238 = arith.constant 24 : index
    %c0_239 = arith.constant 0 : index
    %580 = vector.load %arg14[%c24_238, %c0_239] : memref<256x256xf32, #tpu.memory_space<vmem>>, vector<8x256xf32>
    tpu.vector_store %arg14[%c24_238, %c0_239], %579 {strides = array<i32>} : memref<256x256xf32, #tpu.memory_space<vmem>>, vector<8x256xf32>,
    %c16_240 = arith.constant 16 : index
    %c0_241 = arith.constant 0 : index
    %581 = vector.load %arg13[%c16_240, %c0_241] : memref<128x512xf32, #tpu.memory_space<vmem>>, vector<8x256xf32>
    %c32_242 = arith.constant 32 : index
    %c0_243 = arith.constant 0 : index
    %582 = vector.load %arg14[%c32_242, %c0_243] : memref<256x256xf32, #tpu.memory_space<vmem>>, vector<8x256xf32>
    tpu.vector_store %arg14[%c32_242, %c0_243], %581 {strides = array<i32>} : memref<256x256xf32, #tpu.memory_space<vmem>>, vector<8x256xf32>,
    %c104_244 = arith.constant 104 : index
    %c256_245 = arith.constant 256 : index
    %583 = vector.load %arg13[%c104_244, %c256_245] : memref<128x512xf32, #tpu.memory_space<vmem>>, vector<8x256xf32>
    %c40_246 = arith.constant 40 : index
    %c0_247 = arith.constant 0 : index
    %584 = vector.load %arg14[%c40_246, %c0_247] : memref<256x256xf32, #tpu.memory_space<vmem>>, vector<8x256xf32>
    tpu.vector_store %arg14[%c40_246, %c0_247], %583 {strides = array<i32>} : memref<256x256xf32, #tpu.memory_space<vmem>>, vector<8x256xf32>,
    %c24_248 = arith.constant 24 : index
    %c0_249 = arith.constant 0 : index
    %585 = vector.load %arg13[%c24_248, %c0_249] : memref<128x512xf32, #tpu.memory_space<vmem>>, vector<8x256xf32>
    %c48_250 = arith.constant 48 : index
    %c0_251 = arith.constant 0 : index
    %586 = vector.load %arg14[%c48_250, %c0_251] : memref<256x256xf32, #tpu.memory_space<vmem>>, vector<8x256xf32>
    tpu.vector_store %arg14[%c48_250, %c0_251], %585 {strides = array<i32>} : memref<256x256xf32, #tpu.memory_space<vmem>>, vector<8x256xf32>,
    %c96_252 = arith.constant 96 : index
    %c256_253 = arith.constant 256 : index
    %587 = vector.load %arg13[%c96_252, %c256_253] : memref<128x512xf32, #tpu.memory_space<vmem>>, vector<8x256xf32>
    %c56_254 = arith.constant 56 : index
    %c0_255 = arith.constant 0 : index
    %588 = vector.load %arg14[%c56_254, %c0_255] : memref<256x256xf32, #tpu.memory_space<vmem>>, vector<8x256xf32>
    tpu.vector_store %arg14[%c56_254, %c0_255], %587 {strides = array<i32>} : memref<256x256xf32, #tpu.memory_space<vmem>>, vector<8x256xf32>,
    %c32_256 = arith.constant 32 : index
    %c0_257 = arith.constant 0 : index
    %589 = vector.load %arg13[%c32_256, %c0_257] : memref<128x512xf32, #tpu.memory_space<vmem>>, vector<8x256xf32>
    %c64_258 = arith.constant 64 : index
    %c0_259 = arith.constant 0 : index
    %590 = vector.load %arg14[%c64_258, %c0_259] : memref<256x256xf32, #tpu.memory_space<vmem>>, vector<8x256xf32>
    tpu.vector_store %arg14[%c64_258, %c0_259], %589 {strides = array<i32>} : memref<256x256xf32, #tpu.memory_space<vmem>>, vector<8x256xf32>,
    %c88_260 = arith.constant 88 : index
    %c256_261 = arith.constant 256 : index
    %591 = vector.load %arg13[%c88_260, %c256_261] : memref<128x512xf32, #tpu.memory_space<vmem>>, vector<8x256xf32>
    %c72_262 = arith.constant 72 : index
    %c0_263 = arith.constant 0 : index
    %592 = vector.load %arg14[%c72_262, %c0_263] : memref<256x256xf32, #tpu.memory_space<vmem>>, vector<8x256xf32>
    tpu.vector_store %arg14[%c72_262, %c0_263], %591 {strides = array<i32>} : memref<256x256xf32, #tpu.memory_space<vmem>>, vector<8x256xf32>,
    %c40_264 = arith.constant 40 : index
    %c0_265 = arith.constant 0 : index
    %593 = vector.load %arg13[%c40_264, %c0_265] : memref<128x512xf32, #tpu.memory_space<vmem>>, vector<8x256xf32>
    %c80_266 = arith.constant 80 : index
    %c0_267 = arith.constant 0 : index
    %594 = vector.load %arg14[%c80_266, %c0_267] : memref<256x256xf32, #tpu.memory_space<vmem>>, vector<8x256xf32>
    tpu.vector_store %arg14[%c80_266, %c0_267], %593 {strides = array<i32>} : memref<256x256xf32, #tpu.memory_space<vmem>>, vector<8x256xf32>,
    %c80_268 = arith.constant 80 : index
    %c256_269 = arith.constant 256 : index
    %595 = vector.load %arg13[%c80_268, %c256_269] : memref<128x512xf32, #tpu.memory_space<vmem>>, vector<8x256xf32>
    %c88_270 = arith.constant 88 : index
    %c0_271 = arith.constant 0 : index
    %596 = vector.load %arg14[%c88_270, %c0_271] : memref<256x256xf32, #tpu.memory_space<vmem>>, vector<8x256xf32>
    tpu.vector_store %arg14[%c88_270, %c0_271], %595 {strides = array<i32>} : memref<256x256xf32, #tpu.memory_space<vmem>>, vector<8x256xf32>,
    %c48_272 = arith.constant 48 : index
    %c0_273 = arith.constant 0 : index
    %597 = vector.load %arg13[%c48_272, %c0_273] : memref<128x512xf32, #tpu.memory_space<vmem>>, vector<8x256xf32>
    %c96_274 = arith.constant 96 : index
    %c0_275 = arith.constant 0 : index
    %598 = vector.load %arg14[%c96_274, %c0_275] : memref<256x256xf32, #tpu.memory_space<vmem>>, vector<8x256xf32>
    tpu.vector_store %arg14[%c96_274, %c0_275], %597 {strides = array<i32>} : memref<256x256xf32, #tpu.memory_space<vmem>>, vector<8x256xf32>,
    %c72_276 = arith.constant 72 : index
    %c256_277 = arith.constant 256 : index
    %599 = vector.load %arg13[%c72_276, %c256_277] : memref<128x512xf32, #tpu.memory_space<vmem>>, vector<8x256xf32>
    %c104_278 = arith.constant 104 : index
    %c0_279 = arith.constant 0 : index
    %600 = vector.load %arg14[%c104_278, %c0_279] : memref<256x256xf32, #tpu.memory_space<vmem>>, vector<8x256xf32>
    tpu.vector_store %arg14[%c104_278, %c0_279], %599 {strides = array<i32>} : memref<256x256xf32, #tpu.memory_space<vmem>>, vector<8x256xf32>,
    %c56_280 = arith.constant 56 : index
    %c0_281 = arith.constant 0 : index
    %601 = vector.load %arg13[%c56_280, %c0_281] : memref<128x512xf32, #tpu.memory_space<vmem>>, vector<8x256xf32>
    %c112_282 = arith.constant 112 : index
    %c0_283 = arith.constant 0 : index
    %602 = vector.load %arg14[%c112_282, %c0_283] : memref<256x256xf32, #tpu.memory_space<vmem>>, vector<8x256xf32>
    tpu.vector_store %arg14[%c112_282, %c0_283], %601 {strides = array<i32>} : memref<256x256xf32, #tpu.memory_space<vmem>>, vector<8x256xf32>,
    %c64_284 = arith.constant 64 : index
    %c256_285 = arith.constant 256 : index
    %603 = vector.load %arg13[%c64_284, %c256_285] : memref<128x512xf32, #tpu.memory_space<vmem>>, vector<8x256xf32>
    %c120_286 = arith.constant 120 : index
    %c0_287 = arith.constant 0 : index
    %604 = vector.load %arg14[%c120_286, %c0_287] : memref<256x256xf32, #tpu.memory_space<vmem>>, vector<8x256xf32>
    tpu.vector_store %arg14[%c120_286, %c0_287], %603 {strides = array<i32>} : memref<256x256xf32, #tpu.memory_space<vmem>>, vector<8x256xf32>,
    %c64_288 = arith.constant 64 : index
    %c0_289 = arith.constant 0 : index
    %605 = vector.load %arg13[%c64_288, %c0_289] : memref<128x512xf32, #tpu.memory_space<vmem>>, vector<8x256xf32>
    %c128_290 = arith.constant 128 : index
    %c0_291 = arith.constant 0 : index
    %606 = vector.load %arg14[%c128_290, %c0_291] : memref<256x256xf32, #tpu.memory_space<vmem>>, vector<8x256xf32>
    tpu.vector_store %arg14[%c128_290, %c0_291], %605 {strides = array<i32>} : memref<256x256xf32, #tpu.memory_space<vmem>>, vector<8x256xf32>,
    %c56_292 = arith.constant 56 : index
    %c256_293 = arith.constant 256 : index
    %607 = vector.load %arg13[%c56_292, %c256_293] : memref<128x512xf32, #tpu.memory_space<vmem>>, vector<8x256xf32>
    %c136 = arith.constant 136 : index
    %c0_294 = arith.constant 0 : index
    %608 = vector.load %arg14[%c136, %c0_294] : memref<256x256xf32, #tpu.memory_space<vmem>>, vector<8x256xf32>
    tpu.vector_store %arg14[%c136, %c0_294], %607 {strides = array<i32>} : memref<256x256xf32, #tpu.memory_space<vmem>>, vector<8x256xf32>,
    %c72_295 = arith.constant 72 : index
    %c0_296 = arith.constant 0 : index
    %609 = vector.load %arg13[%c72_295, %c0_296] : memref<128x512xf32, #tpu.memory_space<vmem>>, vector<8x256xf32>
    %c144_297 = arith.constant 144 : index
    %c0_298 = arith.constant 0 : index
    %610 = vector.load %arg14[%c144_297, %c0_298] : memref<256x256xf32, #tpu.memory_space<vmem>>, vector<8x256xf32>
    tpu.vector_store %arg14[%c144_297, %c0_298], %609 {strides = array<i32>} : memref<256x256xf32, #tpu.memory_space<vmem>>, vector<8x256xf32>,
    %c48_299 = arith.constant 48 : index
    %c256_300 = arith.constant 256 : index
    %611 = vector.load %arg13[%c48_299, %c256_300] : memref<128x512xf32, #tpu.memory_space<vmem>>, vector<8x256xf32>
    %c152 = arith.constant 152 : index
    %c0_301 = arith.constant 0 : index
    %612 = vector.load %arg14[%c152, %c0_301] : memref<256x256xf32, #tpu.memory_space<vmem>>, vector<8x256xf32>
    tpu.vector_store %arg14[%c152, %c0_301], %611 {strides = array<i32>} : memref<256x256xf32, #tpu.memory_space<vmem>>, vector<8x256xf32>,
    %c80_302 = arith.constant 80 : index
    %c0_303 = arith.constant 0 : index
    %613 = vector.load %arg13[%c80_302, %c0_303] : memref<128x512xf32, #tpu.memory_space<vmem>>, vector<8x256xf32>
    %c160_304 = arith.constant 160 : index
    %c0_305 = arith.constant 0 : index
    %614 = vector.load %arg14[%c160_304, %c0_305] : memref<256x256xf32, #tpu.memory_space<vmem>>, vector<8x256xf32>
    tpu.vector_store %arg14[%c160_304, %c0_305], %613 {strides = array<i32>} : memref<256x256xf32, #tpu.memory_space<vmem>>, vector<8x256xf32>,
    %c40_306 = arith.constant 40 : index
    %c256_307 = arith.constant 256 : index
    %615 = vector.load %arg13[%c40_306, %c256_307] : memref<128x512xf32, #tpu.memory_space<vmem>>, vector<8x256xf32>
    %c168 = arith.constant 168 : index
    %c0_308 = arith.constant 0 : index
    %616 = vector.load %arg14[%c168, %c0_308] : memref<256x256xf32, #tpu.memory_space<vmem>>, vector<8x256xf32>
    tpu.vector_store %arg14[%c168, %c0_308], %615 {strides = array<i32>} : memref<256x256xf32, #tpu.memory_space<vmem>>, vector<8x256xf32>,
    %c88_309 = arith.constant 88 : index
    %c0_310 = arith.constant 0 : index
    %617 = vector.load %arg13[%c88_309, %c0_310] : memref<128x512xf32, #tpu.memory_space<vmem>>, vector<8x256xf32>
    %c176_311 = arith.constant 176 : index
    %c0_312 = arith.constant 0 : index
    %618 = vector.load %arg14[%c176_311, %c0_312] : memref<256x256xf32, #tpu.memory_space<vmem>>, vector<8x256xf32>
    tpu.vector_store %arg14[%c176_311, %c0_312], %617 {strides = array<i32>} : memref<256x256xf32, #tpu.memory_space<vmem>>, vector<8x256xf32>,
    %c32_313 = arith.constant 32 : index
    %c256_314 = arith.constant 256 : index
    %619 = vector.load %arg13[%c32_313, %c256_314] : memref<128x512xf32, #tpu.memory_space<vmem>>, vector<8x256xf32>
    %c184 = arith.constant 184 : index
    %c0_315 = arith.constant 0 : index
    %620 = vector.load %arg14[%c184, %c0_315] : memref<256x256xf32, #tpu.memory_space<vmem>>, vector<8x256xf32>
    tpu.vector_store %arg14[%c184, %c0_315], %619 {strides = array<i32>} : memref<256x256xf32, #tpu.memory_space<vmem>>, vector<8x256xf32>,
    %c96_316 = arith.constant 96 : index
    %c0_317 = arith.constant 0 : index
    %621 = vector.load %arg13[%c96_316, %c0_317] : memref<128x512xf32, #tpu.memory_space<vmem>>, vector<8x256xf32>
    %c192_318 = arith.constant 192 : index
    %c0_319 = arith.constant 0 : index
    %622 = vector.load %arg14[%c192_318, %c0_319] : memref<256x256xf32, #tpu.memory_space<vmem>>, vector<8x256xf32>
    tpu.vector_store %arg14[%c192_318, %c0_319], %621 {strides = array<i32>} : memref<256x256xf32, #tpu.memory_space<vmem>>, vector<8x256xf32>,
    %c24_320 = arith.constant 24 : index
    %c256_321 = arith.constant 256 : index
    %623 = vector.load %arg13[%c24_320, %c256_321] : memref<128x512xf32, #tpu.memory_space<vmem>>, vector<8x256xf32>
    %c200 = arith.constant 200 : index
    %c0_322 = arith.constant 0 : index
    %624 = vector.load %arg14[%c200, %c0_322] : memref<256x256xf32, #tpu.memory_space<vmem>>, vector<8x256xf32>
    tpu.vector_store %arg14[%c200, %c0_322], %623 {strides = array<i32>} : memref<256x256xf32, #tpu.memory_space<vmem>>, vector<8x256xf32>,
    %c104_323 = arith.constant 104 : index
    %c0_324 = arith.constant 0 : index
    %625 = vector.load %arg13[%c104_323, %c0_324] : memref<128x512xf32, #tpu.memory_space<vmem>>, vector<8x256xf32>
    %c208_325 = arith.constant 208 : index
    %c0_326 = arith.constant 0 : index
    %626 = vector.load %arg14[%c208_325, %c0_326] : memref<256x256xf32, #tpu.memory_space<vmem>>, vector<8x256xf32>
    tpu.vector_store %arg14[%c208_325, %c0_326], %625 {strides = array<i32>} : memref<256x256xf32, #tpu.memory_space<vmem>>, vector<8x256xf32>,
    %c16_327 = arith.constant 16 : index
    %c256_328 = arith.constant 256 : index
    %627 = vector.load %arg13[%c16_327, %c256_328] : memref<128x512xf32, #tpu.memory_space<vmem>>, vector<8x256xf32>
    %c216 = arith.constant 216 : index
    %c0_329 = arith.constant 0 : index
    %628 = vector.load %arg14[%c216, %c0_329] : memref<256x256xf32, #tpu.memory_space<vmem>>, vector<8x256xf32>
    tpu.vector_store %arg14[%c216, %c0_329], %627 {strides = array<i32>} : memref<256x256xf32, #tpu.memory_space<vmem>>, vector<8x256xf32>,
    %c112_330 = arith.constant 112 : index
    %c0_331 = arith.constant 0 : index
    %629 = vector.load %arg13[%c112_330, %c0_331] : memref<128x512xf32, #tpu.memory_space<vmem>>, vector<8x256xf32>
    %c224_332 = arith.constant 224 : index
    %c0_333 = arith.constant 0 : index
    %630 = vector.load %arg14[%c224_332, %c0_333] : memref<256x256xf32, #tpu.memory_space<vmem>>, vector<8x256xf32>
    tpu.vector_store %arg14[%c224_332, %c0_333], %629 {strides = array<i32>} : memref<256x256xf32, #tpu.memory_space<vmem>>, vector<8x256xf32>,
    %c8_334 = arith.constant 8 : index
    %c256_335 = arith.constant 256 : index
    %631 = vector.load %arg13[%c8_334, %c256_335] : memref<128x512xf32, #tpu.memory_space<vmem>>, vector<8x256xf32>
    %c232 = arith.constant 232 : index
    %c0_336 = arith.constant 0 : index
    %632 = vector.load %arg14[%c232, %c0_336] : memref<256x256xf32, #tpu.memory_space<vmem>>, vector<8x256xf32>
    tpu.vector_store %arg14[%c232, %c0_336], %631 {strides = array<i32>} : memref<256x256xf32, #tpu.memory_space<vmem>>, vector<8x256xf32>,
    %c120_337 = arith.constant 120 : index
    %c0_338 = arith.constant 0 : index
    %633 = vector.load %arg13[%c120_337, %c0_338] : memref<128x512xf32, #tpu.memory_space<vmem>>, vector<8x256xf32>
    %c240_339 = arith.constant 240 : index
    %c0_340 = arith.constant 0 : index
    %634 = vector.load %arg14[%c240_339, %c0_340] : memref<256x256xf32, #tpu.memory_space<vmem>>, vector<8x256xf32>
    tpu.vector_store %arg14[%c240_339, %c0_340], %633 {strides = array<i32>} : memref<256x256xf32, #tpu.memory_space<vmem>>, vector<8x256xf32>,
    %c0_341 = arith.constant 0 : index
    %c256_342 = arith.constant 256 : index
    %635 = vector.load %arg13[%c0_341, %c256_342] : memref<128x512xf32, #tpu.memory_space<vmem>>, vector<8x256xf32>
    %c248 = arith.constant 248 : index
    %c0_343 = arith.constant 0 : index
    %636 = vector.load %arg14[%c248, %c0_343] : memref<256x256xf32, #tpu.memory_space<vmem>>, vector<8x256xf32>
    tpu.vector_store %arg14[%c248, %c0_343], %635 {strides = array<i32>} : memref<256x256xf32, #tpu.memory_space<vmem>>, vector<8x256xf32>,
    %cst_344 = arith.constant 0.000000e+00 : f32
    %637 = vector.broadcast %cst_344 : f32 to vector<16x128xf32>
    %cst_345 = arith.constant 0.000000e+00 : f32
    %638 = vector.broadcast %cst_345 : f32 to vector<16x64xf32>
    %cst_346 = arith.constant 0.000000e+00 : f32
    %639 = vector.broadcast %cst_346 : f32 to vector<16x128xf32>
    %cst_347 = arith.constant 0xFF800000 : f32
    %640 = vector.broadcast %cst_347 : f32 to vector<16x128xf32>
    %c0_348 = arith.constant 0 : index
    %c0_349 = arith.constant 0 : index
    %641 = vector.load %arg14[%c0_348, %c0_349] : memref<256x256xf32, #tpu.memory_space<vmem>>, vector<16x256xf32>
    %cst_350 = arith.constant dense<0.000000e+00> : vector<16x256xf32>
    %642 = tpu.matmul %637, %10, %cst_350 {dimension_numbers = #tpu.dot_dimension_numbers<[1], [0], [0], [1], [0, 0, 1, 1], [], []>} : vector<16x128xf32>, vector<128x256xf32>, vector<16x256xf32> -> vector<16x256xf32>
    %643 = arith.addf %641, %642 : vector<16x256xf32>
    %644 = vector.extract_strided_slice %643 {offsets = [0, 0], sizes = [16, 192], strides = [1, 1]} : vector<16x256xf32> to vector<16x192xf32>
    %cst_351 = arith.constant 5.000000e-01 : f32
    %645 = vector.broadcast %cst_351 : f32 to vector<16x192xf32>
    %646 = arith.mulf %645, %644 : vector<16x192xf32>
    %647 = math.tanh %646 : vector<16x192xf32>
    %cst_352 = arith.constant 5.000000e-01 : f32
    %648 = vector.broadcast %cst_352 : f32 to vector<16x192xf32>
    %649 = arith.mulf %648, %647 : vector<16x192xf32>
    %cst_353 = arith.constant 5.000000e-01 : f32
    %650 = vector.broadcast %cst_353 : f32 to vector<16x192xf32>
    %651 = arith.addf %649, %650 : vector<16x192xf32>
    %652 = vector.extract_strided_slice %643 {offsets = [0, 192], sizes = [16, 64], strides = [1, 1]} : vector<16x256xf32> to vector<16x64xf32>
    %653 = math.tanh %652 : vector<16x64xf32>
    %654 = vector.extract_strided_slice %651 {offsets = [0, 64], sizes = [16, 64], strides = [1, 1]} : vector<16x192xf32> to vector<16x64xf32>
    %655 = arith.mulf %654, %638 : vector<16x64xf32>
    %656 = vector.extract_strided_slice %651 {offsets = [0, 0], sizes = [16, 64], strides = [1, 1]} : vector<16x192xf32> to vector<16x64xf32>
    %657 = arith.mulf %656, %653 : vector<16x64xf32>
    %658 = arith.addf %655, %657 : vector<16x64xf32>
    %659 = vector.extract_strided_slice %651 {offsets = [0, 128], sizes = [16, 64], strides = [1, 1]} : vector<16x192xf32> to vector<16x64xf32>
    %660 = math.tanh %658 : vector<16x64xf32>
    %661 = arith.mulf %659, %660 : vector<16x64xf32>
    %662 = vector.broadcast %15 : vector<16x1xf32> to vector<16x64xf32>
    %663 = arith.mulf %661, %662 : vector<16x64xf32>
    %664 = vector.broadcast %17 : vector<16x1xf32> to vector<16x64xf32>
    %665 = arith.mulf %661, %664 : vector<16x64xf32>
    %666 = tpu.concatenate %663, %665 in 1 : vector<16x64xf32>, vector<16x64xf32> -> vector<16x128xf32>
    %667 = arith.addf %639, %666 : vector<16x128xf32>
    %668 = arith.maximumf %640, %666 : vector<16x128xf32>
    %c16_354 = arith.constant 16 : index
    %c0_355 = arith.constant 0 : index
    %669 = vector.load %arg14[%c16_354, %c0_355] : memref<256x256xf32, #tpu.memory_space<vmem>>, vector<16x256xf32>
    %cst_356 = arith.constant dense<0.000000e+00> : vector<16x256xf32>
    %670 = tpu.matmul %666, %10, %cst_356 {dimension_numbers = #tpu.dot_dimension_numbers<[1], [0], [0], [1], [0, 0, 1, 1], [], []>} : vector<16x128xf32>, vector<128x256xf32>, vector<16x256xf32> -> vector<16x256xf32>
    %671 = arith.addf %669, %670 : vector<16x256xf32>
    %672 = vector.extract_strided_slice %671 {offsets = [0, 0], sizes = [16, 192], strides = [1, 1]} : vector<16x256xf32> to vector<16x192xf32>
    %cst_357 = arith.constant 5.000000e-01 : f32
    %673 = vector.broadcast %cst_357 : f32 to vector<16x192xf32>
    %674 = arith.mulf %673, %672 : vector<16x192xf32>
    %675 = math.tanh %674 : vector<16x192xf32>
    %cst_358 = arith.constant 5.000000e-01 : f32
    %676 = vector.broadcast %cst_358 : f32 to vector<16x192xf32>
    %677 = arith.mulf %676, %675 : vector<16x192xf32>
    %cst_359 = arith.constant 5.000000e-01 : f32
    %678 = vector.broadcast %cst_359 : f32 to vector<16x192xf32>
    %679 = arith.addf %677, %678 : vector<16x192xf32>
    %680 = vector.extract_strided_slice %671 {offsets = [0, 192], sizes = [16, 64], strides = [1, 1]} : vector<16x256xf32> to vector<16x64xf32>
    %681 = math.tanh %680 : vector<16x64xf32>
    %682 = vector.extract_strided_slice %679 {offsets = [0, 64], sizes = [16, 64], strides = [1, 1]} : vector<16x192xf32> to vector<16x64xf32>
    %683 = arith.mulf %682, %658 : vector<16x64xf32>
    %684 = vector.extract_strided_slice %679 {offsets = [0, 0], sizes = [16, 64], strides = [1, 1]} : vector<16x192xf32> to vector<16x64xf32>
    %685 = arith.mulf %684, %681 : vector<16x64xf32>
    %686 = arith.addf %683, %685 : vector<16x64xf32>
    %687 = vector.extract_strided_slice %679 {offsets = [0, 128], sizes = [16, 64], strides = [1, 1]} : vector<16x192xf32> to vector<16x64xf32>
    %688 = math.tanh %686 : vector<16x64xf32>
    %689 = arith.mulf %687, %688 : vector<16x64xf32>
    %690 = vector.broadcast %15 : vector<16x1xf32> to vector<16x64xf32>
    %691 = arith.mulf %689, %690 : vector<16x64xf32>
    %692 = vector.broadcast %17 : vector<16x1xf32> to vector<16x64xf32>
    %693 = arith.mulf %689, %692 : vector<16x64xf32>
    %694 = tpu.concatenate %691, %693 in 1 : vector<16x64xf32>, vector<16x64xf32> -> vector<16x128xf32>
    %695 = arith.addf %667, %694 : vector<16x128xf32>
    %696 = arith.maximumf %668, %694 : vector<16x128xf32>
    %c32_360 = arith.constant 32 : index
    %c0_361 = arith.constant 0 : index
    %697 = vector.load %arg14[%c32_360, %c0_361] : memref<256x256xf32, #tpu.memory_space<vmem>>, vector<16x256xf32>
    %cst_362 = arith.constant dense<0.000000e+00> : vector<16x256xf32>
    %698 = tpu.matmul %694, %10, %cst_362 {dimension_numbers = #tpu.dot_dimension_numbers<[1], [0], [0], [1], [0, 0, 1, 1], [], []>} : vector<16x128xf32>, vector<128x256xf32>, vector<16x256xf32> -> vector<16x256xf32>
    %699 = arith.addf %697, %698 : vector<16x256xf32>
    %700 = vector.extract_strided_slice %699 {offsets = [0, 0], sizes = [16, 192], strides = [1, 1]} : vector<16x256xf32> to vector<16x192xf32>
    %cst_363 = arith.constant 5.000000e-01 : f32
    %701 = vector.broadcast %cst_363 : f32 to vector<16x192xf32>
    %702 = arith.mulf %701, %700 : vector<16x192xf32>
    %703 = math.tanh %702 : vector<16x192xf32>
    %cst_364 = arith.constant 5.000000e-01 : f32
    %704 = vector.broadcast %cst_364 : f32 to vector<16x192xf32>
    %705 = arith.mulf %704, %703 : vector<16x192xf32>
    %cst_365 = arith.constant 5.000000e-01 : f32
    %706 = vector.broadcast %cst_365 : f32 to vector<16x192xf32>
    %707 = arith.addf %705, %706 : vector<16x192xf32>
    %708 = vector.extract_strided_slice %699 {offsets = [0, 192], sizes = [16, 64], strides = [1, 1]} : vector<16x256xf32> to vector<16x64xf32>
    %709 = math.tanh %708 : vector<16x64xf32>
    %710 = vector.extract_strided_slice %707 {offsets = [0, 64], sizes = [16, 64], strides = [1, 1]} : vector<16x192xf32> to vector<16x64xf32>
    %711 = arith.mulf %710, %686 : vector<16x64xf32>
    %712 = vector.extract_strided_slice %707 {offsets = [0, 0], sizes = [16, 64], strides = [1, 1]} : vector<16x192xf32> to vector<16x64xf32>
    %713 = arith.mulf %712, %709 : vector<16x64xf32>
    %714 = arith.addf %711, %713 : vector<16x64xf32>
    %715 = vector.extract_strided_slice %707 {offsets = [0, 128], sizes = [16, 64], strides = [1, 1]} : vector<16x192xf32> to vector<16x64xf32>
    %716 = math.tanh %714 : vector<16x64xf32>
    %717 = arith.mulf %715, %716 : vector<16x64xf32>
    %718 = vector.broadcast %15 : vector<16x1xf32> to vector<16x64xf32>
    %719 = arith.mulf %717, %718 : vector<16x64xf32>
    %720 = vector.broadcast %17 : vector<16x1xf32> to vector<16x64xf32>
    %721 = arith.mulf %717, %720 : vector<16x64xf32>
    %722 = tpu.concatenate %719, %721 in 1 : vector<16x64xf32>, vector<16x64xf32> -> vector<16x128xf32>
    %723 = arith.addf %695, %722 : vector<16x128xf32>
    %724 = arith.maximumf %696, %722 : vector<16x128xf32>
    %c48_366 = arith.constant 48 : index
    %c0_367 = arith.constant 0 : index
    %725 = vector.load %arg14[%c48_366, %c0_367] : memref<256x256xf32, #tpu.memory_space<vmem>>, vector<16x256xf32>
    %cst_368 = arith.constant dense<0.000000e+00> : vector<16x256xf32>
    %726 = tpu.matmul %722, %10, %cst_368 {dimension_numbers = #tpu.dot_dimension_numbers<[1], [0], [0], [1], [0, 0, 1, 1], [], []>} : vector<16x128xf32>, vector<128x256xf32>, vector<16x256xf32> -> vector<16x256xf32>
    %727 = arith.addf %725, %726 : vector<16x256xf32>
    %728 = vector.extract_strided_slice %727 {offsets = [0, 0], sizes = [16, 192], strides = [1, 1]} : vector<16x256xf32> to vector<16x192xf32>
    %cst_369 = arith.constant 5.000000e-01 : f32
    %729 = vector.broadcast %cst_369 : f32 to vector<16x192xf32>
    %730 = arith.mulf %729, %728 : vector<16x192xf32>
    %731 = math.tanh %730 : vector<16x192xf32>
    %cst_370 = arith.constant 5.000000e-01 : f32
    %732 = vector.broadcast %cst_370 : f32 to vector<16x192xf32>
    %733 = arith.mulf %732, %731 : vector<16x192xf32>
    %cst_371 = arith.constant 5.000000e-01 : f32
    %734 = vector.broadcast %cst_371 : f32 to vector<16x192xf32>
    %735 = arith.addf %733, %734 : vector<16x192xf32>
    %736 = vector.extract_strided_slice %727 {offsets = [0, 192], sizes = [16, 64], strides = [1, 1]} : vector<16x256xf32> to vector<16x64xf32>
    %737 = math.tanh %736 : vector<16x64xf32>
    %738 = vector.extract_strided_slice %735 {offsets = [0, 64], sizes = [16, 64], strides = [1, 1]} : vector<16x192xf32> to vector<16x64xf32>
    %739 = arith.mulf %738, %714 : vector<16x64xf32>
    %740 = vector.extract_strided_slice %735 {offsets = [0, 0], sizes = [16, 64], strides = [1, 1]} : vector<16x192xf32> to vector<16x64xf32>
    %741 = arith.mulf %740, %737 : vector<16x64xf32>
    %742 = arith.addf %739, %741 : vector<16x64xf32>
    %743 = vector.extract_strided_slice %735 {offsets = [0, 128], sizes = [16, 64], strides = [1, 1]} : vector<16x192xf32> to vector<16x64xf32>
    %744 = math.tanh %742 : vector<16x64xf32>
    %745 = arith.mulf %743, %744 : vector<16x64xf32>
    %746 = vector.broadcast %15 : vector<16x1xf32> to vector<16x64xf32>
    %747 = arith.mulf %745, %746 : vector<16x64xf32>
    %748 = vector.broadcast %17 : vector<16x1xf32> to vector<16x64xf32>
    %749 = arith.mulf %745, %748 : vector<16x64xf32>
    %750 = tpu.concatenate %747, %749 in 1 : vector<16x64xf32>, vector<16x64xf32> -> vector<16x128xf32>
    %751 = arith.addf %723, %750 : vector<16x128xf32>
    %752 = arith.maximumf %724, %750 : vector<16x128xf32>
    %c64_372 = arith.constant 64 : index
    %c0_373 = arith.constant 0 : index
    %753 = vector.load %arg14[%c64_372, %c0_373] : memref<256x256xf32, #tpu.memory_space<vmem>>, vector<16x256xf32>
    %cst_374 = arith.constant dense<0.000000e+00> : vector<16x256xf32>
    %754 = tpu.matmul %750, %10, %cst_374 {dimension_numbers = #tpu.dot_dimension_numbers<[1], [0], [0], [1], [0, 0, 1, 1], [], []>} : vector<16x128xf32>, vector<128x256xf32>, vector<16x256xf32> -> vector<16x256xf32>
    %755 = arith.addf %753, %754 : vector<16x256xf32>
    %756 = vector.extract_strided_slice %755 {offsets = [0, 0], sizes = [16, 192], strides = [1, 1]} : vector<16x256xf32> to vector<16x192xf32>
    %cst_375 = arith.constant 5.000000e-01 : f32
    %757 = vector.broadcast %cst_375 : f32 to vector<16x192xf32>
    %758 = arith.mulf %757, %756 : vector<16x192xf32>
    %759 = math.tanh %758 : vector<16x192xf32>
    %cst_376 = arith.constant 5.000000e-01 : f32
    %760 = vector.broadcast %cst_376 : f32 to vector<16x192xf32>
    %761 = arith.mulf %760, %759 : vector<16x192xf32>
    %cst_377 = arith.constant 5.000000e-01 : f32
    %762 = vector.broadcast %cst_377 : f32 to vector<16x192xf32>
    %763 = arith.addf %761, %762 : vector<16x192xf32>
    %764 = vector.extract_strided_slice %755 {offsets = [0, 192], sizes = [16, 64], strides = [1, 1]} : vector<16x256xf32> to vector<16x64xf32>
    %765 = math.tanh %764 : vector<16x64xf32>
    %766 = vector.extract_strided_slice %763 {offsets = [0, 64], sizes = [16, 64], strides = [1, 1]} : vector<16x192xf32> to vector<16x64xf32>
    %767 = arith.mulf %766, %742 : vector<16x64xf32>
    %768 = vector.extract_strided_slice %763 {offsets = [0, 0], sizes = [16, 64], strides = [1, 1]} : vector<16x192xf32> to vector<16x64xf32>
    %769 = arith.mulf %768, %765 : vector<16x64xf32>
    %770 = arith.addf %767, %769 : vector<16x64xf32>
    %771 = vector.extract_strided_slice %763 {offsets = [0, 128], sizes = [16, 64], strides = [1, 1]} : vector<16x192xf32> to vector<16x64xf32>
    %772 = math.tanh %770 : vector<16x64xf32>
    %773 = arith.mulf %771, %772 : vector<16x64xf32>
    %774 = vector.broadcast %15 : vector<16x1xf32> to vector<16x64xf32>
    %775 = arith.mulf %773, %774 : vector<16x64xf32>
    %776 = vector.broadcast %17 : vector<16x1xf32> to vector<16x64xf32>
    %777 = arith.mulf %773, %776 : vector<16x64xf32>
    %778 = tpu.concatenate %775, %777 in 1 : vector<16x64xf32>, vector<16x64xf32> -> vector<16x128xf32>
    %779 = arith.addf %751, %778 : vector<16x128xf32>
    %780 = arith.maximumf %752, %778 : vector<16x128xf32>
    %c80_378 = arith.constant 80 : index
    %c0_379 = arith.constant 0 : index
    %781 = vector.load %arg14[%c80_378, %c0_379] : memref<256x256xf32, #tpu.memory_space<vmem>>, vector<16x256xf32>
    %cst_380 = arith.constant dense<0.000000e+00> : vector<16x256xf32>
    %782 = tpu.matmul %778, %10, %cst_380 {dimension_numbers = #tpu.dot_dimension_numbers<[1], [0], [0], [1], [0, 0, 1, 1], [], []>} : vector<16x128xf32>, vector<128x256xf32>, vector<16x256xf32> -> vector<16x256xf32>
    %783 = arith.addf %781, %782 : vector<16x256xf32>
    %784 = vector.extract_strided_slice %783 {offsets = [0, 0], sizes = [16, 192], strides = [1, 1]} : vector<16x256xf32> to vector<16x192xf32>
    %cst_381 = arith.constant 5.000000e-01 : f32
    %785 = vector.broadcast %cst_381 : f32 to vector<16x192xf32>
    %786 = arith.mulf %785, %784 : vector<16x192xf32>
    %787 = math.tanh %786 : vector<16x192xf32>
    %cst_382 = arith.constant 5.000000e-01 : f32
    %788 = vector.broadcast %cst_382 : f32 to vector<16x192xf32>
    %789 = arith.mulf %788, %787 : vector<16x192xf32>
    %cst_383 = arith.constant 5.000000e-01 : f32
    %790 = vector.broadcast %cst_383 : f32 to vector<16x192xf32>
    %791 = arith.addf %789, %790 : vector<16x192xf32>
    %792 = vector.extract_strided_slice %783 {offsets = [0, 192], sizes = [16, 64], strides = [1, 1]} : vector<16x256xf32> to vector<16x64xf32>
    %793 = math.tanh %792 : vector<16x64xf32>
    %794 = vector.extract_strided_slice %791 {offsets = [0, 64], sizes = [16, 64], strides = [1, 1]} : vector<16x192xf32> to vector<16x64xf32>
    %795 = arith.mulf %794, %770 : vector<16x64xf32>
    %796 = vector.extract_strided_slice %791 {offsets = [0, 0], sizes = [16, 64], strides = [1, 1]} : vector<16x192xf32> to vector<16x64xf32>
    %797 = arith.mulf %796, %793 : vector<16x64xf32>
    %798 = arith.addf %795, %797 : vector<16x64xf32>
    %799 = vector.extract_strided_slice %791 {offsets = [0, 128], sizes = [16, 64], strides = [1, 1]} : vector<16x192xf32> to vector<16x64xf32>
    %800 = math.tanh %798 : vector<16x64xf32>
    %801 = arith.mulf %799, %800 : vector<16x64xf32>
    %802 = vector.broadcast %15 : vector<16x1xf32> to vector<16x64xf32>
    %803 = arith.mulf %801, %802 : vector<16x64xf32>
    %804 = vector.broadcast %17 : vector<16x1xf32> to vector<16x64xf32>
    %805 = arith.mulf %801, %804 : vector<16x64xf32>
    %806 = tpu.concatenate %803, %805 in 1 : vector<16x64xf32>, vector<16x64xf32> -> vector<16x128xf32>
    %807 = arith.addf %779, %806 : vector<16x128xf32>
    %808 = arith.maximumf %780, %806 : vector<16x128xf32>
    %c96_384 = arith.constant 96 : index
    %c0_385 = arith.constant 0 : index
    %809 = vector.load %arg14[%c96_384, %c0_385] : memref<256x256xf32, #tpu.memory_space<vmem>>, vector<16x256xf32>
    %cst_386 = arith.constant dense<0.000000e+00> : vector<16x256xf32>
    %810 = tpu.matmul %806, %10, %cst_386 {dimension_numbers = #tpu.dot_dimension_numbers<[1], [0], [0], [1], [0, 0, 1, 1], [], []>} : vector<16x128xf32>, vector<128x256xf32>, vector<16x256xf32> -> vector<16x256xf32>
    %811 = arith.addf %809, %810 : vector<16x256xf32>
    %812 = vector.extract_strided_slice %811 {offsets = [0, 0], sizes = [16, 192], strides = [1, 1]} : vector<16x256xf32> to vector<16x192xf32>
    %cst_387 = arith.constant 5.000000e-01 : f32
    %813 = vector.broadcast %cst_387 : f32 to vector<16x192xf32>
    %814 = arith.mulf %813, %812 : vector<16x192xf32>
    %815 = math.tanh %814 : vector<16x192xf32>
    %cst_388 = arith.constant 5.000000e-01 : f32
    %816 = vector.broadcast %cst_388 : f32 to vector<16x192xf32>
    %817 = arith.mulf %816, %815 : vector<16x192xf32>
    %cst_389 = arith.constant 5.000000e-01 : f32
    %818 = vector.broadcast %cst_389 : f32 to vector<16x192xf32>
    %819 = arith.addf %817, %818 : vector<16x192xf32>
    %820 = vector.extract_strided_slice %811 {offsets = [0, 192], sizes = [16, 64], strides = [1, 1]} : vector<16x256xf32> to vector<16x64xf32>
    %821 = math.tanh %820 : vector<16x64xf32>
    %822 = vector.extract_strided_slice %819 {offsets = [0, 64], sizes = [16, 64], strides = [1, 1]} : vector<16x192xf32> to vector<16x64xf32>
    %823 = arith.mulf %822, %798 : vector<16x64xf32>
    %824 = vector.extract_strided_slice %819 {offsets = [0, 0], sizes = [16, 64], strides = [1, 1]} : vector<16x192xf32> to vector<16x64xf32>
    %825 = arith.mulf %824, %821 : vector<16x64xf32>
    %826 = arith.addf %823, %825 : vector<16x64xf32>
    %827 = vector.extract_strided_slice %819 {offsets = [0, 128], sizes = [16, 64], strides = [1, 1]} : vector<16x192xf32> to vector<16x64xf32>
    %828 = math.tanh %826 : vector<16x64xf32>
    %829 = arith.mulf %827, %828 : vector<16x64xf32>
    %830 = vector.broadcast %15 : vector<16x1xf32> to vector<16x64xf32>
    %831 = arith.mulf %829, %830 : vector<16x64xf32>
    %832 = vector.broadcast %17 : vector<16x1xf32> to vector<16x64xf32>
    %833 = arith.mulf %829, %832 : vector<16x64xf32>
    %834 = tpu.concatenate %831, %833 in 1 : vector<16x64xf32>, vector<16x64xf32> -> vector<16x128xf32>
    %835 = arith.addf %807, %834 : vector<16x128xf32>
    %836 = arith.maximumf %808, %834 : vector<16x128xf32>
    %c112_390 = arith.constant 112 : index
    %c0_391 = arith.constant 0 : index
    %837 = vector.load %arg14[%c112_390, %c0_391] : memref<256x256xf32, #tpu.memory_space<vmem>>, vector<16x256xf32>
    %cst_392 = arith.constant dense<0.000000e+00> : vector<16x256xf32>
    %838 = tpu.matmul %834, %10, %cst_392 {dimension_numbers = #tpu.dot_dimension_numbers<[1], [0], [0], [1], [0, 0, 1, 1], [], []>} : vector<16x128xf32>, vector<128x256xf32>, vector<16x256xf32> -> vector<16x256xf32>
    %839 = arith.addf %837, %838 : vector<16x256xf32>
    %840 = vector.extract_strided_slice %839 {offsets = [0, 0], sizes = [16, 192], strides = [1, 1]} : vector<16x256xf32> to vector<16x192xf32>
    %cst_393 = arith.constant 5.000000e-01 : f32
    %841 = vector.broadcast %cst_393 : f32 to vector<16x192xf32>
    %842 = arith.mulf %841, %840 : vector<16x192xf32>
    %843 = math.tanh %842 : vector<16x192xf32>
    %cst_394 = arith.constant 5.000000e-01 : f32
    %844 = vector.broadcast %cst_394 : f32 to vector<16x192xf32>
    %845 = arith.mulf %844, %843 : vector<16x192xf32>
    %cst_395 = arith.constant 5.000000e-01 : f32
    %846 = vector.broadcast %cst_395 : f32 to vector<16x192xf32>
    %847 = arith.addf %845, %846 : vector<16x192xf32>
    %848 = vector.extract_strided_slice %839 {offsets = [0, 192], sizes = [16, 64], strides = [1, 1]} : vector<16x256xf32> to vector<16x64xf32>
    %849 = math.tanh %848 : vector<16x64xf32>
    %850 = vector.extract_strided_slice %847 {offsets = [0, 64], sizes = [16, 64], strides = [1, 1]} : vector<16x192xf32> to vector<16x64xf32>
    %851 = arith.mulf %850, %826 : vector<16x64xf32>
    %852 = vector.extract_strided_slice %847 {offsets = [0, 0], sizes = [16, 64], strides = [1, 1]} : vector<16x192xf32> to vector<16x64xf32>
    %853 = arith.mulf %852, %849 : vector<16x64xf32>
    %854 = arith.addf %851, %853 : vector<16x64xf32>
    %855 = vector.extract_strided_slice %847 {offsets = [0, 128], sizes = [16, 64], strides = [1, 1]} : vector<16x192xf32> to vector<16x64xf32>
    %856 = math.tanh %854 : vector<16x64xf32>
    %857 = arith.mulf %855, %856 : vector<16x64xf32>
    %858 = vector.broadcast %15 : vector<16x1xf32> to vector<16x64xf32>
    %859 = arith.mulf %857, %858 : vector<16x64xf32>
    %860 = vector.broadcast %17 : vector<16x1xf32> to vector<16x64xf32>
    %861 = arith.mulf %857, %860 : vector<16x64xf32>
    %862 = tpu.concatenate %859, %861 in 1 : vector<16x64xf32>, vector<16x64xf32> -> vector<16x128xf32>
    %863 = arith.addf %835, %862 : vector<16x128xf32>
    %864 = arith.maximumf %836, %862 : vector<16x128xf32>
    %c128_396 = arith.constant 128 : index
    %c0_397 = arith.constant 0 : index
    %865 = vector.load %arg14[%c128_396, %c0_397] : memref<256x256xf32, #tpu.memory_space<vmem>>, vector<16x256xf32>
    %cst_398 = arith.constant dense<0.000000e+00> : vector<16x256xf32>
    %866 = tpu.matmul %862, %10, %cst_398 {dimension_numbers = #tpu.dot_dimension_numbers<[1], [0], [0], [1], [0, 0, 1, 1], [], []>} : vector<16x128xf32>, vector<128x256xf32>, vector<16x256xf32> -> vector<16x256xf32>
    %867 = arith.addf %865, %866 : vector<16x256xf32>
    %868 = vector.extract_strided_slice %867 {offsets = [0, 0], sizes = [16, 192], strides = [1, 1]} : vector<16x256xf32> to vector<16x192xf32>
    %cst_399 = arith.constant 5.000000e-01 : f32
    %869 = vector.broadcast %cst_399 : f32 to vector<16x192xf32>
    %870 = arith.mulf %869, %868 : vector<16x192xf32>
    %871 = math.tanh %870 : vector<16x192xf32>
    %cst_400 = arith.constant 5.000000e-01 : f32
    %872 = vector.broadcast %cst_400 : f32 to vector<16x192xf32>
    %873 = arith.mulf %872, %871 : vector<16x192xf32>
    %cst_401 = arith.constant 5.000000e-01 : f32
    %874 = vector.broadcast %cst_401 : f32 to vector<16x192xf32>
    %875 = arith.addf %873, %874 : vector<16x192xf32>
    %876 = vector.extract_strided_slice %867 {offsets = [0, 192], sizes = [16, 64], strides = [1, 1]} : vector<16x256xf32> to vector<16x64xf32>
    %877 = math.tanh %876 : vector<16x64xf32>
    %878 = vector.extract_strided_slice %875 {offsets = [0, 64], sizes = [16, 64], strides = [1, 1]} : vector<16x192xf32> to vector<16x64xf32>
    %879 = arith.mulf %878, %854 : vector<16x64xf32>
    %880 = vector.extract_strided_slice %875 {offsets = [0, 0], sizes = [16, 64], strides = [1, 1]} : vector<16x192xf32> to vector<16x64xf32>
    %881 = arith.mulf %880, %877 : vector<16x64xf32>
    %882 = arith.addf %879, %881 : vector<16x64xf32>
    %883 = vector.extract_strided_slice %875 {offsets = [0, 128], sizes = [16, 64], strides = [1, 1]} : vector<16x192xf32> to vector<16x64xf32>
    %884 = math.tanh %882 : vector<16x64xf32>
    %885 = arith.mulf %883, %884 : vector<16x64xf32>
    %886 = vector.broadcast %15 : vector<16x1xf32> to vector<16x64xf32>
    %887 = arith.mulf %885, %886 : vector<16x64xf32>
    %888 = vector.broadcast %17 : vector<16x1xf32> to vector<16x64xf32>
    %889 = arith.mulf %885, %888 : vector<16x64xf32>
    %890 = tpu.concatenate %887, %889 in 1 : vector<16x64xf32>, vector<16x64xf32> -> vector<16x128xf32>
    %891 = arith.addf %863, %890 : vector<16x128xf32>
    %892 = arith.maximumf %864, %890 : vector<16x128xf32>
    %c144_402 = arith.constant 144 : index
    %c0_403 = arith.constant 0 : index
    %893 = vector.load %arg14[%c144_402, %c0_403] : memref<256x256xf32, #tpu.memory_space<vmem>>, vector<16x256xf32>
    %cst_404 = arith.constant dense<0.000000e+00> : vector<16x256xf32>
    %894 = tpu.matmul %890, %10, %cst_404 {dimension_numbers = #tpu.dot_dimension_numbers<[1], [0], [0], [1], [0, 0, 1, 1], [], []>} : vector<16x128xf32>, vector<128x256xf32>, vector<16x256xf32> -> vector<16x256xf32>
    %895 = arith.addf %893, %894 : vector<16x256xf32>
    %896 = vector.extract_strided_slice %895 {offsets = [0, 0], sizes = [16, 192], strides = [1, 1]} : vector<16x256xf32> to vector<16x192xf32>
    %cst_405 = arith.constant 5.000000e-01 : f32
    %897 = vector.broadcast %cst_405 : f32 to vector<16x192xf32>
    %898 = arith.mulf %897, %896 : vector<16x192xf32>
    %899 = math.tanh %898 : vector<16x192xf32>
    %cst_406 = arith.constant 5.000000e-01 : f32
    %900 = vector.broadcast %cst_406 : f32 to vector<16x192xf32>
    %901 = arith.mulf %900, %899 : vector<16x192xf32>
    %cst_407 = arith.constant 5.000000e-01 : f32
    %902 = vector.broadcast %cst_407 : f32 to vector<16x192xf32>
    %903 = arith.addf %901, %902 : vector<16x192xf32>
    %904 = vector.extract_strided_slice %895 {offsets = [0, 192], sizes = [16, 64], strides = [1, 1]} : vector<16x256xf32> to vector<16x64xf32>
    %905 = math.tanh %904 : vector<16x64xf32>
    %906 = vector.extract_strided_slice %903 {offsets = [0, 64], sizes = [16, 64], strides = [1, 1]} : vector<16x192xf32> to vector<16x64xf32>
    %907 = arith.mulf %906, %882 : vector<16x64xf32>
    %908 = vector.extract_strided_slice %903 {offsets = [0, 0], sizes = [16, 64], strides = [1, 1]} : vector<16x192xf32> to vector<16x64xf32>
    %909 = arith.mulf %908, %905 : vector<16x64xf32>
    %910 = arith.addf %907, %909 : vector<16x64xf32>
    %911 = vector.extract_strided_slice %903 {offsets = [0, 128], sizes = [16, 64], strides = [1, 1]} : vector<16x192xf32> to vector<16x64xf32>
    %912 = math.tanh %910 : vector<16x64xf32>
    %913 = arith.mulf %911, %912 : vector<16x64xf32>
    %914 = vector.broadcast %15 : vector<16x1xf32> to vector<16x64xf32>
    %915 = arith.mulf %913, %914 : vector<16x64xf32>
    %916 = vector.broadcast %17 : vector<16x1xf32> to vector<16x64xf32>
    %917 = arith.mulf %913, %916 : vector<16x64xf32>
    %918 = tpu.concatenate %915, %917 in 1 : vector<16x64xf32>, vector<16x64xf32> -> vector<16x128xf32>
    %919 = arith.addf %891, %918 : vector<16x128xf32>
    %920 = arith.maximumf %892, %918 : vector<16x128xf32>
    %c160_408 = arith.constant 160 : index
    %c0_409 = arith.constant 0 : index
    %921 = vector.load %arg14[%c160_408, %c0_409] : memref<256x256xf32, #tpu.memory_space<vmem>>, vector<16x256xf32>
    %cst_410 = arith.constant dense<0.000000e+00> : vector<16x256xf32>
    %922 = tpu.matmul %918, %10, %cst_410 {dimension_numbers = #tpu.dot_dimension_numbers<[1], [0], [0], [1], [0, 0, 1, 1], [], []>} : vector<16x128xf32>, vector<128x256xf32>, vector<16x256xf32> -> vector<16x256xf32>
    %923 = arith.addf %921, %922 : vector<16x256xf32>
    %924 = vector.extract_strided_slice %923 {offsets = [0, 0], sizes = [16, 192], strides = [1, 1]} : vector<16x256xf32> to vector<16x192xf32>
    %cst_411 = arith.constant 5.000000e-01 : f32
    %925 = vector.broadcast %cst_411 : f32 to vector<16x192xf32>
    %926 = arith.mulf %925, %924 : vector<16x192xf32>
    %927 = math.tanh %926 : vector<16x192xf32>
    %cst_412 = arith.constant 5.000000e-01 : f32
    %928 = vector.broadcast %cst_412 : f32 to vector<16x192xf32>
    %929 = arith.mulf %928, %927 : vector<16x192xf32>
    %cst_413 = arith.constant 5.000000e-01 : f32
    %930 = vector.broadcast %cst_413 : f32 to vector<16x192xf32>
    %931 = arith.addf %929, %930 : vector<16x192xf32>
    %932 = vector.extract_strided_slice %923 {offsets = [0, 192], sizes = [16, 64], strides = [1, 1]} : vector<16x256xf32> to vector<16x64xf32>
    %933 = math.tanh %932 : vector<16x64xf32>
    %934 = vector.extract_strided_slice %931 {offsets = [0, 64], sizes = [16, 64], strides = [1, 1]} : vector<16x192xf32> to vector<16x64xf32>
    %935 = arith.mulf %934, %910 : vector<16x64xf32>
    %936 = vector.extract_strided_slice %931 {offsets = [0, 0], sizes = [16, 64], strides = [1, 1]} : vector<16x192xf32> to vector<16x64xf32>
    %937 = arith.mulf %936, %933 : vector<16x64xf32>
    %938 = arith.addf %935, %937 : vector<16x64xf32>
    %939 = vector.extract_strided_slice %931 {offsets = [0, 128], sizes = [16, 64], strides = [1, 1]} : vector<16x192xf32> to vector<16x64xf32>
    %940 = math.tanh %938 : vector<16x64xf32>
    %941 = arith.mulf %939, %940 : vector<16x64xf32>
    %942 = vector.broadcast %15 : vector<16x1xf32> to vector<16x64xf32>
    %943 = arith.mulf %941, %942 : vector<16x64xf32>
    %944 = vector.broadcast %17 : vector<16x1xf32> to vector<16x64xf32>
    %945 = arith.mulf %941, %944 : vector<16x64xf32>
    %946 = tpu.concatenate %943, %945 in 1 : vector<16x64xf32>, vector<16x64xf32> -> vector<16x128xf32>
    %947 = arith.addf %919, %946 : vector<16x128xf32>
    %948 = arith.maximumf %920, %946 : vector<16x128xf32>
    %c176_414 = arith.constant 176 : index
    %c0_415 = arith.constant 0 : index
    %949 = vector.load %arg14[%c176_414, %c0_415] : memref<256x256xf32, #tpu.memory_space<vmem>>, vector<16x256xf32>
    %cst_416 = arith.constant dense<0.000000e+00> : vector<16x256xf32>
    %950 = tpu.matmul %946, %10, %cst_416 {dimension_numbers = #tpu.dot_dimension_numbers<[1], [0], [0], [1], [0, 0, 1, 1], [], []>} : vector<16x128xf32>, vector<128x256xf32>, vector<16x256xf32> -> vector<16x256xf32>
    %951 = arith.addf %949, %950 : vector<16x256xf32>
    %952 = vector.extract_strided_slice %951 {offsets = [0, 0], sizes = [16, 192], strides = [1, 1]} : vector<16x256xf32> to vector<16x192xf32>
    %cst_417 = arith.constant 5.000000e-01 : f32
    %953 = vector.broadcast %cst_417 : f32 to vector<16x192xf32>
    %954 = arith.mulf %953, %952 : vector<16x192xf32>
    %955 = math.tanh %954 : vector<16x192xf32>
    %cst_418 = arith.constant 5.000000e-01 : f32
    %956 = vector.broadcast %cst_418 : f32 to vector<16x192xf32>
    %957 = arith.mulf %956, %955 : vector<16x192xf32>
    %cst_419 = arith.constant 5.000000e-01 : f32
    %958 = vector.broadcast %cst_419 : f32 to vector<16x192xf32>
    %959 = arith.addf %957, %958 : vector<16x192xf32>
    %960 = vector.extract_strided_slice %951 {offsets = [0, 192], sizes = [16, 64], strides = [1, 1]} : vector<16x256xf32> to vector<16x64xf32>
    %961 = math.tanh %960 : vector<16x64xf32>
    %962 = vector.extract_strided_slice %959 {offsets = [0, 64], sizes = [16, 64], strides = [1, 1]} : vector<16x192xf32> to vector<16x64xf32>
    %963 = arith.mulf %962, %938 : vector<16x64xf32>
    %964 = vector.extract_strided_slice %959 {offsets = [0, 0], sizes = [16, 64], strides = [1, 1]} : vector<16x192xf32> to vector<16x64xf32>
    %965 = arith.mulf %964, %961 : vector<16x64xf32>
    %966 = arith.addf %963, %965 : vector<16x64xf32>
    %967 = vector.extract_strided_slice %959 {offsets = [0, 128], sizes = [16, 64], strides = [1, 1]} : vector<16x192xf32> to vector<16x64xf32>
    %968 = math.tanh %966 : vector<16x64xf32>
    %969 = arith.mulf %967, %968 : vector<16x64xf32>
    %970 = vector.broadcast %15 : vector<16x1xf32> to vector<16x64xf32>
    %971 = arith.mulf %969, %970 : vector<16x64xf32>
    %972 = vector.broadcast %17 : vector<16x1xf32> to vector<16x64xf32>
    %973 = arith.mulf %969, %972 : vector<16x64xf32>
    %974 = tpu.concatenate %971, %973 in 1 : vector<16x64xf32>, vector<16x64xf32> -> vector<16x128xf32>
    %975 = arith.addf %947, %974 : vector<16x128xf32>
    %976 = arith.maximumf %948, %974 : vector<16x128xf32>
    %c192_420 = arith.constant 192 : index
    %c0_421 = arith.constant 0 : index
    %977 = vector.load %arg14[%c192_420, %c0_421] : memref<256x256xf32, #tpu.memory_space<vmem>>, vector<16x256xf32>
    %cst_422 = arith.constant dense<0.000000e+00> : vector<16x256xf32>
    %978 = tpu.matmul %974, %10, %cst_422 {dimension_numbers = #tpu.dot_dimension_numbers<[1], [0], [0], [1], [0, 0, 1, 1], [], []>} : vector<16x128xf32>, vector<128x256xf32>, vector<16x256xf32> -> vector<16x256xf32>
    %979 = arith.addf %977, %978 : vector<16x256xf32>
    %980 = vector.extract_strided_slice %979 {offsets = [0, 0], sizes = [16, 192], strides = [1, 1]} : vector<16x256xf32> to vector<16x192xf32>
    %cst_423 = arith.constant 5.000000e-01 : f32
    %981 = vector.broadcast %cst_423 : f32 to vector<16x192xf32>
    %982 = arith.mulf %981, %980 : vector<16x192xf32>
    %983 = math.tanh %982 : vector<16x192xf32>
    %cst_424 = arith.constant 5.000000e-01 : f32
    %984 = vector.broadcast %cst_424 : f32 to vector<16x192xf32>
    %985 = arith.mulf %984, %983 : vector<16x192xf32>
    %cst_425 = arith.constant 5.000000e-01 : f32
    %986 = vector.broadcast %cst_425 : f32 to vector<16x192xf32>
    %987 = arith.addf %985, %986 : vector<16x192xf32>
    %988 = vector.extract_strided_slice %979 {offsets = [0, 192], sizes = [16, 64], strides = [1, 1]} : vector<16x256xf32> to vector<16x64xf32>
    %989 = math.tanh %988 : vector<16x64xf32>
    %990 = vector.extract_strided_slice %987 {offsets = [0, 64], sizes = [16, 64], strides = [1, 1]} : vector<16x192xf32> to vector<16x64xf32>
    %991 = arith.mulf %990, %966 : vector<16x64xf32>
    %992 = vector.extract_strided_slice %987 {offsets = [0, 0], sizes = [16, 64], strides = [1, 1]} : vector<16x192xf32> to vector<16x64xf32>
    %993 = arith.mulf %992, %989 : vector<16x64xf32>
    %994 = arith.addf %991, %993 : vector<16x64xf32>
    %995 = vector.extract_strided_slice %987 {offsets = [0, 128], sizes = [16, 64], strides = [1, 1]} : vector<16x192xf32> to vector<16x64xf32>
    %996 = math.tanh %994 : vector<16x64xf32>
    %997 = arith.mulf %995, %996 : vector<16x64xf32>
    %998 = vector.broadcast %15 : vector<16x1xf32> to vector<16x64xf32>
    %999 = arith.mulf %997, %998 : vector<16x64xf32>
    %1000 = vector.broadcast %17 : vector<16x1xf32> to vector<16x64xf32>
    %1001 = arith.mulf %997, %1000 : vector<16x64xf32>
    %1002 = tpu.concatenate %999, %1001 in 1 : vector<16x64xf32>, vector<16x64xf32> -> vector<16x128xf32>
    %1003 = arith.addf %975, %1002 : vector<16x128xf32>
    %1004 = arith.maximumf %976, %1002 : vector<16x128xf32>
    %c208_426 = arith.constant 208 : index
    %c0_427 = arith.constant 0 : index
    %1005 = vector.load %arg14[%c208_426, %c0_427] : memref<256x256xf32, #tpu.memory_space<vmem>>, vector<16x256xf32>
    %cst_428 = arith.constant dense<0.000000e+00> : vector<16x256xf32>
    %1006 = tpu.matmul %1002, %10, %cst_428 {dimension_numbers = #tpu.dot_dimension_numbers<[1], [0], [0], [1], [0, 0, 1, 1], [], []>} : vector<16x128xf32>, vector<128x256xf32>, vector<16x256xf32> -> vector<16x256xf32>
    %1007 = arith.addf %1005, %1006 : vector<16x256xf32>
    %1008 = vector.extract_strided_slice %1007 {offsets = [0, 0], sizes = [16, 192], strides = [1, 1]} : vector<16x256xf32> to vector<16x192xf32>
    %cst_429 = arith.constant 5.000000e-01 : f32
    %1009 = vector.broadcast %cst_429 : f32 to vector<16x192xf32>
    %1010 = arith.mulf %1009, %1008 : vector<16x192xf32>
    %1011 = math.tanh %1010 : vector<16x192xf32>
    %cst_430 = arith.constant 5.000000e-01 : f32
    %1012 = vector.broadcast %cst_430 : f32 to vector<16x192xf32>
    %1013 = arith.mulf %1012, %1011 : vector<16x192xf32>
    %cst_431 = arith.constant 5.000000e-01 : f32
    %1014 = vector.broadcast %cst_431 : f32 to vector<16x192xf32>
    %1015 = arith.addf %1013, %1014 : vector<16x192xf32>
    %1016 = vector.extract_strided_slice %1007 {offsets = [0, 192], sizes = [16, 64], strides = [1, 1]} : vector<16x256xf32> to vector<16x64xf32>
    %1017 = math.tanh %1016 : vector<16x64xf32>
    %1018 = vector.extract_strided_slice %1015 {offsets = [0, 64], sizes = [16, 64], strides = [1, 1]} : vector<16x192xf32> to vector<16x64xf32>
    %1019 = arith.mulf %1018, %994 : vector<16x64xf32>
    %1020 = vector.extract_strided_slice %1015 {offsets = [0, 0], sizes = [16, 64], strides = [1, 1]} : vector<16x192xf32> to vector<16x64xf32>
    %1021 = arith.mulf %1020, %1017 : vector<16x64xf32>
    %1022 = arith.addf %1019, %1021 : vector<16x64xf32>
    %1023 = vector.extract_strided_slice %1015 {offsets = [0, 128], sizes = [16, 64], strides = [1, 1]} : vector<16x192xf32> to vector<16x64xf32>
    %1024 = math.tanh %1022 : vector<16x64xf32>
    %1025 = arith.mulf %1023, %1024 : vector<16x64xf32>
    %1026 = vector.broadcast %15 : vector<16x1xf32> to vector<16x64xf32>
    %1027 = arith.mulf %1025, %1026 : vector<16x64xf32>
    %1028 = vector.broadcast %17 : vector<16x1xf32> to vector<16x64xf32>
    %1029 = arith.mulf %1025, %1028 : vector<16x64xf32>
    %1030 = tpu.concatenate %1027, %1029 in 1 : vector<16x64xf32>, vector<16x64xf32> -> vector<16x128xf32>
    %1031 = arith.addf %1003, %1030 : vector<16x128xf32>
    %1032 = arith.maximumf %1004, %1030 : vector<16x128xf32>
    %c224_432 = arith.constant 224 : index
    %c0_433 = arith.constant 0 : index
    %1033 = vector.load %arg14[%c224_432, %c0_433] : memref<256x256xf32, #tpu.memory_space<vmem>>, vector<16x256xf32>
    %cst_434 = arith.constant dense<0.000000e+00> : vector<16x256xf32>
    %1034 = tpu.matmul %1030, %10, %cst_434 {dimension_numbers = #tpu.dot_dimension_numbers<[1], [0], [0], [1], [0, 0, 1, 1], [], []>} : vector<16x128xf32>, vector<128x256xf32>, vector<16x256xf32> -> vector<16x256xf32>
    %1035 = arith.addf %1033, %1034 : vector<16x256xf32>
    %1036 = vector.extract_strided_slice %1035 {offsets = [0, 0], sizes = [16, 192], strides = [1, 1]} : vector<16x256xf32> to vector<16x192xf32>
    %cst_435 = arith.constant 5.000000e-01 : f32
    %1037 = vector.broadcast %cst_435 : f32 to vector<16x192xf32>
    %1038 = arith.mulf %1037, %1036 : vector<16x192xf32>
    %1039 = math.tanh %1038 : vector<16x192xf32>
    %cst_436 = arith.constant 5.000000e-01 : f32
    %1040 = vector.broadcast %cst_436 : f32 to vector<16x192xf32>
    %1041 = arith.mulf %1040, %1039 : vector<16x192xf32>
    %cst_437 = arith.constant 5.000000e-01 : f32
    %1042 = vector.broadcast %cst_437 : f32 to vector<16x192xf32>
    %1043 = arith.addf %1041, %1042 : vector<16x192xf32>
    %1044 = vector.extract_strided_slice %1035 {offsets = [0, 192], sizes = [16, 64], strides = [1, 1]} : vector<16x256xf32> to vector<16x64xf32>
    %1045 = math.tanh %1044 : vector<16x64xf32>
    %1046 = vector.extract_strided_slice %1043 {offsets = [0, 64], sizes = [16, 64], strides = [1, 1]} : vector<16x192xf32> to vector<16x64xf32>
    %1047 = arith.mulf %1046, %1022 : vector<16x64xf32>
    %1048 = vector.extract_strided_slice %1043 {offsets = [0, 0], sizes = [16, 64], strides = [1, 1]} : vector<16x192xf32> to vector<16x64xf32>
    %1049 = arith.mulf %1048, %1045 : vector<16x64xf32>
    %1050 = arith.addf %1047, %1049 : vector<16x64xf32>
    %1051 = vector.extract_strided_slice %1043 {offsets = [0, 128], sizes = [16, 64], strides = [1, 1]} : vector<16x192xf32> to vector<16x64xf32>
    %1052 = math.tanh %1050 : vector<16x64xf32>
    %1053 = arith.mulf %1051, %1052 : vector<16x64xf32>
    %1054 = vector.broadcast %15 : vector<16x1xf32> to vector<16x64xf32>
    %1055 = arith.mulf %1053, %1054 : vector<16x64xf32>
    %1056 = vector.broadcast %17 : vector<16x1xf32> to vector<16x64xf32>
    %1057 = arith.mulf %1053, %1056 : vector<16x64xf32>
    %1058 = tpu.concatenate %1055, %1057 in 1 : vector<16x64xf32>, vector<16x64xf32> -> vector<16x128xf32>
    %1059 = arith.addf %1031, %1058 : vector<16x128xf32>
    %1060 = arith.maximumf %1032, %1058 : vector<16x128xf32>
    %c240_438 = arith.constant 240 : index
    %c0_439 = arith.constant 0 : index
    %1061 = vector.load %arg14[%c240_438, %c0_439] : memref<256x256xf32, #tpu.memory_space<vmem>>, vector<16x256xf32>
    %cst_440 = arith.constant dense<0.000000e+00> : vector<16x256xf32>
    %1062 = tpu.matmul %1058, %10, %cst_440 {dimension_numbers = #tpu.dot_dimension_numbers<[1], [0], [0], [1], [0, 0, 1, 1], [], []>} : vector<16x128xf32>, vector<128x256xf32>, vector<16x256xf32> -> vector<16x256xf32>
    %1063 = arith.addf %1061, %1062 : vector<16x256xf32>
    %1064 = vector.extract_strided_slice %1063 {offsets = [0, 0], sizes = [16, 192], strides = [1, 1]} : vector<16x256xf32> to vector<16x192xf32>
    %cst_441 = arith.constant 5.000000e-01 : f32
    %1065 = vector.broadcast %cst_441 : f32 to vector<16x192xf32>
    %1066 = arith.mulf %1065, %1064 : vector<16x192xf32>
    %1067 = math.tanh %1066 : vector<16x192xf32>
    %cst_442 = arith.constant 5.000000e-01 : f32
    %1068 = vector.broadcast %cst_442 : f32 to vector<16x192xf32>
    %1069 = arith.mulf %1068, %1067 : vector<16x192xf32>
    %cst_443 = arith.constant 5.000000e-01 : f32
    %1070 = vector.broadcast %cst_443 : f32 to vector<16x192xf32>
    %1071 = arith.addf %1069, %1070 : vector<16x192xf32>
    %1072 = vector.extract_strided_slice %1063 {offsets = [0, 192], sizes = [16, 64], strides = [1, 1]} : vector<16x256xf32> to vector<16x64xf32>
    %1073 = math.tanh %1072 : vector<16x64xf32>
    %1074 = vector.extract_strided_slice %1071 {offsets = [0, 64], sizes = [16, 64], strides = [1, 1]} : vector<16x192xf32> to vector<16x64xf32>
    %1075 = arith.mulf %1074, %1050 : vector<16x64xf32>
    %1076 = vector.extract_strided_slice %1071 {offsets = [0, 0], sizes = [16, 64], strides = [1, 1]} : vector<16x192xf32> to vector<16x64xf32>
    %1077 = arith.mulf %1076, %1073 : vector<16x64xf32>
    %1078 = arith.addf %1075, %1077 : vector<16x64xf32>
    %1079 = vector.extract_strided_slice %1071 {offsets = [0, 128], sizes = [16, 64], strides = [1, 1]} : vector<16x192xf32> to vector<16x64xf32>
    %1080 = math.tanh %1078 : vector<16x64xf32>
    %1081 = arith.mulf %1079, %1080 : vector<16x64xf32>
    %1082 = vector.broadcast %15 : vector<16x1xf32> to vector<16x64xf32>
    %1083 = arith.mulf %1081, %1082 : vector<16x64xf32>
    %1084 = vector.broadcast %17 : vector<16x1xf32> to vector<16x64xf32>
    %1085 = arith.mulf %1081, %1084 : vector<16x64xf32>
    %1086 = tpu.concatenate %1083, %1085 in 1 : vector<16x64xf32>, vector<16x64xf32> -> vector<16x128xf32>
    %1087 = arith.addf %1059, %1086 : vector<16x128xf32>
    %1088 = arith.maximumf %1060, %1086 : vector<16x128xf32>
    %1089 = vector.extract_strided_slice %1088 {offsets = [0, 0], sizes = [8, 128], strides = [1, 1]} : vector<16x128xf32> to vector<8x128xf32>
    %1090 = vector.extract_strided_slice %1088 {offsets = [8, 0], sizes = [8, 128], strides = [1, 1]} : vector<16x128xf32> to vector<8x128xf32>
    %1091 = arith.addf %1089, %1090 : vector<8x128xf32>
    %1092 = vector.extract_strided_slice %1087 {offsets = [0, 0], sizes = [8, 128], strides = [1, 1]} : vector<16x128xf32> to vector<8x128xf32>
    %1093 = vector.extract_strided_slice %1087 {offsets = [8, 0], sizes = [8, 128], strides = [1, 1]} : vector<16x128xf32> to vector<8x128xf32>
    %1094 = arith.addf %1092, %1093 : vector<8x128xf32>
    %cst_444 = arith.constant 6.250000e-02 : f32
    %1095 = vector.broadcast %cst_444 : f32 to vector<8x128xf32>
    %1096 = arith.mulf %1094, %1095 : vector<8x128xf32>
    %1097 = tpu.concatenate %1091, %1096 in 1 : vector<8x128xf32>, vector<8x128xf32> -> vector<8x256xf32>
    %c0_445 = arith.constant 0 : index
    %c0_446 = arith.constant 0 : index
    %1098 = vector.load %arg6[%c0_445, %c0_446] : memref<256x128xf32, #tpu.memory_space<vmem>>, vector<256x128xf32>
    %cst_447 = arith.constant dense<0.000000e+00> : vector<8x128xf32>
    %1099 = tpu.matmul %1097, %1098, %cst_447 {dimension_numbers = #tpu.dot_dimension_numbers<[1], [0], [0], [1], [0, 0, 1, 1], [], []>} : vector<8x256xf32>, vector<256x128xf32>, vector<8x128xf32> -> vector<8x128xf32>
    %c0_448 = arith.constant 0 : index
    %c0_449 = arith.constant 0 : index
    %1100 = vector.load %arg9[%c0_448, %c0_449] : memref<3x128xf32, #tpu.memory_space<vmem>>, vector<1x128xf32>
    %1101 = vector.broadcast %1100 : vector<1x128xf32> to vector<8x128xf32>
    %1102 = arith.addf %1099, %1101 : vector<8x128xf32>
    %cst_450 = arith.constant 0.000000e+00 : f32
    %1103 = vector.broadcast %cst_450 : f32 to vector<8x128xf32>
    %1104 = arith.maximumf %1102, %1103 : vector<8x128xf32>
    %c0_451 = arith.constant 0 : index
    %c0_452 = arith.constant 0 : index
    %1105 = vector.load %arg7[%c0_451, %c0_452] : memref<128x64xf32, #tpu.memory_space<vmem>>, vector<128x64xf32>
    %cst_453 = arith.constant dense<0.000000e+00> : vector<8x64xf32>
    %1106 = tpu.matmul %1104, %1105, %cst_453 {dimension_numbers = #tpu.dot_dimension_numbers<[1], [0], [0], [1], [0, 0, 1, 1], [], []>} : vector<8x128xf32>, vector<128x64xf32>, vector<8x64xf32> -> vector<8x64xf32>
    %c1 = arith.constant 1 : index
    %c0_454 = arith.constant 0 : index
    %1107 = vector.load %arg9[%c1, %c0_454] : memref<3x128xf32, #tpu.memory_space<vmem>>, vector<1x64xf32>
    %1108 = vector.broadcast %1107 : vector<1x64xf32> to vector<8x64xf32>
    %1109 = arith.addf %1106, %1108 : vector<8x64xf32>
    %cst_455 = arith.constant 0.000000e+00 : f32
    %1110 = vector.broadcast %cst_455 : f32 to vector<8x64xf32>
    %1111 = arith.maximumf %1109, %1110 : vector<8x64xf32>
    %c0_456 = arith.constant 0 : index
    %c0_457 = arith.constant 0 : index
    %1112 = vector.load %arg8[%c0_456, %c0_457] : memref<64x7xf32, #tpu.memory_space<vmem>>, vector<64x7xf32>
    %cst_458 = arith.constant dense<0.000000e+00> : vector<8x7xf32>
    %1113 = tpu.matmul %1111, %1112, %cst_458 {dimension_numbers = #tpu.dot_dimension_numbers<[1], [0], [0], [1], [0, 0, 1, 1], [], []>} : vector<8x64xf32>, vector<64x7xf32>, vector<8x7xf32> -> vector<8x7xf32>
    %c2 = arith.constant 2 : index
    %c0_459 = arith.constant 0 : index
    %1114 = vector.load %arg9[%c2, %c0_459] : memref<3x128xf32, #tpu.memory_space<vmem>>, vector<1x7xf32>
    %1115 = vector.broadcast %1114 : vector<1x7xf32> to vector<8x7xf32>
    %1116 = arith.addf %1113, %1115 : vector<8x7xf32>
    %c0_460 = arith.constant 0 : index
    %c0_461 = arith.constant 0 : index
    %1117 = vector.load %arg10[%c0_460, %c0_461] : memref<8x7xf32, #tpu.memory_space<vmem>>, vector<8x7xf32>
    tpu.vector_store %arg10[%c0_460, %c0_461], %1116 {strides = array<i32>} : memref<8x7xf32, #tpu.memory_space<vmem>>, vector<8x7xf32>,
    return
  }
}

</mosaic_0001>

<llo_original>
// kernel: bilstm_forward.1
$region0: #{bilstm_forward.1}
  #allocation0 [shape = 'u32[]', space=smem, size = 0x4, offset = 0x4, fixed_abs, tag = 'smem constant byte address 0x4 - core index']
  #allocation1 [shape = 'u32[144,128]{1,0:T(1,128)}', space=vmem, size = 0x12000, scoped, tag = 'internal scratch']
  #allocation2 [shape = 'f32[256,256]{1,0:T(8,128)}', space=vmem, size = 0x40000, scoped, tag = 'scratch operand']
  #allocation3 [shape = 'f32[128,128]{1,0:T(8,128)}', space=vmem, size = 0x10000, scoped, tag = 'scratch operand']
  #allocation4 [shape = 'f32[128,512]{1,0:T(8,128)}', space=vmem, size = 0x40000, scoped, tag = 'scratch operand']
  #allocation5 [shape = 'f32[256,256]{1,0:T(8,128)}', space=vmem, size = 0x40000, scoped, tag = 'scratch operand']
  %s0 = inlined_call_operand.vmem [shape: s32[256,1], index: 0, kind: input, shape index: {}]
  %s1 = inlined_call_operand.vmem [shape: f32[256,256], index: 1, kind: input, shape index: {}]
  %s2 = inlined_call_operand.hbm [shape: f32[128,256], index: 2, kind: input, shape index: {}]
  %s3 = inlined_call_operand.hbm [shape: f32[128,512], index: 3, kind: input, shape index: {}]
  %s4 = inlined_call_operand.vmem [shape: f32[1,512], index: 4, kind: input, shape index: {}]
  %s5 = inlined_call_operand.hbm [shape: f32[128,256], index: 5, kind: input, shape index: {}]
  %s6 = inlined_call_operand.hbm [shape: f32[256,128], index: 6, kind: input, shape index: {}]
  %s7 = inlined_call_operand.vmem [shape: f32[128,64], index: 7, kind: input, shape index: {}]
  %s8 = inlined_call_operand.vmem [shape: f32[64,7], index: 8, kind: input, shape index: {}]
  %s9 = inlined_call_operand.vmem [shape: f32[3,128], index: 9, kind: input, shape index: {}]
  %s10 = inlined_call_operand.hbm [shape: f32[8,7], index: 10, kind: output, shape index: {}]
  %s11 = sld [smem:[#allocation0]]
  $region66: #{bilstm_forward.1} parent=0
    _
  %s13 = ssub.s32 1, %s11
  %s14 = scalar_select 0, %s13, %s11
  $region1: #{bilstm_forward.1} parent=0
    #allocation6 [shape = 'u8[131072]{0}', space=vmem, size = 0x20000, scoped, tag = 'input window, operand 2, single buffered']
    #allocation7 [shape = 's32[1]{0}', space=sflag, size = 0x4, scoped, tag = 'scoped memory for bilstm_forward.1']
    #allocation8 [shape = 's32[1]{0}', space=sflag, size = 0x4, scoped, tag = 'scoped memory for bilstm_forward.1']
    #allocation9 [shape = 'u8[262144]{0}', space=vmem, size = 0x40000, scoped, tag = 'input window, operand 3, single buffered']
    #allocation10 [shape = 's32[1]{0}', space=sflag, size = 0x4, scoped, tag = 'scoped memory for bilstm_forward.1']
    #allocation11 [shape = 'u8[131072]{0}', space=vmem, size = 0x20000, scoped, tag = 'input window, operand 5, single buffered']
    #allocation12 [shape = 'u8[131072]{0}', space=vmem, size = 0x20000, scoped, tag = 'input window, operand 6, single buffered']
    #allocation13 [shape = 's32[1]{0}', space=sflag, size = 0x4, scoped, tag = 'scoped memory for bilstm_forward.1']
    #allocation14 [shape = 'u8[4096]{0}', space=vmem, size = 0x1000, scoped, tag = 'output window, operand 0, single buffered']
    %15 = vsyncpa [#allocation7], 0
    %16 = vsyncpa [#allocation10], 0
    %17 = vsyncpa [#allocation13], 0
    %18 = vsyncpa [#allocation8], 0
    // Predicated region
    $region2: #{bilstm_forward.1} parent=1 // pred_check
      _
    $region3: #{bilstm_forward.1} parent=1 // pred_check_branch
      %20 = sbr.rel (0) target = $region5
    $region4: #{bilstm_forward.1} parent=1 // pred_region
      _
    $region5: #{bilstm_forward.1} parent=1 // pred_fallthru
      _
    // Predicated region
    $region6: #{bilstm_forward.1} parent=1 // pred_check
      _
    $region7: #{bilstm_forward.1} parent=1 // pred_check_branch
      %22 = sbr.rel (0) target = $region9
    $region8: #{bilstm_forward.1} parent=1 // pred_region
      _
    $region9: #{bilstm_forward.1} parent=1 // pred_fallthru
      _
    // Predicated region
    $region10: #{bilstm_forward.1} parent=1 // pred_check
      _
    $region11: #{bilstm_forward.1} parent=1 // pred_check_branch
      %24 = sbr.rel (0) target = $region13
    $region12: #{bilstm_forward.1} parent=1 // pred_region
      %s26 = ssub.s32 4096, 4096
      %27 = vsyncadd [#allocation7], %s26
      %s28 = sshll.u32 [#allocation6], 4
      %s29 = int_to_ptr.vmem [resolvable:$true] %s28
      %34 = dma.hbm_to_vmem [thread:$0]  %s2, 4096, %s29, [#allocation7], 256, 256, 16
    $region13: #{bilstm_forward.1} parent=1 // pred_fallthru
      _
    // Predicated region
    $region14: #{bilstm_forward.1} parent=1 // pred_check
      _
    $region15: #{bilstm_forward.1} parent=1 // pred_check_branch
      %36 = sbr.rel (0) target = $region17
    $region16: #{bilstm_forward.1} parent=1 // pred_region
      %s38 = ssub.s32 8192, 8192
      %39 = vsyncadd [#allocation10], %s38
      %s40 = sshll.u32 [#allocation9], 4
      %s41 = int_to_ptr.vmem [resolvable:$true] %s40
      %46 = dma.hbm_to_vmem [thread:$0]  %s3, 8192, %s41, [#allocation10], 512, 512, 32
    $region17: #{bilstm_forward.1} parent=1 // pred_fallthru
      _
    // Predicated region
    $region18: #{bilstm_forward.1} parent=1 // pred_check
      _
    $region19: #{bilstm_forward.1} parent=1 // pred_check_branch
      %48 = sbr.rel (0) target = $region21
    $region20: #{bilstm_forward.1} parent=1 // pred_region
      _
    $region21: #{bilstm_forward.1} parent=1 // pred_fallthru
      _
    // Predicated region
    $region22: #{bilstm_forward.1} parent=1 // pred_check
      _
    $region23: #{bilstm_forward.1} parent=1 // pred_check_branch
      %50 = sbr.rel (0) target = $region25
    $region24: #{bilstm_forward.1} parent=1 // pred_region
      %s52 = ssub.s32 4096, 4096
      %53 = vsyncadd [#allocation10], %s52
      %s54 = sshll.u32 [#allocation11], 4
      %s55 = int_to_ptr.vmem [resolvable:$true] %s54
      %60 = dma.hbm_to_vmem [thread:$0]  %s5, 4096, %s55, [#allocation10], 256, 256, 16
    $region25: #{bilstm_forward.1} parent=1 // pred_fallthru
      _
    // Predicated region
    $region26: #{bilstm_forward.1} parent=1 // pred_check
      _
    $region27: #{bilstm_forward.1} parent=1 // pred_check_branch
      %62 = sbr.rel (0) target = $region29
    $region28: #{bilstm_forward.1} parent=1 // pred_region
      %s64 = ssub.s32 4096, 4096
      %65 = vsyncadd [#allocation13], %s64
      %s66 = sshll.u32 [#allocation12], 4
      %s67 = int_to_ptr.vmem [resolvable:$true] %s66
      %72 = dma.hbm_to_vmem [thread:$0]  %s6, 4096, %s67, [#allocation13], 128, 128, 8
    $region29: #{bilstm_forward.1} parent=1 // pred_fallthru
      _
    // Predicated region
    $region30: #{bilstm_forward.1} parent=1 // pred_check
      _
    $region31: #{bilstm_forward.1} parent=1 // pred_check_branch
      %74 = sbr.rel (0) target = $region33
    $region32: #{bilstm_forward.1} parent=1 // pred_region
      _
    $region33: #{bilstm_forward.1} parent=1 // pred_fallthru
      _
    // Predicated region
    $region34: #{bilstm_forward.1} parent=1 // pred_check
      _
    $region35: #{bilstm_forward.1} parent=1 // pred_check_branch
      %76 = sbr.rel (0) target = $region37
    $region36: #{bilstm_forward.1} parent=1 // pred_region
      _
    $region37: #{bilstm_forward.1} parent=1 // pred_fallthru
      _
    // Predicated region
    $region38: #{bilstm_forward.1} parent=1 // pred_check
      _
    $region39: #{bilstm_forward.1} parent=1 // pred_check_branch
      %78 = sbr.rel (0) target = $region41
    $region40: #{bilstm_forward.1} parent=1 // pred_region
      _
    $region41: #{bilstm_forward.1} parent=1 // pred_fallthru
      _
    // Predicated region
    $region42: #{bilstm_forward.1} parent=1 // pred_check
      _
    $region43: #{bilstm_forward.1} parent=1 // pred_check_branch
      %80 = sbr.rel (0) target = $region45
    $region44: #{bilstm_forward.1} parent=1 // pred_region
      %81 = dma.done [#allocation7], 4096
    $region45: #{bilstm_forward.1} parent=1 // pred_fallthru
      _
    // Predicated region
    $region46: #{bilstm_forward.1} parent=1 // pred_check
      _
    $region47: #{bilstm_forward.1} parent=1 // pred_check_branch
      %83 = sbr.rel (0) target = $region49
    $region48: #{bilstm_forward.1} parent=1 // pred_region
      %84 = dma.done [#allocation10], 8192
    $region49: #{bilstm_forward.1} parent=1 // pred_fallthru
      _
    // Predicated region
    $region50: #{bilstm_forward.1} parent=1 // pred_check
      _
    $region51: #{bilstm_forward.1} parent=1 // pred_check_branch
      %86 = sbr.rel (0) target = $region53
    $region52: #{bilstm_forward.1} parent=1 // pred_region
      %87 = dma.done [#allocation10], 4096
    $region53: #{bilstm_forward.1} parent=1 // pred_fallthru
      _
    // Predicated region
    $region54: #{bilstm_forward.1} parent=1 // pred_check
      _
    $region55: #{bilstm_forward.1} parent=1 // pred_check_branch
      %89 = sbr.rel (0) target = $region57
    $region56: #{bilstm_forward.1} parent=1 // pred_region
      %90 = dma.done [#allocation13], 4096
    $region57: #{bilstm_forward.1} parent=1 // pred_fallthru
      _
    %v91 = vld [vmem:[%s0] sm:$0xff]
    %v92 = vld [vmem:[%s0 + $0x8] sm:$0xff]
    %v93 = vld [vmem:[%s0 + $0x10] sm:$0xff]
    %v94 = vld [vmem:[%s0 + $0x18] sm:$0xff]
    %v95 = vld [vmem:[%s0 + $0x20] sm:$0xff]
    %v96 = vld [vmem:[%s0 + $0x28] sm:$0xff]
    %v97 = vld [vmem:[%s0 + $0x30] sm:$0xff]
    %v98 = vld [vmem:[%s0 + $0x38] sm:$0xff]
    %v99 = vld [vmem:[%s0 + $0x40] sm:$0xff]
    %v100 = vld [vmem:[%s0 + $0x48] sm:$0xff]
    %v101 = vld [vmem:[%s0 + $0x50] sm:$0xff]
    %v102 = vld [vmem:[%s0 + $0x58] sm:$0xff]
    %v103 = vld [vmem:[%s0 + $0x60] sm:$0xff]
    %v104 = vld [vmem:[%s0 + $0x68] sm:$0xff]
    %v105 = vld [vmem:[%s0 + $0x70] sm:$0xff]
    %v106 = vld [vmem:[%s0 + $0x78] sm:$0xff]
    %v107 = vld [vmem:[%s0 + $0x80] sm:$0xff]
    %v108 = vld [vmem:[%s0 + $0x88] sm:$0xff]
    %v109 = vld [vmem:[%s0 + $0x90] sm:$0xff]
    %v110 = vld [vmem:[%s0 + $0x98] sm:$0xff]
    %v111 = vld [vmem:[%s0 + $0xa0] sm:$0xff]
    %v112 = vld [vmem:[%s0 + $0xa8] sm:$0xff]
    %v113 = vld [vmem:[%s0 + $0xb0] sm:$0xff]
    %v114 = vld [vmem:[%s0 + $0xb8] sm:$0xff]
    %v115 = vld [vmem:[%s0 + $0xc0] sm:$0xff]
    %v116 = vld [vmem:[%s0 + $0xc8] sm:$0xff]
    %v117 = vld [vmem:[%s0 + $0xd0] sm:$0xff]
    %v118 = vld [vmem:[%s0 + $0xd8] sm:$0xff]
    %v119 = vld [vmem:[%s0 + $0xe0] sm:$0xff]
    %v120 = vld [vmem:[%s0 + $0xe8] sm:$0xff]
    %v121 = vld [vmem:[%s0 + $0xf0] sm:$0xff]
    %v122 = vld [vmem:[%s0 + $0xf8] sm:$0xff]
    %v123 = vlaneseq
    %v124 = vand.u32 %v123, 127
    %v125 = vadd.s32 %v124, 128
    %126 = vset.pattern.permute.xlu0 0
    %127 = vperm.xlu0 %126, %v91
    %v128 = vpop.permute.xlu0 %127
    %129 = vset.pattern.permute.xlu0 0
    %130 = vperm.xlu0 %129, %v92
    %v131 = vpop.permute.xlu0 %130
    %132 = vset.pattern.permute.xlu0 0
    %133 = vperm.xlu0 %132, %v93
    %v134 = vpop.permute.xlu0 %133
    %135 = vset.pattern.permute.xlu0 0
    %136 = vperm.xlu0 %135, %v94
    %v137 = vpop.permute.xlu0 %136
    %138 = vset.pattern.permute.xlu0 0
    %139 = vperm.xlu0 %138, %v95
    %v140 = vpop.permute.xlu0 %139
    %141 = vset.pattern.permute.xlu0 0
    %142 = vperm.xlu0 %141, %v96
    %v143 = vpop.permute.xlu0 %142
    %144 = vset.pattern.permute.xlu0 0
    %145 = vperm.xlu0 %144, %v97
    %v146 = vpop.permute.xlu0 %145
    %147 = vset.pattern.permute.xlu0 0
    %148 = vperm.xlu0 %147, %v98
    %v149 = vpop.permute.xlu0 %148
    %150 = vset.pattern.permute.xlu0 0
    %151 = vperm.xlu0 %150, %v99
    %v152 = vpop.permute.xlu0 %151
    %153 = vset.pattern.permute.xlu0 0
    %154 = vperm.xlu0 %153, %v100
    %v155 = vpop.permute.xlu0 %154
    %156 = vset.pattern.permute.xlu0 0
    %157 = vperm.xlu0 %156, %v101
    %v158 = vpop.permute.xlu0 %157
    %159 = vset.pattern.permute.xlu0 0
    %160 = vperm.xlu0 %159, %v102
    %v161 = vpop.permute.xlu0 %160
    %162 = vset.pattern.permute.xlu0 0
    %163 = vperm.xlu0 %162, %v103
    %v164 = vpop.permute.xlu0 %163
    %165 = vset.pattern.permute.xlu0 0
    %166 = vperm.xlu0 %165, %v104
    %v167 = vpop.permute.xlu0 %166
    %168 = vset.pattern.permute.xlu0 0
    %169 = vperm.xlu0 %168, %v105
    %v170 = vpop.permute.xlu0 %169
    %171 = vset.pattern.permute.xlu0 0
    %172 = vperm.xlu0 %171, %v106
    %v173 = vpop.permute.xlu0 %172
    %174 = vset.pattern.permute.xlu0 0
    %175 = vperm.xlu0 %174, %v107
    %v176 = vpop.permute.xlu0 %175
    %177 = vset.pattern.permute.xlu0 0
    %178 = vperm.xlu0 %177, %v108
    %v179 = vpop.permute.xlu0 %178
    %180 = vset.pattern.permute.xlu0 0
    %181 = vperm.xlu0 %180, %v109
    %v182 = vpop.permute.xlu0 %181
    %183 = vset.pattern.permute.xlu0 0
    %184 = vperm.xlu0 %183, %v110
    %v185 = vpop.permute.xlu0 %184
    %186 = vset.pattern.permute.xlu0 0
    %187 = vperm.xlu0 %186, %v111
    %v188 = vpop.permute.xlu0 %187
    %189 = vset.pattern.permute.xlu0 0
    %190 = vperm.xlu0 %189, %v112
    %v191 = vpop.permute.xlu0 %190
    %192 = vset.pattern.permute.xlu0 0
    %193 = vperm.xlu0 %192, %v113
    %v194 = vpop.permute.xlu0 %193
    %195 = vset.pattern.permute.xlu0 0
    %196 = vperm.xlu0 %195, %v114
    %v197 = vpop.permute.xlu0 %196
    %198 = vset.pattern.permute.xlu0 0
    %199 = vperm.xlu0 %198, %v115
    %v200 = vpop.permute.xlu0 %199
    %201 = vset.pattern.permute.xlu0 0
    %202 = vperm.xlu0 %201, %v116
    %v203 = vpop.permute.xlu0 %202
    %204 = vset.pattern.permute.xlu0 0
    %205 = vperm.xlu0 %204, %v117
    %v206 = vpop.permute.xlu0 %205
    %207 = vset.pattern.permute.xlu0 0
    %208 = vperm.xlu0 %207, %v118
    %v209 = vpop.permute.xlu0 %208
    %210 = vset.pattern.permute.xlu0 0
    %211 = vperm.xlu0 %210, %v119
    %v212 = vpop.permute.xlu0 %211
    %213 = vset.pattern.permute.xlu0 0
    %214 = vperm.xlu0 %213, %v120
    %v215 = vpop.permute.xlu0 %214
    %216 = vset.pattern.permute.xlu0 0
    %217 = vperm.xlu0 %216, %v121
    %v218 = vpop.permute.xlu0 %217
    %219 = vset.pattern.permute.xlu0 0
    %220 = vperm.xlu0 %219, %v122
    %v221 = vpop.permute.xlu0 %220
    %vm222 = vcmp.eq.s32.totalorder %v128, %v124
    %vm223 = vcmp.eq.s32.totalorder %v128, %v125
    %vm224 = vcmp.eq.s32.totalorder %v131, %v124
    %vm225 = vcmp.eq.s32.totalorder %v131, %v125
    %vm226 = vcmp.eq.s32.totalorder %v134, %v124
    %vm227 = vcmp.eq.s32.totalorder %v134, %v125
    %vm228 = vcmp.eq.s32.totalorder %v137, %v124
    %vm229 = vcmp.eq.s32.totalorder %v137, %v125
    %vm230 = vcmp.eq.s32.totalorder %v140, %v124
    %vm231 = vcmp.eq.s32.totalorder %v140, %v125
    %vm232 = vcmp.eq.s32.totalorder %v143, %v124
    %vm233 = vcmp.eq.s32.totalorder %v143, %v125
    %vm234 = vcmp.eq.s32.totalorder %v146, %v124
    %vm235 = vcmp.eq.s32.totalorder %v146, %v125
    %vm236 = vcmp.eq.s32.totalorder %v149, %v124
    %vm237 = vcmp.eq.s32.totalorder %v149, %v125
    %vm238 = vcmp.eq.s32.totalorder %v152, %v124
    %vm239 = vcmp.eq.s32.totalorder %v152, %v125
    %vm240 = vcmp.eq.s32.totalorder %v155, %v124
    %vm241 = vcmp.eq.s32.totalorder %v155, %v125
    %vm242 = vcmp.eq.s32.totalorder %v158, %v124
    %vm243 = vcmp.eq.s32.totalorder %v158, %v125
    %vm244 = vcmp.eq.s32.totalorder %v161, %v124
    %vm245 = vcmp.eq.s32.totalorder %v161, %v125
    %vm246 = vcmp.eq.s32.totalorder %v164, %v124
    %vm247 = vcmp.eq.s32.totalorder %v164, %v125
    %vm248 = vcmp.eq.s32.totalorder %v167, %v124
    %vm249 = vcmp.eq.s32.totalorder %v167, %v125
    %vm250 = vcmp.eq.s32.totalorder %v170, %v124
    %vm251 = vcmp.eq.s32.totalorder %v170, %v125
    %vm252 = vcmp.eq.s32.totalorder %v173, %v124
    %vm253 = vcmp.eq.s32.totalorder %v173, %v125
    %vm254 = vcmp.eq.s32.totalorder %v176, %v124
    %vm255 = vcmp.eq.s32.totalorder %v176, %v125
    %vm256 = vcmp.eq.s32.totalorder %v179, %v124
    %vm257 = vcmp.eq.s32.totalorder %v179, %v125
    %vm258 = vcmp.eq.s32.totalorder %v182, %v124
    %vm259 = vcmp.eq.s32.totalorder %v182, %v125
    %vm260 = vcmp.eq.s32.totalorder %v185, %v124
    %vm261 = vcmp.eq.s32.totalorder %v185, %v125
    %vm262 = vcmp.eq.s32.totalorder %v188, %v124
    %vm263 = vcmp.eq.s32.totalorder %v188, %v125
    %vm264 = vcmp.eq.s32.totalorder %v191, %v124
    %vm265 = vcmp.eq.s32.totalorder %v191, %v125
    %vm266 = vcmp.eq.s32.totalorder %v194, %v124
    %vm267 = vcmp.eq.s32.totalorder %v194, %v125
    %vm268 = vcmp.eq.s32.totalorder %v197, %v124
    %vm269 = vcmp.eq.s32.totalorder %v197, %v125
    %vm270 = vcmp.eq.s32.totalorder %v200, %v124
    %vm271 = vcmp.eq.s32.totalorder %v200, %v125
    %vm272 = vcmp.eq.s32.totalorder %v203, %v124
    %vm273 = vcmp.eq.s32.totalorder %v203, %v125
    %vm274 = vcmp.eq.s32.totalorder %v206, %v124
    %vm275 = vcmp.eq.s32.totalorder %v206, %v125
    %vm276 = vcmp.eq.s32.totalorder %v209, %v124
    %vm277 = vcmp.eq.s32.totalorder %v209, %v125
    %vm278 = vcmp.eq.s32.totalorder %v212, %v124
    %vm279 = vcmp.eq.s32.totalorder %v212, %v125
    %vm280 = vcmp.eq.s32.totalorder %v215, %v124
    %vm281 = vcmp.eq.s32.totalorder %v215, %v125
    %vm282 = vcmp.eq.s32.totalorder %v218, %v124
    %vm283 = vcmp.eq.s32.totalorder %v218, %v125
    %vm284 = vcmp.eq.s32.totalorder %v221, %v124
    %vm285 = vcmp.eq.s32.totalorder %v221, %v125
    %v286 = vsel %vm222, 1, 0
    %v287 = vsel %vm223, 1, 0
    %v288 = vsel %vm224, 1, 0
    %v289 = vsel %vm225, 1, 0
    %v290 = vsel %vm226, 1, 0
    %v291 = vsel %vm227, 1, 0
    %v292 = vsel %vm228, 1, 0
    %v293 = vsel %vm229, 1, 0
    %v294 = vsel %vm230, 1, 0
    %v295 = vsel %vm231, 1, 0
    %v296 = vsel %vm232, 1, 0
    %v297 = vsel %vm233, 1, 0
    %v298 = vsel %vm234, 1, 0
    %v299 = vsel %vm235, 1, 0
    %v300 = vsel %vm236, 1, 0
    %v301 = vsel %vm237, 1, 0
    %v302 = vsel %vm238, 1, 0
    %v303 = vsel %vm239, 1, 0
    %v304 = vsel %vm240, 1, 0
    %v305 = vsel %vm241, 1, 0
    %v306 = vsel %vm242, 1, 0
    %v307 = vsel %vm243, 1, 0
    %v308 = vsel %vm244, 1, 0
    %v309 = vsel %vm245, 1, 0
    %v310 = vsel %vm246, 1, 0
    %v311 = vsel %vm247, 1, 0
    %v312 = vsel %vm248, 1, 0
    %v313 = vsel %vm249, 1, 0
    %v314 = vsel %vm250, 1, 0
    %v315 = vsel %vm251, 1, 0
    %v316 = vsel %vm252, 1, 0
    %v317 = vsel %vm253, 1, 0
    %v318 = vsel %vm254, 1, 0
    %v319 = vsel %vm255, 1, 0
    %v320 = vsel %vm256, 1, 0
    %v321 = vsel %vm257, 1, 0
    %v322 = vsel %vm258, 1, 0
    %v323 = vsel %vm259, 1, 0
    %v324 = vsel %vm260, 1, 0
    %v325 = vsel %vm261, 1, 0
    %v326 = vsel %vm262, 1, 0
    %v327 = vsel %vm263, 1, 0
    %v328 = vsel %vm264, 1, 0
    %v329 = vsel %vm265, 1, 0
    %v330 = vsel %vm266, 1, 0
    %v331 = vsel %vm267, 1, 0
    %v332 = vsel %vm268, 1, 0
    %v333 = vsel %vm269, 1, 0
    %v334 = vsel %vm270, 1, 0
    %v335 = vsel %vm271, 1, 0
    %v336 = vsel %vm272, 1, 0
    %v337 = vsel %vm273, 1, 0
    %v338 = vsel %vm274, 1, 0
    %v339 = vsel %vm275, 1, 0
    %v340 = vsel %vm276, 1, 0
    %v341 = vsel %vm277, 1, 0
    %v342 = vsel %vm278, 1, 0
    %v343 = vsel %vm279, 1, 0
    %v344 = vsel %vm280, 1, 0
    %v345 = vsel %vm281, 1, 0
    %v346 = vsel %vm282, 1, 0
    %v347 = vsel %vm283, 1, 0
    %v348 = vsel %vm284, 1, 0
    %v349 = vsel %vm285, 1, 0
    %v350 = vcvt.s32.f32 %v286
    %v351 = vcvt.s32.f32 %v287
    %v352 = vcvt.s32.f32 %v288
    %v353 = vcvt.s32.f32 %v289
    %v354 = vcvt.s32.f32 %v290
    %v355 = vcvt.s32.f32 %v291
    %v356 = vcvt.s32.f32 %v292
    %v357 = vcvt.s32.f32 %v293
    %v358 = vcvt.s32.f32 %v294
    %v359 = vcvt.s32.f32 %v295
    %v360 = vcvt.s32.f32 %v296
    %v361 = vcvt.s32.f32 %v297
    %v362 = vcvt.s32.f32 %v298
    %v363 = vcvt.s32.f32 %v299
    %v364 = vcvt.s32.f32 %v300
    %v365 = vcvt.s32.f32 %v301
    %v366 = vcvt.s32.f32 %v302
    %v367 = vcvt.s32.f32 %v303
    %v368 = vcvt.s32.f32 %v304
    %v369 = vcvt.s32.f32 %v305
    %v370 = vcvt.s32.f32 %v306
    %v371 = vcvt.s32.f32 %v307
    %v372 = vcvt.s32.f32 %v308
    %v373 = vcvt.s32.f32 %v309
    %v374 = vcvt.s32.f32 %v310
    %v375 = vcvt.s32.f32 %v311
    %v376 = vcvt.s32.f32 %v312
    %v377 = vcvt.s32.f32 %v313
    %v378 = vcvt.s32.f32 %v314
    %v379 = vcvt.s32.f32 %v315
    %v380 = vcvt.s32.f32 %v316
    %v381 = vcvt.s32.f32 %v317
    %v382 = vcvt.s32.f32 %v318
    %v383 = vcvt.s32.f32 %v319
    %v384 = vcvt.s32.f32 %v320
    %v385 = vcvt.s32.f32 %v321
    %v386 = vcvt.s32.f32 %v322
    %v387 = vcvt.s32.f32 %v323
    %v388 = vcvt.s32.f32 %v324
    %v389 = vcvt.s32.f32 %v325
    %v390 = vcvt.s32.f32 %v326
    %v391 = vcvt.s32.f32 %v327
    %v392 = vcvt.s32.f32 %v328
    %v393 = vcvt.s32.f32 %v329
    %v394 = vcvt.s32.f32 %v330
    %v395 = vcvt.s32.f32 %v331
    %v396 = vcvt.s32.f32 %v332
    %v397 = vcvt.s32.f32 %v333
    %v398 = vcvt.s32.f32 %v334
    %v399 = vcvt.s32.f32 %v335
    %v400 = vcvt.s32.f32 %v336
    %v401 = vcvt.s32.f32 %v337
    %v402 = vcvt.s32.f32 %v338
    %v403 = vcvt.s32.f32 %v339
    %v404 = vcvt.s32.f32 %v340
    %v405 = vcvt.s32.f32 %v341
    %v406 = vcvt.s32.f32 %v342
    %v407 = vcvt.s32.f32 %v343
    %v408 = vcvt.s32.f32 %v344
    %v409 = vcvt.s32.f32 %v345
    %v410 = vcvt.s32.f32 %v346
    %v411 = vcvt.s32.f32 %v347
    %v412 = vcvt.s32.f32 %v348
    %v413 = vcvt.s32.f32 %v349
    %v414 = vld [vmem:[%s1] sm:$0xff]
    %v415 = vld [vmem:[%s1 + $0x8] sm:$0xff]
    %v416 = vld [vmem:[%s1 + $0x10] sm:$0xff]
    %v417 = vld [vmem:[%s1 + $0x18] sm:$0xff]
    %v418 = vld [vmem:[%s1 + $0x20] sm:$0xff]
    %v419 = vld [vmem:[%s1 + $0x28] sm:$0xff]
    %v420 = vld [vmem:[%s1 + $0x30] sm:$0xff]
    %v421 = vld [vmem:[%s1 + $0x38] sm:$0xff]
    %v422 = vld [vmem:[%s1 + $0x40] sm:$0xff]
    %v423 = vld [vmem:[%s1 + $0x48] sm:$0xff]
    %v424 = vld [vmem:[%s1 + $0x50] sm:$0xff]
    %v425 = vld [vmem:[%s1 + $0x58] sm:$0xff]
    %v426 = vld [vmem:[%s1 + $0x60] sm:$0xff]
    %v427 = vld [vmem:[%s1 + $0x68] sm:$0xff]
    %v428 = vld [vmem:[%s1 + $0x70] sm:$0xff]
    %v429 = vld [vmem:[%s1 + $0x78] sm:$0xff]
    %v430 = vld [vmem:[%s1 + $0x80] sm:$0xff]
    %v431 = vld [vmem:[%s1 + $0x88] sm:$0xff]
    %v432 = vld [vmem:[%s1 + $0x90] sm:$0xff]
    %v433 = vld [vmem:[%s1 + $0x98] sm:$0xff]
    %v434 = vld [vmem:[%s1 + $0xa0] sm:$0xff]
    %v435 = vld [vmem:[%s1 + $0xa8] sm:$0xff]
    %v436 = vld [vmem:[%s1 + $0xb0] sm:$0xff]
    %v437 = vld [vmem:[%s1 + $0xb8] sm:$0xff]
    %v438 = vld [vmem:[%s1 + $0xc0] sm:$0xff]
    %v439 = vld [vmem:[%s1 + $0xc8] sm:$0xff]
    %v440 = vld [vmem:[%s1 + $0xd0] sm:$0xff]
    %v441 = vld [vmem:[%s1 + $0xd8] sm:$0xff]
    %v442 = vld [vmem:[%s1 + $0xe0] sm:$0xff]
    %v443 = vld [vmem:[%s1 + $0xe8] sm:$0xff]
    %v444 = vld [vmem:[%s1 + $0xf0] sm:$0xff]
    %v445 = vld [vmem:[%s1 + $0xf8] sm:$0xff]
    %v446 = vld [vmem:[%s1 + $0x100] sm:$0xff]
    %v447 = vld [vmem:[%s1 + $0x108] sm:$0xff]
    %v448 = vld [vmem:[%s1 + $0x110] sm:$0xff]
    %v449 = vld [vmem:[%s1 + $0x118] sm:$0xff]
    %v450 = vld [vmem:[%s1 + $0x120] sm:$0xff]
    %v451 = vld [vmem:[%s1 + $0x128] sm:$0xff]
    %v452 = vld [vmem:[%s1 + $0x130] sm:$0xff]
    %v453 = vld [vmem:[%s1 + $0x138] sm:$0xff]
    %v454 = vld [vmem:[%s1 + $0x140] sm:$0xff]
    %v455 = vld [vmem:[%s1 + $0x148] sm:$0xff]
    %v456 = vld [vmem:[%s1 + $0x150] sm:$0xff]
    %v457 = vld [vmem:[%s1 + $0x158] sm:$0xff]
    %v458 = vld [vmem:[%s1 + $0x160] sm:$0xff]
    %v459 = vld [vmem:[%s1 + $0x168] sm:$0xff]
    %v460 = vld [vmem:[%s1 + $0x170] sm:$0xff]
    %v461 = vld [vmem:[%s1 + $0x178] sm:$0xff]
    %v462 = vld [vmem:[%s1 + $0x180] sm:$0xff]
    %v463 = vld [vmem:[%s1 + $0x188] sm:$0xff]
    %v464 = vld [vmem:[%s1 + $0x190] sm:$0xff]
    %v465 = vld [vmem:[%s1 + $0x198] sm:$0xff]
    %v466 = vld [vmem:[%s1 + $0x1a0] sm:$0xff]
    %v467 = vld [vmem:[%s1 + $0x1a8] sm:$0xff]
    %v468 = vld [vmem:[%s1 + $0x1b0] sm:$0xff]
    %v469 = vld [vmem:[%s1 + $0x1b8] sm:$0xff]
    %v470 = vld [vmem:[%s1 + $0x1c0] sm:$0xff]
    %v471 = vld [vmem:[%s1 + $0x1c8] sm:$0xff]
    %v472 = vld [vmem:[%s1 + $0x1d0] sm:$0xff]
    %v473 = vld [vmem:[%s1 + $0x1d8] sm:$0xff]
    %v474 = vld [vmem:[%s1 + $0x1e0] sm:$0xff]
    %v475 = vld [vmem:[%s1 + $0x1e8] sm:$0xff]
    %v476 = vld [vmem:[%s1 + $0x1f0] sm:$0xff]
    %v477 = vld [vmem:[%s1 + $0x1f8] sm:$0xff]
    %478 = vmatprep.subr.mxu0 %v415
    %479 = vmatpush1.msra.mxu0 %v414
    %480 = vmatprep.subr.mxu0 %v417
    %481 = vmatpush1.msra.mxu0 %v416
    %482 = vmatprep.subr.mxu0 %v419
    %483 = vmatpush1.msra.mxu0 %v418
    %484 = vmatprep.subr.mxu0 %v421
    %485 = vmatpush1.msra.mxu0 %v420
    %486 = vmatprep.subr.mxu0 %v423
    %487 = vmatpush1.msra.mxu0 %v422
    %488 = vmatprep.subr.mxu0 %v425
    %489 = vmatpush1.msra.mxu0 %v424
    %490 = vmatprep.subr.mxu0 %v427
    %491 = vmatpush1.msra.mxu0 %v426
    %492 = vmatprep.subr.mxu0 %v429
    %493 = vmatpush1.msra.mxu0 %v428
    %494 = vmatprep.subr.mxu0 %v431
    %495 = vmatpush1.msra.mxu0 %v430
    %496 = vmatprep.subr.mxu0 %v433
    %497 = vmatpush1.msra.mxu0 %v432
    %498 = vmatprep.subr.mxu0 %v435
    %499 = vmatpush1.msra.mxu0 %v434
    %500 = vmatprep.subr.mxu0 %v437
    %501 = vmatpush1.msra.mxu0 %v436
    %502 = vmatprep.subr.mxu0 %v439
    %503 = vmatpush1.msra.mxu0 %v438
    %504 = vmatprep.subr.mxu0 %v441
    %505 = vmatpush1.msra.mxu0 %v440
    %506 = vmatprep.subr.mxu0 %v443
    %507 = vmatpush1.msra.mxu0 %v442
    %508 = vmatprep.subr.mxu0 %v445
    %509 = vmatpush1.msra.mxu0 %v444
    %510 = vmatprep.subr.mxu0 %v447
    %511 = vmatpush1.msra.mxu0 %v446
    %512 = vmatprep.subr.mxu0 %v449
    %513 = vmatpush1.msra.mxu0 %v448
    %514 = vmatprep.subr.mxu0 %v451
    %515 = vmatpush1.msra.mxu0 %v450
    %516 = vmatprep.subr.mxu0 %v453
    %517 = vmatpush1.msra.mxu0 %v452
    %518 = vmatprep.subr.mxu0 %v455
    %519 = vmatpush1.msra.mxu0 %v454
    %520 = vmatprep.subr.mxu0 %v457
    %521 = vmatpush1.msra.mxu0 %v456
    %522 = vmatprep.subr.mxu0 %v459
    %523 = vmatpush1.msra.mxu0 %v458
    %524 = vmatprep.subr.mxu0 %v461
    %525 = vmatpush1.msra.mxu0 %v460
    %526 = vmatprep.subr.mxu0 %v463
    %527 = vmatpush1.msra.mxu0 %v462
    %528 = vmatprep.subr.mxu0 %v465
    %529 = vmatpush1.msra.mxu0 %v464
    %530 = vmatprep.subr.mxu0 %v467
    %531 = vmatpush1.msra.mxu0 %v466
    %532 = vmatprep.subr.mxu0 %v469
    %533 = vmatpush1.msra.mxu0 %v468
    %534 = vmatprep.subr.mxu0 %v471
    %535 = vmatpush1.msra.mxu0 %v470
    %536 = vmatprep.subr.mxu0 %v473
    %537 = vmatpush1.msra.mxu0 %v472
    %538 = vmatprep.subr.mxu0 %v475
    %539 = vmatpush1.msra.mxu0 %v474
    %540 = vmatprep.subr.mxu0 %v477
    %541 = vmatpush1.msra.mxu0 %v476
    %542 = vmatprep.mubr.f32.mxu0 %v351
    %543 = vmatmul.mubr.f32.gmra.mrb[0].mxu0 %v350
    %v544 = vpop.f32.mrb[0].mxu0
    %v545 = vadd.f32 0.0, %v544
    %v546 = vpop.f32.mrb[0].mxu0
    %v547 = vadd.f32 0.0, %v546
    %548 = vmatprep.mubr.f32.mxu0 %v353
    %549 = vmatmul.mubr.f32.gmra.mrb[0].mxu0 %v352
    %v550 = vpop.f32.mrb[0].mxu0
    %v551 = vadd.f32 0.0, %v550
    %v552 = vpop.f32.mrb[0].mxu0
    %v553 = vadd.f32 0.0, %v552
    %554 = vmatprep.mubr.f32.mxu0 %v355
    %555 = vmatmul.mubr.f32.gmra.mrb[0].mxu0 %v354
    %v556 = vpop.f32.mrb[0].mxu0
    %v557 = vadd.f32 0.0, %v556
    %v558 = vpop.f32.mrb[0].mxu0
    %v559 = vadd.f32 0.0, %v558
    %560 = vmatprep.mubr.f32.mxu0 %v357
    %561 = vmatmul.mubr.f32.gmra.mrb[0].mxu0 %v356
    %v562 = vpop.f32.mrb[0].mxu0
    %v563 = vadd.f32 0.0, %v562
    %v564 = vpop.f32.mrb[0].mxu0
    %v565 = vadd.f32 0.0, %v564
    %566 = vmatprep.mubr.f32.mxu0 %v359
    %567 = vmatmul.mubr.f32.gmra.mrb[0].mxu0 %v358
    %v568 = vpop.f32.mrb[0].mxu0
    %v569 = vadd.f32 0.0, %v568
    %v570 = vpop.f32.mrb[0].mxu0
    %v571 = vadd.f32 0.0, %v570
    %572 = vmatprep.mubr.f32.mxu0 %v361
    %573 = vmatmul.mubr.f32.gmra.mrb[0].mxu0 %v360
    %v574 = vpop.f32.mrb[0].mxu0
    %v575 = vadd.f32 0.0, %v574
    %v576 = vpop.f32.mrb[0].mxu0
    %v577 = vadd.f32 0.0, %v576
    %578 = vmatprep.mubr.f32.mxu0 %v363
    %579 = vmatmul.mubr.f32.gmra.mrb[0].mxu0 %v362
    %v580 = vpop.f32.mrb[0].mxu0
    %v581 = vadd.f32 0.0, %v580
    %v582 = vpop.f32.mrb[0].mxu0
    %v583 = vadd.f32 0.0, %v582
    %584 = vmatprep.mubr.f32.mxu0 %v365
    %585 = vmatmul.mubr.f32.gmra.mrb[0].mxu0 %v364
    %v586 = vpop.f32.mrb[0].mxu0
    %v587 = vadd.f32 0.0, %v586
    %v588 = vpop.f32.mrb[0].mxu0
    %v589 = vadd.f32 0.0, %v588
    %590 = vmatprep.mubr.f32.mxu0 %v367
    %591 = vmatmul.mubr.f32.gmra.mrb[0].mxu0 %v366
    %v592 = vpop.f32.mrb[0].mxu0
    %v593 = vadd.f32 0.0, %v592
    %v594 = vpop.f32.mrb[0].mxu0
    %v595 = vadd.f32 0.0, %v594
    %596 = vmatprep.mubr.f32.mxu0 %v369
    %597 = vmatmul.mubr.f32.gmra.mrb[0].mxu0 %v368
    %v598 = vpop.f32.mrb[0].mxu0
    %v599 = vadd.f32 0.0, %v598
    %v600 = vpop.f32.mrb[0].mxu0
    %v601 = vadd.f32 0.0, %v600
    %602 = vmatprep.mubr.f32.mxu0 %v371
    %603 = vmatmul.mubr.f32.gmra.mrb[0].mxu0 %v370
    %v604 = vpop.f32.mrb[0].mxu0
    %v605 = vadd.f32 0.0, %v604
    %v606 = vpop.f32.mrb[0].mxu0
    %v607 = vadd.f32 0.0, %v606
    %608 = vmatprep.mubr.f32.mxu0 %v373
    %609 = vmatmul.mubr.f32.gmra.mrb[0].mxu0 %v372
    %v610 = vpop.f32.mrb[0].mxu0
    %v611 = vadd.f32 0.0, %v610
    %v612 = vpop.f32.mrb[0].mxu0
    %v613 = vadd.f32 0.0, %v612
    %614 = vmatprep.mubr.f32.mxu0 %v375
    %615 = vmatmul.mubr.f32.gmra.mrb[0].mxu0 %v374
    %v616 = vpop.f32.mrb[0].mxu0
    %v617 = vadd.f32 0.0, %v616
    %v618 = vpop.f32.mrb[0].mxu0
    %v619 = vadd.f32 0.0, %v618
    %620 = vmatprep.mubr.f32.mxu0 %v377
    %621 = vmatmul.mubr.f32.gmra.mrb[0].mxu0 %v376
    %v622 = vpop.f32.mrb[0].mxu0
    %v623 = vadd.f32 0.0, %v622
    %v624 = vpop.f32.mrb[0].mxu0
    %v625 = vadd.f32 0.0, %v624
    %626 = vmatprep.mubr.f32.mxu0 %v379
    %627 = vmatmul.mubr.f32.gmra.mrb[0].mxu0 %v378
    %v628 = vpop.f32.mrb[0].mxu0
    %v629 = vadd.f32 0.0, %v628
    %v630 = vpop.f32.mrb[0].mxu0
    %v631 = vadd.f32 0.0, %v630
    %632 = vmatprep.mubr.f32.mxu0 %v381
    %633 = vmatmul.mubr.f32.gmra.mrb[0].mxu0 %v380
    %v634 = vpop.f32.mrb[0].mxu0
    %v635 = vadd.f32 0.0, %v634
    %v636 = vpop.f32.mrb[0].mxu0
    %v637 = vadd.f32 0.0, %v636
    %638 = vmatprep.mubr.f32.mxu0 %v383
    %639 = vmatmul.mubr.f32.gmra.mrb[0].mxu0 %v382
    %v640 = vpop.f32.mrb[0].mxu0
    %v641 = vadd.f32 0.0, %v640
    %v642 = vpop.f32.mrb[0].mxu0
    %v643 = vadd.f32 0.0, %v642
    %644 = vmatprep.mubr.f32.mxu0 %v385
    %645 = vmatmul.mubr.f32.gmra.mrb[0].mxu0 %v384
    %v646 = vpop.f32.mrb[0].mxu0
    %v647 = vadd.f32 0.0, %v646
    %v648 = vpop.f32.mrb[0].mxu0
    %v649 = vadd.f32 0.0, %v648
    %650 = vmatprep.mubr.f32.mxu0 %v387
    %651 = vmatmul.mubr.f32.gmra.mrb[0].mxu0 %v386
    %v652 = vpop.f32.mrb[0].mxu0
    %v653 = vadd.f32 0.0, %v652
    %v654 = vpop.f32.mrb[0].mxu0
    %v655 = vadd.f32 0.0, %v654
    %656 = vmatprep.mubr.f32.mxu0 %v389
    %657 = vmatmul.mubr.f32.gmra.mrb[0].mxu0 %v388
    %v658 = vpop.f32.mrb[0].mxu0
    %v659 = vadd.f32 0.0, %v658
    %v660 = vpop.f32.mrb[0].mxu0
    %v661 = vadd.f32 0.0, %v660
    %662 = vmatprep.mubr.f32.mxu0 %v391
    %663 = vmatmul.mubr.f32.gmra.mrb[0].mxu0 %v390
    %v664 = vpop.f32.mrb[0].mxu0
    %v665 = vadd.f32 0.0, %v664
    %v666 = vpop.f32.mrb[0].mxu0
    %v667 = vadd.f32 0.0, %v666
    %668 = vmatprep.mubr.f32.mxu0 %v393
    %669 = vmatmul.mubr.f32.gmra.mrb[0].mxu0 %v392
    %v670 = vpop.f32.mrb[0].mxu0
    %v671 = vadd.f32 0.0, %v670
    %v672 = vpop.f32.mrb[0].mxu0
    %v673 = vadd.f32 0.0, %v672
    %674 = vmatprep.mubr.f32.mxu0 %v395
    %675 = vmatmul.mubr.f32.gmra.mrb[0].mxu0 %v394
    %v676 = vpop.f32.mrb[0].mxu0
    %v677 = vadd.f32 0.0, %v676
    %v678 = vpop.f32.mrb[0].mxu0
    %v679 = vadd.f32 0.0, %v678
    %680 = vmatprep.mubr.f32.mxu0 %v397
    %681 = vmatmul.mubr.f32.gmra.mrb[0].mxu0 %v396
    %v682 = vpop.f32.mrb[0].mxu0
    %v683 = vadd.f32 0.0, %v682
    %v684 = vpop.f32.mrb[0].mxu0
    %v685 = vadd.f32 0.0, %v684
    %686 = vmatprep.mubr.f32.mxu0 %v399
    %687 = vmatmul.mubr.f32.gmra.mrb[0].mxu0 %v398
    %v688 = vpop.f32.mrb[0].mxu0
    %v689 = vadd.f32 0.0, %v688
    %v690 = vpop.f32.mrb[0].mxu0
    %v691 = vadd.f32 0.0, %v690
    %692 = vmatprep.mubr.f32.mxu0 %v401
    %693 = vmatmul.mubr.f32.gmra.mrb[0].mxu0 %v400
    %v694 = vpop.f32.mrb[0].mxu0
    %v695 = vadd.f32 0.0, %v694
    %v696 = vpop.f32.mrb[0].mxu0
    %v697 = vadd.f32 0.0, %v696
    %698 = vmatprep.mubr.f32.mxu0 %v403
    %699 = vmatmul.mubr.f32.gmra.mrb[0].mxu0 %v402
    %v700 = vpop.f32.mrb[0].mxu0
    %v701 = vadd.f32 0.0, %v700
    %v702 = vpop.f32.mrb[0].mxu0
    %v703 = vadd.f32 0.0, %v702
    %704 = vmatprep.mubr.f32.mxu0 %v405
    %705 = vmatmul.mubr.f32.gmra.mrb[0].mxu0 %v404
    %v706 = vpop.f32.mrb[0].mxu0
    %v707 = vadd.f32 0.0, %v706
    %v708 = vpop.f32.mrb[0].mxu0
    %v709 = vadd.f32 0.0, %v708
    %710 = vmatprep.mubr.f32.mxu0 %v407
    %711 = vmatmul.mubr.f32.gmra.mrb[0].mxu0 %v406
    %v712 = vpop.f32.mrb[0].mxu0
    %v713 = vadd.f32 0.0, %v712
    %v714 = vpop.f32.mrb[0].mxu0
    %v715 = vadd.f32 0.0, %v714
    %716 = vmatprep.mubr.f32.mxu0 %v409
    %717 = vmatmul.mubr.f32.gmra.mrb[0].mxu0 %v408
    %v718 = vpop.f32.mrb[0].mxu0
    %v719 = vadd.f32 0.0, %v718
    %v720 = vpop.f32.mrb[0].mxu0
    %v721 = vadd.f32 0.0, %v720
    %722 = vmatprep.mubr.f32.mxu0 %v411
    %723 = vmatmul.mubr.f32.gmra.mrb[0].mxu0 %v410
    %v724 = vpop.f32.mrb[0].mxu0
    %v725 = vadd.f32 0.0, %v724
    %v726 = vpop.f32.mrb[0].mxu0
    %v727 = vadd.f32 0.0, %v726
    %728 = vmatprep.mubr.f32.mxu0 %v413
    %729 = vmatmul.mubr.f32.gmra.mrb[0].mxu0 %v412
    %v730 = vpop.f32.mrb[0].mxu0
    %v731 = vadd.f32 0.0, %v730
    %v732 = vpop.f32.mrb[0].mxu0
    %v733 = vadd.f32 0.0, %v732
    %734 = vdwg.mxu0
    %735 = vst [vmem:[#allocation2] sm:$0xff] %v545
    %736 = vst [vmem:[#allocation2 + $0x8] sm:$0xff] %v547
    %737 = vst [vmem:[#allocation2 + $0x10] sm:$0xff] %v551
    %738 = vst [vmem:[#allocation2 + $0x18] sm:$0xff] %v553
    %739 = vst [vmem:[#allocation2 + $0x20] sm:$0xff] %v557
    %740 = vst [vmem:[#allocation2 + $0x28] sm:$0xff] %v559
    %741 = vst [vmem:[#allocation2 + $0x30] sm:$0xff] %v563
    %742 = vst [vmem:[#allocation2 + $0x38] sm:$0xff] %v565
    %743 = vst [vmem:[#allocation2 + $0x40] sm:$0xff] %v569
    %744 = vst [vmem:[#allocation2 + $0x48] sm:$0xff] %v571
    %745 = vst [vmem:[#allocation2 + $0x50] sm:$0xff] %v575
    %746 = vst [vmem:[#allocation2 + $0x58] sm:$0xff] %v577
    %747 = vst [vmem:[#allocation2 + $0x60] sm:$0xff] %v581
    %748 = vst [vmem:[#allocation2 + $0x68] sm:$0xff] %v583
    %749 = vst [vmem:[#allocation2 + $0x70] sm:$0xff] %v587
    %750 = vst [vmem:[#allocation2 + $0x78] sm:$0xff] %v589
    %751 = vst [vmem:[#allocation2 + $0x80] sm:$0xff] %v593
    %752 = vst [vmem:[#allocation2 + $0x88] sm:$0xff] %v595
    %753 = vst [vmem:[#allocation2 + $0x90] sm:$0xff] %v599
    %754 = vst [vmem:[#allocation2 + $0x98] sm:$0xff] %v601
    %755 = vst [vmem:[#allocation2 + $0xa0] sm:$0xff] %v605
    %756 = vst [vmem:[#allocation2 + $0xa8] sm:$0xff] %v607
    %757 = vst [vmem:[#allocation2 + $0xb0] sm:$0xff] %v611
    %758 = vst [vmem:[#allocation2 + $0xb8] sm:$0xff] %v613
    %759 = vst [vmem:[#allocation2 + $0xc0] sm:$0xff] %v617
    %760 = vst [vmem:[#allocation2 + $0xc8] sm:$0xff] %v619
    %761 = vst [vmem:[#allocation2 + $0xd0] sm:$0xff] %v623
    %762 = vst [vmem:[#allocation2 + $0xd8] sm:$0xff] %v625
    %763 = vst [vmem:[#allocation2 + $0xe0] sm:$0xff] %v629
    %764 = vst [vmem:[#allocation2 + $0xe8] sm:$0xff] %v631
    %765 = vst [vmem:[#allocation2 + $0xf0] sm:$0xff] %v635
    %766 = vst [vmem:[#allocation2 + $0xf8] sm:$0xff] %v637
    %767 = vst [vmem:[#allocation2 + $0x100] sm:$0xff] %v641
    %768 = vst [vmem:[#allocation2 + $0x108] sm:$0xff] %v643
    %769 = vst [vmem:[#allocation2 + $0x110] sm:$0xff] %v647
    %770 = vst [vmem:[#allocation2 + $0x118] sm:$0xff] %v649
    %771 = vst [vmem:[#allocation2 + $0x120] sm:$0xff] %v653
    %772 = vst [vmem:[#allocation2 + $0x128] sm:$0xff] %v655
    %773 = vst [vmem:[#allocation2 + $0x130] sm:$0xff] %v659
    %774 = vst [vmem:[#allocation2 + $0x138] sm:$0xff] %v661
    %775 = vst [vmem:[#allocation2 + $0x140] sm:$0xff] %v665
    %776 = vst [vmem:[#allocation2 + $0x148] sm:$0xff] %v667
    %777 = vst [vmem:[#allocation2 + $0x150] sm:$0xff] %v671
    %778 = vst [vmem:[#allocation2 + $0x158] sm:$0xff] %v673
    %779 = vst [vmem:[#allocation2 + $0x160] sm:$0xff] %v677
    %780 = vst [vmem:[#allocation2 + $0x168] sm:$0xff] %v679
    %781 = vst [vmem:[#allocation2 + $0x170] sm:$0xff] %v683
    %782 = vst [vmem:[#allocation2 + $0x178] sm:$0xff] %v685
    %783 = vst [vmem:[#allocation2 + $0x180] sm:$0xff] %v689
    %784 = vst [vmem:[#allocation2 + $0x188] sm:$0xff] %v691
    %785 = vst [vmem:[#allocation2 + $0x190] sm:$0xff] %v695
    %786 = vst [vmem:[#allocation2 + $0x198] sm:$0xff] %v697
    %787 = vst [vmem:[#allocation2 + $0x1a0] sm:$0xff] %v701
    %788 = vst [vmem:[#allocation2 + $0x1a8] sm:$0xff] %v703
    %789 = vst [vmem:[#allocation2 + $0x1b0] sm:$0xff] %v707
    %790 = vst [vmem:[#allocation2 + $0x1b8] sm:$0xff] %v709
    %791 = vst [vmem:[#allocation2 + $0x1c0] sm:$0xff] %v713
    %792 = vst [vmem:[#allocation2 + $0x1c8] sm:$0xff] %v715
    %793 = vst [vmem:[#allocation2 + $0x1d0] sm:$0xff] %v719
    %794 = vst [vmem:[#allocation2 + $0x1d8] sm:$0xff] %v721
    %795 = vst [vmem:[#allocation2 + $0x1e0] sm:$0xff] %v725
    %796 = vst [vmem:[#allocation2 + $0x1e8] sm:$0xff] %v727
    %797 = vst [vmem:[#allocation2 + $0x1f0] sm:$0xff] %v731
    %798 = vst [vmem:[#allocation2 + $0x1f8] sm:$0xff] %v733
    %v799 = vld [vmem:[#allocation6] sm:$0xff]
    %v800 = vld [vmem:[#allocation6 + $0x8] sm:$0xff]
    %v801 = vld [vmem:[#allocation6 + $0x10] sm:$0xff]
    %v802 = vld [vmem:[#allocation6 + $0x18] sm:$0xff]
    %v803 = vld [vmem:[#allocation6 + $0x20] sm:$0xff]
    %v804 = vld [vmem:[#allocation6 + $0x28] sm:$0xff]
    %v805 = vld [vmem:[#allocation6 + $0x30] sm:$0xff]
    %v806 = vld [vmem:[#allocation6 + $0x38] sm:$0xff]
    %v807 = vld [vmem:[#allocation6 + $0x40] sm:$0xff]
    %v808 = vld [vmem:[#allocation6 + $0x48] sm:$0xff]
    %v809 = vld [vmem:[#allocation6 + $0x50] sm:$0xff]
    %v810 = vld [vmem:[#allocation6 + $0x58] sm:$0xff]
    %v811 = vld [vmem:[#allocation6 + $0x60] sm:$0xff]
    %v812 = vld [vmem:[#allocation6 + $0x68] sm:$0xff]
    %v813 = vld [vmem:[#allocation6 + $0x70] sm:$0xff]
    %v814 = vld [vmem:[#allocation6 + $0x78] sm:$0xff]
    %v815 = vld [vmem:[#allocation6 + $0x80] sm:$0xff]
    %v816 = vld [vmem:[#allocation6 + $0x88] sm:$0xff]
    %v817 = vld [vmem:[#allocation6 + $0x90] sm:$0xff]
    %v818 = vld [vmem:[#allocation6 + $0x98] sm:$0xff]
    %v819 = vld [vmem:[#allocation6 + $0xa0] sm:$0xff]
    %v820 = vld [vmem:[#allocation6 + $0xa8] sm:$0xff]
    %v821 = vld [vmem:[#allocation6 + $0xb0] sm:$0xff]
    %v822 = vld [vmem:[#allocation6 + $0xb8] sm:$0xff]
    %v823 = vld [vmem:[#allocation6 + $0xc0] sm:$0xff]
    %v824 = vld [vmem:[#allocation6 + $0xc8] sm:$0xff]
    %v825 = vld [vmem:[#allocation6 + $0xd0] sm:$0xff]
    %v826 = vld [vmem:[#allocation6 + $0xd8] sm:$0xff]
    %v827 = vld [vmem:[#allocation6 + $0xe0] sm:$0xff]
    %v828 = vld [vmem:[#allocation6 + $0xe8] sm:$0xff]
    %v829 = vld [vmem:[#allocation6 + $0xf0] sm:$0xff]
    %v830 = vld [vmem:[#allocation6 + $0xf8] sm:$0xff]
    %v831 = vld [vmem:[#allocation11] sm:$0xff]
    %v832 = vld [vmem:[#allocation11 + $0x8] sm:$0xff]
    %v833 = vld [vmem:[#allocation11 + $0x10] sm:$0xff]
    %v834 = vld [vmem:[#allocation11 + $0x18] sm:$0xff]
    %v835 = vld [vmem:[#allocation11 + $0x20] sm:$0xff]
    %v836 = vld [vmem:[#allocation11 + $0x28] sm:$0xff]
    %v837 = vld [vmem:[#allocation11 + $0x30] sm:$0xff]
    %v838 = vld [vmem:[#allocation11 + $0x38] sm:$0xff]
    %v839 = vld [vmem:[#allocation11 + $0x40] sm:$0xff]
    %v840 = vld [vmem:[#allocation11 + $0x48] sm:$0xff]
    %v841 = vld [vmem:[#allocation11 + $0x50] sm:$0xff]
    %v842 = vld [vmem:[#allocation11 + $0x58] sm:$0xff]
    %v843 = vld [vmem:[#allocation11 + $0x60] sm:$0xff]
    %v844 = vld [vmem:[#allocation11 + $0x68] sm:$0xff]
    %v845 = vld [vmem:[#allocation11 + $0x70] sm:$0xff]
    %v846 = vld [vmem:[#allocation11 + $0x78] sm:$0xff]
    %v847 = vld [vmem:[#allocation11 + $0x80] sm:$0xff]
    %v848 = vld [vmem:[#allocation11 + $0x88] sm:$0xff]
    %v849 = vld [vmem:[#allocation11 + $0x90] sm:$0xff]
    %v850 = vld [vmem:[#allocation11 + $0x98] sm:$0xff]
    %v851 = vld [vmem:[#allocation11 + $0xa0] sm:$0xff]
    %v852 = vld [vmem:[#allocation11 + $0xa8] sm:$0xff]
    %v853 = vld [vmem:[#allocation11 + $0xb0] sm:$0xff]
    %v854 = vld [vmem:[#allocation11 + $0xb8] sm:$0xff]
    %v855 = vld [vmem:[#allocation11 + $0xc0] sm:$0xff]
    %v856 = vld [vmem:[#allocation11 + $0xc8] sm:$0xff]
    %v857 = vld [vmem:[#allocation11 + $0xd0] sm:$0xff]
    %v858 = vld [vmem:[#allocation11 + $0xd8] sm:$0xff]
    %v859 = vld [vmem:[#allocation11 + $0xe0] sm:$0xff]
    %v860 = vld [vmem:[#allocation11 + $0xe8] sm:$0xff]
    %v861 = vld [vmem:[#allocation11 + $0xf0] sm:$0xff]
    %v862 = vld [vmem:[#allocation11 + $0xf8] sm:$0xff]
    %v863 = vlaneseq
    %v864 = vshrl.u32 %v863, 7
    %v865 = vadd.s32 %v864, 8
    %vm866 = vcmp.lt.s32.totalorder %v864, 8
    %vm867 = vcmp.lt.s32.totalorder %v865, 8
    %v868 = vsel %vm866, 1, 0
    %v869 = vsel %vm867, 1, 0
    %v870 = vcvt.s32.f32 %v868
    %v871 = vcvt.s32.f32 %v869
    %v872 = vsub.f32 1.0, %v870
    %v873 = vsub.f32 1.0, %v871
    %874 = vst [vmem:[#allocation3] sm:$0xff] 0.0
    %875 = vst [vmem:[#allocation3 + $0x8] sm:$0xff] 0.0
    %876 = vst [vmem:[#allocation3 + $0x10] sm:$0xff] 0.0
    %877 = vst [vmem:[#allocation3 + $0x18] sm:$0xff] 0.0
    %878 = vst [vmem:[#allocation3 + $0x20] sm:$0xff] 0.0
    %879 = vst [vmem:[#allocation3 + $0x28] sm:$0xff] 0.0
    %880 = vst [vmem:[#allocation3 + $0x30] sm:$0xff] 0.0
    %881 = vst [vmem:[#allocation3 + $0x38] sm:$0xff] 0.0
    %882 = vst [vmem:[#allocation3 + $0x40] sm:$0xff] 0.0
    %883 = vst [vmem:[#allocation3 + $0x48] sm:$0xff] 0.0
    %884 = vst [vmem:[#allocation3 + $0x50] sm:$0xff] 0.0
    %885 = vst [vmem:[#allocation3 + $0x58] sm:$0xff] 0.0
    %886 = vst [vmem:[#allocation3 + $0x60] sm:$0xff] 0.0
    %887 = vst [vmem:[#allocation3 + $0x68] sm:$0xff] 0.0
    %888 = vst [vmem:[#allocation3 + $0x70] sm:$0xff] 0.0
    %889 = vst [vmem:[#allocation3 + $0x78] sm:$0xff] 0.0
    %v890 = vld [vmem:[#allocation2] sm:$0xff]
    %v891 = vld [vmem:[#allocation2 + $0x8] sm:$0xff]
    %v892 = vld [vmem:[#allocation2 + $0x10] sm:$0xff]
    %v893 = vld [vmem:[#allocation2 + $0x18] sm:$0xff]
    %894 = vmatprep.subr.mxu0 %v800
    %895 = vmatpush1.msra.mxu0 %v799
    %896 = vmatprep.subr.mxu0 %v802
    %897 = vmatpush1.msra.mxu0 %v801
    %898 = vmatprep.subr.mxu0 %v804
    %899 = vmatpush1.msra.mxu0 %v803
    %900 = vmatprep.subr.mxu0 %v806
    %901 = vmatpush1.msra.mxu0 %v805
    %902 = vmatprep.subr.mxu0 %v808
    %903 = vmatpush1.msra.mxu0 %v807
    %904 = vmatprep.subr.mxu0 %v810
    %905 = vmatpush1.msra.mxu0 %v809
    %906 = vmatprep.subr.mxu0 %v812
    %907 = vmatpush1.msra.mxu0 %v811
    %908 = vmatprep.subr.mxu0 %v814
    %909 = vmatpush1.msra.mxu0 %v813
    %910 = vmatprep.subr.mxu0 %v816
    %911 = vmatpush1.msra.mxu0 %v815
    %912 = vmatprep.subr.mxu0 %v818
    %913 = vmatpush1.msra.mxu0 %v817
    %914 = vmatprep.subr.mxu0 %v820
    %915 = vmatpush1.msra.mxu0 %v819
    %916 = vmatprep.subr.mxu0 %v822
    %917 = vmatpush1.msra.mxu0 %v821
    %918 = vmatprep.subr.mxu0 %v824
    %919 = vmatpush1.msra.mxu0 %v823
    %920 = vmatprep.subr.mxu0 %v826
    %921 = vmatpush1.msra.mxu0 %v825
    %922 = vmatprep.subr.mxu0 %v828
    %923 = vmatpush1.msra.mxu0 %v827
    %924 = vmatprep.subr.mxu0 %v830
    %925 = vmatpush1.msra.mxu0 %v829
    %926 = vmatprep.subr.mxu0 0.0
    %927 = vmatpush1.msra.mxu0 0.0
    %928 = vmatprep.subr.mxu0 0.0
    %929 = vmatpush1.msra.mxu0 0.0
    %930 = vmatprep.subr.mxu0 0.0
    %931 = vmatpush1.msra.mxu0 0.0
    %932 = vmatprep.subr.mxu0 0.0
    %933 = vmatpush1.msra.mxu0 0.0
    %934 = vmatprep.subr.mxu0 0.0
    %935 = vmatpush1.msra.mxu0 0.0
    %936 = vmatprep.subr.mxu0 0.0
    %937 = vmatpush1.msra.mxu0 0.0
    %938 = vmatprep.subr.mxu0 0.0
    %939 = vmatpush1.msra.mxu0 0.0
    %940 = vmatprep.subr.mxu0 0.0
    %941 = vmatpush1.msra.mxu0 0.0
    %942 = vmatprep.subr.mxu0 0.0
    %943 = vmatpush1.msra.mxu0 0.0
    %944 = vmatprep.subr.mxu0 0.0
    %945 = vmatpush1.msra.mxu0 0.0
    %946 = vmatprep.subr.mxu0 0.0
    %947 = vmatpush1.msra.mxu0 0.0
    %948 = vmatprep.subr.mxu0 0.0
    %949 = vmatpush1.msra.mxu0 0.0
    %950 = vmatprep.subr.mxu0 0.0
    %951 = vmatpush1.msra.mxu0 0.0
    %952 = vmatprep.subr.mxu0 0.0
    %953 = vmatpush1.msra.mxu0 0.0
    %954 = vmatprep.subr.mxu0 0.0
    %955 = vmatpush1.msra.mxu0 0.0
    %956 = vmatprep.subr.mxu0 0.0
    %957 = vmatpush1.msra.mxu0 0.0
    %958 = vmatprep.mubr.f32.mxu0 0.0
    %959 = vmatmul.mubr.f32.gmra.mrb[0].mxu0 0.0
    %v960 = vpop.f32.mrb[0].mxu0
    %v961 = vadd.f32 0.0, %v960
    %v962 = vpop.f32.mrb[0].mxu0
    %v963 = vadd.f32 0.0, %v962
    %964 = vmatprep.mubr.f32.mxu0 0.0
    %965 = vmatmul.mubr.f32.gmra.mrb[0].mxu0 0.0
    %v966 = vpop.f32.mrb[0].mxu0
    %v967 = vadd.f32 0.0, %v966
    %v968 = vpop.f32.mrb[0].mxu0
    %v969 = vadd.f32 0.0, %v968
    %970 = vdwg.mxu0
    %v971 = vadd.f32 %v890, %v961
    %v972 = vadd.f32 %v891, %v963
    %v973 = vadd.f32 %v892, %v967
    %v974 = vadd.f32 %v893, %v969
    %v975 = vmul.f32 %v971, 0.5
    %v976 = vmul.f32 %v972, 0.5
    %v977 = vmul.f32 %v973, 0.5
    %v978 = vmul.f32 %v974, 0.5
    %v979 = vtanh.pop %v975
    %v980 = vtanh.pop %v976
    %v981 = vtanh.pop %v977
    %v982 = vtanh.pop %v978
    %v983 = vmul.f32 %v979, 0.5
    %v984 = vmul.f32 %v980, 0.5
    %v985 = vmul.f32 %v981, 0.5
    %v986 = vmul.f32 %v982, 0.5
    %v987 = vadd.f32 %v983, 0.5
    %v988 = vadd.f32 %v984, 0.5
    %v989 = vadd.f32 %v985, 0.5
    %v990 = vadd.f32 %v986, 0.5
    %v991 = vtanh.pop %v972
    %v992 = vtanh.pop %v974
    %v993 = vmul.f32 %v987, 0.0
    %v994 = vmul.f32 %v989, 0.0
    %997 = vrot.lane.b32.xlu0 %v991, 64
    %v998 = vpop.permute.xlu0 %997
    %999 = vrot.lane.b32.xlu0 %v992, 64
    %v1000 = vpop.permute.xlu0 %999
    %v1003 = vmul.f32 %v987, %v998
    %v1004 = vmul.f32 %v989, %v1000
    %1007 = vrot.lane.b32.xlu0 %v1003, 64
    %v1008 = vpop.permute.xlu0 %1007
    %1009 = vrot.lane.b32.xlu0 %v1004, 64
    %v1010 = vpop.permute.xlu0 %1009
    %v1013 = vadd.f32 %v993, %v1008
    %v1014 = vadd.f32 %v994, %v1010
    %v1015 = vtanh.pop %v1013
    %v1016 = vtanh.pop %v1014
    %1019 = vrot.lane.b32.xlu0 %v1015, 64
    %v1020 = vpop.permute.xlu0 %1019
    %1021 = vrot.lane.b32.xlu0 %v1016, 64
    %v1022 = vpop.permute.xlu0 %1021
    %v1025 = vmul.f32 %v988, %v1020
    %v1026 = vmul.f32 %v990, %v1022
    %v1027 = vmul.f32 %v1025, %v870
    %v1028 = vmul.f32 %v1026, %v871
    %v1029 = vmul.f32 %v1025, %v872
    %v1030 = vmul.f32 %v1026, %v873
    %1033 = vrot.lane.b32.xlu0 %v1029, 64
    %v1034 = vpop.permute.xlu0 %1033
    %1035 = vrot.lane.b32.xlu0 %v1030, 64
    %v1036 = vpop.permute.xlu0 %1035
    %vm1039 = vcmask 523264
    %v1040 = vsel %vm1039, %v1027, %v1034
    %v1041 = vsel %vm1039, %v1028, %v1036
    %v1042 = vld [vmem:[#allocation3] sm:$0xff]
    %v1043 = vadd.f32 %v1042, %v1040
    %1044 = vst [vmem:[#allocation3] sm:$0xff] %v1043
    %v1045 = vld [vmem:[#allocation3 + $0x78] sm:$0xff]
    %v1046 = vadd.f32 %v1045, %v1041
    %1047 = vst [vmem:[#allocation3 + $0x78] sm:$0xff] %v1046
    %v1048 = vld [vmem:[#allocation2 + $0x20] sm:$0xff]
    %v1049 = vld [vmem:[#allocation2 + $0x28] sm:$0xff]
    %v1050 = vld [vmem:[#allocation2 + $0x30] sm:$0xff]
    %v1051 = vld [vmem:[#allocation2 + $0x38] sm:$0xff]
    %1052 = vmatprep.subr.mxu0 %v800
    %1053 = vmatpush1.msra.mxu0 %v799
    %1054 = vmatprep.subr.mxu0 %v802
    %1055 = vmatpush1.msra.mxu0 %v801
    %1056 = vmatprep.subr.mxu0 %v804
    %1057 = vmatpush1.msra.mxu0 %v803
    %1058 = vmatprep.subr.mxu0 %v806
    %1059 = vmatpush1.msra.mxu0 %v805
    %1060 = vmatprep.subr.mxu0 %v808
    %1061 = vmatpush1.msra.mxu0 %v807
    %1062 = vmatprep.subr.mxu0 %v810
    %1063 = vmatpush1.msra.mxu0 %v809
    %1064 = vmatprep.subr.mxu0 %v812
    %1065 = vmatpush1.msra.mxu0 %v811
    %1066 = vmatprep.subr.mxu0 %v814
    %1067 = vmatpush1.msra.mxu0 %v813
    %1068 = vmatprep.subr.mxu0 %v816
    %1069 = vmatpush1.msra.mxu0 %v815
    %1070 = vmatprep.subr.mxu0 %v818
    %1071 = vmatpush1.msra.mxu0 %v817
    %1072 = vmatprep.subr.mxu0 %v820
    %1073 = vmatpush1.msra.mxu0 %v819
    %1074 = vmatprep.subr.mxu0 %v822
    %1075 = vmatpush1.msra.mxu0 %v821
    %1076 = vmatprep.subr.mxu0 %v824
    %1077 = vmatpush1.msra.mxu0 %v823
    %1078 = vmatprep.subr.mxu0 %v826
    %1079 = vmatpush1.msra.mxu0 %v825
    %1080 = vmatprep.subr.mxu0 %v828
    %1081 = vmatpush1.msra.mxu0 %v827
    %1082 = vmatprep.subr.mxu0 %v830
    %1083 = vmatpush1.msra.mxu0 %v829
    %1084 = vmatprep.subr.mxu0 0.0
    %1085 = vmatpush1.msra.mxu0 0.0
    %1086 = vmatprep.subr.mxu0 0.0
    %1087 = vmatpush1.msra.mxu0 0.0
    %1088 = vmatprep.subr.mxu0 0.0
    %1089 = vmatpush1.msra.mxu0 0.0
    %1090 = vmatprep.subr.mxu0 0.0
    %1091 = vmatpush1.msra.mxu0 0.0
    %1092 = vmatprep.subr.mxu0 0.0
    %1093 = vmatpush1.msra.mxu0 0.0
    %1094 = vmatprep.subr.mxu0 0.0
    %1095 = vmatpush1.msra.mxu0 0.0
    %1096 = vmatprep.subr.mxu0 0.0
    %1097 = vmatpush1.msra.mxu0 0.0
    %1098 = vmatprep.subr.mxu0 0.0
    %1099 = vmatpush1.msra.mxu0 0.0
    %1100 = vmatprep.subr.mxu0 0.0
    %1101 = vmatpush1.msra.mxu0 0.0
    %1102 = vmatprep.subr.mxu0 0.0
    %1103 = vmatpush1.msra.mxu0 0.0
    %1104 = vmatprep.subr.mxu0 0.0
    %1105 = vmatpush1.msra.mxu0 0.0
    %1106 = vmatprep.subr.mxu0 0.0
    %1107 = vmatpush1.msra.mxu0 0.0
    %1108 = vmatprep.subr.mxu0 0.0
    %1109 = vmatpush1.msra.mxu0 0.0
    %1110 = vmatprep.subr.mxu0 0.0
    %1111 = vmatpush1.msra.mxu0 0.0
    %1112 = vmatprep.subr.mxu0 0.0
    %1113 = vmatpush1.msra.mxu0 0.0
    %1114 = vmatprep.subr.mxu0 0.0
    %1115 = vmatpush1.msra.mxu0 0.0
    %1116 = vmatprep.mubr.f32.mxu0 0.0
    %1117 = vmatmul.mubr.f32.gmra.mrb[0].mxu0 %v1040
    %v1118 = vpop.f32.mrb[0].mxu0
    %v1119 = vadd.f32 0.0, %v1118
    %v1120 = vpop.f32.mrb[0].mxu0
    %v1121 = vadd.f32 0.0, %v1120
    %1122 = vmatprep.mubr.f32.mxu0 0.0
    %1123 = vmatmul.mubr.f32.gmra.mrb[0].mxu0 %v1041
    %v1124 = vpop.f32.mrb[0].mxu0
    %v1125 = vadd.f32 0.0, %v1124
    %v1126 = vpop.f32.mrb[0].mxu0
    %v1127 = vadd.f32 0.0, %v1126
    %1128 = vdwg.mxu0
    %v1129 = vadd.f32 %v1048, %v1119
    %v1130 = vadd.f32 %v1049, %v1121
    %v1131 = vadd.f32 %v1050, %v1125
    %v1132 = vadd.f32 %v1051, %v1127
    %v1133 = vmul.f32 %v1129, 0.5
    %v1134 = vmul.f32 %v1130, 0.5
    %v1135 = vmul.f32 %v1131, 0.5
    %v1136 = vmul.f32 %v1132, 0.5
    %v1137 = vtanh.pop %v1133
    %v1138 = vtanh.pop %v1134
    %v1139 = vtanh.pop %v1135
    %v1140 = vtanh.pop %v1136
    %v1141 = vmul.f32 %v1137, 0.5
    %v1142 = vmul.f32 %v1138, 0.5
    %v1143 = vmul.f32 %v1139, 0.5
    %v1144 = vmul.f32 %v1140, 0.5
    %v1145 = vadd.f32 %v1141, 0.5
    %v1146 = vadd.f32 %v1142, 0.5
    %v1147 = vadd.f32 %v1143, 0.5
    %v1148 = vadd.f32 %v1144, 0.5
    %v1149 = vtanh.pop %v1130
    %v1150 = vtanh.pop %v1132
    %v1151 = vmul.f32 %v1145, %v1013
    %v1152 = vmul.f32 %v1147, %v1014
    %1155 = vrot.lane.b32.xlu0 %v1149, 64
    %v1156 = vpop.permute.xlu0 %1155
    %1157 = vrot.lane.b32.xlu0 %v1150, 64
    %v1158 = vpop.permute.xlu0 %1157
    %v1161 = vmul.f32 %v1145, %v1156
    %v1162 = vmul.f32 %v1147, %v1158
    %1165 = vrot.lane.b32.xlu0 %v1161, 64
    %v1166 = vpop.permute.xlu0 %1165
    %1167 = vrot.lane.b32.xlu0 %v1162, 64
    %v1168 = vpop.permute.xlu0 %1167
    %v1171 = vadd.f32 %v1151, %v1166
    %v1172 = vadd.f32 %v1152, %v1168
    %v1173 = vtanh.pop %v1171
    %v1174 = vtanh.pop %v1172
    %1177 = vrot.lane.b32.xlu0 %v1173, 64
    %v1178 = vpop.permute.xlu0 %1177
    %1179 = vrot.lane.b32.xlu0 %v1174, 64
    %v1180 = vpop.permute.xlu0 %1179
    %v1183 = vmul.f32 %v1146, %v1178
    %v1184 = vmul.f32 %v1148, %v1180
    %v1185 = vmul.f32 %v1183, %v870
    %v1186 = vmul.f32 %v1184, %v871
    %v1187 = vmul.f32 %v1183, %v872
    %v1188 = vmul.f32 %v1184, %v873
    %1191 = vrot.lane.b32.xlu0 %v1187, 64
    %v1192 = vpop.permute.xlu0 %1191
    %1193 = vrot.lane.b32.xlu0 %v1188, 64
    %v1194 = vpop.permute.xlu0 %1193
    %v1197 = vsel %vm1039, %v1185, %v1192
    %v1198 = vsel %vm1039, %v1186, %v1194
    %v1199 = vld [vmem:[#allocation3 + $0x8] sm:$0xff]
    %v1200 = vadd.f32 %v1199, %v1197
    %1201 = vst [vmem:[#allocation3 + $0x8] sm:$0xff] %v1200
    %v1202 = vld [vmem:[#allocation3 + $0x70] sm:$0xff]
    %v1203 = vadd.f32 %v1202, %v1198
    %1204 = vst [vmem:[#allocation3 + $0x70] sm:$0xff] %v1203
    %v1205 = vld [vmem:[#allocation2 + $0x40] sm:$0xff]
    %v1206 = vld [vmem:[#allocation2 + $0x48] sm:$0xff]
    %v1207 = vld [vmem:[#allocation2 + $0x50] sm:$0xff]
    %v1208 = vld [vmem:[#allocation2 + $0x58] sm:$0xff]
    %1209 = vmatprep.subr.mxu0 %v800
    %1210 = vmatpush1.msra.mxu0 %v799
    %1211 = vmatprep.subr.mxu0 %v802
    %1212 = vmatpush1.msra.mxu0 %v801
    %1213 = vmatprep.subr.mxu0 %v804
    %1214 = vmatpush1.msra.mxu0 %v803
    %1215 = vmatprep.subr.mxu0 %v806
    %1216 = vmatpush1.msra.mxu0 %v805
    %1217 = vmatprep.subr.mxu0 %v808
    %1218 = vmatpush1.msra.mxu0 %v807
    %1219 = vmatprep.subr.mxu0 %v810
    %1220 = vmatpush1.msra.mxu0 %v809
    %1221 = vmatprep.subr.mxu0 %v812
    %1222 = vmatpush1.msra.mxu0 %v811
    %1223 = vmatprep.subr.mxu0 %v814
    %1224 = vmatpush1.msra.mxu0 %v813
    %1225 = vmatprep.subr.mxu0 %v816
    %1226 = vmatpush1.msra.mxu0 %v815
    %1227 = vmatprep.subr.mxu0 %v818
    %1228 = vmatpush1.msra.mxu0 %v817
    %1229 = vmatprep.subr.mxu0 %v820
    %1230 = vmatpush1.msra.mxu0 %v819
    %1231 = vmatprep.subr.mxu0 %v822
    %1232 = vmatpush1.msra.mxu0 %v821
    %1233 = vmatprep.subr.mxu0 %v824
    %1234 = vmatpush1.msra.mxu0 %v823
    %1235 = vmatprep.subr.mxu0 %v826
    %1236 = vmatpush1.msra.mxu0 %v825
    %1237 = vmatprep.subr.mxu0 %v828
    %1238 = vmatpush1.msra.mxu0 %v827
    %1239 = vmatprep.subr.mxu0 %v830
    %1240 = vmatpush1.msra.mxu0 %v829
    %1241 = vmatprep.subr.mxu0 0.0
    %1242 = vmatpush1.msra.mxu0 0.0
    %1243 = vmatprep.subr.mxu0 0.0
    %1244 = vmatpush1.msra.mxu0 0.0
    %1245 = vmatprep.subr.mxu0 0.0
    %1246 = vmatpush1.msra.mxu0 0.0
    %1247 = vmatprep.subr.mxu0 0.0
    %1248 = vmatpush1.msra.mxu0 0.0
    %1249 = vmatprep.subr.mxu0 0.0
    %1250 = vmatpush1.msra.mxu0 0.0
    %1251 = vmatprep.subr.mxu0 0.0
    %1252 = vmatpush1.msra.mxu0 0.0
    %1253 = vmatprep.subr.mxu0 0.0
    %1254 = vmatpush1.msra.mxu0 0.0
    %1255 = vmatprep.subr.mxu0 0.0
    %1256 = vmatpush1.msra.mxu0 0.0
    %1257 = vmatprep.subr.mxu0 0.0
    %1258 = vmatpush1.msra.mxu0 0.0
    %1259 = vmatprep.subr.mxu0 0.0
    %1260 = vmatpush1.msra.mxu0 0.0
    %1261 = vmatprep.subr.mxu0 0.0
    %1262 = vmatpush1.msra.mxu0 0.0
    %1263 = vmatprep.subr.mxu0 0.0
    %1264 = vmatpush1.msra.mxu0 0.0
    %1265 = vmatprep.subr.mxu0 0.0
    %1266 = vmatpush1.msra.mxu0 0.0
    %1267 = vmatprep.subr.mxu0 0.0
    %1268 = vmatpush1.msra.mxu0 0.0
    %1269 = vmatprep.subr.mxu0 0.0
    %1270 = vmatpush1.msra.mxu0 0.0
    %1271 = vmatprep.subr.mxu0 0.0
    %1272 = vmatpush1.msra.mxu0 0.0
    %1273 = vmatprep.mubr.f32.mxu0 0.0
    %1274 = vmatmul.mubr.f32.gmra.mrb[0].mxu0 %v1197
    %v1275 = vpop.f32.mrb[0].mxu0
    %v1276 = vadd.f32 0.0, %v1275
    %v1277 = vpop.f32.mrb[0].mxu0
    %v1278 = vadd.f32 0.0, %v1277
    %1279 = vmatprep.mubr.f32.mxu0 0.0
    %1280 = vmatmul.mubr.f32.gmra.mrb[0].mxu0 %v1198
    %v1281 = vpop.f32.mrb[0].mxu0
    %v1282 = vadd.f32 0.0, %v1281
    %v1283 = vpop.f32.mrb[0].mxu0
    %v1284 = vadd.f32 0.0, %v1283
    %1285 = vdwg.mxu0
    %v1286 = vadd.f32 %v1205, %v1276
    %v1287 = vadd.f32 %v1206, %v1278
    %v1288 = vadd.f32 %v1207, %v1282
    %v1289 = vadd.f32 %v1208, %v1284
    %v1290 = vmul.f32 %v1286, 0.5
    %v1291 = vmul.f32 %v1287, 0.5
    %v1292 = vmul.f32 %v1288, 0.5
    %v1293 = vmul.f32 %v1289, 0.5
    %v1294 = vtanh.pop %v1290
    %v1295 = vtanh.pop %v1291
    %v1296 = vtanh.pop %v1292
    %v1297 = vtanh.pop %v1293
    %v1298 = vmul.f32 %v1294, 0.5
    %v1299 = vmul.f32 %v1295, 0.5
    %v1300 = vmul.f32 %v1296, 0.5
    %v1301 = vmul.f32 %v1297, 0.5
    %v1302 = vadd.f32 %v1298, 0.5
    %v1303 = vadd.f32 %v1299, 0.5
    %v1304 = vadd.f32 %v1300, 0.5
    %v1305 = vadd.f32 %v1301, 0.5
    %v1306 = vtanh.pop %v1287
    %v1307 = vtanh.pop %v1289
    %v1308 = vmul.f32 %v1302, %v1171
    %v1309 = vmul.f32 %v1304, %v1172
    %1312 = vrot.lane.b32.xlu0 %v1306, 64
    %v1313 = vpop.permute.xlu0 %1312
    %1314 = vrot.lane.b32.xlu0 %v1307, 64
    %v1315 = vpop.permute.xlu0 %1314
    %v1318 = vmul.f32 %v1302, %v1313
    %v1319 = vmul.f32 %v1304, %v1315
    %1322 = vrot.lane.b32.xlu0 %v1318, 64
    %v1323 = vpop.permute.xlu0 %1322
    %1324 = vrot.lane.b32.xlu0 %v1319, 64
    %v1325 = vpop.permute.xlu0 %1324
    %v1328 = vadd.f32 %v1308, %v1323
    %v1329 = vadd.f32 %v1309, %v1325
    %v1330 = vtanh.pop %v1328
    %v1331 = vtanh.pop %v1329
    %1334 = vrot.lane.b32.xlu0 %v1330, 64
    %v1335 = vpop.permute.xlu0 %1334
    %1336 = vrot.lane.b32.xlu0 %v1331, 64
    %v1337 = vpop.permute.xlu0 %1336
    %v1340 = vmul.f32 %v1303, %v1335
    %v1341 = vmul.f32 %v1305, %v1337
    %v1342 = vmul.f32 %v1340, %v870
    %v1343 = vmul.f32 %v1341, %v871
    %v1344 = vmul.f32 %v1340, %v872
    %v1345 = vmul.f32 %v1341, %v873
    %1348 = vrot.lane.b32.xlu0 %v1344, 64
    %v1349 = vpop.permute.xlu0 %1348
    %1350 = vrot.lane.b32.xlu0 %v1345, 64
    %v1351 = vpop.permute.xlu0 %1350
    %v1354 = vsel %vm1039, %v1342, %v1349
    %v1355 = vsel %vm1039, %v1343, %v1351
    %v1356 = vld [vmem:[#allocation3 + $0x10] sm:$0xff]
    %v1357 = vadd.f32 %v1356, %v1354
    %1358 = vst [vmem:[#allocation3 + $0x10] sm:$0xff] %v1357
    %v1359 = vld [vmem:[#allocation3 + $0x68] sm:$0xff]
    %v1360 = vadd.f32 %v1359, %v1355
    %1361 = vst [vmem:[#allocation3 + $0x68] sm:$0xff] %v1360
    %v1362 = vld [vmem:[#allocation2 + $0x60] sm:$0xff]
    %v1363 = vld [vmem:[#allocation2 + $0x68] sm:$0xff]
    %v1364 = vld [vmem:[#allocation2 + $0x70] sm:$0xff]
    %v1365 = vld [vmem:[#allocation2 + $0x78] sm:$0xff]
    %1366 = vmatprep.subr.mxu0 %v800
    %1367 = vmatpush1.msra.mxu0 %v799
    %1368 = vmatprep.subr.mxu0 %v802
    %1369 = vmatpush1.msra.mxu0 %v801
    %1370 = vmatprep.subr.mxu0 %v804
    %1371 = vmatpush1.msra.mxu0 %v803
    %1372 = vmatprep.subr.mxu0 %v806
    %1373 = vmatpush1.msra.mxu0 %v805
    %1374 = vmatprep.subr.mxu0 %v808
    %1375 = vmatpush1.msra.mxu0 %v807
    %1376 = vmatprep.subr.mxu0 %v810
    %1377 = vmatpush1.msra.mxu0 %v809
    %1378 = vmatprep.subr.mxu0 %v812
    %1379 = vmatpush1.msra.mxu0 %v811
    %1380 = vmatprep.subr.mxu0 %v814
    %1381 = vmatpush1.msra.mxu0 %v813
    %1382 = vmatprep.subr.mxu0 %v816
    %1383 = vmatpush1.msra.mxu0 %v815
    %1384 = vmatprep.subr.mxu0 %v818
    %1385 = vmatpush1.msra.mxu0 %v817
    %1386 = vmatprep.subr.mxu0 %v820
    %1387 = vmatpush1.msra.mxu0 %v819
    %1388 = vmatprep.subr.mxu0 %v822
    %1389 = vmatpush1.msra.mxu0 %v821
    %1390 = vmatprep.subr.mxu0 %v824
    %1391 = vmatpush1.msra.mxu0 %v823
    %1392 = vmatprep.subr.mxu0 %v826
    %1393 = vmatpush1.msra.mxu0 %v825
    %1394 = vmatprep.subr.mxu0 %v828
    %1395 = vmatpush1.msra.mxu0 %v827
    %1396 = vmatprep.subr.mxu0 %v830
    %1397 = vmatpush1.msra.mxu0 %v829
    %1398 = vmatprep.subr.mxu0 0.0
    %1399 = vmatpush1.msra.mxu0 0.0
    %1400 = vmatprep.subr.mxu0 0.0
    %1401 = vmatpush1.msra.mxu0 0.0
    %1402 = vmatprep.subr.mxu0 0.0
    %1403 = vmatpush1.msra.mxu0 0.0
    %1404 = vmatprep.subr.mxu0 0.0
    %1405 = vmatpush1.msra.mxu0 0.0
    %1406 = vmatprep.subr.mxu0 0.0
    %1407 = vmatpush1.msra.mxu0 0.0
    %1408 = vmatprep.subr.mxu0 0.0
    %1409 = vmatpush1.msra.mxu0 0.0
    %1410 = vmatprep.subr.mxu0 0.0
    %1411 = vmatpush1.msra.mxu0 0.0
    %1412 = vmatprep.subr.mxu0 0.0
    %1413 = vmatpush1.msra.mxu0 0.0
    %1414 = vmatprep.subr.mxu0 0.0
    %1415 = vmatpush1.msra.mxu0 0.0
    %1416 = vmatprep.subr.mxu0 0.0
    %1417 = vmatpush1.msra.mxu0 0.0
    %1418 = vmatprep.subr.mxu0 0.0
    %1419 = vmatpush1.msra.mxu0 0.0
    %1420 = vmatprep.subr.mxu0 0.0
    %1421 = vmatpush1.msra.mxu0 0.0
    %1422 = vmatprep.subr.mxu0 0.0
    %1423 = vmatpush1.msra.mxu0 0.0
    %1424 = vmatprep.subr.mxu0 0.0
    %1425 = vmatpush1.msra.mxu0 0.0
    %1426 = vmatprep.subr.mxu0 0.0
    %1427 = vmatpush1.msra.mxu0 0.0
    %1428 = vmatprep.subr.mxu0 0.0
    %1429 = vmatpush1.msra.mxu0 0.0
    %1430 = vmatprep.mubr.f32.mxu0 0.0
    %1431 = vmatmul.mubr.f32.gmra.mrb[0].mxu0 %v1354
    %v1432 = vpop.f32.mrb[0].mxu0
    %v1433 = vadd.f32 0.0, %v1432
    %v1434 = vpop.f32.mrb[0].mxu0
    %v1435 = vadd.f32 0.0, %v1434
    %1436 = vmatprep.mubr.f32.mxu0 0.0
    %1437 = vmatmul.mubr.f32.gmra.mrb[0].mxu0 %v1355
    %v1438 = vpop.f32.mrb[0].mxu0
    %v1439 = vadd.f32 0.0, %v1438
    %v1440 = vpop.f32.mrb[0].mxu0
    %v1441 = vadd.f32 0.0, %v1440
    %1442 = vdwg.mxu0
    %v1443 = vadd.f32 %v1362, %v1433
    %v1444 = vadd.f32 %v1363, %v1435
    %v1445 = vadd.f32 %v1364, %v1439
    %v1446 = vadd.f32 %v1365, %v1441
    %v1447 = vmul.f32 %v1443, 0.5
    %v1448 = vmul.f32 %v1444, 0.5
    %v1449 = vmul.f32 %v1445, 0.5
    %v1450 = vmul.f32 %v1446, 0.5
    %v1451 = vtanh.pop %v1447
    %v1452 = vtanh.pop %v1448
    %v1453 = vtanh.pop %v1449
    %v1454 = vtanh.pop %v1450
    %v1455 = vmul.f32 %v1451, 0.5
    %v1456 = vmul.f32 %v1452, 0.5
    %v1457 = vmul.f32 %v1453, 0.5
    %v1458 = vmul.f32 %v1454, 0.5
    %v1459 = vadd.f32 %v1455, 0.5
    %v1460 = vadd.f32 %v1456, 0.5
    %v1461 = vadd.f32 %v1457, 0.5
    %v1462 = vadd.f32 %v1458, 0.5
    %v1463 = vtanh.pop %v1444
    %v1464 = vtanh.pop %v1446
    %v1465 = vmul.f32 %v1459, %v1328
    %v1466 = vmul.f32 %v1461, %v1329
    %1469 = vrot.lane.b32.xlu0 %v1463, 64
    %v1470 = vpop.permute.xlu0 %1469
    %1471 = vrot.lane.b32.xlu0 %v1464, 64
    %v1472 = vpop.permute.xlu0 %1471
    %v1475 = vmul.f32 %v1459, %v1470
    %v1476 = vmul.f32 %v1461, %v1472
    %1479 = vrot.lane.b32.xlu0 %v1475, 64
    %v1480 = vpop.permute.xlu0 %1479
    %1481 = vrot.lane.b32.xlu0 %v1476, 64
    %v1482 = vpop.permute.xlu0 %1481
    %v1485 = vadd.f32 %v1465, %v1480
    %v1486 = vadd.f32 %v1466, %v1482
    %v1487 = vtanh.pop %v1485
    %v1488 = vtanh.pop %v1486
    %1491 = vrot.lane.b32.xlu0 %v1487, 64
    %v1492 = vpop.permute.xlu0 %1491
    %1493 = vrot.lane.b32.xlu0 %v1488, 64
    %v1494 = vpop.permute.xlu0 %1493
    %v1497 = vmul.f32 %v1460, %v1492
    %v1498 = vmul.f32 %v1462, %v1494
    %v1499 = vmul.f32 %v1497, %v870
    %v1500 = vmul.f32 %v1498, %v871
    %v1501 = vmul.f32 %v1497, %v872
    %v1502 = vmul.f32 %v1498, %v873
    %1505 = vrot.lane.b32.xlu0 %v1501, 64
    %v1506 = vpop.permute.xlu0 %1505
    %1507 = vrot.lane.b32.xlu0 %v1502, 64
    %v1508 = vpop.permute.xlu0 %1507
    %v1511 = vsel %vm1039, %v1499, %v1506
    %v1512 = vsel %vm1039, %v1500, %v1508
    %v1513 = vld [vmem:[#allocation3 + $0x18] sm:$0xff]
    %v1514 = vadd.f32 %v1513, %v1511
    %1515 = vst [vmem:[#allocation3 + $0x18] sm:$0xff] %v1514
    %v1516 = vld [vmem:[#allocation3 + $0x60] sm:$0xff]
    %v1517 = vadd.f32 %v1516, %v1512
    %1518 = vst [vmem:[#allocation3 + $0x60] sm:$0xff] %v1517
    %v1519 = vld [vmem:[#allocation2 + $0x80] sm:$0xff]
    %v1520 = vld [vmem:[#allocation2 + $0x88] sm:$0xff]
    %v1521 = vld [vmem:[#allocation2 + $0x90] sm:$0xff]
    %v1522 = vld [vmem:[#allocation2 + $0x98] sm:$0xff]
    %1523 = vmatprep.subr.mxu0 %v800
    %1524 = vmatpush1.msra.mxu0 %v799
    %1525 = vmatprep.subr.mxu0 %v802
    %1526 = vmatpush1.msra.mxu0 %v801
    %1527 = vmatprep.subr.mxu0 %v804
    %1528 = vmatpush1.msra.mxu0 %v803
    %1529 = vmatprep.subr.mxu0 %v806
    %1530 = vmatpush1.msra.mxu0 %v805
    %1531 = vmatprep.subr.mxu0 %v808
    %1532 = vmatpush1.msra.mxu0 %v807
    %1533 = vmatprep.subr.mxu0 %v810
    %1534 = vmatpush1.msra.mxu0 %v809
    %1535 = vmatprep.subr.mxu0 %v812
    %1536 = vmatpush1.msra.mxu0 %v811
    %1537 = vmatprep.subr.mxu0 %v814
    %1538 = vmatpush1.msra.mxu0 %v813
    %1539 = vmatprep.subr.mxu0 %v816
    %1540 = vmatpush1.msra.mxu0 %v815
    %1541 = vmatprep.subr.mxu0 %v818
    %1542 = vmatpush1.msra.mxu0 %v817
    %1543 = vmatprep.subr.mxu0 %v820
    %1544 = vmatpush1.msra.mxu0 %v819
    %1545 = vmatprep.subr.mxu0 %v822
    %1546 = vmatpush1.msra.mxu0 %v821
    %1547 = vmatprep.subr.mxu0 %v824
    %1548 = vmatpush1.msra.mxu0 %v823
    %1549 = vmatprep.subr.mxu0 %v826
    %1550 = vmatpush1.msra.mxu0 %v825
    %1551 = vmatprep.subr.mxu0 %v828
    %1552 = vmatpush1.msra.mxu0 %v827
    %1553 = vmatprep.subr.mxu0 %v830
    %1554 = vmatpush1.msra.mxu0 %v829
    %1555 = vmatprep.subr.mxu0 0.0
    %1556 = vmatpush1.msra.mxu0 0.0
    %1557 = vmatprep.subr.mxu0 0.0
    %1558 = vmatpush1.msra.mxu0 0.0
    %1559 = vmatprep.subr.mxu0 0.0
    %1560 = vmatpush1.msra.mxu0 0.0
    %1561 = vmatprep.subr.mxu0 0.0
    %1562 = vmatpush1.msra.mxu0 0.0
    %1563 = vmatprep.subr.mxu0 0.0
    %1564 = vmatpush1.msra.mxu0 0.0
    %1565 = vmatprep.subr.mxu0 0.0
    %1566 = vmatpush1.msra.mxu0 0.0
    %1567 = vmatprep.subr.mxu0 0.0
    %1568 = vmatpush1.msra.mxu0 0.0
    %1569 = vmatprep.subr.mxu0 0.0
    %1570 = vmatpush1.msra.mxu0 0.0
    %1571 = vmatprep.subr.mxu0 0.0
    %1572 = vmatpush1.msra.mxu0 0.0
    %1573 = vmatprep.subr.mxu0 0.0
    %1574 = vmatpush1.msra.mxu0 0.0
    %1575 = vmatprep.subr.mxu0 0.0
    %1576 = vmatpush1.msra.mxu0 0.0
    %1577 = vmatprep.subr.mxu0 0.0
    %1578 = vmatpush1.msra.mxu0 0.0
    %1579 = vmatprep.subr.mxu0 0.0
    %1580 = vmatpush1.msra.mxu0 0.0
    %1581 = vmatprep.subr.mxu0 0.0
    %1582 = vmatpush1.msra.mxu0 0.0
    %1583 = vmatprep.subr.mxu0 0.0
    %1584 = vmatpush1.msra.mxu0 0.0
    %1585 = vmatprep.subr.mxu0 0.0
    %1586 = vmatpush1.msra.mxu0 0.0
    %1587 = vmatprep.mubr.f32.mxu0 0.0
    %1588 = vmatmul.mubr.f32.gmra.mrb[0].mxu0 %v1511
    %v1589 = vpop.f32.mrb[0].mxu0
    %v1590 = vadd.f32 0.0, %v1589
    %v1591 = vpop.f32.mrb[0].mxu0
    %v1592 = vadd.f32 0.0, %v1591
    %1593 = vmatprep.mubr.f32.mxu0 0.0
    %1594 = vmatmul.mubr.f32.gmra.mrb[0].mxu0 %v1512
    %v1595 = vpop.f32.mrb[0].mxu0
    %v1596 = vadd.f32 0.0, %v1595
    %v1597 = vpop.f32.mrb[0].mxu0
    %v1598 = vadd.f32 0.0, %v1597
    %1599 = vdwg.mxu0
    %v1600 = vadd.f32 %v1519, %v1590
    %v1601 = vadd.f32 %v1520, %v1592
    %v1602 = vadd.f32 %v1521, %v1596
    %v1603 = vadd.f32 %v1522, %v1598
    %v1604 = vmul.f32 %v1600, 0.5
    %v1605 = vmul.f32 %v1601, 0.5
    %v1606 = vmul.f32 %v1602, 0.5
    %v1607 = vmul.f32 %v1603, 0.5
    %v1608 = vtanh.pop %v1604
    %v1609 = vtanh.pop %v1605
    %v1610 = vtanh.pop %v1606
    %v1611 = vtanh.pop %v1607
    %v1612 = vmul.f32 %v1608, 0.5
    %v1613 = vmul.f32 %v1609, 0.5
    %v1614 = vmul.f32 %v1610, 0.5
    %v1615 = vmul.f32 %v1611, 0.5
    %v1616 = vadd.f32 %v1612, 0.5
    %v1617 = vadd.f32 %v1613, 0.5
    %v1618 = vadd.f32 %v1614, 0.5
    %v1619 = vadd.f32 %v1615, 0.5
    %v1620 = vtanh.pop %v1601
    %v1621 = vtanh.pop %v1603
    %v1622 = vmul.f32 %v1616, %v1485
    %v1623 = vmul.f32 %v1618, %v1486
    %1626 = vrot.lane.b32.xlu0 %v1620, 64
    %v1627 = vpop.permute.xlu0 %1626
    %1628 = vrot.lane.b32.xlu0 %v1621, 64
    %v1629 = vpop.permute.xlu0 %1628
    %v1632 = vmul.f32 %v1616, %v1627
    %v1633 = vmul.f32 %v1618, %v1629
    %1636 = vrot.lane.b32.xlu0 %v1632, 64
    %v1637 = vpop.permute.xlu0 %1636
    %1638 = vrot.lane.b32.xlu0 %v1633, 64
    %v1639 = vpop.permute.xlu0 %1638
    %v1642 = vadd.f32 %v1622, %v1637
    %v1643 = vadd.f32 %v1623, %v1639
    %v1644 = vtanh.pop %v1642
    %v1645 = vtanh.pop %v1643
    %1648 = vrot.lane.b32.xlu0 %v1644, 64
    %v1649 = vpop.permute.xlu0 %1648
    %1650 = vrot.lane.b32.xlu0 %v1645, 64
    %v1651 = vpop.permute.xlu0 %1650
    %v1654 = vmul.f32 %v1617, %v1649
    %v1655 = vmul.f32 %v1619, %v1651
    %v1656 = vmul.f32 %v1654, %v870
    %v1657 = vmul.f32 %v1655, %v871
    %v1658 = vmul.f32 %v1654, %v872
    %v1659 = vmul.f32 %v1655, %v873
    %1662 = vrot.lane.b32.xlu0 %v1658, 64
    %v1663 = vpop.permute.xlu0 %1662
    %1664 = vrot.lane.b32.xlu0 %v1659, 64
    %v1665 = vpop.permute.xlu0 %1664
    %v1668 = vsel %vm1039, %v1656, %v1663
    %v1669 = vsel %vm1039, %v1657, %v1665
    %v1670 = vld [vmem:[#allocation3 + $0x20] sm:$0xff]
    %v1671 = vadd.f32 %v1670, %v1668
    %1672 = vst [vmem:[#allocation3 + $0x20] sm:$0xff] %v1671
    %v1673 = vld [vmem:[#allocation3 + $0x58] sm:$0xff]
    %v1674 = vadd.f32 %v1673, %v1669
    %1675 = vst [vmem:[#allocation3 + $0x58] sm:$0xff] %v1674
    %v1676 = vld [vmem:[#allocation2 + $0xa0] sm:$0xff]
    %v1677 = vld [vmem:[#allocation2 + $0xa8] sm:$0xff]
    %v1678 = vld [vmem:[#allocation2 + $0xb0] sm:$0xff]
    %v1679 = vld [vmem:[#allocation2 + $0xb8] sm:$0xff]
    %1680 = vmatprep.subr.mxu0 %v800
    %1681 = vmatpush1.msra.mxu0 %v799
    %1682 = vmatprep.subr.mxu0 %v802
    %1683 = vmatpush1.msra.mxu0 %v801
    %1684 = vmatprep.subr.mxu0 %v804
    %1685 = vmatpush1.msra.mxu0 %v803
    %1686 = vmatprep.subr.mxu0 %v806
    %1687 = vmatpush1.msra.mxu0 %v805
    %1688 = vmatprep.subr.mxu0 %v808
    %1689 = vmatpush1.msra.mxu0 %v807
    %1690 = vmatprep.subr.mxu0 %v810
    %1691 = vmatpush1.msra.mxu0 %v809
    %1692 = vmatprep.subr.mxu0 %v812
    %1693 = vmatpush1.msra.mxu0 %v811
    %1694 = vmatprep.subr.mxu0 %v814
    %1695 = vmatpush1.msra.mxu0 %v813
    %1696 = vmatprep.subr.mxu0 %v816
    %1697 = vmatpush1.msra.mxu0 %v815
    %1698 = vmatprep.subr.mxu0 %v818
    %1699 = vmatpush1.msra.mxu0 %v817
    %1700 = vmatprep.subr.mxu0 %v820
    %1701 = vmatpush1.msra.mxu0 %v819
    %1702 = vmatprep.subr.mxu0 %v822
    %1703 = vmatpush1.msra.mxu0 %v821
    %1704 = vmatprep.subr.mxu0 %v824
    %1705 = vmatpush1.msra.mxu0 %v823
    %1706 = vmatprep.subr.mxu0 %v826
    %1707 = vmatpush1.msra.mxu0 %v825
    %1708 = vmatprep.subr.mxu0 %v828
    %1709 = vmatpush1.msra.mxu0 %v827
    %1710 = vmatprep.subr.mxu0 %v830
    %1711 = vmatpush1.msra.mxu0 %v829
    %1712 = vmatprep.subr.mxu0 0.0
    %1713 = vmatpush1.msra.mxu0 0.0
    %1714 = vmatprep.subr.mxu0 0.0
    %1715 = vmatpush1.msra.mxu0 0.0
    %1716 = vmatprep.subr.mxu0 0.0
    %1717 = vmatpush1.msra.mxu0 0.0
    %1718 = vmatprep.subr.mxu0 0.0
    %1719 = vmatpush1.msra.mxu0 0.0
    %1720 = vmatprep.subr.mxu0 0.0
    %1721 = vmatpush1.msra.mxu0 0.0
    %1722 = vmatprep.subr.mxu0 0.0
    %1723 = vmatpush1.msra.mxu0 0.0
    %1724 = vmatprep.subr.mxu0 0.0
    %1725 = vmatpush1.msra.mxu0 0.0
    %1726 = vmatprep.subr.mxu0 0.0
    %1727 = vmatpush1.msra.mxu0 0.0
    %1728 = vmatprep.subr.mxu0 0.0
    %1729 = vmatpush1.msra.mxu0 0.0
    %1730 = vmatprep.subr.mxu0 0.0
    %1731 = vmatpush1.msra.mxu0 0.0
    %1732 = vmatprep.subr.mxu0 0.0
    %1733 = vmatpush1.msra.mxu0 0.0
    %1734 = vmatprep.subr.mxu0 0.0
    %1735 = vmatpush1.msra.mxu0 0.0
    %1736 = vmatprep.subr.mxu0 0.0
    %1737 = vmatpush1.msra.mxu0 0.0
    %1738 = vmatprep.subr.mxu0 0.0
    %1739 = vmatpush1.msra.mxu0 0.0
    %1740 = vmatprep.subr.mxu0 0.0
    %1741 = vmatpush1.msra.mxu0 0.0
    %1742 = vmatprep.subr.mxu0 0.0
    %1743 = vmatpush1.msra.mxu0 0.0
    %1744 = vmatprep.mubr.f32.mxu0 0.0
    %1745 = vmatmul.mubr.f32.gmra.mrb[0].mxu0 %v1668
    %v1746 = vpop.f32.mrb[0].mxu0
    %v1747 = vadd.f32 0.0, %v1746
    %v1748 = vpop.f32.mrb[0].mxu0
    %v1749 = vadd.f32 0.0, %v1748
    %1750 = vmatprep.mubr.f32.mxu0 0.0
    %1751 = vmatmul.mubr.f32.gmra.mrb[0].mxu0 %v1669
    %v1752 = vpop.f32.mrb[0].mxu0
    %v1753 = vadd.f32 0.0, %v1752
    %v1754 = vpop.f32.mrb[0].mxu0
    %v1755 = vadd.f32 0.0, %v1754
    %1756 = vdwg.mxu0
    %v1757 = vadd.f32 %v1676, %v1747
    %v1758 = vadd.f32 %v1677, %v1749
    %v1759 = vadd.f32 %v1678, %v1753
    %v1760 = vadd.f32 %v1679, %v1755
    %v1761 = vmul.f32 %v1757, 0.5
    %v1762 = vmul.f32 %v1758, 0.5
    %v1763 = vmul.f32 %v1759, 0.5
    %v1764 = vmul.f32 %v1760, 0.5
    %v1765 = vtanh.pop %v1761
    %v1766 = vtanh.pop %v1762
    %v1767 = vtanh.pop %v1763
    %v1768 = vtanh.pop %v1764
    %v1769 = vmul.f32 %v1765, 0.5
    %v1770 = vmul.f32 %v1766, 0.5
    %v1771 = vmul.f32 %v1767, 0.5
    %v1772 = vmul.f32 %v1768, 0.5
    %v1773 = vadd.f32 %v1769, 0.5
    %v1774 = vadd.f32 %v1770, 0.5
    %v1775 = vadd.f32 %v1771, 0.5
    %v1776 = vadd.f32 %v1772, 0.5
    %v1777 = vtanh.pop %v1758
    %v1778 = vtanh.pop %v1760
    %v1779 = vmul.f32 %v1773, %v1642
    %v1780 = vmul.f32 %v1775, %v1643
    %1783 = vrot.lane.b32.xlu0 %v1777, 64
    %v1784 = vpop.permute.xlu0 %1783
    %1785 = vrot.lane.b32.xlu0 %v1778, 64
    %v1786 = vpop.permute.xlu0 %1785
    %v1789 = vmul.f32 %v1773, %v1784
    %v1790 = vmul.f32 %v1775, %v1786
    %1793 = vrot.lane.b32.xlu0 %v1789, 64
    %v1794 = vpop.permute.xlu0 %1793
    %1795 = vrot.lane.b32.xlu0 %v1790, 64
    %v1796 = vpop.permute.xlu0 %1795
    %v1799 = vadd.f32 %v1779, %v1794
    %v1800 = vadd.f32 %v1780, %v1796
    %v1801 = vtanh.pop %v1799
    %v1802 = vtanh.pop %v1800
    %1805 = vrot.lane.b32.xlu0 %v1801, 64
    %v1806 = vpop.permute.xlu0 %1805
    %1807 = vrot.lane.b32.xlu0 %v1802, 64
    %v1808 = vpop.permute.xlu0 %1807
    %v1811 = vmul.f32 %v1774, %v1806
    %v1812 = vmul.f32 %v1776, %v1808
    %v1813 = vmul.f32 %v1811, %v870
    %v1814 = vmul.f32 %v1812, %v871
    %v1815 = vmul.f32 %v1811, %v872
    %v1816 = vmul.f32 %v1812, %v873
    %1819 = vrot.lane.b32.xlu0 %v1815, 64
    %v1820 = vpop.permute.xlu0 %1819
    %1821 = vrot.lane.b32.xlu0 %v1816, 64
    %v1822 = vpop.permute.xlu0 %1821
    %v1825 = vsel %vm1039, %v1813, %v1820
    %v1826 = vsel %vm1039, %v1814, %v1822
    %v1827 = vld [vmem:[#allocation3 + $0x28] sm:$0xff]
    %v1828 = vadd.f32 %v1827, %v1825
    %1829 = vst [vmem:[#allocation3 + $0x28] sm:$0xff] %v1828
    %v1830 = vld [vmem:[#allocation3 + $0x50] sm:$0xff]
    %v1831 = vadd.f32 %v1830, %v1826
    %1832 = vst [vmem:[#allocation3 + $0x50] sm:$0xff] %v1831
    %v1833 = vld [vmem:[#allocation2 + $0xc0] sm:$0xff]
    %v1834 = vld [vmem:[#allocation2 + $0xc8] sm:$0xff]
    %v1835 = vld [vmem:[#allocation2 + $0xd0] sm:$0xff]
    %v1836 = vld [vmem:[#allocation2 + $0xd8] sm:$0xff]
    %1837 = vmatprep.subr.mxu0 %v800
    %1838 = vmatpush1.msra.mxu0 %v799
    %1839 = vmatprep.subr.mxu0 %v802
    %1840 = vmatpush1.msra.mxu0 %v801
    %1841 = vmatprep.subr.mxu0 %v804
    %1842 = vmatpush1.msra.mxu0 %v803
    %1843 = vmatprep.subr.mxu0 %v806
    %1844 = vmatpush1.msra.mxu0 %v805
    %1845 = vmatprep.subr.mxu0 %v808
    %1846 = vmatpush1.msra.mxu0 %v807
    %1847 = vmatprep.subr.mxu0 %v810
    %1848 = vmatpush1.msra.mxu0 %v809
    %1849 = vmatprep.subr.mxu0 %v812
    %1850 = vmatpush1.msra.mxu0 %v811
    %1851 = vmatprep.subr.mxu0 %v814
    %1852 = vmatpush1.msra.mxu0 %v813
    %1853 = vmatprep.subr.mxu0 %v816
    %1854 = vmatpush1.msra.mxu0 %v815
    %1855 = vmatprep.subr.mxu0 %v818
    %1856 = vmatpush1.msra.mxu0 %v817
    %1857 = vmatprep.subr.mxu0 %v820
    %1858 = vmatpush1.msra.mxu0 %v819
    %1859 = vmatprep.subr.mxu0 %v822
    %1860 = vmatpush1.msra.mxu0 %v821
    %1861 = vmatprep.subr.mxu0 %v824
    %1862 = vmatpush1.msra.mxu0 %v823
    %1863 = vmatprep.subr.mxu0 %v826
    %1864 = vmatpush1.msra.mxu0 %v825
    %1865 = vmatprep.subr.mxu0 %v828
    %1866 = vmatpush1.msra.mxu0 %v827
    %1867 = vmatprep.subr.mxu0 %v830
    %1868 = vmatpush1.msra.mxu0 %v829
    %1869 = vmatprep.subr.mxu0 0.0
    %1870 = vmatpush1.msra.mxu0 0.0
    %1871 = vmatprep.subr.mxu0 0.0
    %1872 = vmatpush1.msra.mxu0 0.0
    %1873 = vmatprep.subr.mxu0 0.0
    %1874 = vmatpush1.msra.mxu0 0.0
    %1875 = vmatprep.subr.mxu0 0.0
    %1876 = vmatpush1.msra.mxu0 0.0
    %1877 = vmatprep.subr.mxu0 0.0
    %1878 = vmatpush1.msra.mxu0 0.0
    %1879 = vmatprep.subr.mxu0 0.0
    %1880 = vmatpush1.msra.mxu0 0.0
    %1881 = vmatprep.subr.mxu0 0.0
    %1882 = vmatpush1.msra.mxu0 0.0
    %1883 = vmatprep.subr.mxu0 0.0
    %1884 = vmatpush1.msra.mxu0 0.0
    %1885 = vmatprep.subr.mxu0 0.0
    %1886 = vmatpush1.msra.mxu0 0.0
    %1887 = vmatprep.subr.mxu0 0.0
    %1888 = vmatpush1.msra.mxu0 0.0
    %1889 = vmatprep.subr.mxu0 0.0
    %1890 = vmatpush1.msra.mxu0 0.0
    %1891 = vmatprep.subr.mxu0 0.0
    %1892 = vmatpush1.msra.mxu0 0.0
    %1893 = vmatprep.subr.mxu0 0.0
    %1894 = vmatpush1.msra.mxu0 0.0
    %1895 = vmatprep.subr.mxu0 0.0
    %1896 = vmatpush1.msra.mxu0 0.0
    %1897 = vmatprep.subr.mxu0 0.0
    %1898 = vmatpush1.msra.mxu0 0.0
    %1899 = vmatprep.subr.mxu0 0.0
    %1900 = vmatpush1.msra.mxu0 0.0
    %1901 = vmatprep.mubr.f32.mxu0 0.0
    %1902 = vmatmul.mubr.f32.gmra.mrb[0].mxu0 %v1825
    %v1903 = vpop.f32.mrb[0].mxu0
    %v1904 = vadd.f32 0.0, %v1903
    %v1905 = vpop.f32.mrb[0].mxu0
    %v1906 = vadd.f32 0.0, %v1905
    %1907 = vmatprep.mubr.f32.mxu0 0.0
    %1908 = vmatmul.mubr.f32.gmra.mrb[0].mxu0 %v1826
    %v1909 = vpop.f32.mrb[0].mxu0
    %v1910 = vadd.f32 0.0, %v1909
    %v1911 = vpop.f32.mrb[0].mxu0
    %v1912 = vadd.f32 0.0, %v1911
    %1913 = vdwg.mxu0
    %v1914 = vadd.f32 %v1833, %v1904
    %v1915 = vadd.f32 %v1834, %v1906
    %v1916 = vadd.f32 %v1835, %v1910
    %v1917 = vadd.f32 %v1836, %v1912
    %v1918 = vmul.f32 %v1914, 0.5
    %v1919 = vmul.f32 %v1915, 0.5
    %v1920 = vmul.f32 %v1916, 0.5
    %v1921 = vmul.f32 %v1917, 0.5
    %v1922 = vtanh.pop %v1918
    %v1923 = vtanh.pop %v1919
    %v1924 = vtanh.pop %v1920
    %v1925 = vtanh.pop %v1921
    %v1926 = vmul.f32 %v1922, 0.5
    %v1927 = vmul.f32 %v1923, 0.5
    %v1928 = vmul.f32 %v1924, 0.5
    %v1929 = vmul.f32 %v1925, 0.5
    %v1930 = vadd.f32 %v1926, 0.5
    %v1931 = vadd.f32 %v1927, 0.5
    %v1932 = vadd.f32 %v1928, 0.5
    %v1933 = vadd.f32 %v1929, 0.5
    %v1934 = vtanh.pop %v1915
    %v1935 = vtanh.pop %v1917
    %v1936 = vmul.f32 %v1930, %v1799
    %v1937 = vmul.f32 %v1932, %v1800
    %1940 = vrot.lane.b32.xlu0 %v1934, 64
    %v1941 = vpop.permute.xlu0 %1940
    %1942 = vrot.lane.b32.xlu0 %v1935, 64
    %v1943 = vpop.permute.xlu0 %1942
    %v1946 = vmul.f32 %v1930, %v1941
    %v1947 = vmul.f32 %v1932, %v1943
    %1950 = vrot.lane.b32.xlu0 %v1946, 64
    %v1951 = vpop.permute.xlu0 %1950
    %1952 = vrot.lane.b32.xlu0 %v1947, 64
    %v1953 = vpop.permute.xlu0 %1952
    %v1956 = vadd.f32 %v1936, %v1951
    %v1957 = vadd.f32 %v1937, %v1953
    %v1958 = vtanh.pop %v1956
    %v1959 = vtanh.pop %v1957
    %1962 = vrot.lane.b32.xlu0 %v1958, 64
    %v1963 = vpop.permute.xlu0 %1962
    %1964 = vrot.lane.b32.xlu0 %v1959, 64
    %v1965 = vpop.permute.xlu0 %1964
    %v1968 = vmul.f32 %v1931, %v1963
    %v1969 = vmul.f32 %v1933, %v1965
    %v1970 = vmul.f32 %v1968, %v870
    %v1971 = vmul.f32 %v1969, %v871
    %v1972 = vmul.f32 %v1968, %v872
    %v1973 = vmul.f32 %v1969, %v873
    %1976 = vrot.lane.b32.xlu0 %v1972, 64
    %v1977 = vpop.permute.xlu0 %1976
    %1978 = vrot.lane.b32.xlu0 %v1973, 64
    %v1979 = vpop.permute.xlu0 %1978
    %v1982 = vsel %vm1039, %v1970, %v1977
    %v1983 = vsel %vm1039, %v1971, %v1979
    %v1984 = vld [vmem:[#allocation3 + $0x30] sm:$0xff]
    %v1985 = vadd.f32 %v1984, %v1982
    %1986 = vst [vmem:[#allocation3 + $0x30] sm:$0xff] %v1985
    %v1987 = vld [vmem:[#allocation3 + $0x48] sm:$0xff]
    %v1988 = vadd.f32 %v1987, %v1983
    %1989 = vst [vmem:[#allocation3 + $0x48] sm:$0xff] %v1988
    %v1990 = vld [vmem:[#allocation2 + $0xe0] sm:$0xff]
    %v1991 = vld [vmem:[#allocation2 + $0xe8] sm:$0xff]
    %v1992 = vld [vmem:[#allocation2 + $0xf0] sm:$0xff]
    %v1993 = vld [vmem:[#allocation2 + $0xf8] sm:$0xff]
    %1994 = vmatprep.subr.mxu0 %v800
    %1995 = vmatpush1.msra.mxu0 %v799
    %1996 = vmatprep.subr.mxu0 %v802
    %1997 = vmatpush1.msra.mxu0 %v801
    %1998 = vmatprep.subr.mxu0 %v804
    %1999 = vmatpush1.msra.mxu0 %v803
    %2000 = vmatprep.subr.mxu0 %v806
    %2001 = vmatpush1.msra.mxu0 %v805
    %2002 = vmatprep.subr.mxu0 %v808
    %2003 = vmatpush1.msra.mxu0 %v807
    %2004 = vmatprep.subr.mxu0 %v810
    %2005 = vmatpush1.msra.mxu0 %v809
    %2006 = vmatprep.subr.mxu0 %v812
    %2007 = vmatpush1.msra.mxu0 %v811
    %2008 = vmatprep.subr.mxu0 %v814
    %2009 = vmatpush1.msra.mxu0 %v813
    %2010 = vmatprep.subr.mxu0 %v816
    %2011 = vmatpush1.msra.mxu0 %v815
    %2012 = vmatprep.subr.mxu0 %v818
    %2013 = vmatpush1.msra.mxu0 %v817
    %2014 = vmatprep.subr.mxu0 %v820
    %2015 = vmatpush1.msra.mxu0 %v819
    %2016 = vmatprep.subr.mxu0 %v822
    %2017 = vmatpush1.msra.mxu0 %v821
    %2018 = vmatprep.subr.mxu0 %v824
    %2019 = vmatpush1.msra.mxu0 %v823
    %2020 = vmatprep.subr.mxu0 %v826
    %2021 = vmatpush1.msra.mxu0 %v825
    %2022 = vmatprep.subr.mxu0 %v828
    %2023 = vmatpush1.msra.mxu0 %v827
    %2024 = vmatprep.subr.mxu0 %v830
    %2025 = vmatpush1.msra.mxu0 %v829
    %2026 = vmatprep.subr.mxu0 0.0
    %2027 = vmatpush1.msra.mxu0 0.0
    %2028 = vmatprep.subr.mxu0 0.0
    %2029 = vmatpush1.msra.mxu0 0.0
    %2030 = vmatprep.subr.mxu0 0.0
    %2031 = vmatpush1.msra.mxu0 0.0
    %2032 = vmatprep.subr.mxu0 0.0
    %2033 = vmatpush1.msra.mxu0 0.0
    %2034 = vmatprep.subr.mxu0 0.0
    %2035 = vmatpush1.msra.mxu0 0.0
    %2036 = vmatprep.subr.mxu0 0.0
    %2037 = vmatpush1.msra.mxu0 0.0
    %2038 = vmatprep.subr.mxu0 0.0
    %2039 = vmatpush1.msra.mxu0 0.0
    %2040 = vmatprep.subr.mxu0 0.0
    %2041 = vmatpush1.msra.mxu0 0.0
    %2042 = vmatprep.subr.mxu0 0.0
    %2043 = vmatpush1.msra.mxu0 0.0
    %2044 = vmatprep.subr.mxu0 0.0
    %2045 = vmatpush1.msra.mxu0 0.0
    %2046 = vmatprep.subr.mxu0 0.0
    %2047 = vmatpush1.msra.mxu0 0.0
    %2048 = vmatprep.subr.mxu0 0.0
    %2049 = vmatpush1.msra.mxu0 0.0
    %2050 = vmatprep.subr.mxu0 0.0
    %2051 = vmatpush1.msra.mxu0 0.0
    %2052 = vmatprep.subr.mxu0 0.0
    %2053 = vmatpush1.msra.mxu0 0.0
    %2054 = vmatprep.subr.mxu0 0.0
    %2055 = vmatpush1.msra.mxu0 0.0
    %2056 = vmatprep.subr.mxu0 0.0
    %2057 = vmatpush1.msra.mxu0 0.0
    %2058 = vmatprep.mubr.f32.mxu0 0.0
    %2059 = vmatmul.mubr.f32.gmra.mrb[0].mxu0 %v1982
    %v2060 = vpop.f32.mrb[0].mxu0
    %v2061 = vadd.f32 0.0, %v2060
    %v2062 = vpop.f32.mrb[0].mxu0
    %v2063 = vadd.f32 0.0, %v2062
    %2064 = vmatprep.mubr.f32.mxu0 0.0
    %2065 = vmatmul.mubr.f32.gmra.mrb[0].mxu0 %v1983
    %v2066 = vpop.f32.mrb[0].mxu0
    %v2067 = vadd.f32 0.0, %v2066
    %v2068 = vpop.f32.mrb[0].mxu0
    %v2069 = vadd.f32 0.0, %v2068
    %2070 = vdwg.mxu0
    %v2071 = vadd.f32 %v1990, %v2061
    %v2072 = vadd.f32 %v1991, %v2063
    %v2073 = vadd.f32 %v1992, %v2067
    %v2074 = vadd.f32 %v1993, %v2069
    %v2075 = vmul.f32 %v2071, 0.5
    %v2076 = vmul.f32 %v2072, 0.5
    %v2077 = vmul.f32 %v2073, 0.5
    %v2078 = vmul.f32 %v2074, 0.5
    %v2079 = vtanh.pop %v2075
    %v2080 = vtanh.pop %v2076
    %v2081 = vtanh.pop %v2077
    %v2082 = vtanh.pop %v2078
    %v2083 = vmul.f32 %v2079, 0.5
    %v2084 = vmul.f32 %v2080, 0.5
    %v2085 = vmul.f32 %v2081, 0.5
    %v2086 = vmul.f32 %v2082, 0.5
    %v2087 = vadd.f32 %v2083, 0.5
    %v2088 = vadd.f32 %v2084, 0.5
    %v2089 = vadd.f32 %v2085, 0.5
    %v2090 = vadd.f32 %v2086, 0.5
    %v2091 = vtanh.pop %v2072
    %v2092 = vtanh.pop %v2074
    %v2093 = vmul.f32 %v2087, %v1956
    %v2094 = vmul.f32 %v2089, %v1957
    %2097 = vrot.lane.b32.xlu0 %v2091, 64
    %v2098 = vpop.permute.xlu0 %2097
    %2099 = vrot.lane.b32.xlu0 %v2092, 64
    %v2100 = vpop.permute.xlu0 %2099
    %v2103 = vmul.f32 %v2087, %v2098
    %v2104 = vmul.f32 %v2089, %v2100
    %2107 = vrot.lane.b32.xlu0 %v2103, 64
    %v2108 = vpop.permute.xlu0 %2107
    %2109 = vrot.lane.b32.xlu0 %v2104, 64
    %v2110 = vpop.permute.xlu0 %2109
    %v2113 = vadd.f32 %v2093, %v2108
    %v2114 = vadd.f32 %v2094, %v2110
    %v2115 = vtanh.pop %v2113
    %v2116 = vtanh.pop %v2114
    %2119 = vrot.lane.b32.xlu0 %v2115, 64
    %v2120 = vpop.permute.xlu0 %2119
    %2121 = vrot.lane.b32.xlu0 %v2116, 64
    %v2122 = vpop.permute.xlu0 %2121
    %v2125 = vmul.f32 %v2088, %v2120
    %v2126 = vmul.f32 %v2090, %v2122
    %v2127 = vmul.f32 %v2125, %v870
    %v2128 = vmul.f32 %v2126, %v871
    %v2129 = vmul.f32 %v2125, %v872
    %v2130 = vmul.f32 %v2126, %v873
    %2133 = vrot.lane.b32.xlu0 %v2129, 64
    %v2134 = vpop.permute.xlu0 %2133
    %2135 = vrot.lane.b32.xlu0 %v2130, 64
    %v2136 = vpop.permute.xlu0 %2135
    %v2139 = vsel %vm1039, %v2127, %v2134
    %v2140 = vsel %vm1039, %v2128, %v2136
    %v2141 = vld [vmem:[#allocation3 + $0x38] sm:$0xff]
    %v2142 = vadd.f32 %v2141, %v2139
    %2143 = vst [vmem:[#allocation3 + $0x38] sm:$0xff] %v2142
    %v2144 = vld [vmem:[#allocation3 + $0x40] sm:$0xff]
    %v2145 = vadd.f32 %v2144, %v2140
    %2146 = vst [vmem:[#allocation3 + $0x40] sm:$0xff] %v2145
    %v2147 = vld [vmem:[#allocation2 + $0x100] sm:$0xff]
    %v2148 = vld [vmem:[#allocation2 + $0x108] sm:$0xff]
    %v2149 = vld [vmem:[#allocation2 + $0x110] sm:$0xff]
    %v2150 = vld [vmem:[#allocation2 + $0x118] sm:$0xff]
    %2151 = vmatprep.subr.mxu0 %v800
    %2152 = vmatpush1.msra.mxu0 %v799
    %2153 = vmatprep.subr.mxu0 %v802
    %2154 = vmatpush1.msra.mxu0 %v801
    %2155 = vmatprep.subr.mxu0 %v804
    %2156 = vmatpush1.msra.mxu0 %v803
    %2157 = vmatprep.subr.mxu0 %v806
    %2158 = vmatpush1.msra.mxu0 %v805
    %2159 = vmatprep.subr.mxu0 %v808
    %2160 = vmatpush1.msra.mxu0 %v807
    %2161 = vmatprep.subr.mxu0 %v810
    %2162 = vmatpush1.msra.mxu0 %v809
    %2163 = vmatprep.subr.mxu0 %v812
    %2164 = vmatpush1.msra.mxu0 %v811
    %2165 = vmatprep.subr.mxu0 %v814
    %2166 = vmatpush1.msra.mxu0 %v813
    %2167 = vmatprep.subr.mxu0 %v816
    %2168 = vmatpush1.msra.mxu0 %v815
    %2169 = vmatprep.subr.mxu0 %v818
    %2170 = vmatpush1.msra.mxu0 %v817
    %2171 = vmatprep.subr.mxu0 %v820
    %2172 = vmatpush1.msra.mxu0 %v819
    %2173 = vmatprep.subr.mxu0 %v822
    %2174 = vmatpush1.msra.mxu0 %v821
    %2175 = vmatprep.subr.mxu0 %v824
    %2176 = vmatpush1.msra.mxu0 %v823
    %2177 = vmatprep.subr.mxu0 %v826
    %2178 = vmatpush1.msra.mxu0 %v825
    %2179 = vmatprep.subr.mxu0 %v828
    %2180 = vmatpush1.msra.mxu0 %v827
    %2181 = vmatprep.subr.mxu0 %v830
    %2182 = vmatpush1.msra.mxu0 %v829
    %2183 = vmatprep.subr.mxu0 0.0
    %2184 = vmatpush1.msra.mxu0 0.0
    %2185 = vmatprep.subr.mxu0 0.0
    %2186 = vmatpush1.msra.mxu0 0.0
    %2187 = vmatprep.subr.mxu0 0.0
    %2188 = vmatpush1.msra.mxu0 0.0
    %2189 = vmatprep.subr.mxu0 0.0
    %2190 = vmatpush1.msra.mxu0 0.0
    %2191 = vmatprep.subr.mxu0 0.0
    %2192 = vmatpush1.msra.mxu0 0.0
    %2193 = vmatprep.subr.mxu0 0.0
    %2194 = vmatpush1.msra.mxu0 0.0
    %2195 = vmatprep.subr.mxu0 0.0
    %2196 = vmatpush1.msra.mxu0 0.0
    %2197 = vmatprep.subr.mxu0 0.0
    %2198 = vmatpush1.msra.mxu0 0.0
    %2199 = vmatprep.subr.mxu0 0.0
    %2200 = vmatpush1.msra.mxu0 0.0
    %2201 = vmatprep.subr.mxu0 0.0
    %2202 = vmatpush1.msra.mxu0 0.0
    %2203 = vmatprep.subr.mxu0 0.0
    %2204 = vmatpush1.msra.mxu0 0.0
    %2205 = vmatprep.subr.mxu0 0.0
    %2206 = vmatpush1.msra.mxu0 0.0
    %2207 = vmatprep.subr.mxu0 0.0
    %2208 = vmatpush1.msra.mxu0 0.0
    %2209 = vmatprep.subr.mxu0 0.0
    %2210 = vmatpush1.msra.mxu0 0.0
    %2211 = vmatprep.subr.mxu0 0.0
    %2212 = vmatpush1.msra.mxu0 0.0
    %2213 = vmatprep.subr.mxu0 0.0
    %2214 = vmatpush1.msra.mxu0 0.0
    %2215 = vmatprep.mubr.f32.mxu0 0.0
    %2216 = vmatmul.mubr.f32.gmra.mrb[0].mxu0 %v2139
    %v2217 = vpop.f32.mrb[0].mxu0
    %v2218 = vadd.f32 0.0, %v2217
    %v2219 = vpop.f32.mrb[0].mxu0
    %v2220 = vadd.f32 0.0, %v2219
    %2221 = vmatprep.mubr.f32.mxu0 0.0
    %2222 = vmatmul.mubr.f32.gmra.mrb[0].mxu0 %v2140
    %v2223 = vpop.f32.mrb[0].mxu0
    %v2224 = vadd.f32 0.0, %v2223
    %v2225 = vpop.f32.mrb[0].mxu0
    %v2226 = vadd.f32 0.0, %v2225
    %2227 = vdwg.mxu0
    %v2228 = vadd.f32 %v2147, %v2218
    %v2229 = vadd.f32 %v2148, %v2220
    %v2230 = vadd.f32 %v2149, %v2224
    %v2231 = vadd.f32 %v2150, %v2226
    %v2232 = vmul.f32 %v2228, 0.5
    %v2233 = vmul.f32 %v2229, 0.5
    %v2234 = vmul.f32 %v2230, 0.5
    %v2235 = vmul.f32 %v2231, 0.5
    %v2236 = vtanh.pop %v2232
    %v2237 = vtanh.pop %v2233
    %v2238 = vtanh.pop %v2234
    %v2239 = vtanh.pop %v2235
    %v2240 = vmul.f32 %v2236, 0.5
    %v2241 = vmul.f32 %v2237, 0.5
    %v2242 = vmul.f32 %v2238, 0.5
    %v2243 = vmul.f32 %v2239, 0.5
    %v2244 = vadd.f32 %v2240, 0.5
    %v2245 = vadd.f32 %v2241, 0.5
    %v2246 = vadd.f32 %v2242, 0.5
    %v2247 = vadd.f32 %v2243, 0.5
    %v2248 = vtanh.pop %v2229
    %v2249 = vtanh.pop %v2231
    %v2250 = vmul.f32 %v2244, %v2113
    %v2251 = vmul.f32 %v2246, %v2114
    %2254 = vrot.lane.b32.xlu0 %v2248, 64
    %v2255 = vpop.permute.xlu0 %2254
    %2256 = vrot.lane.b32.xlu0 %v2249, 64
    %v2257 = vpop.permute.xlu0 %2256
    %v2260 = vmul.f32 %v2244, %v2255
    %v2261 = vmul.f32 %v2246, %v2257
    %2264 = vrot.lane.b32.xlu0 %v2260, 64
    %v2265 = vpop.permute.xlu0 %2264
    %2266 = vrot.lane.b32.xlu0 %v2261, 64
    %v2267 = vpop.permute.xlu0 %2266
    %v2270 = vadd.f32 %v2250, %v2265
    %v2271 = vadd.f32 %v2251, %v2267
    %v2272 = vtanh.pop %v2270
    %v2273 = vtanh.pop %v2271
    %2276 = vrot.lane.b32.xlu0 %v2272, 64
    %v2277 = vpop.permute.xlu0 %2276
    %2278 = vrot.lane.b32.xlu0 %v2273, 64
    %v2279 = vpop.permute.xlu0 %2278
    %v2282 = vmul.f32 %v2245, %v2277
    %v2283 = vmul.f32 %v2247, %v2279
    %v2284 = vmul.f32 %v2282, %v870
    %v2285 = vmul.f32 %v2283, %v871
    %v2286 = vmul.f32 %v2282, %v872
    %v2287 = vmul.f32 %v2283, %v873
    %2290 = vrot.lane.b32.xlu0 %v2286, 64
    %v2291 = vpop.permute.xlu0 %2290
    %2292 = vrot.lane.b32.xlu0 %v2287, 64
    %v2293 = vpop.permute.xlu0 %2292
    %v2296 = vsel %vm1039, %v2284, %v2291
    %v2297 = vsel %vm1039, %v2285, %v2293
    %v2298 = vld [vmem:[#allocation3 + $0x40] sm:$0xff]
    %v2299 = vadd.f32 %v2298, %v2296
    %2300 = vst [vmem:[#allocation3 + $0x40] sm:$0xff] %v2299
    %v2301 = vld [vmem:[#allocation3 + $0x38] sm:$0xff]
    %v2302 = vadd.f32 %v2301, %v2297
    %2303 = vst [vmem:[#allocation3 + $0x38] sm:$0xff] %v2302
    %v2304 = vld [vmem:[#allocation2 + $0x120] sm:$0xff]
    %v2305 = vld [vmem:[#allocation2 + $0x128] sm:$0xff]
    %v2306 = vld [vmem:[#allocation2 + $0x130] sm:$0xff]
    %v2307 = vld [vmem:[#allocation2 + $0x138] sm:$0xff]
    %2308 = vmatprep.subr.mxu0 %v800
    %2309 = vmatpush1.msra.mxu0 %v799
    %2310 = vmatprep.subr.mxu0 %v802
    %2311 = vmatpush1.msra.mxu0 %v801
    %2312 = vmatprep.subr.mxu0 %v804
    %2313 = vmatpush1.msra.mxu0 %v803
    %2314 = vmatprep.subr.mxu0 %v806
    %2315 = vmatpush1.msra.mxu0 %v805
    %2316 = vmatprep.subr.mxu0 %v808
    %2317 = vmatpush1.msra.mxu0 %v807
    %2318 = vmatprep.subr.mxu0 %v810
    %2319 = vmatpush1.msra.mxu0 %v809
    %2320 = vmatprep.subr.mxu0 %v812
    %2321 = vmatpush1.msra.mxu0 %v811
    %2322 = vmatprep.subr.mxu0 %v814
    %2323 = vmatpush1.msra.mxu0 %v813
    %2324 = vmatprep.subr.mxu0 %v816
    %2325 = vmatpush1.msra.mxu0 %v815
    %2326 = vmatprep.subr.mxu0 %v818
    %2327 = vmatpush1.msra.mxu0 %v817
    %2328 = vmatprep.subr.mxu0 %v820
    %2329 = vmatpush1.msra.mxu0 %v819
    %2330 = vmatprep.subr.mxu0 %v822
    %2331 = vmatpush1.msra.mxu0 %v821
    %2332 = vmatprep.subr.mxu0 %v824
    %2333 = vmatpush1.msra.mxu0 %v823
    %2334 = vmatprep.subr.mxu0 %v826
    %2335 = vmatpush1.msra.mxu0 %v825
    %2336 = vmatprep.subr.mxu0 %v828
    %2337 = vmatpush1.msra.mxu0 %v827
    %2338 = vmatprep.subr.mxu0 %v830
    %2339 = vmatpush1.msra.mxu0 %v829
    %2340 = vmatprep.subr.mxu0 0.0
    %2341 = vmatpush1.msra.mxu0 0.0
    %2342 = vmatprep.subr.mxu0 0.0
    %2343 = vmatpush1.msra.mxu0 0.0
    %2344 = vmatprep.subr.mxu0 0.0
    %2345 = vmatpush1.msra.mxu0 0.0
    %2346 = vmatprep.subr.mxu0 0.0
    %2347 = vmatpush1.msra.mxu0 0.0
    %2348 = vmatprep.subr.mxu0 0.0
    %2349 = vmatpush1.msra.mxu0 0.0
    %2350 = vmatprep.subr.mxu0 0.0
    %2351 = vmatpush1.msra.mxu0 0.0
    %2352 = vmatprep.subr.mxu0 0.0
    %2353 = vmatpush1.msra.mxu0 0.0
    %2354 = vmatprep.subr.mxu0 0.0
    %2355 = vmatpush1.msra.mxu0 0.0
    %2356 = vmatprep.subr.mxu0 0.0
    %2357 = vmatpush1.msra.mxu0 0.0
    %2358 = vmatprep.subr.mxu0 0.0
    %2359 = vmatpush1.msra.mxu0 0.0
    %2360 = vmatprep.subr.mxu0 0.0
    %2361 = vmatpush1.msra.mxu0 0.0
    %2362 = vmatprep.subr.mxu0 0.0
    %2363 = vmatpush1.msra.mxu0 0.0
    %2364 = vmatprep.subr.mxu0 0.0
    %2365 = vmatpush1.msra.mxu0 0.0
    %2366 = vmatprep.subr.mxu0 0.0
    %2367 = vmatpush1.msra.mxu0 0.0
    %2368 = vmatprep.subr.mxu0 0.0
    %2369 = vmatpush1.msra.mxu0 0.0
    %2370 = vmatprep.subr.mxu0 0.0
    %2371 = vmatpush1.msra.mxu0 0.0
    %2372 = vmatprep.mubr.f32.mxu0 0.0
    %2373 = vmatmul.mubr.f32.gmra.mrb[0].mxu0 %v2296
    %v2374 = vpop.f32.mrb[0].mxu0
    %v2375 = vadd.f32 0.0, %v2374
    %v2376 = vpop.f32.mrb[0].mxu0
    %v2377 = vadd.f32 0.0, %v2376
    %2378 = vmatprep.mubr.f32.mxu0 0.0
    %2379 = vmatmul.mubr.f32.gmra.mrb[0].mxu0 %v2297
    %v2380 = vpop.f32.mrb[0].mxu0
    %v2381 = vadd.f32 0.0, %v2380
    %v2382 = vpop.f32.mrb[0].mxu0
    %v2383 = vadd.f32 0.0, %v2382
    %2384 = vdwg.mxu0
    %v2385 = vadd.f32 %v2304, %v2375
    %v2386 = vadd.f32 %v2305, %v2377
    %v2387 = vadd.f32 %v2306, %v2381
    %v2388 = vadd.f32 %v2307, %v2383
    %v2389 = vmul.f32 %v2385, 0.5
    %v2390 = vmul.f32 %v2386, 0.5
    %v2391 = vmul.f32 %v2387, 0.5
    %v2392 = vmul.f32 %v2388, 0.5
    %v2393 = vtanh.pop %v2389
    %v2394 = vtanh.pop %v2390
    %v2395 = vtanh.pop %v2391
    %v2396 = vtanh.pop %v2392
    %v2397 = vmul.f32 %v2393, 0.5
    %v2398 = vmul.f32 %v2394, 0.5
    %v2399 = vmul.f32 %v2395, 0.5
    %v2400 = vmul.f32 %v2396, 0.5
    %v2401 = vadd.f32 %v2397, 0.5
    %v2402 = vadd.f32 %v2398, 0.5
    %v2403 = vadd.f32 %v2399, 0.5
    %v2404 = vadd.f32 %v2400, 0.5
    %v2405 = vtanh.pop %v2386
    %v2406 = vtanh.pop %v2388
    %v2407 = vmul.f32 %v2401, %v2270
    %v2408 = vmul.f32 %v2403, %v2271
    %2411 = vrot.lane.b32.xlu0 %v2405, 64
    %v2412 = vpop.permute.xlu0 %2411
    %2413 = vrot.lane.b32.xlu0 %v2406, 64
    %v2414 = vpop.permute.xlu0 %2413
    %v2417 = vmul.f32 %v2401, %v2412
    %v2418 = vmul.f32 %v2403, %v2414
    %2421 = vrot.lane.b32.xlu0 %v2417, 64
    %v2422 = vpop.permute.xlu0 %2421
    %2423 = vrot.lane.b32.xlu0 %v2418, 64
    %v2424 = vpop.permute.xlu0 %2423
    %v2427 = vadd.f32 %v2407, %v2422
    %v2428 = vadd.f32 %v2408, %v2424
    %v2429 = vtanh.pop %v2427
    %v2430 = vtanh.pop %v2428
    %2433 = vrot.lane.b32.xlu0 %v2429, 64
    %v2434 = vpop.permute.xlu0 %2433
    %2435 = vrot.lane.b32.xlu0 %v2430, 64
    %v2436 = vpop.permute.xlu0 %2435
    %v2439 = vmul.f32 %v2402, %v2434
    %v2440 = vmul.f32 %v2404, %v2436
    %v2441 = vmul.f32 %v2439, %v870
    %v2442 = vmul.f32 %v2440, %v871
    %v2443 = vmul.f32 %v2439, %v872
    %v2444 = vmul.f32 %v2440, %v873
    %2447 = vrot.lane.b32.xlu0 %v2443, 64
    %v2448 = vpop.permute.xlu0 %2447
    %2449 = vrot.lane.b32.xlu0 %v2444, 64
    %v2450 = vpop.permute.xlu0 %2449
    %v2453 = vsel %vm1039, %v2441, %v2448
    %v2454 = vsel %vm1039, %v2442, %v2450
    %v2455 = vld [vmem:[#allocation3 + $0x48] sm:$0xff]
    %v2456 = vadd.f32 %v2455, %v2453
    %2457 = vst [vmem:[#allocation3 + $0x48] sm:$0xff] %v2456
    %v2458 = vld [vmem:[#allocation3 + $0x30] sm:$0xff]
    %v2459 = vadd.f32 %v2458, %v2454
    %2460 = vst [vmem:[#allocation3 + $0x30] sm:$0xff] %v2459
    %v2461 = vld [vmem:[#allocation2 + $0x140] sm:$0xff]
    %v2462 = vld [vmem:[#allocation2 + $0x148] sm:$0xff]
    %v2463 = vld [vmem:[#allocation2 + $0x150] sm:$0xff]
    %v2464 = vld [vmem:[#allocation2 + $0x158] sm:$0xff]
    %2465 = vmatprep.subr.mxu0 %v800
    %2466 = vmatpush1.msra.mxu0 %v799
    %2467 = vmatprep.subr.mxu0 %v802
    %2468 = vmatpush1.msra.mxu0 %v801
    %2469 = vmatprep.subr.mxu0 %v804
    %2470 = vmatpush1.msra.mxu0 %v803
    %2471 = vmatprep.subr.mxu0 %v806
    %2472 = vmatpush1.msra.mxu0 %v805
    %2473 = vmatprep.subr.mxu0 %v808
    %2474 = vmatpush1.msra.mxu0 %v807
    %2475 = vmatprep.subr.mxu0 %v810
    %2476 = vmatpush1.msra.mxu0 %v809
    %2477 = vmatprep.subr.mxu0 %v812
    %2478 = vmatpush1.msra.mxu0 %v811
    %2479 = vmatprep.subr.mxu0 %v814
    %2480 = vmatpush1.msra.mxu0 %v813
    %2481 = vmatprep.subr.mxu0 %v816
    %2482 = vmatpush1.msra.mxu0 %v815
    %2483 = vmatprep.subr.mxu0 %v818
    %2484 = vmatpush1.msra.mxu0 %v817
    %2485 = vmatprep.subr.mxu0 %v820
    %2486 = vmatpush1.msra.mxu0 %v819
    %2487 = vmatprep.subr.mxu0 %v822
    %2488 = vmatpush1.msra.mxu0 %v821
    %2489 = vmatprep.subr.mxu0 %v824
    %2490 = vmatpush1.msra.mxu0 %v823
    %2491 = vmatprep.subr.mxu0 %v826
    %2492 = vmatpush1.msra.mxu0 %v825
    %2493 = vmatprep.subr.mxu0 %v828
    %2494 = vmatpush1.msra.mxu0 %v827
    %2495 = vmatprep.subr.mxu0 %v830
    %2496 = vmatpush1.msra.mxu0 %v829
    %2497 = vmatprep.subr.mxu0 0.0
    %2498 = vmatpush1.msra.mxu0 0.0
    %2499 = vmatprep.subr.mxu0 0.0
    %2500 = vmatpush1.msra.mxu0 0.0
    %2501 = vmatprep.subr.mxu0 0.0
    %2502 = vmatpush1.msra.mxu0 0.0
    %2503 = vmatprep.subr.mxu0 0.0
    %2504 = vmatpush1.msra.mxu0 0.0
    %2505 = vmatprep.subr.mxu0 0.0
    %2506 = vmatpush1.msra.mxu0 0.0
    %2507 = vmatprep.subr.mxu0 0.0
    %2508 = vmatpush1.msra.mxu0 0.0
    %2509 = vmatprep.subr.mxu0 0.0
    %2510 = vmatpush1.msra.mxu0 0.0
    %2511 = vmatprep.subr.mxu0 0.0
    %2512 = vmatpush1.msra.mxu0 0.0
    %2513 = vmatprep.subr.mxu0 0.0
    %2514 = vmatpush1.msra.mxu0 0.0
    %2515 = vmatprep.subr.mxu0 0.0
    %2516 = vmatpush1.msra.mxu0 0.0
    %2517 = vmatprep.subr.mxu0 0.0
    %2518 = vmatpush1.msra.mxu0 0.0
    %2519 = vmatprep.subr.mxu0 0.0
    %2520 = vmatpush1.msra.mxu0 0.0
    %2521 = vmatprep.subr.mxu0 0.0
    %2522 = vmatpush1.msra.mxu0 0.0
    %2523 = vmatprep.subr.mxu0 0.0
    %2524 = vmatpush1.msra.mxu0 0.0
    %2525 = vmatprep.subr.mxu0 0.0
    %2526 = vmatpush1.msra.mxu0 0.0
    %2527 = vmatprep.subr.mxu0 0.0
    %2528 = vmatpush1.msra.mxu0 0.0
    %2529 = vmatprep.mubr.f32.mxu0 0.0
    %2530 = vmatmul.mubr.f32.gmra.mrb[0].mxu0 %v2453
    %v2531 = vpop.f32.mrb[0].mxu0
    %v2532 = vadd.f32 0.0, %v2531
    %v2533 = vpop.f32.mrb[0].mxu0
    %v2534 = vadd.f32 0.0, %v2533
    %2535 = vmatprep.mubr.f32.mxu0 0.0
    %2536 = vmatmul.mubr.f32.gmra.mrb[0].mxu0 %v2454
    %v2537 = vpop.f32.mrb[0].mxu0
    %v2538 = vadd.f32 0.0, %v2537
    %v2539 = vpop.f32.mrb[0].mxu0
    %v2540 = vadd.f32 0.0, %v2539
    %2541 = vdwg.mxu0
    %v2542 = vadd.f32 %v2461, %v2532
    %v2543 = vadd.f32 %v2462, %v2534
    %v2544 = vadd.f32 %v2463, %v2538
    %v2545 = vadd.f32 %v2464, %v2540
    %v2546 = vmul.f32 %v2542, 0.5
    %v2547 = vmul.f32 %v2543, 0.5
    %v2548 = vmul.f32 %v2544, 0.5
    %v2549 = vmul.f32 %v2545, 0.5
    %v2550 = vtanh.pop %v2546
    %v2551 = vtanh.pop %v2547
    %v2552 = vtanh.pop %v2548
    %v2553 = vtanh.pop %v2549
    %v2554 = vmul.f32 %v2550, 0.5
    %v2555 = vmul.f32 %v2551, 0.5
    %v2556 = vmul.f32 %v2552, 0.5
    %v2557 = vmul.f32 %v2553, 0.5
    %v2558 = vadd.f32 %v2554, 0.5
    %v2559 = vadd.f32 %v2555, 0.5
    %v2560 = vadd.f32 %v2556, 0.5
    %v2561 = vadd.f32 %v2557, 0.5
    %v2562 = vtanh.pop %v2543
    %v2563 = vtanh.pop %v2545
    %v2564 = vmul.f32 %v2558, %v2427
    %v2565 = vmul.f32 %v2560, %v2428
    %2568 = vrot.lane.b32.xlu0 %v2562, 64
    %v2569 = vpop.permute.xlu0 %2568
    %2570 = vrot.lane.b32.xlu0 %v2563, 64
    %v2571 = vpop.permute.xlu0 %2570
    %v2574 = vmul.f32 %v2558, %v2569
    %v2575 = vmul.f32 %v2560, %v2571
    %2578 = vrot.lane.b32.xlu0 %v2574, 64
    %v2579 = vpop.permute.xlu0 %2578
    %2580 = vrot.lane.b32.xlu0 %v2575, 64
    %v2581 = vpop.permute.xlu0 %2580
    %v2584 = vadd.f32 %v2564, %v2579
    %v2585 = vadd.f32 %v2565, %v2581
    %v2586 = vtanh.pop %v2584
    %v2587 = vtanh.pop %v2585
    %2590 = vrot.lane.b32.xlu0 %v2586, 64
    %v2591 = vpop.permute.xlu0 %2590
    %2592 = vrot.lane.b32.xlu0 %v2587, 64
    %v2593 = vpop.permute.xlu0 %2592
    %v2596 = vmul.f32 %v2559, %v2591
    %v2597 = vmul.f32 %v2561, %v2593
    %v2598 = vmul.f32 %v2596, %v870
    %v2599 = vmul.f32 %v2597, %v871
    %v2600 = vmul.f32 %v2596, %v872
    %v2601 = vmul.f32 %v2597, %v873
    %2604 = vrot.lane.b32.xlu0 %v2600, 64
    %v2605 = vpop.permute.xlu0 %2604
    %2606 = vrot.lane.b32.xlu0 %v2601, 64
    %v2607 = vpop.permute.xlu0 %2606
    %v2610 = vsel %vm1039, %v2598, %v2605
    %v2611 = vsel %vm1039, %v2599, %v2607
    %v2612 = vld [vmem:[#allocation3 + $0x50] sm:$0xff]
    %v2613 = vadd.f32 %v2612, %v2610
    %2614 = vst [vmem:[#allocation3 + $0x50] sm:$0xff] %v2613
    %v2615 = vld [vmem:[#allocation3 + $0x28] sm:$0xff]
    %v2616 = vadd.f32 %v2615, %v2611
    %2617 = vst [vmem:[#allocation3 + $0x28] sm:$0xff] %v2616
    %v2618 = vld [vmem:[#allocation2 + $0x160] sm:$0xff]
    %v2619 = vld [vmem:[#allocation2 + $0x168] sm:$0xff]
    %v2620 = vld [vmem:[#allocation2 + $0x170] sm:$0xff]
    %v2621 = vld [vmem:[#allocation2 + $0x178] sm:$0xff]
    %2622 = vmatprep.subr.mxu0 %v800
    %2623 = vmatpush1.msra.mxu0 %v799
    %2624 = vmatprep.subr.mxu0 %v802
    %2625 = vmatpush1.msra.mxu0 %v801
    %2626 = vmatprep.subr.mxu0 %v804
    %2627 = vmatpush1.msra.mxu0 %v803
    %2628 = vmatprep.subr.mxu0 %v806
    %2629 = vmatpush1.msra.mxu0 %v805
    %2630 = vmatprep.subr.mxu0 %v808
    %2631 = vmatpush1.msra.mxu0 %v807
    %2632 = vmatprep.subr.mxu0 %v810
    %2633 = vmatpush1.msra.mxu0 %v809
    %2634 = vmatprep.subr.mxu0 %v812
    %2635 = vmatpush1.msra.mxu0 %v811
    %2636 = vmatprep.subr.mxu0 %v814
    %2637 = vmatpush1.msra.mxu0 %v813
    %2638 = vmatprep.subr.mxu0 %v816
    %2639 = vmatpush1.msra.mxu0 %v815
    %2640 = vmatprep.subr.mxu0 %v818
    %2641 = vmatpush1.msra.mxu0 %v817
    %2642 = vmatprep.subr.mxu0 %v820
    %2643 = vmatpush1.msra.mxu0 %v819
    %2644 = vmatprep.subr.mxu0 %v822
    %2645 = vmatpush1.msra.mxu0 %v821
    %2646 = vmatprep.subr.mxu0 %v824
    %2647 = vmatpush1.msra.mxu0 %v823
    %2648 = vmatprep.subr.mxu0 %v826
    %2649 = vmatpush1.msra.mxu0 %v825
    %2650 = vmatprep.subr.mxu0 %v828
    %2651 = vmatpush1.msra.mxu0 %v827
    %2652 = vmatprep.subr.mxu0 %v830
    %2653 = vmatpush1.msra.mxu0 %v829
    %2654 = vmatprep.subr.mxu0 0.0
    %2655 = vmatpush1.msra.mxu0 0.0
    %2656 = vmatprep.subr.mxu0 0.0
    %2657 = vmatpush1.msra.mxu0 0.0
    %2658 = vmatprep.subr.mxu0 0.0
    %2659 = vmatpush1.msra.mxu0 0.0
    %2660 = vmatprep.subr.mxu0 0.0
    %2661 = vmatpush1.msra.mxu0 0.0
    %2662 = vmatprep.subr.mxu0 0.0
    %2663 = vmatpush1.msra.mxu0 0.0
    %2664 = vmatprep.subr.mxu0 0.0
    %2665 = vmatpush1.msra.mxu0 0.0
    %2666 = vmatprep.subr.mxu0 0.0
    %2667 = vmatpush1.msra.mxu0 0.0
    %2668 = vmatprep.subr.mxu0 0.0
    %2669 = vmatpush1.msra.mxu0 0.0
    %2670 = vmatprep.subr.mxu0 0.0
    %2671 = vmatpush1.msra.mxu0 0.0
    %2672 = vmatprep.subr.mxu0 0.0
    %2673 = vmatpush1.msra.mxu0 0.0
    %2674 = vmatprep.subr.mxu0 0.0
    %2675 = vmatpush1.msra.mxu0 0.0
    %2676 = vmatprep.subr.mxu0 0.0
    %2677 = vmatpush1.msra.mxu0 0.0
    %2678 = vmatprep.subr.mxu0 0.0
    %2679 = vmatpush1.msra.mxu0 0.0
    %2680 = vmatprep.subr.mxu0 0.0
    %2681 = vmatpush1.msra.mxu0 0.0
    %2682 = vmatprep.subr.mxu0 0.0
    %2683 = vmatpush1.msra.mxu0 0.0
    %2684 = vmatprep.subr.mxu0 0.0
    %2685 = vmatpush1.msra.mxu0 0.0
    %2686 = vmatprep.mubr.f32.mxu0 0.0
    %2687 = vmatmul.mubr.f32.gmra.mrb[0].mxu0 %v2610
    %v2688 = vpop.f32.mrb[0].mxu0
    %v2689 = vadd.f32 0.0, %v2688
    %v2690 = vpop.f32.mrb[0].mxu0
    %v2691 = vadd.f32 0.0, %v2690
    %2692 = vmatprep.mubr.f32.mxu0 0.0
    %2693 = vmatmul.mubr.f32.gmra.mrb[0].mxu0 %v2611
    %v2694 = vpop.f32.mrb[0].mxu0
    %v2695 = vadd.f32 0.0, %v2694
    %v2696 = vpop.f32.mrb[0].mxu0
    %v2697 = vadd.f32 0.0, %v2696
    %2698 = vdwg.mxu0
    %v2699 = vadd.f32 %v2618, %v2689
    %v2700 = vadd.f32 %v2619, %v2691
    %v2701 = vadd.f32 %v2620, %v2695
    %v2702 = vadd.f32 %v2621, %v2697
    %v2703 = vmul.f32 %v2699, 0.5
    %v2704 = vmul.f32 %v2700, 0.5
    %v2705 = vmul.f32 %v2701, 0.5
    %v2706 = vmul.f32 %v2702, 0.5
    %v2707 = vtanh.pop %v2703
    %v2708 = vtanh.pop %v2704
    %v2709 = vtanh.pop %v2705
    %v2710 = vtanh.pop %v2706
    %v2711 = vmul.f32 %v2707, 0.5
    %v2712 = vmul.f32 %v2708, 0.5
    %v2713 = vmul.f32 %v2709, 0.5
    %v2714 = vmul.f32 %v2710, 0.5
    %v2715 = vadd.f32 %v2711, 0.5
    %v2716 = vadd.f32 %v2712, 0.5
    %v2717 = vadd.f32 %v2713, 0.5
    %v2718 = vadd.f32 %v2714, 0.5
    %v2719 = vtanh.pop %v2700
    %v2720 = vtanh.pop %v2702
    %v2721 = vmul.f32 %v2715, %v2584
    %v2722 = vmul.f32 %v2717, %v2585
    %2725 = vrot.lane.b32.xlu0 %v2719, 64
    %v2726 = vpop.permute.xlu0 %2725
    %2727 = vrot.lane.b32.xlu0 %v2720, 64
    %v2728 = vpop.permute.xlu0 %2727
    %v2731 = vmul.f32 %v2715, %v2726
    %v2732 = vmul.f32 %v2717, %v2728
    %2735 = vrot.lane.b32.xlu0 %v2731, 64
    %v2736 = vpop.permute.xlu0 %2735
    %2737 = vrot.lane.b32.xlu0 %v2732, 64
    %v2738 = vpop.permute.xlu0 %2737
    %v2741 = vadd.f32 %v2721, %v2736
    %v2742 = vadd.f32 %v2722, %v2738
    %v2743 = vtanh.pop %v2741
    %v2744 = vtanh.pop %v2742
    %2747 = vrot.lane.b32.xlu0 %v2743, 64
    %v2748 = vpop.permute.xlu0 %2747
    %2749 = vrot.lane.b32.xlu0 %v2744, 64
    %v2750 = vpop.permute.xlu0 %2749
    %v2753 = vmul.f32 %v2716, %v2748
    %v2754 = vmul.f32 %v2718, %v2750
    %v2755 = vmul.f32 %v2753, %v870
    %v2756 = vmul.f32 %v2754, %v871
    %v2757 = vmul.f32 %v2753, %v872
    %v2758 = vmul.f32 %v2754, %v873
    %2761 = vrot.lane.b32.xlu0 %v2757, 64
    %v2762 = vpop.permute.xlu0 %2761
    %2763 = vrot.lane.b32.xlu0 %v2758, 64
    %v2764 = vpop.permute.xlu0 %2763
    %v2767 = vsel %vm1039, %v2755, %v2762
    %v2768 = vsel %vm1039, %v2756, %v2764
    %v2769 = vld [vmem:[#allocation3 + $0x58] sm:$0xff]
    %v2770 = vadd.f32 %v2769, %v2767
    %2771 = vst [vmem:[#allocation3 + $0x58] sm:$0xff] %v2770
    %v2772 = vld [vmem:[#allocation3 + $0x20] sm:$0xff]
    %v2773 = vadd.f32 %v2772, %v2768
    %2774 = vst [vmem:[#allocation3 + $0x20] sm:$0xff] %v2773
    %v2775 = vld [vmem:[#allocation2 + $0x180] sm:$0xff]
    %v2776 = vld [vmem:[#allocation2 + $0x188] sm:$0xff]
    %v2777 = vld [vmem:[#allocation2 + $0x190] sm:$0xff]
    %v2778 = vld [vmem:[#allocation2 + $0x198] sm:$0xff]
    %2779 = vmatprep.subr.mxu0 %v800
    %2780 = vmatpush1.msra.mxu0 %v799
    %2781 = vmatprep.subr.mxu0 %v802
    %2782 = vmatpush1.msra.mxu0 %v801
    %2783 = vmatprep.subr.mxu0 %v804
    %2784 = vmatpush1.msra.mxu0 %v803
    %2785 = vmatprep.subr.mxu0 %v806
    %2786 = vmatpush1.msra.mxu0 %v805
    %2787 = vmatprep.subr.mxu0 %v808
    %2788 = vmatpush1.msra.mxu0 %v807
    %2789 = vmatprep.subr.mxu0 %v810
    %2790 = vmatpush1.msra.mxu0 %v809
    %2791 = vmatprep.subr.mxu0 %v812
    %2792 = vmatpush1.msra.mxu0 %v811
    %2793 = vmatprep.subr.mxu0 %v814
    %2794 = vmatpush1.msra.mxu0 %v813
    %2795 = vmatprep.subr.mxu0 %v816
    %2796 = vmatpush1.msra.mxu0 %v815
    %2797 = vmatprep.subr.mxu0 %v818
    %2798 = vmatpush1.msra.mxu0 %v817
    %2799 = vmatprep.subr.mxu0 %v820
    %2800 = vmatpush1.msra.mxu0 %v819
    %2801 = vmatprep.subr.mxu0 %v822
    %2802 = vmatpush1.msra.mxu0 %v821
    %2803 = vmatprep.subr.mxu0 %v824
    %2804 = vmatpush1.msra.mxu0 %v823
    %2805 = vmatprep.subr.mxu0 %v826
    %2806 = vmatpush1.msra.mxu0 %v825
    %2807 = vmatprep.subr.mxu0 %v828
    %2808 = vmatpush1.msra.mxu0 %v827
    %2809 = vmatprep.subr.mxu0 %v830
    %2810 = vmatpush1.msra.mxu0 %v829
    %2811 = vmatprep.subr.mxu0 0.0
    %2812 = vmatpush1.msra.mxu0 0.0
    %2813 = vmatprep.subr.mxu0 0.0
    %2814 = vmatpush1.msra.mxu0 0.0
    %2815 = vmatprep.subr.mxu0 0.0
    %2816 = vmatpush1.msra.mxu0 0.0
    %2817 = vmatprep.subr.mxu0 0.0
    %2818 = vmatpush1.msra.mxu0 0.0
    %2819 = vmatprep.subr.mxu0 0.0
    %2820 = vmatpush1.msra.mxu0 0.0
    %2821 = vmatprep.subr.mxu0 0.0
    %2822 = vmatpush1.msra.mxu0 0.0
    %2823 = vmatprep.subr.mxu0 0.0
    %2824 = vmatpush1.msra.mxu0 0.0
    %2825 = vmatprep.subr.mxu0 0.0
    %2826 = vmatpush1.msra.mxu0 0.0
    %2827 = vmatprep.subr.mxu0 0.0
    %2828 = vmatpush1.msra.mxu0 0.0
    %2829 = vmatprep.subr.mxu0 0.0
    %2830 = vmatpush1.msra.mxu0 0.0
    %2831 = vmatprep.subr.mxu0 0.0
    %2832 = vmatpush1.msra.mxu0 0.0
    %2833 = vmatprep.subr.mxu0 0.0
    %2834 = vmatpush1.msra.mxu0 0.0
    %2835 = vmatprep.subr.mxu0 0.0
    %2836 = vmatpush1.msra.mxu0 0.0
    %2837 = vmatprep.subr.mxu0 0.0
    %2838 = vmatpush1.msra.mxu0 0.0
    %2839 = vmatprep.subr.mxu0 0.0
    %2840 = vmatpush1.msra.mxu0 0.0
    %2841 = vmatprep.subr.mxu0 0.0
    %2842 = vmatpush1.msra.mxu0 0.0
    %2843 = vmatprep.mubr.f32.mxu0 0.0
    %2844 = vmatmul.mubr.f32.gmra.mrb[0].mxu0 %v2767
    %v2845 = vpop.f32.mrb[0].mxu0
    %v2846 = vadd.f32 0.0, %v2845
    %v2847 = vpop.f32.mrb[0].mxu0
    %v2848 = vadd.f32 0.0, %v2847
    %2849 = vmatprep.mubr.f32.mxu0 0.0
    %2850 = vmatmul.mubr.f32.gmra.mrb[0].mxu0 %v2768
    %v2851 = vpop.f32.mrb[0].mxu0
    %v2852 = vadd.f32 0.0, %v2851
    %v2853 = vpop.f32.mrb[0].mxu0
    %v2854 = vadd.f32 0.0, %v2853
    %2855 = vdwg.mxu0
    %v2856 = vadd.f32 %v2775, %v2846
    %v2857 = vadd.f32 %v2776, %v2848
    %v2858 = vadd.f32 %v2777, %v2852
    %v2859 = vadd.f32 %v2778, %v2854
    %v2860 = vmul.f32 %v2856, 0.5
    %v2861 = vmul.f32 %v2857, 0.5
    %v2862 = vmul.f32 %v2858, 0.5
    %v2863 = vmul.f32 %v2859, 0.5
    %v2864 = vtanh.pop %v2860
    %v2865 = vtanh.pop %v2861
    %v2866 = vtanh.pop %v2862
    %v2867 = vtanh.pop %v2863
    %v2868 = vmul.f32 %v2864, 0.5
    %v2869 = vmul.f32 %v2865, 0.5
    %v2870 = vmul.f32 %v2866, 0.5
    %v2871 = vmul.f32 %v2867, 0.5
    %v2872 = vadd.f32 %v2868, 0.5
    %v2873 = vadd.f32 %v2869, 0.5
    %v2874 = vadd.f32 %v2870, 0.5
    %v2875 = vadd.f32 %v2871, 0.5
    %v2876 = vtanh.pop %v2857
    %v2877 = vtanh.pop %v2859
    %v2878 = vmul.f32 %v2872, %v2741
    %v2879 = vmul.f32 %v2874, %v2742
    %2882 = vrot.lane.b32.xlu0 %v2876, 64
    %v2883 = vpop.permute.xlu0 %2882
    %2884 = vrot.lane.b32.xlu0 %v2877, 64
    %v2885 = vpop.permute.xlu0 %2884
    %v2888 = vmul.f32 %v2872, %v2883
    %v2889 = vmul.f32 %v2874, %v2885
    %2892 = vrot.lane.b32.xlu0 %v2888, 64
    %v2893 = vpop.permute.xlu0 %2892
    %2894 = vrot.lane.b32.xlu0 %v2889, 64
    %v2895 = vpop.permute.xlu0 %2894
    %v2898 = vadd.f32 %v2878, %v2893
    %v2899 = vadd.f32 %v2879, %v2895
    %v2900 = vtanh.pop %v2898
    %v2901 = vtanh.pop %v2899
    %2904 = vrot.lane.b32.xlu0 %v2900, 64
    %v2905 = vpop.permute.xlu0 %2904
    %2906 = vrot.lane.b32.xlu0 %v2901, 64
    %v2907 = vpop.permute.xlu0 %2906
    %v2910 = vmul.f32 %v2873, %v2905
    %v2911 = vmul.f32 %v2875, %v2907
    %v2912 = vmul.f32 %v2910, %v870
    %v2913 = vmul.f32 %v2911, %v871
    %v2914 = vmul.f32 %v2910, %v872
    %v2915 = vmul.f32 %v2911, %v873
    %2918 = vrot.lane.b32.xlu0 %v2914, 64
    %v2919 = vpop.permute.xlu0 %2918
    %2920 = vrot.lane.b32.xlu0 %v2915, 64
    %v2921 = vpop.permute.xlu0 %2920
    %v2924 = vsel %vm1039, %v2912, %v2919
    %v2925 = vsel %vm1039, %v2913, %v2921
    %v2926 = vld [vmem:[#allocation3 + $0x60] sm:$0xff]
    %v2927 = vadd.f32 %v2926, %v2924
    %2928 = vst [vmem:[#allocation3 + $0x60] sm:$0xff] %v2927
    %v2929 = vld [vmem:[#allocation3 + $0x18] sm:$0xff]
    %v2930 = vadd.f32 %v2929, %v2925
    %2931 = vst [vmem:[#allocation3 + $0x18] sm:$0xff] %v2930
    %v2932 = vld [vmem:[#allocation2 + $0x1a0] sm:$0xff]
    %v2933 = vld [vmem:[#allocation2 + $0x1a8] sm:$0xff]
    %v2934 = vld [vmem:[#allocation2 + $0x1b0] sm:$0xff]
    %v2935 = vld [vmem:[#allocation2 + $0x1b8] sm:$0xff]
    %2936 = vmatprep.subr.mxu0 %v800
    %2937 = vmatpush1.msra.mxu0 %v799
    %2938 = vmatprep.subr.mxu0 %v802
    %2939 = vmatpush1.msra.mxu0 %v801
    %2940 = vmatprep.subr.mxu0 %v804
    %2941 = vmatpush1.msra.mxu0 %v803
    %2942 = vmatprep.subr.mxu0 %v806
    %2943 = vmatpush1.msra.mxu0 %v805
    %2944 = vmatprep.subr.mxu0 %v808
    %2945 = vmatpush1.msra.mxu0 %v807
    %2946 = vmatprep.subr.mxu0 %v810
    %2947 = vmatpush1.msra.mxu0 %v809
    %2948 = vmatprep.subr.mxu0 %v812
    %2949 = vmatpush1.msra.mxu0 %v811
    %2950 = vmatprep.subr.mxu0 %v814
    %2951 = vmatpush1.msra.mxu0 %v813
    %2952 = vmatprep.subr.mxu0 %v816
    %2953 = vmatpush1.msra.mxu0 %v815
    %2954 = vmatprep.subr.mxu0 %v818
    %2955 = vmatpush1.msra.mxu0 %v817
    %2956 = vmatprep.subr.mxu0 %v820
    %2957 = vmatpush1.msra.mxu0 %v819
    %2958 = vmatprep.subr.mxu0 %v822
    %2959 = vmatpush1.msra.mxu0 %v821
    %2960 = vmatprep.subr.mxu0 %v824
    %2961 = vmatpush1.msra.mxu0 %v823
    %2962 = vmatprep.subr.mxu0 %v826
    %2963 = vmatpush1.msra.mxu0 %v825
    %2964 = vmatprep.subr.mxu0 %v828
    %2965 = vmatpush1.msra.mxu0 %v827
    %2966 = vmatprep.subr.mxu0 %v830
    %2967 = vmatpush1.msra.mxu0 %v829
    %2968 = vmatprep.subr.mxu0 0.0
    %2969 = vmatpush1.msra.mxu0 0.0
    %2970 = vmatprep.subr.mxu0 0.0
    %2971 = vmatpush1.msra.mxu0 0.0
    %2972 = vmatprep.subr.mxu0 0.0
    %2973 = vmatpush1.msra.mxu0 0.0
    %2974 = vmatprep.subr.mxu0 0.0
    %2975 = vmatpush1.msra.mxu0 0.0
    %2976 = vmatprep.subr.mxu0 0.0
    %2977 = vmatpush1.msra.mxu0 0.0
    %2978 = vmatprep.subr.mxu0 0.0
    %2979 = vmatpush1.msra.mxu0 0.0
    %2980 = vmatprep.subr.mxu0 0.0
    %2981 = vmatpush1.msra.mxu0 0.0
    %2982 = vmatprep.subr.mxu0 0.0
    %2983 = vmatpush1.msra.mxu0 0.0
    %2984 = vmatprep.subr.mxu0 0.0
    %2985 = vmatpush1.msra.mxu0 0.0
    %2986 = vmatprep.subr.mxu0 0.0
    %2987 = vmatpush1.msra.mxu0 0.0
    %2988 = vmatprep.subr.mxu0 0.0
    %2989 = vmatpush1.msra.mxu0 0.0
    %2990 = vmatprep.subr.mxu0 0.0
    %2991 = vmatpush1.msra.mxu0 0.0
    %2992 = vmatprep.subr.mxu0 0.0
    %2993 = vmatpush1.msra.mxu0 0.0
    %2994 = vmatprep.subr.mxu0 0.0
    %2995 = vmatpush1.msra.mxu0 0.0
    %2996 = vmatprep.subr.mxu0 0.0
    %2997 = vmatpush1.msra.mxu0 0.0
    %2998 = vmatprep.subr.mxu0 0.0
    %2999 = vmatpush1.msra.mxu0 0.0
    %3000 = vmatprep.mubr.f32.mxu0 0.0
    %3001 = vmatmul.mubr.f32.gmra.mrb[0].mxu0 %v2924
    %v3002 = vpop.f32.mrb[0].mxu0
    %v3003 = vadd.f32 0.0, %v3002
    %v3004 = vpop.f32.mrb[0].mxu0
    %v3005 = vadd.f32 0.0, %v3004
    %3006 = vmatprep.mubr.f32.mxu0 0.0
    %3007 = vmatmul.mubr.f32.gmra.mrb[0].mxu0 %v2925
    %v3008 = vpop.f32.mrb[0].mxu0
    %v3009 = vadd.f32 0.0, %v3008
    %v3010 = vpop.f32.mrb[0].mxu0
    %v3011 = vadd.f32 0.0, %v3010
    %3012 = vdwg.mxu0
    %v3013 = vadd.f32 %v2932, %v3003
    %v3014 = vadd.f32 %v2933, %v3005
    %v3015 = vadd.f32 %v2934, %v3009
    %v3016 = vadd.f32 %v2935, %v3011
    %v3017 = vmul.f32 %v3013, 0.5
    %v3018 = vmul.f32 %v3014, 0.5
    %v3019 = vmul.f32 %v3015, 0.5
    %v3020 = vmul.f32 %v3016, 0.5
    %v3021 = vtanh.pop %v3017
    %v3022 = vtanh.pop %v3018
    %v3023 = vtanh.pop %v3019
    %v3024 = vtanh.pop %v3020
    %v3025 = vmul.f32 %v3021, 0.5
    %v3026 = vmul.f32 %v3022, 0.5
    %v3027 = vmul.f32 %v3023, 0.5
    %v3028 = vmul.f32 %v3024, 0.5
    %v3029 = vadd.f32 %v3025, 0.5
    %v3030 = vadd.f32 %v3026, 0.5
    %v3031 = vadd.f32 %v3027, 0.5
    %v3032 = vadd.f32 %v3028, 0.5
    %v3033 = vtanh.pop %v3014
    %v3034 = vtanh.pop %v3016
    %v3035 = vmul.f32 %v3029, %v2898
    %v3036 = vmul.f32 %v3031, %v2899
    %3039 = vrot.lane.b32.xlu0 %v3033, 64
    %v3040 = vpop.permute.xlu0 %3039
    %3041 = vrot.lane.b32.xlu0 %v3034, 64
    %v3042 = vpop.permute.xlu0 %3041
    %v3045 = vmul.f32 %v3029, %v3040
    %v3046 = vmul.f32 %v3031, %v3042
    %3049 = vrot.lane.b32.xlu0 %v3045, 64
    %v3050 = vpop.permute.xlu0 %3049
    %3051 = vrot.lane.b32.xlu0 %v3046, 64
    %v3052 = vpop.permute.xlu0 %3051
    %v3055 = vadd.f32 %v3035, %v3050
    %v3056 = vadd.f32 %v3036, %v3052
    %v3057 = vtanh.pop %v3055
    %v3058 = vtanh.pop %v3056
    %3061 = vrot.lane.b32.xlu0 %v3057, 64
    %v3062 = vpop.permute.xlu0 %3061
    %3063 = vrot.lane.b32.xlu0 %v3058, 64
    %v3064 = vpop.permute.xlu0 %3063
    %v3067 = vmul.f32 %v3030, %v3062
    %v3068 = vmul.f32 %v3032, %v3064
    %v3069 = vmul.f32 %v3067, %v870
    %v3070 = vmul.f32 %v3068, %v871
    %v3071 = vmul.f32 %v3067, %v872
    %v3072 = vmul.f32 %v3068, %v873
    %3075 = vrot.lane.b32.xlu0 %v3071, 64
    %v3076 = vpop.permute.xlu0 %3075
    %3077 = vrot.lane.b32.xlu0 %v3072, 64
    %v3078 = vpop.permute.xlu0 %3077
    %v3081 = vsel %vm1039, %v3069, %v3076
    %v3082 = vsel %vm1039, %v3070, %v3078
    %v3083 = vld [vmem:[#allocation3 + $0x68] sm:$0xff]
    %v3084 = vadd.f32 %v3083, %v3081
    %3085 = vst [vmem:[#allocation3 + $0x68] sm:$0xff] %v3084
    %v3086 = vld [vmem:[#allocation3 + $0x10] sm:$0xff]
    %v3087 = vadd.f32 %v3086, %v3082
    %3088 = vst [vmem:[#allocation3 + $0x10] sm:$0xff] %v3087
    %v3089 = vld [vmem:[#allocation2 + $0x1c0] sm:$0xff]
    %v3090 = vld [vmem:[#allocation2 + $0x1c8] sm:$0xff]
    %v3091 = vld [vmem:[#allocation2 + $0x1d0] sm:$0xff]
    %v3092 = vld [vmem:[#allocation2 + $0x1d8] sm:$0xff]
    %3093 = vmatprep.subr.mxu0 %v800
    %3094 = vmatpush1.msra.mxu0 %v799
    %3095 = vmatprep.subr.mxu0 %v802
    %3096 = vmatpush1.msra.mxu0 %v801
    %3097 = vmatprep.subr.mxu0 %v804
    %3098 = vmatpush1.msra.mxu0 %v803
    %3099 = vmatprep.subr.mxu0 %v806
    %3100 = vmatpush1.msra.mxu0 %v805
    %3101 = vmatprep.subr.mxu0 %v808
    %3102 = vmatpush1.msra.mxu0 %v807
    %3103 = vmatprep.subr.mxu0 %v810
    %3104 = vmatpush1.msra.mxu0 %v809
    %3105 = vmatprep.subr.mxu0 %v812
    %3106 = vmatpush1.msra.mxu0 %v811
    %3107 = vmatprep.subr.mxu0 %v814
    %3108 = vmatpush1.msra.mxu0 %v813
    %3109 = vmatprep.subr.mxu0 %v816
    %3110 = vmatpush1.msra.mxu0 %v815
    %3111 = vmatprep.subr.mxu0 %v818
    %3112 = vmatpush1.msra.mxu0 %v817
    %3113 = vmatprep.subr.mxu0 %v820
    %3114 = vmatpush1.msra.mxu0 %v819
    %3115 = vmatprep.subr.mxu0 %v822
    %3116 = vmatpush1.msra.mxu0 %v821
    %3117 = vmatprep.subr.mxu0 %v824
    %3118 = vmatpush1.msra.mxu0 %v823
    %3119 = vmatprep.subr.mxu0 %v826
    %3120 = vmatpush1.msra.mxu0 %v825
    %3121 = vmatprep.subr.mxu0 %v828
    %3122 = vmatpush1.msra.mxu0 %v827
    %3123 = vmatprep.subr.mxu0 %v830
    %3124 = vmatpush1.msra.mxu0 %v829
    %3125 = vmatprep.subr.mxu0 0.0
    %3126 = vmatpush1.msra.mxu0 0.0
    %3127 = vmatprep.subr.mxu0 0.0
    %3128 = vmatpush1.msra.mxu0 0.0
    %3129 = vmatprep.subr.mxu0 0.0
    %3130 = vmatpush1.msra.mxu0 0.0
    %3131 = vmatprep.subr.mxu0 0.0
    %3132 = vmatpush1.msra.mxu0 0.0
    %3133 = vmatprep.subr.mxu0 0.0
    %3134 = vmatpush1.msra.mxu0 0.0
    %3135 = vmatprep.subr.mxu0 0.0
    %3136 = vmatpush1.msra.mxu0 0.0
    %3137 = vmatprep.subr.mxu0 0.0
    %3138 = vmatpush1.msra.mxu0 0.0
    %3139 = vmatprep.subr.mxu0 0.0
    %3140 = vmatpush1.msra.mxu0 0.0
    %3141 = vmatprep.subr.mxu0 0.0
    %3142 = vmatpush1.msra.mxu0 0.0
    %3143 = vmatprep.subr.mxu0 0.0
    %3144 = vmatpush1.msra.mxu0 0.0
    %3145 = vmatprep.subr.mxu0 0.0
    %3146 = vmatpush1.msra.mxu0 0.0
    %3147 = vmatprep.subr.mxu0 0.0
    %3148 = vmatpush1.msra.mxu0 0.0
    %3149 = vmatprep.subr.mxu0 0.0
    %3150 = vmatpush1.msra.mxu0 0.0
    %3151 = vmatprep.subr.mxu0 0.0
    %3152 = vmatpush1.msra.mxu0 0.0
    %3153 = vmatprep.subr.mxu0 0.0
    %3154 = vmatpush1.msra.mxu0 0.0
    %3155 = vmatprep.subr.mxu0 0.0
    %3156 = vmatpush1.msra.mxu0 0.0
    %3157 = vmatprep.mubr.f32.mxu0 0.0
    %3158 = vmatmul.mubr.f32.gmra.mrb[0].mxu0 %v3081
    %v3159 = vpop.f32.mrb[0].mxu0
    %v3160 = vadd.f32 0.0, %v3159
    %v3161 = vpop.f32.mrb[0].mxu0
    %v3162 = vadd.f32 0.0, %v3161
    %3163 = vmatprep.mubr.f32.mxu0 0.0
    %3164 = vmatmul.mubr.f32.gmra.mrb[0].mxu0 %v3082
    %v3165 = vpop.f32.mrb[0].mxu0
    %v3166 = vadd.f32 0.0, %v3165
    %v3167 = vpop.f32.mrb[0].mxu0
    %v3168 = vadd.f32 0.0, %v3167
    %3169 = vdwg.mxu0
    %v3170 = vadd.f32 %v3089, %v3160
    %v3171 = vadd.f32 %v3090, %v3162
    %v3172 = vadd.f32 %v3091, %v3166
    %v3173 = vadd.f32 %v3092, %v3168
    %v3174 = vmul.f32 %v3170, 0.5
    %v3175 = vmul.f32 %v3171, 0.5
    %v3176 = vmul.f32 %v3172, 0.5
    %v3177 = vmul.f32 %v3173, 0.5
    %v3178 = vtanh.pop %v3174
    %v3179 = vtanh.pop %v3175
    %v3180 = vtanh.pop %v3176
    %v3181 = vtanh.pop %v3177
    %v3182 = vmul.f32 %v3178, 0.5
    %v3183 = vmul.f32 %v3179, 0.5
    %v3184 = vmul.f32 %v3180, 0.5
    %v3185 = vmul.f32 %v3181, 0.5
    %v3186 = vadd.f32 %v3182, 0.5
    %v3187 = vadd.f32 %v3183, 0.5
    %v3188 = vadd.f32 %v3184, 0.5
    %v3189 = vadd.f32 %v3185, 0.5
    %v3190 = vtanh.pop %v3171
    %v3191 = vtanh.pop %v3173
    %v3192 = vmul.f32 %v3186, %v3055
    %v3193 = vmul.f32 %v3188, %v3056
    %3196 = vrot.lane.b32.xlu0 %v3190, 64
    %v3197 = vpop.permute.xlu0 %3196
    %3198 = vrot.lane.b32.xlu0 %v3191, 64
    %v3199 = vpop.permute.xlu0 %3198
    %v3202 = vmul.f32 %v3186, %v3197
    %v3203 = vmul.f32 %v3188, %v3199
    %3206 = vrot.lane.b32.xlu0 %v3202, 64
    %v3207 = vpop.permute.xlu0 %3206
    %3208 = vrot.lane.b32.xlu0 %v3203, 64
    %v3209 = vpop.permute.xlu0 %3208
    %v3212 = vadd.f32 %v3192, %v3207
    %v3213 = vadd.f32 %v3193, %v3209
    %v3214 = vtanh.pop %v3212
    %v3215 = vtanh.pop %v3213
    %3218 = vrot.lane.b32.xlu0 %v3214, 64
    %v3219 = vpop.permute.xlu0 %3218
    %3220 = vrot.lane.b32.xlu0 %v3215, 64
    %v3221 = vpop.permute.xlu0 %3220
    %v3224 = vmul.f32 %v3187, %v3219
    %v3225 = vmul.f32 %v3189, %v3221
    %v3226 = vmul.f32 %v3224, %v870
    %v3227 = vmul.f32 %v3225, %v871
    %v3228 = vmul.f32 %v3224, %v872
    %v3229 = vmul.f32 %v3225, %v873
    %3232 = vrot.lane.b32.xlu0 %v3228, 64
    %v3233 = vpop.permute.xlu0 %3232
    %3234 = vrot.lane.b32.xlu0 %v3229, 64
    %v3235 = vpop.permute.xlu0 %3234
    %v3238 = vsel %vm1039, %v3226, %v3233
    %v3239 = vsel %vm1039, %v3227, %v3235
    %v3240 = vld [vmem:[#allocation3 + $0x70] sm:$0xff]
    %v3241 = vadd.f32 %v3240, %v3238
    %3242 = vst [vmem:[#allocation3 + $0x70] sm:$0xff] %v3241
    %v3243 = vld [vmem:[#allocation3 + $0x8] sm:$0xff]
    %v3244 = vadd.f32 %v3243, %v3239
    %3245 = vst [vmem:[#allocation3 + $0x8] sm:$0xff] %v3244
    %v3246 = vld [vmem:[#allocation2 + $0x1e0] sm:$0xff]
    %v3247 = vld [vmem:[#allocation2 + $0x1e8] sm:$0xff]
    %v3248 = vld [vmem:[#allocation2 + $0x1f0] sm:$0xff]
    %v3249 = vld [vmem:[#allocation2 + $0x1f8] sm:$0xff]
    %3250 = vmatprep.subr.mxu0 %v800
    %3251 = vmatpush1.msra.mxu0 %v799
    %3252 = vmatprep.subr.mxu0 %v802
    %3253 = vmatpush1.msra.mxu0 %v801
    %3254 = vmatprep.subr.mxu0 %v804
    %3255 = vmatpush1.msra.mxu0 %v803
    %3256 = vmatprep.subr.mxu0 %v806
    %3257 = vmatpush1.msra.mxu0 %v805
    %3258 = vmatprep.subr.mxu0 %v808
    %3259 = vmatpush1.msra.mxu0 %v807
    %3260 = vmatprep.subr.mxu0 %v810
    %3261 = vmatpush1.msra.mxu0 %v809
    %3262 = vmatprep.subr.mxu0 %v812
    %3263 = vmatpush1.msra.mxu0 %v811
    %3264 = vmatprep.subr.mxu0 %v814
    %3265 = vmatpush1.msra.mxu0 %v813
    %3266 = vmatprep.subr.mxu0 %v816
    %3267 = vmatpush1.msra.mxu0 %v815
    %3268 = vmatprep.subr.mxu0 %v818
    %3269 = vmatpush1.msra.mxu0 %v817
    %3270 = vmatprep.subr.mxu0 %v820
    %3271 = vmatpush1.msra.mxu0 %v819
    %3272 = vmatprep.subr.mxu0 %v822
    %3273 = vmatpush1.msra.mxu0 %v821
    %3274 = vmatprep.subr.mxu0 %v824
    %3275 = vmatpush1.msra.mxu0 %v823
    %3276 = vmatprep.subr.mxu0 %v826
    %3277 = vmatpush1.msra.mxu0 %v825
    %3278 = vmatprep.subr.mxu0 %v828
    %3279 = vmatpush1.msra.mxu0 %v827
    %3280 = vmatprep.subr.mxu0 %v830
    %3281 = vmatpush1.msra.mxu0 %v829
    %3282 = vmatprep.subr.mxu0 0.0
    %3283 = vmatpush1.msra.mxu0 0.0
    %3284 = vmatprep.subr.mxu0 0.0
    %3285 = vmatpush1.msra.mxu0 0.0
    %3286 = vmatprep.subr.mxu0 0.0
    %3287 = vmatpush1.msra.mxu0 0.0
    %3288 = vmatprep.subr.mxu0 0.0
    %3289 = vmatpush1.msra.mxu0 0.0
    %3290 = vmatprep.subr.mxu0 0.0
    %3291 = vmatpush1.msra.mxu0 0.0
    %3292 = vmatprep.subr.mxu0 0.0
    %3293 = vmatpush1.msra.mxu0 0.0
    %3294 = vmatprep.subr.mxu0 0.0
    %3295 = vmatpush1.msra.mxu0 0.0
    %3296 = vmatprep.subr.mxu0 0.0
    %3297 = vmatpush1.msra.mxu0 0.0
    %3298 = vmatprep.subr.mxu0 0.0
    %3299 = vmatpush1.msra.mxu0 0.0
    %3300 = vmatprep.subr.mxu0 0.0
    %3301 = vmatpush1.msra.mxu0 0.0
    %3302 = vmatprep.subr.mxu0 0.0
    %3303 = vmatpush1.msra.mxu0 0.0
    %3304 = vmatprep.subr.mxu0 0.0
    %3305 = vmatpush1.msra.mxu0 0.0
    %3306 = vmatprep.subr.mxu0 0.0
    %3307 = vmatpush1.msra.mxu0 0.0
    %3308 = vmatprep.subr.mxu0 0.0
    %3309 = vmatpush1.msra.mxu0 0.0
    %3310 = vmatprep.subr.mxu0 0.0
    %3311 = vmatpush1.msra.mxu0 0.0
    %3312 = vmatprep.subr.mxu0 0.0
    %3313 = vmatpush1.msra.mxu0 0.0
    %3314 = vmatprep.mubr.f32.mxu0 0.0
    %3315 = vmatmul.mubr.f32.gmra.mrb[0].mxu0 %v3238
    %v3316 = vpop.f32.mrb[0].mxu0
    %v3317 = vadd.f32 0.0, %v3316
    %v3318 = vpop.f32.mrb[0].mxu0
    %v3319 = vadd.f32 0.0, %v3318
    %3320 = vmatprep.mubr.f32.mxu0 0.0
    %3321 = vmatmul.mubr.f32.gmra.mrb[0].mxu0 %v3239
    %v3322 = vpop.f32.mrb[0].mxu0
    %v3323 = vadd.f32 0.0, %v3322
    %v3324 = vpop.f32.mrb[0].mxu0
    %v3325 = vadd.f32 0.0, %v3324
    %3326 = vdwg.mxu0
    %v3327 = vadd.f32 %v3246, %v3317
    %v3328 = vadd.f32 %v3247, %v3319
    %v3329 = vadd.f32 %v3248, %v3323
    %v3330 = vadd.f32 %v3249, %v3325
    %v3331 = vmul.f32 %v3327, 0.5
    %v3332 = vmul.f32 %v3328, 0.5
    %v3333 = vmul.f32 %v3329, 0.5
    %v3334 = vmul.f32 %v3330, 0.5
    %v3335 = vtanh.pop %v3331
    %v3336 = vtanh.pop %v3332
    %v3337 = vtanh.pop %v3333
    %v3338 = vtanh.pop %v3334
    %v3339 = vmul.f32 %v3335, 0.5
    %v3340 = vmul.f32 %v3336, 0.5
    %v3341 = vmul.f32 %v3337, 0.5
    %v3342 = vmul.f32 %v3338, 0.5
    %v3343 = vadd.f32 %v3339, 0.5
    %v3344 = vadd.f32 %v3340, 0.5
    %v3345 = vadd.f32 %v3341, 0.5
    %v3346 = vadd.f32 %v3342, 0.5
    %v3347 = vtanh.pop %v3328
    %v3348 = vtanh.pop %v3330
    %v3349 = vmul.f32 %v3343, %v3212
    %v3350 = vmul.f32 %v3345, %v3213
    %3353 = vrot.lane.b32.xlu0 %v3347, 64
    %v3354 = vpop.permute.xlu0 %3353
    %3355 = vrot.lane.b32.xlu0 %v3348, 64
    %v3356 = vpop.permute.xlu0 %3355
    %v3359 = vmul.f32 %v3343, %v3354
    %v3360 = vmul.f32 %v3345, %v3356
    %3363 = vrot.lane.b32.xlu0 %v3359, 64
    %v3364 = vpop.permute.xlu0 %3363
    %3365 = vrot.lane.b32.xlu0 %v3360, 64
    %v3366 = vpop.permute.xlu0 %3365
    %v3369 = vadd.f32 %v3349, %v3364
    %v3370 = vadd.f32 %v3350, %v3366
    %v3371 = vtanh.pop %v3369
    %v3372 = vtanh.pop %v3370
    %3375 = vrot.lane.b32.xlu0 %v3371, 64
    %v3376 = vpop.permute.xlu0 %3375
    %3377 = vrot.lane.b32.xlu0 %v3372, 64
    %v3378 = vpop.permute.xlu0 %3377
    %v3381 = vmul.f32 %v3344, %v3376
    %v3382 = vmul.f32 %v3346, %v3378
    %v3383 = vmul.f32 %v3381, %v870
    %v3384 = vmul.f32 %v3382, %v871
    %v3385 = vmul.f32 %v3381, %v872
    %v3386 = vmul.f32 %v3382, %v873
    %3389 = vrot.lane.b32.xlu0 %v3385, 64
    %v3390 = vpop.permute.xlu0 %3389
    %3391 = vrot.lane.b32.xlu0 %v3386, 64
    %v3392 = vpop.permute.xlu0 %3391
    %v3395 = vsel %vm1039, %v3383, %v3390
    %v3396 = vsel %vm1039, %v3384, %v3392
    %v3397 = vld [vmem:[#allocation3 + $0x78] sm:$0xff]
    %v3398 = vadd.f32 %v3397, %v3395
    %3399 = vst [vmem:[#allocation3 + $0x78] sm:$0xff] %v3398
    %v3400 = vld [vmem:[#allocation3] sm:$0xff]
    %v3401 = vadd.f32 %v3400, %v3396
    %3402 = vst [vmem:[#allocation3] sm:$0xff] %v3401
    %v3403 = vld [vmem:[#allocation3] sm:$0xff]
    %v3404 = vld [vmem:[#allocation3 + $0x8] sm:$0xff]
    %v3405 = vld [vmem:[#allocation3 + $0x10] sm:$0xff]
    %v3406 = vld [vmem:[#allocation3 + $0x18] sm:$0xff]
    %v3407 = vld [vmem:[#allocation3 + $0x20] sm:$0xff]
    %v3408 = vld [vmem:[#allocation3 + $0x28] sm:$0xff]
    %v3409 = vld [vmem:[#allocation3 + $0x30] sm:$0xff]
    %v3410 = vld [vmem:[#allocation3 + $0x38] sm:$0xff]
    %v3411 = vld [vmem:[#allocation3 + $0x40] sm:$0xff]
    %v3412 = vld [vmem:[#allocation3 + $0x48] sm:$0xff]
    %v3413 = vld [vmem:[#allocation3 + $0x50] sm:$0xff]
    %v3414 = vld [vmem:[#allocation3 + $0x58] sm:$0xff]
    %v3415 = vld [vmem:[#allocation3 + $0x60] sm:$0xff]
    %v3416 = vld [vmem:[#allocation3 + $0x68] sm:$0xff]
    %v3417 = vld [vmem:[#allocation3 + $0x70] sm:$0xff]
    %v3418 = vld [vmem:[#allocation3 + $0x78] sm:$0xff]
    %v3419 = vld [vmem:[#allocation9] sm:$0xff]
    %v3420 = vld [vmem:[#allocation9 + $0x8] sm:$0xff]
    %v3421 = vld [vmem:[#allocation9 + $0x10] sm:$0xff]
    %v3422 = vld [vmem:[#allocation9 + $0x18] sm:$0xff]
    %v3423 = vld [vmem:[#allocation9 + $0x20] sm:$0xff]
    %v3424 = vld [vmem:[#allocation9 + $0x28] sm:$0xff]
    %v3425 = vld [vmem:[#allocation9 + $0x30] sm:$0xff]
    %v3426 = vld [vmem:[#allocation9 + $0x38] sm:$0xff]
    %v3427 = vld [vmem:[#allocation9 + $0x40] sm:$0xff]
    %v3428 = vld [vmem:[#allocation9 + $0x48] sm:$0xff]
    %v3429 = vld [vmem:[#allocation9 + $0x50] sm:$0xff]
    %v3430 = vld [vmem:[#allocation9 + $0x58] sm:$0xff]
    %v3431 = vld [vmem:[#allocation9 + $0x60] sm:$0xff]
    %v3432 = vld [vmem:[#allocation9 + $0x68] sm:$0xff]
    %v3433 = vld [vmem:[#allocation9 + $0x70] sm:$0xff]
    %v3434 = vld [vmem:[#allocation9 + $0x78] sm:$0xff]
    %v3435 = vld [vmem:[#allocation9 + $0x80] sm:$0xff]
    %v3436 = vld [vmem:[#allocation9 + $0x88] sm:$0xff]
    %v3437 = vld [vmem:[#allocation9 + $0x90] sm:$0xff]
    %v3438 = vld [vmem:[#allocation9 + $0x98] sm:$0xff]
    %v3439 = vld [vmem:[#allocation9 + $0xa0] sm:$0xff]
    %v3440 = vld [vmem:[#allocation9 + $0xa8] sm:$0xff]
    %v3441 = vld [vmem:[#allocation9 + $0xb0] sm:$0xff]
    %v3442 = vld [vmem:[#allocation9 + $0xb8] sm:$0xff]
    %v3443 = vld [vmem:[#allocation9 + $0xc0] sm:$0xff]
    %v3444 = vld [vmem:[#allocation9 + $0xc8] sm:$0xff]
    %v3445 = vld [vmem:[#allocation9 + $0xd0] sm:$0xff]
    %v3446 = vld [vmem:[#allocation9 + $0xd8] sm:$0xff]
    %v3447 = vld [vmem:[#allocation9 + $0xe0] sm:$0xff]
    %v3448 = vld [vmem:[#allocation9 + $0xe8] sm:$0xff]
    %v3449 = vld [vmem:[#allocation9 + $0xf0] sm:$0xff]
    %v3450 = vld [vmem:[#allocation9 + $0xf8] sm:$0xff]
    %v3451 = vld [vmem:[#allocation9 + $0x100] sm:$0xff]
    %v3452 = vld [vmem:[#allocation9 + $0x108] sm:$0xff]
    %v3453 = vld [vmem:[#allocation9 + $0x110] sm:$0xff]
    %v3454 = vld [vmem:[#allocation9 + $0x118] sm:$0xff]
    %v3455 = vld [vmem:[#allocation9 + $0x120] sm:$0xff]
    %v3456 = vld [vmem:[#allocation9 + $0x128] sm:$0xff]
    %v3457 = vld [vmem:[#allocation9 + $0x130] sm:$0xff]
    %v3458 = vld [vmem:[#allocation9 + $0x138] sm:$0xff]
    %v3459 = vld [vmem:[#allocation9 + $0x140] sm:$0xff]
    %v3460 = vld [vmem:[#allocation9 + $0x148] sm:$0xff]
    %v3461 = vld [vmem:[#allocation9 + $0x150] sm:$0xff]
    %v3462 = vld [vmem:[#allocation9 + $0x158] sm:$0xff]
    %v3463 = vld [vmem:[#allocation9 + $0x160] sm:$0xff]
    %v3464 = vld [vmem:[#allocation9 + $0x168] sm:$0xff]
    %v3465 = vld [vmem:[#allocation9 + $0x170] sm:$0xff]
    %v3466 = vld [vmem:[#allocation9 + $0x178] sm:$0xff]
    %v3467 = vld [vmem:[#allocation9 + $0x180] sm:$0xff]
    %v3468 = vld [vmem:[#allocation9 + $0x188] sm:$0xff]
    %v3469 = vld [vmem:[#allocation9 + $0x190] sm:$0xff]
    %v3470 = vld [vmem:[#allocation9 + $0x198] sm:$0xff]
    %v3471 = vld [vmem:[#allocation9 + $0x1a0] sm:$0xff]
    %v3472 = vld [vmem:[#allocation9 + $0x1a8] sm:$0xff]
    %v3473 = vld [vmem:[#allocation9 + $0x1b0] sm:$0xff]
    %v3474 = vld [vmem:[#allocation9 + $0x1b8] sm:$0xff]
    %v3475 = vld [vmem:[#allocation9 + $0x1c0] sm:$0xff]
    %v3476 = vld [vmem:[#allocation9 + $0x1c8] sm:$0xff]
    %v3477 = vld [vmem:[#allocation9 + $0x1d0] sm:$0xff]
    %v3478 = vld [vmem:[#allocation9 + $0x1d8] sm:$0xff]
    %v3479 = vld [vmem:[#allocation9 + $0x1e0] sm:$0xff]
    %v3480 = vld [vmem:[#allocation9 + $0x1e8] sm:$0xff]
    %v3481 = vld [vmem:[#allocation9 + $0x1f0] sm:$0xff]
    %v3482 = vld [vmem:[#allocation9 + $0x1f8] sm:$0xff]
    %v3483 = vld [vmem:[%s4] sm:$0xf]
    %v3485 = vlaneseq
    %v3486 = vshrl.u32 %v3485, 7
    %v3487 = vsub.s32 0, %v3486
    %v3488 = vrot.slane %v3483, %v3487
    %v3489 = vlaneseq
    %v3490 = vshrl.u32 %v3489, 7
    %v3491 = vsub.s32 1, %v3490
    %v3492 = vrot.slane %v3483, %v3491
    %v3493 = vlaneseq
    %v3494 = vshrl.u32 %v3493, 7
    %v3495 = vsub.s32 2, %v3494
    %v3496 = vrot.slane %v3483, %v3495
    %v3497 = vlaneseq
    %v3498 = vshrl.u32 %v3497, 7
    %v3499 = vsub.s32 3, %v3498
    %v3500 = vrot.slane %v3483, %v3499
    %3505 = vmatprep.subr.mxu0 %v3420
    %3506 = vmatpush1.msra.mxu0 %v3419
    %3507 = vmatprep.subr.mxu0 %v3424
    %3508 = vmatpush1.msra.mxu0 %v3423
    %3509 = vmatprep.subr.mxu0 %v3428
    %3510 = vmatpush1.msra.mxu0 %v3427
    %3511 = vmatprep.subr.mxu0 %v3432
    %3512 = vmatpush1.msra.mxu0 %v3431
    %3513 = vmatprep.subr.mxu0 %v3436
    %3514 = vmatpush1.msra.mxu0 %v3435
    %3515 = vmatprep.subr.mxu0 %v3440
    %3516 = vmatpush1.msra.mxu0 %v3439
    %3517 = vmatprep.subr.mxu0 %v3444
    %3518 = vmatpush1.msra.mxu0 %v3443
    %3519 = vmatprep.subr.mxu0 %v3448
    %3520 = vmatpush1.msra.mxu0 %v3447
    %3521 = vmatprep.subr.mxu0 %v3452
    %3522 = vmatpush1.msra.mxu0 %v3451
    %3523 = vmatprep.subr.mxu0 %v3456
    %3524 = vmatpush1.msra.mxu0 %v3455
    %3525 = vmatprep.subr.mxu0 %v3460
    %3526 = vmatpush1.msra.mxu0 %v3459
    %3527 = vmatprep.subr.mxu0 %v3464
    %3528 = vmatpush1.msra.mxu0 %v3463
    %3529 = vmatprep.subr.mxu0 %v3468
    %3530 = vmatpush1.msra.mxu0 %v3467
    %3531 = vmatprep.subr.mxu0 %v3472
    %3532 = vmatpush1.msra.mxu0 %v3471
    %3533 = vmatprep.subr.mxu0 %v3476
    %3534 = vmatpush1.msra.mxu0 %v3475
    %3535 = vmatprep.subr.mxu0 %v3480
    %3536 = vmatpush1.msra.mxu0 %v3479
    %3537 = vmatprep.subr.mxu0 0.0
    %3538 = vmatpush1.msra.mxu0 0.0
    %3539 = vmatprep.subr.mxu0 0.0
    %3540 = vmatpush1.msra.mxu0 0.0
    %3541 = vmatprep.subr.mxu0 0.0
    %3542 = vmatpush1.msra.mxu0 0.0
    %3543 = vmatprep.subr.mxu0 0.0
    %3544 = vmatpush1.msra.mxu0 0.0
    %3545 = vmatprep.subr.mxu0 0.0
    %3546 = vmatpush1.msra.mxu0 0.0
    %3547 = vmatprep.subr.mxu0 0.0
    %3548 = vmatpush1.msra.mxu0 0.0
    %3549 = vmatprep.subr.mxu0 0.0
    %3550 = vmatpush1.msra.mxu0 0.0
    %3551 = vmatprep.subr.mxu0 0.0
    %3552 = vmatpush1.msra.mxu0 0.0
    %3553 = vmatprep.subr.mxu0 0.0
    %3554 = vmatpush1.msra.mxu0 0.0
    %3555 = vmatprep.subr.mxu0 0.0
    %3556 = vmatpush1.msra.mxu0 0.0
    %3557 = vmatprep.subr.mxu0 0.0
    %3558 = vmatpush1.msra.mxu0 0.0
    %3559 = vmatprep.subr.mxu0 0.0
    %3560 = vmatpush1.msra.mxu0 0.0
    %3561 = vmatprep.subr.mxu0 0.0
    %3562 = vmatpush1.msra.mxu0 0.0
    %3563 = vmatprep.subr.mxu0 0.0
    %3564 = vmatpush1.msra.mxu0 0.0
    %3565 = vmatprep.subr.mxu0 0.0
    %3566 = vmatpush1.msra.mxu0 0.0
    %3567 = vmatprep.subr.mxu0 0.0
    %3568 = vmatpush1.msra.mxu0 0.0
    %3569 = vmatprep.mubr.f32.mxu0 0.0
    %3570 = vmatmul.mubr.f32.gmra.mrb[0].mxu0 %v3403
    %v3571 = vpop.f32.mrb[0].mxu0
    %v3572 = vadd.f32 %v3488, %v3571
    %v3573 = vpop.f32.mrb[0].mxu0
    %v3574 = vadd.f32 %v3492, %v3573
    %3575 = vmatprep.mubr.f32.mxu0 0.0
    %3576 = vmatmul.mubr.f32.gmra.mrb[0].mxu0 %v3404
    %v3577 = vpop.f32.mrb[0].mxu0
    %v3578 = vadd.f32 %v3488, %v3577
    %v3579 = vpop.f32.mrb[0].mxu0
    %v3580 = vadd.f32 %v3492, %v3579
    %3581 = vmatprep.mubr.f32.mxu0 0.0
    %3582 = vmatmul.mubr.f32.gmra.mrb[0].mxu0 %v3405
    %v3583 = vpop.f32.mrb[0].mxu0
    %v3584 = vadd.f32 %v3488, %v3583
    %v3585 = vpop.f32.mrb[0].mxu0
    %v3586 = vadd.f32 %v3492, %v3585
    %3587 = vmatprep.mubr.f32.mxu0 0.0
    %3588 = vmatmul.mubr.f32.gmra.mrb[0].mxu0 %v3406
    %v3589 = vpop.f32.mrb[0].mxu0
    %v3590 = vadd.f32 %v3488, %v3589
    %v3591 = vpop.f32.mrb[0].mxu0
    %v3592 = vadd.f32 %v3492, %v3591
    %3593 = vmatprep.mubr.f32.mxu0 0.0
    %3594 = vmatmul.mubr.f32.gmra.mrb[0].mxu0 %v3407
    %v3595 = vpop.f32.mrb[0].mxu0
    %v3596 = vadd.f32 %v3488, %v3595
    %v3597 = vpop.f32.mrb[0].mxu0
    %v3598 = vadd.f32 %v3492, %v3597
    %3599 = vmatprep.mubr.f32.mxu0 0.0
    %3600 = vmatmul.mubr.f32.gmra.mrb[0].mxu0 %v3408
    %v3601 = vpop.f32.mrb[0].mxu0
    %v3602 = vadd.f32 %v3488, %v3601
    %v3603 = vpop.f32.mrb[0].mxu0
    %v3604 = vadd.f32 %v3492, %v3603
    %3605 = vmatprep.mubr.f32.mxu0 0.0
    %3606 = vmatmul.mubr.f32.gmra.mrb[0].mxu0 %v3409
    %v3607 = vpop.f32.mrb[0].mxu0
    %v3608 = vadd.f32 %v3488, %v3607
    %v3609 = vpop.f32.mrb[0].mxu0
    %v3610 = vadd.f32 %v3492, %v3609
    %3611 = vmatprep.mubr.f32.mxu0 0.0
    %3612 = vmatmul.mubr.f32.gmra.mrb[0].mxu0 %v3410
    %v3613 = vpop.f32.mrb[0].mxu0
    %v3614 = vadd.f32 %v3488, %v3613
    %v3615 = vpop.f32.mrb[0].mxu0
    %v3616 = vadd.f32 %v3492, %v3615
    %3617 = vmatprep.mubr.f32.mxu0 0.0
    %3618 = vmatmul.mubr.f32.gmra.mrb[0].mxu0 %v3411
    %v3619 = vpop.f32.mrb[0].mxu0
    %v3620 = vadd.f32 %v3488, %v3619
    %v3621 = vpop.f32.mrb[0].mxu0
    %v3622 = vadd.f32 %v3492, %v3621
    %3623 = vmatprep.mubr.f32.mxu0 0.0
    %3624 = vmatmul.mubr.f32.gmra.mrb[0].mxu0 %v3412
    %v3625 = vpop.f32.mrb[0].mxu0
    %v3626 = vadd.f32 %v3488, %v3625
    %v3627 = vpop.f32.mrb[0].mxu0
    %v3628 = vadd.f32 %v3492, %v3627
    %3629 = vmatprep.mubr.f32.mxu0 0.0
    %3630 = vmatmul.mubr.f32.gmra.mrb[0].mxu0 %v3413
    %v3631 = vpop.f32.mrb[0].mxu0
    %v3632 = vadd.f32 %v3488, %v3631
    %v3633 = vpop.f32.mrb[0].mxu0
    %v3634 = vadd.f32 %v3492, %v3633
    %3635 = vmatprep.mubr.f32.mxu0 0.0
    %3636 = vmatmul.mubr.f32.gmra.mrb[0].mxu0 %v3414
    %v3637 = vpop.f32.mrb[0].mxu0
    %v3638 = vadd.f32 %v3488, %v3637
    %v3639 = vpop.f32.mrb[0].mxu0
    %v3640 = vadd.f32 %v3492, %v3639
    %3641 = vmatprep.mubr.f32.mxu0 0.0
    %3642 = vmatmul.mubr.f32.gmra.mrb[0].mxu0 %v3415
    %v3643 = vpop.f32.mrb[0].mxu0
    %v3644 = vadd.f32 %v3488, %v3643
    %v3645 = vpop.f32.mrb[0].mxu0
    %v3646 = vadd.f32 %v3492, %v3645
    %3647 = vmatprep.mubr.f32.mxu0 0.0
    %3648 = vmatmul.mubr.f32.gmra.mrb[0].mxu0 %v3416
    %v3649 = vpop.f32.mrb[0].mxu0
    %v3650 = vadd.f32 %v3488, %v3649
    %v3651 = vpop.f32.mrb[0].mxu0
    %v3652 = vadd.f32 %v3492, %v3651
    %3653 = vmatprep.mubr.f32.mxu0 0.0
    %3654 = vmatmul.mubr.f32.gmra.mrb[0].mxu0 %v3417
    %v3655 = vpop.f32.mrb[0].mxu0
    %v3656 = vadd.f32 %v3488, %v3655
    %v3657 = vpop.f32.mrb[0].mxu0
    %v3658 = vadd.f32 %v3492, %v3657
    %3659 = vmatprep.mubr.f32.mxu0 0.0
    %3660 = vmatmul.mubr.f32.gmra.mrb[0].mxu0 %v3418
    %v3661 = vpop.f32.mrb[0].mxu0
    %v3662 = vadd.f32 %v3488, %v3661
    %v3663 = vpop.f32.mrb[0].mxu0
    %v3664 = vadd.f32 %v3492, %v3663
    %3665 = vdwg.mxu0
    %3666 = vmatprep.subr.mxu0 %v3422
    %3667 = vmatpush1.msra.mxu0 %v3421
    %3668 = vmatprep.subr.mxu0 %v3426
    %3669 = vmatpush1.msra.mxu0 %v3425
    %3670 = vmatprep.subr.mxu0 %v3430
    %3671 = vmatpush1.msra.mxu0 %v3429
    %3672 = vmatprep.subr.mxu0 %v3434
    %3673 = vmatpush1.msra.mxu0 %v3433
    %3674 = vmatprep.subr.mxu0 %v3438
    %3675 = vmatpush1.msra.mxu0 %v3437
    %3676 = vmatprep.subr.mxu0 %v3442
    %3677 = vmatpush1.msra.mxu0 %v3441
    %3678 = vmatprep.subr.mxu0 %v3446
    %3679 = vmatpush1.msra.mxu0 %v3445
    %3680 = vmatprep.subr.mxu0 %v3450
    %3681 = vmatpush1.msra.mxu0 %v3449
    %3682 = vmatprep.subr.mxu0 %v3454
    %3683 = vmatpush1.msra.mxu0 %v3453
    %3684 = vmatprep.subr.mxu0 %v3458
    %3685 = vmatpush1.msra.mxu0 %v3457
    %3686 = vmatprep.subr.mxu0 %v3462
    %3687 = vmatpush1.msra.mxu0 %v3461
    %3688 = vmatprep.subr.mxu0 %v3466
    %3689 = vmatpush1.msra.mxu0 %v3465
    %3690 = vmatprep.subr.mxu0 %v3470
    %3691 = vmatpush1.msra.mxu0 %v3469
    %3692 = vmatprep.subr.mxu0 %v3474
    %3693 = vmatpush1.msra.mxu0 %v3473
    %3694 = vmatprep.subr.mxu0 %v3478
    %3695 = vmatpush1.msra.mxu0 %v3477
    %3696 = vmatprep.subr.mxu0 %v3482
    %3697 = vmatpush1.msra.mxu0 %v3481
    %3698 = vmatprep.subr.mxu0 0.0
    %3699 = vmatpush1.msra.mxu0 0.0
    %3700 = vmatprep.subr.mxu0 0.0
    %3701 = vmatpush1.msra.mxu0 0.0
    %3702 = vmatprep.subr.mxu0 0.0
    %3703 = vmatpush1.msra.mxu0 0.0
    %3704 = vmatprep.subr.mxu0 0.0
    %3705 = vmatpush1.msra.mxu0 0.0
    %3706 = vmatprep.subr.mxu0 0.0
    %3707 = vmatpush1.msra.mxu0 0.0
    %3708 = vmatprep.subr.mxu0 0.0
    %3709 = vmatpush1.msra.mxu0 0.0
    %3710 = vmatprep.subr.mxu0 0.0
    %3711 = vmatpush1.msra.mxu0 0.0
    %3712 = vmatprep.subr.mxu0 0.0
    %3713 = vmatpush1.msra.mxu0 0.0
    %3714 = vmatprep.subr.mxu0 0.0
    %3715 = vmatpush1.msra.mxu0 0.0
    %3716 = vmatprep.subr.mxu0 0.0
    %3717 = vmatpush1.msra.mxu0 0.0
    %3718 = vmatprep.subr.mxu0 0.0
    %3719 = vmatpush1.msra.mxu0 0.0
    %3720 = vmatprep.subr.mxu0 0.0
    %3721 = vmatpush1.msra.mxu0 0.0
    %3722 = vmatprep.subr.mxu0 0.0
    %3723 = vmatpush1.msra.mxu0 0.0
    %3724 = vmatprep.subr.mxu0 0.0
    %3725 = vmatpush1.msra.mxu0 0.0
    %3726 = vmatprep.subr.mxu0 0.0
    %3727 = vmatpush1.msra.mxu0 0.0
    %3728 = vmatprep.subr.mxu0 0.0
    %3729 = vmatpush1.msra.mxu0 0.0
    %3730 = vmatprep.mubr.f32.mxu0 0.0
    %3731 = vmatmul.mubr.f32.gmra.mrb[0].mxu0 %v3403
    %v3732 = vpop.f32.mrb[0].mxu0
    %v3733 = vadd.f32 %v3496, %v3732
    %v3734 = vpop.f32.mrb[0].mxu0
    %v3735 = vadd.f32 %v3500, %v3734
    %3736 = vmatprep.mubr.f32.mxu0 0.0
    %3737 = vmatmul.mubr.f32.gmra.mrb[0].mxu0 %v3404
    %v3738 = vpop.f32.mrb[0].mxu0
    %v3739 = vadd.f32 %v3496, %v3738
    %v3740 = vpop.f32.mrb[0].mxu0
    %v3741 = vadd.f32 %v3500, %v3740
    %3742 = vmatprep.mubr.f32.mxu0 0.0
    %3743 = vmatmul.mubr.f32.gmra.mrb[0].mxu0 %v3405
    %v3744 = vpop.f32.mrb[0].mxu0
    %v3745 = vadd.f32 %v3496, %v3744
    %v3746 = vpop.f32.mrb[0].mxu0
    %v3747 = vadd.f32 %v3500, %v3746
    %3748 = vmatprep.mubr.f32.mxu0 0.0
    %3749 = vmatmul.mubr.f32.gmra.mrb[0].mxu0 %v3406
    %v3750 = vpop.f32.mrb[0].mxu0
    %v3751 = vadd.f32 %v3496, %v3750
    %v3752 = vpop.f32.mrb[0].mxu0
    %v3753 = vadd.f32 %v3500, %v3752
    %3754 = vmatprep.mubr.f32.mxu0 0.0
    %3755 = vmatmul.mubr.f32.gmra.mrb[0].mxu0 %v3407
    %v3756 = vpop.f32.mrb[0].mxu0
    %v3757 = vadd.f32 %v3496, %v3756
    %v3758 = vpop.f32.mrb[0].mxu0
    %v3759 = vadd.f32 %v3500, %v3758
    %3760 = vmatprep.mubr.f32.mxu0 0.0
    %3761 = vmatmul.mubr.f32.gmra.mrb[0].mxu0 %v3408
    %v3762 = vpop.f32.mrb[0].mxu0
    %v3763 = vadd.f32 %v3496, %v3762
    %v3764 = vpop.f32.mrb[0].mxu0
    %v3765 = vadd.f32 %v3500, %v3764
    %3766 = vmatprep.mubr.f32.mxu0 0.0
    %3767 = vmatmul.mubr.f32.gmra.mrb[0].mxu0 %v3409
    %v3768 = vpop.f32.mrb[0].mxu0
    %v3769 = vadd.f32 %v3496, %v3768
    %v3770 = vpop.f32.mrb[0].mxu0
    %v3771 = vadd.f32 %v3500, %v3770
    %3772 = vmatprep.mubr.f32.mxu0 0.0
    %3773 = vmatmul.mubr.f32.gmra.mrb[0].mxu0 %v3410
    %v3774 = vpop.f32.mrb[0].mxu0
    %v3775 = vadd.f32 %v3496, %v3774
    %v3776 = vpop.f32.mrb[0].mxu0
    %v3777 = vadd.f32 %v3500, %v3776
    %3778 = vmatprep.mubr.f32.mxu0 0.0
    %3779 = vmatmul.mubr.f32.gmra.mrb[0].mxu0 %v3411
    %v3780 = vpop.f32.mrb[0].mxu0
    %v3781 = vadd.f32 %v3496, %v3780
    %v3782 = vpop.f32.mrb[0].mxu0
    %v3783 = vadd.f32 %v3500, %v3782
    %3784 = vmatprep.mubr.f32.mxu0 0.0
    %3785 = vmatmul.mubr.f32.gmra.mrb[0].mxu0 %v3412
    %v3786 = vpop.f32.mrb[0].mxu0
    %v3787 = vadd.f32 %v3496, %v3786
    %v3788 = vpop.f32.mrb[0].mxu0
    %v3789 = vadd.f32 %v3500, %v3788
    %3790 = vmatprep.mubr.f32.mxu0 0.0
    %3791 = vmatmul.mubr.f32.gmra.mrb[0].mxu0 %v3413
    %v3792 = vpop.f32.mrb[0].mxu0
    %v3793 = vadd.f32 %v3496, %v3792
    %v3794 = vpop.f32.mrb[0].mxu0
    %v3795 = vadd.f32 %v3500, %v3794
    %3796 = vmatprep.mubr.f32.mxu0 0.0
    %3797 = vmatmul.mubr.f32.gmra.mrb[0].mxu0 %v3414
    %v3798 = vpop.f32.mrb[0].mxu0
    %v3799 = vadd.f32 %v3496, %v3798
    %v3800 = vpop.f32.mrb[0].mxu0
    %v3801 = vadd.f32 %v3500, %v3800
    %3802 = vmatprep.mubr.f32.mxu0 0.0
    %3803 = vmatmul.mubr.f32.gmra.mrb[0].mxu0 %v3415
    %v3804 = vpop.f32.mrb[0].mxu0
    %v3805 = vadd.f32 %v3496, %v3804
    %v3806 = vpop.f32.mrb[0].mxu0
    %v3807 = vadd.f32 %v3500, %v3806
    %3808 = vmatprep.mubr.f32.mxu0 0.0
    %3809 = vmatmul.mubr.f32.gmra.mrb[0].mxu0 %v3416
    %v3810 = vpop.f32.mrb[0].mxu0
    %v3811 = vadd.f32 %v3496, %v3810
    %v3812 = vpop.f32.mrb[0].mxu0
    %v3813 = vadd.f32 %v3500, %v3812
    %3814 = vmatprep.mubr.f32.mxu0 0.0
    %3815 = vmatmul.mubr.f32.gmra.mrb[0].mxu0 %v3417
    %v3816 = vpop.f32.mrb[0].mxu0
    %v3817 = vadd.f32 %v3496, %v3816
    %v3818 = vpop.f32.mrb[0].mxu0
    %v3819 = vadd.f32 %v3500, %v3818
    %3820 = vmatprep.mubr.f32.mxu0 0.0
    %3821 = vmatmul.mubr.f32.gmra.mrb[0].mxu0 %v3418
    %v3822 = vpop.f32.mrb[0].mxu0
    %v3823 = vadd.f32 %v3496, %v3822
    %v3824 = vpop.f32.mrb[0].mxu0
    %v3825 = vadd.f32 %v3500, %v3824
    %3826 = vdwg.mxu0
    %3827 = vst [vmem:[#allocation4] sm:$0xff] %v3572
    %3828 = vst [vmem:[#allocation4 + $0x8] sm:$0xff] %v3574
    %3829 = vst [vmem:[#allocation4 + $0x10] sm:$0xff] %v3733
    %3830 = vst [vmem:[#allocation4 + $0x18] sm:$0xff] %v3735
    %3831 = vst [vmem:[#allocation4 + $0x20] sm:$0xff] %v3578
    %3832 = vst [vmem:[#allocation4 + $0x28] sm:$0xff] %v3580
    %3833 = vst [vmem:[#allocation4 + $0x30] sm:$0xff] %v3739
    %3834 = vst [vmem:[#allocation4 + $0x38] sm:$0xff] %v3741
    %3835 = vst [vmem:[#allocation4 + $0x40] sm:$0xff] %v3584
    %3836 = vst [vmem:[#allocation4 + $0x48] sm:$0xff] %v3586
    %3837 = vst [vmem:[#allocation4 + $0x50] sm:$0xff] %v3745
    %3838 = vst [vmem:[#allocation4 + $0x58] sm:$0xff] %v3747
    %3839 = vst [vmem:[#allocation4 + $0x60] sm:$0xff] %v3590
    %3840 = vst [vmem:[#allocation4 + $0x68] sm:$0xff] %v3592
    %3841 = vst [vmem:[#allocation4 + $0x70] sm:$0xff] %v3751
    %3842 = vst [vmem:[#allocation4 + $0x78] sm:$0xff] %v3753
    %3843 = vst [vmem:[#allocation4 + $0x80] sm:$0xff] %v3596
    %3844 = vst [vmem:[#allocation4 + $0x88] sm:$0xff] %v3598
    %3845 = vst [vmem:[#allocation4 + $0x90] sm:$0xff] %v3757
    %3846 = vst [vmem:[#allocation4 + $0x98] sm:$0xff] %v3759
    %3847 = vst [vmem:[#allocation4 + $0xa0] sm:$0xff] %v3602
    %3848 = vst [vmem:[#allocation4 + $0xa8] sm:$0xff] %v3604
    %3849 = vst [vmem:[#allocation4 + $0xb0] sm:$0xff] %v3763
    %3850 = vst [vmem:[#allocation4 + $0xb8] sm:$0xff] %v3765
    %3851 = vst [vmem:[#allocation4 + $0xc0] sm:$0xff] %v3608
    %3852 = vst [vmem:[#allocation4 + $0xc8] sm:$0xff] %v3610
    %3853 = vst [vmem:[#allocation4 + $0xd0] sm:$0xff] %v3769
    %3854 = vst [vmem:[#allocation4 + $0xd8] sm:$0xff] %v3771
    %3855 = vst [vmem:[#allocation4 + $0xe0] sm:$0xff] %v3614
    %3856 = vst [vmem:[#allocation4 + $0xe8] sm:$0xff] %v3616
    %3857 = vst [vmem:[#allocation4 + $0xf0] sm:$0xff] %v3775
    %3858 = vst [vmem:[#allocation4 + $0xf8] sm:$0xff] %v3777
    %3859 = vst [vmem:[#allocation4 + $0x100] sm:$0xff] %v3620
    %3860 = vst [vmem:[#allocation4 + $0x108] sm:$0xff] %v3622
    %3861 = vst [vmem:[#allocation4 + $0x110] sm:$0xff] %v3781
    %3862 = vst [vmem:[#allocation4 + $0x118] sm:$0xff] %v3783
    %3863 = vst [vmem:[#allocation4 + $0x120] sm:$0xff] %v3626
    %3864 = vst [vmem:[#allocation4 + $0x128] sm:$0xff] %v3628
    %3865 = vst [vmem:[#allocation4 + $0x130] sm:$0xff] %v3787
    %3866 = vst [vmem:[#allocation4 + $0x138] sm:$0xff] %v3789
    %3867 = vst [vmem:[#allocation4 + $0x140] sm:$0xff] %v3632
    %3868 = vst [vmem:[#allocation4 + $0x148] sm:$0xff] %v3634
    %3869 = vst [vmem:[#allocation4 + $0x150] sm:$0xff] %v3793
    %3870 = vst [vmem:[#allocation4 + $0x158] sm:$0xff] %v3795
    %3871 = vst [vmem:[#allocation4 + $0x160] sm:$0xff] %v3638
    %3872 = vst [vmem:[#allocation4 + $0x168] sm:$0xff] %v3640
    %3873 = vst [vmem:[#allocation4 + $0x170] sm:$0xff] %v3799
    %3874 = vst [vmem:[#allocation4 + $0x178] sm:$0xff] %v3801
    %3875 = vst [vmem:[#allocation4 + $0x180] sm:$0xff] %v3644
    %3876 = vst [vmem:[#allocation4 + $0x188] sm:$0xff] %v3646
    %3877 = vst [vmem:[#allocation4 + $0x190] sm:$0xff] %v3805
    %3878 = vst [vmem:[#allocation4 + $0x198] sm:$0xff] %v3807
    %3879 = vst [vmem:[#allocation4 + $0x1a0] sm:$0xff] %v3650
    %3880 = vst [vmem:[#allocation4 + $0x1a8] sm:$0xff] %v3652
    %3881 = vst [vmem:[#allocation4 + $0x1b0] sm:$0xff] %v3811
    %3882 = vst [vmem:[#allocation4 + $0x1b8] sm:$0xff] %v3813
    %3883 = vst [vmem:[#allocation4 + $0x1c0] sm:$0xff] %v3656
    %3884 = vst [vmem:[#allocation4 + $0x1c8] sm:$0xff] %v3658
    %3885 = vst [vmem:[#allocation4 + $0x1d0] sm:$0xff] %v3817
    %3886 = vst [vmem:[#allocation4 + $0x1d8] sm:$0xff] %v3819
    %3887 = vst [vmem:[#allocation4 + $0x1e0] sm:$0xff] %v3662
    %3888 = vst [vmem:[#allocation4 + $0x1e8] sm:$0xff] %v3664
    %3889 = vst [vmem:[#allocation4 + $0x1f0] sm:$0xff] %v3823
    %3890 = vst [vmem:[#allocation4 + $0x1f8] sm:$0xff] %v3825
    %v3891 = vld [vmem:[#allocation4] sm:$0xff]
    %v3892 = vld [vmem:[#allocation4 + $0x8] sm:$0xff]
    %3893 = vst [vmem:[#allocation5] sm:$0xff] %v3891
    %3894 = vst [vmem:[#allocation5 + $0x8] sm:$0xff] %v3892
    %v3895 = vld [vmem:[#allocation4 + $0x1f0] sm:$0xff]
    %v3896 = vld [vmem:[#allocation4 + $0x1f8] sm:$0xff]
    %3897 = vst [vmem:[#allocation5 + $0x10] sm:$0xff] %v3895
    %3898 = vst [vmem:[#allocation5 + $0x18] sm:$0xff] %v3896
    %v3899 = vld [vmem:[#allocation4 + $0x20] sm:$0xff]
    %v3900 = vld [vmem:[#allocation4 + $0x28] sm:$0xff]
    %3901 = vst [vmem:[#allocation5 + $0x20] sm:$0xff] %v3899
    %3902 = vst [vmem:[#allocation5 + $0x28] sm:$0xff] %v3900
    %v3903 = vld [vmem:[#allocation4 + $0x1d0] sm:$0xff]
    %v3904 = vld [vmem:[#allocation4 + $0x1d8] sm:$0xff]
    %3905 = vst [vmem:[#allocation5 + $0x30] sm:$0xff] %v3903
    %3906 = vst [vmem:[#allocation5 + $0x38] sm:$0xff] %v3904
    %v3907 = vld [vmem:[#allocation4 + $0x40] sm:$0xff]
    %v3908 = vld [vmem:[#allocation4 + $0x48] sm:$0xff]
    %3909 = vst [vmem:[#allocation5 + $0x40] sm:$0xff] %v3907
    %3910 = vst [vmem:[#allocation5 + $0x48] sm:$0xff] %v3908
    %v3911 = vld [vmem:[#allocation4 + $0x1b0] sm:$0xff]
    %v3912 = vld [vmem:[#allocation4 + $0x1b8] sm:$0xff]
    %3913 = vst [vmem:[#allocation5 + $0x50] sm:$0xff] %v3911
    %3914 = vst [vmem:[#allocation5 + $0x58] sm:$0xff] %v3912
    %v3915 = vld [vmem:[#allocation4 + $0x60] sm:$0xff]
    %v3916 = vld [vmem:[#allocation4 + $0x68] sm:$0xff]
    %3917 = vst [vmem:[#allocation5 + $0x60] sm:$0xff] %v3915
    %3918 = vst [vmem:[#allocation5 + $0x68] sm:$0xff] %v3916
    %v3919 = vld [vmem:[#allocation4 + $0x190] sm:$0xff]
    %v3920 = vld [vmem:[#allocation4 + $0x198] sm:$0xff]
    %3921 = vst [vmem:[#allocation5 + $0x70] sm:$0xff] %v3919
    %3922 = vst [vmem:[#allocation5 + $0x78] sm:$0xff] %v3920
    %v3923 = vld [vmem:[#allocation4 + $0x80] sm:$0xff]
    %v3924 = vld [vmem:[#allocation4 + $0x88] sm:$0xff]
    %3925 = vst [vmem:[#allocation5 + $0x80] sm:$0xff] %v3923
    %3926 = vst [vmem:[#allocation5 + $0x88] sm:$0xff] %v3924
    %v3927 = vld [vmem:[#allocation4 + $0x170] sm:$0xff]
    %v3928 = vld [vmem:[#allocation4 + $0x178] sm:$0xff]
    %3929 = vst [vmem:[#allocation5 + $0x90] sm:$0xff] %v3927
    %3930 = vst [vmem:[#allocation5 + $0x98] sm:$0xff] %v3928
    %v3931 = vld [vmem:[#allocation4 + $0xa0] sm:$0xff]
    %v3932 = vld [vmem:[#allocation4 + $0xa8] sm:$0xff]
    %3933 = vst [vmem:[#allocation5 + $0xa0] sm:$0xff] %v3931
    %3934 = vst [vmem:[#allocation5 + $0xa8] sm:$0xff] %v3932
    %v3935 = vld [vmem:[#allocation4 + $0x150] sm:$0xff]
    %v3936 = vld [vmem:[#allocation4 + $0x158] sm:$0xff]
    %3937 = vst [vmem:[#allocation5 + $0xb0] sm:$0xff] %v3935
    %3938 = vst [vmem:[#allocation5 + $0xb8] sm:$0xff] %v3936
    %v3939 = vld [vmem:[#allocation4 + $0xc0] sm:$0xff]
    %v3940 = vld [vmem:[#allocation4 + $0xc8] sm:$0xff]
    %3941 = vst [vmem:[#allocation5 + $0xc0] sm:$0xff] %v3939
    %3942 = vst [vmem:[#allocation5 + $0xc8] sm:$0xff] %v3940
    %v3943 = vld [vmem:[#allocation4 + $0x130] sm:$0xff]
    %v3944 = vld [vmem:[#allocation4 + $0x138] sm:$0xff]
    %3945 = vst [vmem:[#allocation5 + $0xd0] sm:$0xff] %v3943
    %3946 = vst [vmem:[#allocation5 + $0xd8] sm:$0xff] %v3944
    %v3947 = vld [vmem:[#allocation4 + $0xe0] sm:$0xff]
    %v3948 = vld [vmem:[#allocation4 + $0xe8] sm:$0xff]
    %3949 = vst [vmem:[#allocation5 + $0xe0] sm:$0xff] %v3947
    %3950 = vst [vmem:[#allocation5 + $0xe8] sm:$0xff] %v3948
    %v3951 = vld [vmem:[#allocation4 + $0x110] sm:$0xff]
    %v3952 = vld [vmem:[#allocation4 + $0x118] sm:$0xff]
    %3953 = vst [vmem:[#allocation5 + $0xf0] sm:$0xff] %v3951
    %3954 = vst [vmem:[#allocation5 + $0xf8] sm:$0xff] %v3952
    %v3955 = vld [vmem:[#allocation4 + $0x100] sm:$0xff]
    %v3956 = vld [vmem:[#allocation4 + $0x108] sm:$0xff]
    %3957 = vst [vmem:[#allocation5 + $0x100] sm:$0xff] %v3955
    %3958 = vst [vmem:[#allocation5 + $0x108] sm:$0xff] %v3956
    %v3959 = vld [vmem:[#allocation4 + $0xf0] sm:$0xff]
    %v3960 = vld [vmem:[#allocation4 + $0xf8] sm:$0xff]
    %3961 = vst [vmem:[#allocation5 + $0x110] sm:$0xff] %v3959
    %3962 = vst [vmem:[#allocation5 + $0x118] sm:$0xff] %v3960
    %v3963 = vld [vmem:[#allocation4 + $0x120] sm:$0xff]
    %v3964 = vld [vmem:[#allocation4 + $0x128] sm:$0xff]
    %3965 = vst [vmem:[#allocation5 + $0x120] sm:$0xff] %v3963
    %3966 = vst [vmem:[#allocation5 + $0x128] sm:$0xff] %v3964
    %v3967 = vld [vmem:[#allocation4 + $0xd0] sm:$0xff]
    %v3968 = vld [vmem:[#allocation4 + $0xd8] sm:$0xff]
    %3969 = vst [vmem:[#allocation5 + $0x130] sm:$0xff] %v3967
    %3970 = vst [vmem:[#allocation5 + $0x138] sm:$0xff] %v3968
    %v3971 = vld [vmem:[#allocation4 + $0x140] sm:$0xff]
    %v3972 = vld [vmem:[#allocation4 + $0x148] sm:$0xff]
    %3973 = vst [vmem:[#allocation5 + $0x140] sm:$0xff] %v3971
    %3974 = vst [vmem:[#allocation5 + $0x148] sm:$0xff] %v3972
    %v3975 = vld [vmem:[#allocation4 + $0xb0] sm:$0xff]
    %v3976 = vld [vmem:[#allocation4 + $0xb8] sm:$0xff]
    %3977 = vst [vmem:[#allocation5 + $0x150] sm:$0xff] %v3975
    %3978 = vst [vmem:[#allocation5 + $0x158] sm:$0xff] %v3976
    %v3979 = vld [vmem:[#allocation4 + $0x160] sm:$0xff]
    %v3980 = vld [vmem:[#allocation4 + $0x168] sm:$0xff]
    %3981 = vst [vmem:[#allocation5 + $0x160] sm:$0xff] %v3979
    %3982 = vst [vmem:[#allocation5 + $0x168] sm:$0xff] %v3980
    %v3983 = vld [vmem:[#allocation4 + $0x90] sm:$0xff]
    %v3984 = vld [vmem:[#allocation4 + $0x98] sm:$0xff]
    %3985 = vst [vmem:[#allocation5 + $0x170] sm:$0xff] %v3983
    %3986 = vst [vmem:[#allocation5 + $0x178] sm:$0xff] %v3984
    %v3987 = vld [vmem:[#allocation4 + $0x180] sm:$0xff]
    %v3988 = vld [vmem:[#allocation4 + $0x188] sm:$0xff]
    %3989 = vst [vmem:[#allocation5 + $0x180] sm:$0xff] %v3987
    %3990 = vst [vmem:[#allocation5 + $0x188] sm:$0xff] %v3988
    %v3991 = vld [vmem:[#allocation4 + $0x70] sm:$0xff]
    %v3992 = vld [vmem:[#allocation4 + $0x78] sm:$0xff]
    %3993 = vst [vmem:[#allocation5 + $0x190] sm:$0xff] %v3991
    %3994 = vst [vmem:[#allocation5 + $0x198] sm:$0xff] %v3992
    %v3995 = vld [vmem:[#allocation4 + $0x1a0] sm:$0xff]
    %v3996 = vld [vmem:[#allocation4 + $0x1a8] sm:$0xff]
    %3997 = vst [vmem:[#allocation5 + $0x1a0] sm:$0xff] %v3995
    %3998 = vst [vmem:[#allocation5 + $0x1a8] sm:$0xff] %v3996
    %v3999 = vld [vmem:[#allocation4 + $0x50] sm:$0xff]
    %v4000 = vld [vmem:[#allocation4 + $0x58] sm:$0xff]
    %4001 = vst [vmem:[#allocation5 + $0x1b0] sm:$0xff] %v3999
    %4002 = vst [vmem:[#allocation5 + $0x1b8] sm:$0xff] %v4000
    %v4003 = vld [vmem:[#allocation4 + $0x1c0] sm:$0xff]
    %v4004 = vld [vmem:[#allocation4 + $0x1c8] sm:$0xff]
    %4005 = vst [vmem:[#allocation5 + $0x1c0] sm:$0xff] %v4003
    %4006 = vst [vmem:[#allocation5 + $0x1c8] sm:$0xff] %v4004
    %v4007 = vld [vmem:[#allocation4 + $0x30] sm:$0xff]
    %v4008 = vld [vmem:[#allocation4 + $0x38] sm:$0xff]
    %4009 = vst [vmem:[#allocation5 + $0x1d0] sm:$0xff] %v4007
    %4010 = vst [vmem:[#allocation5 + $0x1d8] sm:$0xff] %v4008
    %v4011 = vld [vmem:[#allocation4 + $0x1e0] sm:$0xff]
    %v4012 = vld [vmem:[#allocation4 + $0x1e8] sm:$0xff]
    %4013 = vst [vmem:[#allocation5 + $0x1e0] sm:$0xff] %v4011
    %4014 = vst [vmem:[#allocation5 + $0x1e8] sm:$0xff] %v4012
    %v4015 = vld [vmem:[#allocation4 + $0x10] sm:$0xff]
    %v4016 = vld [vmem:[#allocation4 + $0x18] sm:$0xff]
    %4017 = vst [vmem:[#allocation5 + $0x1f0] sm:$0xff] %v4015
    %4018 = vst [vmem:[#allocation5 + $0x1f8] sm:$0xff] %v4016
    %v4019 = vld [vmem:[#allocation5] sm:$0xff]
    %v4020 = vld [vmem:[#allocation5 + $0x8] sm:$0xff]
    %v4021 = vld [vmem:[#allocation5 + $0x10] sm:$0xff]
    %v4022 = vld [vmem:[#allocation5 + $0x18] sm:$0xff]
    %4023 = vmatprep.subr.mxu0 %v832
    %4024 = vmatpush1.msra.mxu0 %v831
    %4025 = vmatprep.subr.mxu0 %v834
    %4026 = vmatpush1.msra.mxu0 %v833
    %4027 = vmatprep.subr.mxu0 %v836
    %4028 = vmatpush1.msra.mxu0 %v835
    %4029 = vmatprep.subr.mxu0 %v838
    %4030 = vmatpush1.msra.mxu0 %v837
    %4031 = vmatprep.subr.mxu0 %v840
    %4032 = vmatpush1.msra.mxu0 %v839
    %4033 = vmatprep.subr.mxu0 %v842
    %4034 = vmatpush1.msra.mxu0 %v841
    %4035 = vmatprep.subr.mxu0 %v844
    %4036 = vmatpush1.msra.mxu0 %v843
    %4037 = vmatprep.subr.mxu0 %v846
    %4038 = vmatpush1.msra.mxu0 %v845
    %4039 = vmatprep.subr.mxu0 %v848
    %4040 = vmatpush1.msra.mxu0 %v847
    %4041 = vmatprep.subr.mxu0 %v850
    %4042 = vmatpush1.msra.mxu0 %v849
    %4043 = vmatprep.subr.mxu0 %v852
    %4044 = vmatpush1.msra.mxu0 %v851
    %4045 = vmatprep.subr.mxu0 %v854
    %4046 = vmatpush1.msra.mxu0 %v853
    %4047 = vmatprep.subr.mxu0 %v856
    %4048 = vmatpush1.msra.mxu0 %v855
    %4049 = vmatprep.subr.mxu0 %v858
    %4050 = vmatpush1.msra.mxu0 %v857
    %4051 = vmatprep.subr.mxu0 %v860
    %4052 = vmatpush1.msra.mxu0 %v859
    %4053 = vmatprep.subr.mxu0 %v862
    %4054 = vmatpush1.msra.mxu0 %v861
    %4055 = vmatprep.subr.mxu0 0.0
    %4056 = vmatpush1.msra.mxu0 0.0
    %4057 = vmatprep.subr.mxu0 0.0
    %4058 = vmatpush1.msra.mxu0 0.0
    %4059 = vmatprep.subr.mxu0 0.0
    %4060 = vmatpush1.msra.mxu0 0.0
    %4061 = vmatprep.subr.mxu0 0.0
    %4062 = vmatpush1.msra.mxu0 0.0
    %4063 = vmatprep.subr.mxu0 0.0
    %4064 = vmatpush1.msra.mxu0 0.0
    %4065 = vmatprep.subr.mxu0 0.0
    %4066 = vmatpush1.msra.mxu0 0.0
    %4067 = vmatprep.subr.mxu0 0.0
    %4068 = vmatpush1.msra.mxu0 0.0
    %4069 = vmatprep.subr.mxu0 0.0
    %4070 = vmatpush1.msra.mxu0 0.0
    %4071 = vmatprep.subr.mxu0 0.0
    %4072 = vmatpush1.msra.mxu0 0.0
    %4073 = vmatprep.subr.mxu0 0.0
    %4074 = vmatpush1.msra.mxu0 0.0
    %4075 = vmatprep.subr.mxu0 0.0
    %4076 = vmatpush1.msra.mxu0 0.0
    %4077 = vmatprep.subr.mxu0 0.0
    %4078 = vmatpush1.msra.mxu0 0.0
    %4079 = vmatprep.subr.mxu0 0.0
    %4080 = vmatpush1.msra.mxu0 0.0
    %4081 = vmatprep.subr.mxu0 0.0
    %4082 = vmatpush1.msra.mxu0 0.0
    %4083 = vmatprep.subr.mxu0 0.0
    %4084 = vmatpush1.msra.mxu0 0.0
    %4085 = vmatprep.subr.mxu0 0.0
    %4086 = vmatpush1.msra.mxu0 0.0
    %4087 = vmatprep.mubr.f32.mxu0 0.0
    %4088 = vmatmul.mubr.f32.gmra.mrb[0].mxu0 0.0
    %v4089 = vpop.f32.mrb[0].mxu0
    %v4090 = vadd.f32 0.0, %v4089
    %v4091 = vpop.f32.mrb[0].mxu0
    %v4092 = vadd.f32 0.0, %v4091
    %4093 = vmatprep.mubr.f32.mxu0 0.0
    %4094 = vmatmul.mubr.f32.gmra.mrb[0].mxu0 0.0
    %v4095 = vpop.f32.mrb[0].mxu0
    %v4096 = vadd.f32 0.0, %v4095
    %v4097 = vpop.f32.mrb[0].mxu0
    %v4098 = vadd.f32 0.0, %v4097
    %4099 = vdwg.mxu0
    %v4100 = vadd.f32 %v4019, %v4090
    %v4101 = vadd.f32 %v4020, %v4092
    %v4102 = vadd.f32 %v4021, %v4096
    %v4103 = vadd.f32 %v4022, %v4098
    %v4104 = vmul.f32 %v4100, 0.5
    %v4105 = vmul.f32 %v4101, 0.5
    %v4106 = vmul.f32 %v4102, 0.5
    %v4107 = vmul.f32 %v4103, 0.5
    %v4108 = vtanh.pop %v4104
    %v4109 = vtanh.pop %v4105
    %v4110 = vtanh.pop %v4106
    %v4111 = vtanh.pop %v4107
    %v4112 = vmul.f32 %v4108, 0.5
    %v4113 = vmul.f32 %v4109, 0.5
    %v4114 = vmul.f32 %v4110, 0.5
    %v4115 = vmul.f32 %v4111, 0.5
    %v4116 = vadd.f32 %v4112, 0.5
    %v4117 = vadd.f32 %v4113, 0.5
    %v4118 = vadd.f32 %v4114, 0.5
    %v4119 = vadd.f32 %v4115, 0.5
    %v4120 = vtanh.pop %v4101
    %v4121 = vtanh.pop %v4103
    %v4122 = vmul.f32 %v4116, 0.0
    %v4123 = vmul.f32 %v4118, 0.0
    %4126 = vrot.lane.b32.xlu0 %v4120, 64
    %v4127 = vpop.permute.xlu0 %4126
    %4128 = vrot.lane.b32.xlu0 %v4121, 64
    %v4129 = vpop.permute.xlu0 %4128
    %v4132 = vmul.f32 %v4116, %v4127
    %v4133 = vmul.f32 %v4118, %v4129
    %4136 = vrot.lane.b32.xlu0 %v4132, 64
    %v4137 = vpop.permute.xlu0 %4136
    %4138 = vrot.lane.b32.xlu0 %v4133, 64
    %v4139 = vpop.permute.xlu0 %4138
    %v4142 = vadd.f32 %v4122, %v4137
    %v4143 = vadd.f32 %v4123, %v4139
    %v4144 = vtanh.pop %v4142
    %v4145 = vtanh.pop %v4143
    %4148 = vrot.lane.b32.xlu0 %v4144, 64
    %v4149 = vpop.permute.xlu0 %4148
    %4150 = vrot.lane.b32.xlu0 %v4145, 64
    %v4151 = vpop.permute.xlu0 %4150
    %v4154 = vmul.f32 %v4117, %v4149
    %v4155 = vmul.f32 %v4119, %v4151
    %v4156 = vmul.f32 %v4154, %v870
    %v4157 = vmul.f32 %v4155, %v871
    %v4158 = vmul.f32 %v4154, %v872
    %v4159 = vmul.f32 %v4155, %v873
    %4162 = vrot.lane.b32.xlu0 %v4158, 64
    %v4163 = vpop.permute.xlu0 %4162
    %4164 = vrot.lane.b32.xlu0 %v4159, 64
    %v4165 = vpop.permute.xlu0 %4164
    %v4168 = vsel %vm1039, %v4156, %v4163
    %v4169 = vsel %vm1039, %v4157, %v4165
    %v4170 = vadd.f32 %v4168, 0.0
    %v4171 = vadd.f32 %v4169, 0.0
    %v4172 = vld [vmem:[#allocation5 + $0x20] sm:$0xff]
    %v4173 = vld [vmem:[#allocation5 + $0x28] sm:$0xff]
    %v4174 = vld [vmem:[#allocation5 + $0x30] sm:$0xff]
    %v4175 = vld [vmem:[#allocation5 + $0x38] sm:$0xff]
    %4176 = vmatprep.subr.mxu0 %v832
    %4177 = vmatpush1.msra.mxu0 %v831
    %4178 = vmatprep.subr.mxu0 %v834
    %4179 = vmatpush1.msra.mxu0 %v833
    %4180 = vmatprep.subr.mxu0 %v836
    %4181 = vmatpush1.msra.mxu0 %v835
    %4182 = vmatprep.subr.mxu0 %v838
    %4183 = vmatpush1.msra.mxu0 %v837
    %4184 = vmatprep.subr.mxu0 %v840
    %4185 = vmatpush1.msra.mxu0 %v839
    %4186 = vmatprep.subr.mxu0 %v842
    %4187 = vmatpush1.msra.mxu0 %v841
    %4188 = vmatprep.subr.mxu0 %v844
    %4189 = vmatpush1.msra.mxu0 %v843
    %4190 = vmatprep.subr.mxu0 %v846
    %4191 = vmatpush1.msra.mxu0 %v845
    %4192 = vmatprep.subr.mxu0 %v848
    %4193 = vmatpush1.msra.mxu0 %v847
    %4194 = vmatprep.subr.mxu0 %v850
    %4195 = vmatpush1.msra.mxu0 %v849
    %4196 = vmatprep.subr.mxu0 %v852
    %4197 = vmatpush1.msra.mxu0 %v851
    %4198 = vmatprep.subr.mxu0 %v854
    %4199 = vmatpush1.msra.mxu0 %v853
    %4200 = vmatprep.subr.mxu0 %v856
    %4201 = vmatpush1.msra.mxu0 %v855
    %4202 = vmatprep.subr.mxu0 %v858
    %4203 = vmatpush1.msra.mxu0 %v857
    %4204 = vmatprep.subr.mxu0 %v860
    %4205 = vmatpush1.msra.mxu0 %v859
    %4206 = vmatprep.subr.mxu0 %v862
    %4207 = vmatpush1.msra.mxu0 %v861
    %4208 = vmatprep.subr.mxu0 0.0
    %4209 = vmatpush1.msra.mxu0 0.0
    %4210 = vmatprep.subr.mxu0 0.0
    %4211 = vmatpush1.msra.mxu0 0.0
    %4212 = vmatprep.subr.mxu0 0.0
    %4213 = vmatpush1.msra.mxu0 0.0
    %4214 = vmatprep.subr.mxu0 0.0
    %4215 = vmatpush1.msra.mxu0 0.0
    %4216 = vmatprep.subr.mxu0 0.0
    %4217 = vmatpush1.msra.mxu0 0.0
    %4218 = vmatprep.subr.mxu0 0.0
    %4219 = vmatpush1.msra.mxu0 0.0
    %4220 = vmatprep.subr.mxu0 0.0
    %4221 = vmatpush1.msra.mxu0 0.0
    %4222 = vmatprep.subr.mxu0 0.0
    %4223 = vmatpush1.msra.mxu0 0.0
    %4224 = vmatprep.subr.mxu0 0.0
    %4225 = vmatpush1.msra.mxu0 0.0
    %4226 = vmatprep.subr.mxu0 0.0
    %4227 = vmatpush1.msra.mxu0 0.0
    %4228 = vmatprep.subr.mxu0 0.0
    %4229 = vmatpush1.msra.mxu0 0.0
    %4230 = vmatprep.subr.mxu0 0.0
    %4231 = vmatpush1.msra.mxu0 0.0
    %4232 = vmatprep.subr.mxu0 0.0
    %4233 = vmatpush1.msra.mxu0 0.0
    %4234 = vmatprep.subr.mxu0 0.0
    %4235 = vmatpush1.msra.mxu0 0.0
    %4236 = vmatprep.subr.mxu0 0.0
    %4237 = vmatpush1.msra.mxu0 0.0
    %4238 = vmatprep.subr.mxu0 0.0
    %4239 = vmatpush1.msra.mxu0 0.0
    %4240 = vmatprep.mubr.f32.mxu0 0.0
    %4241 = vmatmul.mubr.f32.gmra.mrb[0].mxu0 %v4168
    %v4242 = vpop.f32.mrb[0].mxu0
    %v4243 = vadd.f32 0.0, %v4242
    %v4244 = vpop.f32.mrb[0].mxu0
    %v4245 = vadd.f32 0.0, %v4244
    %4246 = vmatprep.mubr.f32.mxu0 0.0
    %4247 = vmatmul.mubr.f32.gmra.mrb[0].mxu0 %v4169
    %v4248 = vpop.f32.mrb[0].mxu0
    %v4249 = vadd.f32 0.0, %v4248
    %v4250 = vpop.f32.mrb[0].mxu0
    %v4251 = vadd.f32 0.0, %v4250
    %4252 = vdwg.mxu0
    %v4253 = vadd.f32 %v4172, %v4243
    %v4254 = vadd.f32 %v4173, %v4245
    %v4255 = vadd.f32 %v4174, %v4249
    %v4256 = vadd.f32 %v4175, %v4251
    %v4257 = vmul.f32 %v4253, 0.5
    %v4258 = vmul.f32 %v4254, 0.5
    %v4259 = vmul.f32 %v4255, 0.5
    %v4260 = vmul.f32 %v4256, 0.5
    %v4261 = vtanh.pop %v4257
    %v4262 = vtanh.pop %v4258
    %v4263 = vtanh.pop %v4259
    %v4264 = vtanh.pop %v4260
    %v4265 = vmul.f32 %v4261, 0.5
    %v4266 = vmul.f32 %v4262, 0.5
    %v4267 = vmul.f32 %v4263, 0.5
    %v4268 = vmul.f32 %v4264, 0.5
    %v4269 = vadd.f32 %v4265, 0.5
    %v4270 = vadd.f32 %v4266, 0.5
    %v4271 = vadd.f32 %v4267, 0.5
    %v4272 = vadd.f32 %v4268, 0.5
    %v4273 = vtanh.pop %v4254
    %v4274 = vtanh.pop %v4256
    %v4275 = vmul.f32 %v4269, %v4142
    %v4276 = vmul.f32 %v4271, %v4143
    %4279 = vrot.lane.b32.xlu0 %v4273, 64
    %v4280 = vpop.permute.xlu0 %4279
    %4281 = vrot.lane.b32.xlu0 %v4274, 64
    %v4282 = vpop.permute.xlu0 %4281
    %v4285 = vmul.f32 %v4269, %v4280
    %v4286 = vmul.f32 %v4271, %v4282
    %4289 = vrot.lane.b32.xlu0 %v4285, 64
    %v4290 = vpop.permute.xlu0 %4289
    %4291 = vrot.lane.b32.xlu0 %v4286, 64
    %v4292 = vpop.permute.xlu0 %4291
    %v4295 = vadd.f32 %v4275, %v4290
    %v4296 = vadd.f32 %v4276, %v4292
    %v4297 = vtanh.pop %v4295
    %v4298 = vtanh.pop %v4296
    %4301 = vrot.lane.b32.xlu0 %v4297, 64
    %v4302 = vpop.permute.xlu0 %4301
    %4303 = vrot.lane.b32.xlu0 %v4298, 64
    %v4304 = vpop.permute.xlu0 %4303
    %v4307 = vmul.f32 %v4270, %v4302
    %v4308 = vmul.f32 %v4272, %v4304
    %v4309 = vmul.f32 %v4307, %v870
    %v4310 = vmul.f32 %v4308, %v871
    %v4311 = vmul.f32 %v4307, %v872
    %v4312 = vmul.f32 %v4308, %v873
    %4315 = vrot.lane.b32.xlu0 %v4311, 64
    %v4316 = vpop.permute.xlu0 %4315
    %4317 = vrot.lane.b32.xlu0 %v4312, 64
    %v4318 = vpop.permute.xlu0 %4317
    %v4321 = vsel %vm1039, %v4309, %v4316
    %v4322 = vsel %vm1039, %v4310, %v4318
    %v4323 = vadd.f32 %v4170, %v4321
    %v4324 = vadd.f32 %v4171, %v4322
    %v4325 = vmax.f32 %v4168, %v4321
    %v4326 = vmax.f32 %v4169, %v4322
    %v4327 = vld [vmem:[#allocation5 + $0x40] sm:$0xff]
    %v4328 = vld [vmem:[#allocation5 + $0x48] sm:$0xff]
    %v4329 = vld [vmem:[#allocation5 + $0x50] sm:$0xff]
    %v4330 = vld [vmem:[#allocation5 + $0x58] sm:$0xff]
    %4331 = vmatprep.subr.mxu0 %v832
    %4332 = vmatpush1.msra.mxu0 %v831
    %4333 = vmatprep.subr.mxu0 %v834
    %4334 = vmatpush1.msra.mxu0 %v833
    %4335 = vmatprep.subr.mxu0 %v836
    %4336 = vmatpush1.msra.mxu0 %v835
    %4337 = vmatprep.subr.mxu0 %v838
    %4338 = vmatpush1.msra.mxu0 %v837
    %4339 = vmatprep.subr.mxu0 %v840
    %4340 = vmatpush1.msra.mxu0 %v839
    %4341 = vmatprep.subr.mxu0 %v842
    %4342 = vmatpush1.msra.mxu0 %v841
    %4343 = vmatprep.subr.mxu0 %v844
    %4344 = vmatpush1.msra.mxu0 %v843
    %4345 = vmatprep.subr.mxu0 %v846
    %4346 = vmatpush1.msra.mxu0 %v845
    %4347 = vmatprep.subr.mxu0 %v848
    %4348 = vmatpush1.msra.mxu0 %v847
    %4349 = vmatprep.subr.mxu0 %v850
    %4350 = vmatpush1.msra.mxu0 %v849
    %4351 = vmatprep.subr.mxu0 %v852
    %4352 = vmatpush1.msra.mxu0 %v851
    %4353 = vmatprep.subr.mxu0 %v854
    %4354 = vmatpush1.msra.mxu0 %v853
    %4355 = vmatprep.subr.mxu0 %v856
    %4356 = vmatpush1.msra.mxu0 %v855
    %4357 = vmatprep.subr.mxu0 %v858
    %4358 = vmatpush1.msra.mxu0 %v857
    %4359 = vmatprep.subr.mxu0 %v860
    %4360 = vmatpush1.msra.mxu0 %v859
    %4361 = vmatprep.subr.mxu0 %v862
    %4362 = vmatpush1.msra.mxu0 %v861
    %4363 = vmatprep.subr.mxu0 0.0
    %4364 = vmatpush1.msra.mxu0 0.0
    %4365 = vmatprep.subr.mxu0 0.0
    %4366 = vmatpush1.msra.mxu0 0.0
    %4367 = vmatprep.subr.mxu0 0.0
    %4368 = vmatpush1.msra.mxu0 0.0
    %4369 = vmatprep.subr.mxu0 0.0
    %4370 = vmatpush1.msra.mxu0 0.0
    %4371 = vmatprep.subr.mxu0 0.0
    %4372 = vmatpush1.msra.mxu0 0.0
    %4373 = vmatprep.subr.mxu0 0.0
    %4374 = vmatpush1.msra.mxu0 0.0
    %4375 = vmatprep.subr.mxu0 0.0
    %4376 = vmatpush1.msra.mxu0 0.0
    %4377 = vmatprep.subr.mxu0 0.0
    %4378 = vmatpush1.msra.mxu0 0.0
    %4379 = vmatprep.subr.mxu0 0.0
    %4380 = vmatpush1.msra.mxu0 0.0
    %4381 = vmatprep.subr.mxu0 0.0
    %4382 = vmatpush1.msra.mxu0 0.0
    %4383 = vmatprep.subr.mxu0 0.0
    %4384 = vmatpush1.msra.mxu0 0.0
    %4385 = vmatprep.subr.mxu0 0.0
    %4386 = vmatpush1.msra.mxu0 0.0
    %4387 = vmatprep.subr.mxu0 0.0
    %4388 = vmatpush1.msra.mxu0 0.0
    %4389 = vmatprep.subr.mxu0 0.0
    %4390 = vmatpush1.msra.mxu0 0.0
    %4391 = vmatprep.subr.mxu0 0.0
    %4392 = vmatpush1.msra.mxu0 0.0
    %4393 = vmatprep.subr.mxu0 0.0
    %4394 = vmatpush1.msra.mxu0 0.0
    %4395 = vmatprep.mubr.f32.mxu0 0.0
    %4396 = vmatmul.mubr.f32.gmra.mrb[0].mxu0 %v4321
    %v4397 = vpop.f32.mrb[0].mxu0
    %v4398 = vadd.f32 0.0, %v4397
    %v4399 = vpop.f32.mrb[0].mxu0
    %v4400 = vadd.f32 0.0, %v4399
    %4401 = vmatprep.mubr.f32.mxu0 0.0
    %4402 = vmatmul.mubr.f32.gmra.mrb[0].mxu0 %v4322
    %v4403 = vpop.f32.mrb[0].mxu0
    %v4404 = vadd.f32 0.0, %v4403
    %v4405 = vpop.f32.mrb[0].mxu0
    %v4406 = vadd.f32 0.0, %v4405
    %4407 = vdwg.mxu0
    %v4408 = vadd.f32 %v4327, %v4398
    %v4409 = vadd.f32 %v4328, %v4400
    %v4410 = vadd.f32 %v4329, %v4404
    %v4411 = vadd.f32 %v4330, %v4406
    %v4412 = vmul.f32 %v4408, 0.5
    %v4413 = vmul.f32 %v4409, 0.5
    %v4414 = vmul.f32 %v4410, 0.5
    %v4415 = vmul.f32 %v4411, 0.5
    %v4416 = vtanh.pop %v4412
    %v4417 = vtanh.pop %v4413
    %v4418 = vtanh.pop %v4414
    %v4419 = vtanh.pop %v4415
    %v4420 = vmul.f32 %v4416, 0.5
    %v4421 = vmul.f32 %v4417, 0.5
    %v4422 = vmul.f32 %v4418, 0.5
    %v4423 = vmul.f32 %v4419, 0.5
    %v4424 = vadd.f32 %v4420, 0.5
    %v4425 = vadd.f32 %v4421, 0.5
    %v4426 = vadd.f32 %v4422, 0.5
    %v4427 = vadd.f32 %v4423, 0.5
    %v4428 = vtanh.pop %v4409
    %v4429 = vtanh.pop %v4411
    %v4430 = vmul.f32 %v4424, %v4295
    %v4431 = vmul.f32 %v4426, %v4296
    %4434 = vrot.lane.b32.xlu0 %v4428, 64
    %v4435 = vpop.permute.xlu0 %4434
    %4436 = vrot.lane.b32.xlu0 %v4429, 64
    %v4437 = vpop.permute.xlu0 %4436
    %v4440 = vmul.f32 %v4424, %v4435
    %v4441 = vmul.f32 %v4426, %v4437
    %4444 = vrot.lane.b32.xlu0 %v4440, 64
    %v4445 = vpop.permute.xlu0 %4444
    %4446 = vrot.lane.b32.xlu0 %v4441, 64
    %v4447 = vpop.permute.xlu0 %4446
    %v4450 = vadd.f32 %v4430, %v4445
    %v4451 = vadd.f32 %v4431, %v4447
    %v4452 = vtanh.pop %v4450
    %v4453 = vtanh.pop %v4451
    %4456 = vrot.lane.b32.xlu0 %v4452, 64
    %v4457 = vpop.permute.xlu0 %4456
    %4458 = vrot.lane.b32.xlu0 %v4453, 64
    %v4459 = vpop.permute.xlu0 %4458
    %v4462 = vmul.f32 %v4425, %v4457
    %v4463 = vmul.f32 %v4427, %v4459
    %v4464 = vmul.f32 %v4462, %v870
    %v4465 = vmul.f32 %v4463, %v871
    %v4466 = vmul.f32 %v4462, %v872
    %v4467 = vmul.f32 %v4463, %v873
    %4470 = vrot.lane.b32.xlu0 %v4466, 64
    %v4471 = vpop.permute.xlu0 %4470
    %4472 = vrot.lane.b32.xlu0 %v4467, 64
    %v4473 = vpop.permute.xlu0 %4472
    %v4476 = vsel %vm1039, %v4464, %v4471
    %v4477 = vsel %vm1039, %v4465, %v4473
    %v4478 = vadd.f32 %v4323, %v4476
    %v4479 = vadd.f32 %v4324, %v4477
    %v4480 = vmax.f32 %v4325, %v4476
    %v4481 = vmax.f32 %v4326, %v4477
    %v4482 = vld [vmem:[#allocation5 + $0x60] sm:$0xff]
    %v4483 = vld [vmem:[#allocation5 + $0x68] sm:$0xff]
    %v4484 = vld [vmem:[#allocation5 + $0x70] sm:$0xff]
    %v4485 = vld [vmem:[#allocation5 + $0x78] sm:$0xff]
    %4486 = vmatprep.subr.mxu0 %v832
    %4487 = vmatpush1.msra.mxu0 %v831
    %4488 = vmatprep.subr.mxu0 %v834
    %4489 = vmatpush1.msra.mxu0 %v833
    %4490 = vmatprep.subr.mxu0 %v836
    %4491 = vmatpush1.msra.mxu0 %v835
    %4492 = vmatprep.subr.mxu0 %v838
    %4493 = vmatpush1.msra.mxu0 %v837
    %4494 = vmatprep.subr.mxu0 %v840
    %4495 = vmatpush1.msra.mxu0 %v839
    %4496 = vmatprep.subr.mxu0 %v842
    %4497 = vmatpush1.msra.mxu0 %v841
    %4498 = vmatprep.subr.mxu0 %v844
    %4499 = vmatpush1.msra.mxu0 %v843
    %4500 = vmatprep.subr.mxu0 %v846
    %4501 = vmatpush1.msra.mxu0 %v845
    %4502 = vmatprep.subr.mxu0 %v848
    %4503 = vmatpush1.msra.mxu0 %v847
    %4504 = vmatprep.subr.mxu0 %v850
    %4505 = vmatpush1.msra.mxu0 %v849
    %4506 = vmatprep.subr.mxu0 %v852
    %4507 = vmatpush1.msra.mxu0 %v851
    %4508 = vmatprep.subr.mxu0 %v854
    %4509 = vmatpush1.msra.mxu0 %v853
    %4510 = vmatprep.subr.mxu0 %v856
    %4511 = vmatpush1.msra.mxu0 %v855
    %4512 = vmatprep.subr.mxu0 %v858
    %4513 = vmatpush1.msra.mxu0 %v857
    %4514 = vmatprep.subr.mxu0 %v860
    %4515 = vmatpush1.msra.mxu0 %v859
    %4516 = vmatprep.subr.mxu0 %v862
    %4517 = vmatpush1.msra.mxu0 %v861
    %4518 = vmatprep.subr.mxu0 0.0
    %4519 = vmatpush1.msra.mxu0 0.0
    %4520 = vmatprep.subr.mxu0 0.0
    %4521 = vmatpush1.msra.mxu0 0.0
    %4522 = vmatprep.subr.mxu0 0.0
    %4523 = vmatpush1.msra.mxu0 0.0
    %4524 = vmatprep.subr.mxu0 0.0
    %4525 = vmatpush1.msra.mxu0 0.0
    %4526 = vmatprep.subr.mxu0 0.0
    %4527 = vmatpush1.msra.mxu0 0.0
    %4528 = vmatprep.subr.mxu0 0.0
    %4529 = vmatpush1.msra.mxu0 0.0
    %4530 = vmatprep.subr.mxu0 0.0
    %4531 = vmatpush1.msra.mxu0 0.0
    %4532 = vmatprep.subr.mxu0 0.0
    %4533 = vmatpush1.msra.mxu0 0.0
    %4534 = vmatprep.subr.mxu0 0.0
    %4535 = vmatpush1.msra.mxu0 0.0
    %4536 = vmatprep.subr.mxu0 0.0
    %4537 = vmatpush1.msra.mxu0 0.0
    %4538 = vmatprep.subr.mxu0 0.0
    %4539 = vmatpush1.msra.mxu0 0.0
    %4540 = vmatprep.subr.mxu0 0.0
    %4541 = vmatpush1.msra.mxu0 0.0
    %4542 = vmatprep.subr.mxu0 0.0
    %4543 = vmatpush1.msra.mxu0 0.0
    %4544 = vmatprep.subr.mxu0 0.0
    %4545 = vmatpush1.msra.mxu0 0.0
    %4546 = vmatprep.subr.mxu0 0.0
    %4547 = vmatpush1.msra.mxu0 0.0
    %4548 = vmatprep.subr.mxu0 0.0
    %4549 = vmatpush1.msra.mxu0 0.0
    %4550 = vmatprep.mubr.f32.mxu0 0.0
    %4551 = vmatmul.mubr.f32.gmra.mrb[0].mxu0 %v4476
    %v4552 = vpop.f32.mrb[0].mxu0
    %v4553 = vadd.f32 0.0, %v4552
    %v4554 = vpop.f32.mrb[0].mxu0
    %v4555 = vadd.f32 0.0, %v4554
    %4556 = vmatprep.mubr.f32.mxu0 0.0
    %4557 = vmatmul.mubr.f32.gmra.mrb[0].mxu0 %v4477
    %v4558 = vpop.f32.mrb[0].mxu0
    %v4559 = vadd.f32 0.0, %v4558
    %v4560 = vpop.f32.mrb[0].mxu0
    %v4561 = vadd.f32 0.0, %v4560
    %4562 = vdwg.mxu0
    %v4563 = vadd.f32 %v4482, %v4553
    %v4564 = vadd.f32 %v4483, %v4555
    %v4565 = vadd.f32 %v4484, %v4559
    %v4566 = vadd.f32 %v4485, %v4561
    %v4567 = vmul.f32 %v4563, 0.5
    %v4568 = vmul.f32 %v4564, 0.5
    %v4569 = vmul.f32 %v4565, 0.5
    %v4570 = vmul.f32 %v4566, 0.5
    %v4571 = vtanh.pop %v4567
    %v4572 = vtanh.pop %v4568
    %v4573 = vtanh.pop %v4569
    %v4574 = vtanh.pop %v4570
    %v4575 = vmul.f32 %v4571, 0.5
    %v4576 = vmul.f32 %v4572, 0.5
    %v4577 = vmul.f32 %v4573, 0.5
    %v4578 = vmul.f32 %v4574, 0.5
    %v4579 = vadd.f32 %v4575, 0.5
    %v4580 = vadd.f32 %v4576, 0.5
    %v4581 = vadd.f32 %v4577, 0.5
    %v4582 = vadd.f32 %v4578, 0.5
    %v4583 = vtanh.pop %v4564
    %v4584 = vtanh.pop %v4566
    %v4585 = vmul.f32 %v4579, %v4450
    %v4586 = vmul.f32 %v4581, %v4451
    %4589 = vrot.lane.b32.xlu0 %v4583, 64
    %v4590 = vpop.permute.xlu0 %4589
    %4591 = vrot.lane.b32.xlu0 %v4584, 64
    %v4592 = vpop.permute.xlu0 %4591
    %v4595 = vmul.f32 %v4579, %v4590
    %v4596 = vmul.f32 %v4581, %v4592
    %4599 = vrot.lane.b32.xlu0 %v4595, 64
    %v4600 = vpop.permute.xlu0 %4599
    %4601 = vrot.lane.b32.xlu0 %v4596, 64
    %v4602 = vpop.permute.xlu0 %4601
    %v4605 = vadd.f32 %v4585, %v4600
    %v4606 = vadd.f32 %v4586, %v4602
    %v4607 = vtanh.pop %v4605
    %v4608 = vtanh.pop %v4606
    %4611 = vrot.lane.b32.xlu0 %v4607, 64
    %v4612 = vpop.permute.xlu0 %4611
    %4613 = vrot.lane.b32.xlu0 %v4608, 64
    %v4614 = vpop.permute.xlu0 %4613
    %v4617 = vmul.f32 %v4580, %v4612
    %v4618 = vmul.f32 %v4582, %v4614
    %v4619 = vmul.f32 %v4617, %v870
    %v4620 = vmul.f32 %v4618, %v871
    %v4621 = vmul.f32 %v4617, %v872
    %v4622 = vmul.f32 %v4618, %v873
    %4625 = vrot.lane.b32.xlu0 %v4621, 64
    %v4626 = vpop.permute.xlu0 %4625
    %4627 = vrot.lane.b32.xlu0 %v4622, 64
    %v4628 = vpop.permute.xlu0 %4627
    %v4631 = vsel %vm1039, %v4619, %v4626
    %v4632 = vsel %vm1039, %v4620, %v4628
    %v4633 = vadd.f32 %v4478, %v4631
    %v4634 = vadd.f32 %v4479, %v4632
    %v4635 = vmax.f32 %v4480, %v4631
    %v4636 = vmax.f32 %v4481, %v4632
    %v4637 = vld [vmem:[#allocation5 + $0x80] sm:$0xff]
    %v4638 = vld [vmem:[#allocation5 + $0x88] sm:$0xff]
    %v4639 = vld [vmem:[#allocation5 + $0x90] sm:$0xff]
    %v4640 = vld [vmem:[#allocation5 + $0x98] sm:$0xff]
    %4641 = vmatprep.subr.mxu0 %v832
    %4642 = vmatpush1.msra.mxu0 %v831
    %4643 = vmatprep.subr.mxu0 %v834
    %4644 = vmatpush1.msra.mxu0 %v833
    %4645 = vmatprep.subr.mxu0 %v836
    %4646 = vmatpush1.msra.mxu0 %v835
    %4647 = vmatprep.subr.mxu0 %v838
    %4648 = vmatpush1.msra.mxu0 %v837
    %4649 = vmatprep.subr.mxu0 %v840
    %4650 = vmatpush1.msra.mxu0 %v839
    %4651 = vmatprep.subr.mxu0 %v842
    %4652 = vmatpush1.msra.mxu0 %v841
    %4653 = vmatprep.subr.mxu0 %v844
    %4654 = vmatpush1.msra.mxu0 %v843
    %4655 = vmatprep.subr.mxu0 %v846
    %4656 = vmatpush1.msra.mxu0 %v845
    %4657 = vmatprep.subr.mxu0 %v848
    %4658 = vmatpush1.msra.mxu0 %v847
    %4659 = vmatprep.subr.mxu0 %v850
    %4660 = vmatpush1.msra.mxu0 %v849
    %4661 = vmatprep.subr.mxu0 %v852
    %4662 = vmatpush1.msra.mxu0 %v851
    %4663 = vmatprep.subr.mxu0 %v854
    %4664 = vmatpush1.msra.mxu0 %v853
    %4665 = vmatprep.subr.mxu0 %v856
    %4666 = vmatpush1.msra.mxu0 %v855
    %4667 = vmatprep.subr.mxu0 %v858
    %4668 = vmatpush1.msra.mxu0 %v857
    %4669 = vmatprep.subr.mxu0 %v860
    %4670 = vmatpush1.msra.mxu0 %v859
    %4671 = vmatprep.subr.mxu0 %v862
    %4672 = vmatpush1.msra.mxu0 %v861
    %4673 = vmatprep.subr.mxu0 0.0
    %4674 = vmatpush1.msra.mxu0 0.0
    %4675 = vmatprep.subr.mxu0 0.0
    %4676 = vmatpush1.msra.mxu0 0.0
    %4677 = vmatprep.subr.mxu0 0.0
    %4678 = vmatpush1.msra.mxu0 0.0
    %4679 = vmatprep.subr.mxu0 0.0
    %4680 = vmatpush1.msra.mxu0 0.0
    %4681 = vmatprep.subr.mxu0 0.0
    %4682 = vmatpush1.msra.mxu0 0.0
    %4683 = vmatprep.subr.mxu0 0.0
    %4684 = vmatpush1.msra.mxu0 0.0
    %4685 = vmatprep.subr.mxu0 0.0
    %4686 = vmatpush1.msra.mxu0 0.0
    %4687 = vmatprep.subr.mxu0 0.0
    %4688 = vmatpush1.msra.mxu0 0.0
    %4689 = vmatprep.subr.mxu0 0.0
    %4690 = vmatpush1.msra.mxu0 0.0
    %4691 = vmatprep.subr.mxu0 0.0
    %4692 = vmatpush1.msra.mxu0 0.0
    %4693 = vmatprep.subr.mxu0 0.0
    %4694 = vmatpush1.msra.mxu0 0.0
    %4695 = vmatprep.subr.mxu0 0.0
    %4696 = vmatpush1.msra.mxu0 0.0
    %4697 = vmatprep.subr.mxu0 0.0
    %4698 = vmatpush1.msra.mxu0 0.0
    %4699 = vmatprep.subr.mxu0 0.0
    %4700 = vmatpush1.msra.mxu0 0.0
    %4701 = vmatprep.subr.mxu0 0.0
    %4702 = vmatpush1.msra.mxu0 0.0
    %4703 = vmatprep.subr.mxu0 0.0
    %4704 = vmatpush1.msra.mxu0 0.0
    %4705 = vmatprep.mubr.f32.mxu0 0.0
    %4706 = vmatmul.mubr.f32.gmra.mrb[0].mxu0 %v4631
    %v4707 = vpop.f32.mrb[0].mxu0
    %v4708 = vadd.f32 0.0, %v4707
    %v4709 = vpop.f32.mrb[0].mxu0
    %v4710 = vadd.f32 0.0, %v4709
    %4711 = vmatprep.mubr.f32.mxu0 0.0
    %4712 = vmatmul.mubr.f32.gmra.mrb[0].mxu0 %v4632
    %v4713 = vpop.f32.mrb[0].mxu0
    %v4714 = vadd.f32 0.0, %v4713
    %v4715 = vpop.f32.mrb[0].mxu0
    %v4716 = vadd.f32 0.0, %v4715
    %4717 = vdwg.mxu0
    %v4718 = vadd.f32 %v4637, %v4708
    %v4719 = vadd.f32 %v4638, %v4710
    %v4720 = vadd.f32 %v4639, %v4714
    %v4721 = vadd.f32 %v4640, %v4716
    %v4722 = vmul.f32 %v4718, 0.5
    %v4723 = vmul.f32 %v4719, 0.5
    %v4724 = vmul.f32 %v4720, 0.5
    %v4725 = vmul.f32 %v4721, 0.5
    %v4726 = vtanh.pop %v4722
    %v4727 = vtanh.pop %v4723
    %v4728 = vtanh.pop %v4724
    %v4729 = vtanh.pop %v4725
    %v4730 = vmul.f32 %v4726, 0.5
    %v4731 = vmul.f32 %v4727, 0.5
    %v4732 = vmul.f32 %v4728, 0.5
    %v4733 = vmul.f32 %v4729, 0.5
    %v4734 = vadd.f32 %v4730, 0.5
    %v4735 = vadd.f32 %v4731, 0.5
    %v4736 = vadd.f32 %v4732, 0.5
    %v4737 = vadd.f32 %v4733, 0.5
    %v4738 = vtanh.pop %v4719
    %v4739 = vtanh.pop %v4721
    %v4740 = vmul.f32 %v4734, %v4605
    %v4741 = vmul.f32 %v4736, %v4606
    %4744 = vrot.lane.b32.xlu0 %v4738, 64
    %v4745 = vpop.permute.xlu0 %4744
    %4746 = vrot.lane.b32.xlu0 %v4739, 64
    %v4747 = vpop.permute.xlu0 %4746
    %v4750 = vmul.f32 %v4734, %v4745
    %v4751 = vmul.f32 %v4736, %v4747
    %4754 = vrot.lane.b32.xlu0 %v4750, 64
    %v4755 = vpop.permute.xlu0 %4754
    %4756 = vrot.lane.b32.xlu0 %v4751, 64
    %v4757 = vpop.permute.xlu0 %4756
    %v4760 = vadd.f32 %v4740, %v4755
    %v4761 = vadd.f32 %v4741, %v4757
    %v4762 = vtanh.pop %v4760
    %v4763 = vtanh.pop %v4761
    %4766 = vrot.lane.b32.xlu0 %v4762, 64
    %v4767 = vpop.permute.xlu0 %4766
    %4768 = vrot.lane.b32.xlu0 %v4763, 64
    %v4769 = vpop.permute.xlu0 %4768
    %v4772 = vmul.f32 %v4735, %v4767
    %v4773 = vmul.f32 %v4737, %v4769
    %v4774 = vmul.f32 %v4772, %v870
    %v4775 = vmul.f32 %v4773, %v871
    %v4776 = vmul.f32 %v4772, %v872
    %v4777 = vmul.f32 %v4773, %v873
    %4780 = vrot.lane.b32.xlu0 %v4776, 64
    %v4781 = vpop.permute.xlu0 %4780
    %4782 = vrot.lane.b32.xlu0 %v4777, 64
    %v4783 = vpop.permute.xlu0 %4782
    %v4786 = vsel %vm1039, %v4774, %v4781
    %v4787 = vsel %vm1039, %v4775, %v4783
    %v4788 = vadd.f32 %v4633, %v4786
    %v4789 = vadd.f32 %v4634, %v4787
    %v4790 = vmax.f32 %v4635, %v4786
    %v4791 = vmax.f32 %v4636, %v4787
    %v4792 = vld [vmem:[#allocation5 + $0xa0] sm:$0xff]
    %v4793 = vld [vmem:[#allocation5 + $0xa8] sm:$0xff]
    %v4794 = vld [vmem:[#allocation5 + $0xb0] sm:$0xff]
    %v4795 = vld [vmem:[#allocation5 + $0xb8] sm:$0xff]
    %4796 = vmatprep.subr.mxu0 %v832
    %4797 = vmatpush1.msra.mxu0 %v831
    %4798 = vmatprep.subr.mxu0 %v834
    %4799 = vmatpush1.msra.mxu0 %v833
    %4800 = vmatprep.subr.mxu0 %v836
    %4801 = vmatpush1.msra.mxu0 %v835
    %4802 = vmatprep.subr.mxu0 %v838
    %4803 = vmatpush1.msra.mxu0 %v837
    %4804 = vmatprep.subr.mxu0 %v840
    %4805 = vmatpush1.msra.mxu0 %v839
    %4806 = vmatprep.subr.mxu0 %v842
    %4807 = vmatpush1.msra.mxu0 %v841
    %4808 = vmatprep.subr.mxu0 %v844
    %4809 = vmatpush1.msra.mxu0 %v843
    %4810 = vmatprep.subr.mxu0 %v846
    %4811 = vmatpush1.msra.mxu0 %v845
    %4812 = vmatprep.subr.mxu0 %v848
    %4813 = vmatpush1.msra.mxu0 %v847
    %4814 = vmatprep.subr.mxu0 %v850
    %4815 = vmatpush1.msra.mxu0 %v849
    %4816 = vmatprep.subr.mxu0 %v852
    %4817 = vmatpush1.msra.mxu0 %v851
    %4818 = vmatprep.subr.mxu0 %v854
    %4819 = vmatpush1.msra.mxu0 %v853
    %4820 = vmatprep.subr.mxu0 %v856
    %4821 = vmatpush1.msra.mxu0 %v855
    %4822 = vmatprep.subr.mxu0 %v858
    %4823 = vmatpush1.msra.mxu0 %v857
    %4824 = vmatprep.subr.mxu0 %v860
    %4825 = vmatpush1.msra.mxu0 %v859
    %4826 = vmatprep.subr.mxu0 %v862
    %4827 = vmatpush1.msra.mxu0 %v861
    %4828 = vmatprep.subr.mxu0 0.0
    %4829 = vmatpush1.msra.mxu0 0.0
    %4830 = vmatprep.subr.mxu0 0.0
    %4831 = vmatpush1.msra.mxu0 0.0
    %4832 = vmatprep.subr.mxu0 0.0
    %4833 = vmatpush1.msra.mxu0 0.0
    %4834 = vmatprep.subr.mxu0 0.0
    %4835 = vmatpush1.msra.mxu0 0.0
    %4836 = vmatprep.subr.mxu0 0.0
    %4837 = vmatpush1.msra.mxu0 0.0
    %4838 = vmatprep.subr.mxu0 0.0
    %4839 = vmatpush1.msra.mxu0 0.0
    %4840 = vmatprep.subr.mxu0 0.0
    %4841 = vmatpush1.msra.mxu0 0.0
    %4842 = vmatprep.subr.mxu0 0.0
    %4843 = vmatpush1.msra.mxu0 0.0
    %4844 = vmatprep.subr.mxu0 0.0
    %4845 = vmatpush1.msra.mxu0 0.0
    %4846 = vmatprep.subr.mxu0 0.0
    %4847 = vmatpush1.msra.mxu0 0.0
    %4848 = vmatprep.subr.mxu0 0.0
    %4849 = vmatpush1.msra.mxu0 0.0
    %4850 = vmatprep.subr.mxu0 0.0
    %4851 = vmatpush1.msra.mxu0 0.0
    %4852 = vmatprep.subr.mxu0 0.0
    %4853 = vmatpush1.msra.mxu0 0.0
    %4854 = vmatprep.subr.mxu0 0.0
    %4855 = vmatpush1.msra.mxu0 0.0
    %4856 = vmatprep.subr.mxu0 0.0
    %4857 = vmatpush1.msra.mxu0 0.0
    %4858 = vmatprep.subr.mxu0 0.0
    %4859 = vmatpush1.msra.mxu0 0.0
    %4860 = vmatprep.mubr.f32.mxu0 0.0
    %4861 = vmatmul.mubr.f32.gmra.mrb[0].mxu0 %v4786
    %v4862 = vpop.f32.mrb[0].mxu0
    %v4863 = vadd.f32 0.0, %v4862
    %v4864 = vpop.f32.mrb[0].mxu0
    %v4865 = vadd.f32 0.0, %v4864
    %4866 = vmatprep.mubr.f32.mxu0 0.0
    %4867 = vmatmul.mubr.f32.gmra.mrb[0].mxu0 %v4787
    %v4868 = vpop.f32.mrb[0].mxu0
    %v4869 = vadd.f32 0.0, %v4868
    %v4870 = vpop.f32.mrb[0].mxu0
    %v4871 = vadd.f32 0.0, %v4870
    %4872 = vdwg.mxu0
    %v4873 = vadd.f32 %v4792, %v4863
    %v4874 = vadd.f32 %v4793, %v4865
    %v4875 = vadd.f32 %v4794, %v4869
    %v4876 = vadd.f32 %v4795, %v4871
    %v4877 = vmul.f32 %v4873, 0.5
    %v4878 = vmul.f32 %v4874, 0.5
    %v4879 = vmul.f32 %v4875, 0.5
    %v4880 = vmul.f32 %v4876, 0.5
    %v4881 = vtanh.pop %v4877
    %v4882 = vtanh.pop %v4878
    %v4883 = vtanh.pop %v4879
    %v4884 = vtanh.pop %v4880
    %v4885 = vmul.f32 %v4881, 0.5
    %v4886 = vmul.f32 %v4882, 0.5
    %v4887 = vmul.f32 %v4883, 0.5
    %v4888 = vmul.f32 %v4884, 0.5
    %v4889 = vadd.f32 %v4885, 0.5
    %v4890 = vadd.f32 %v4886, 0.5
    %v4891 = vadd.f32 %v4887, 0.5
    %v4892 = vadd.f32 %v4888, 0.5
    %v4893 = vtanh.pop %v4874
    %v4894 = vtanh.pop %v4876
    %v4895 = vmul.f32 %v4889, %v4760
    %v4896 = vmul.f32 %v4891, %v4761
    %4899 = vrot.lane.b32.xlu0 %v4893, 64
    %v4900 = vpop.permute.xlu0 %4899
    %4901 = vrot.lane.b32.xlu0 %v4894, 64
    %v4902 = vpop.permute.xlu0 %4901
    %v4905 = vmul.f32 %v4889, %v4900
    %v4906 = vmul.f32 %v4891, %v4902
    %4909 = vrot.lane.b32.xlu0 %v4905, 64
    %v4910 = vpop.permute.xlu0 %4909
    %4911 = vrot.lane.b32.xlu0 %v4906, 64
    %v4912 = vpop.permute.xlu0 %4911
    %v4915 = vadd.f32 %v4895, %v4910
    %v4916 = vadd.f32 %v4896, %v4912
    %v4917 = vtanh.pop %v4915
    %v4918 = vtanh.pop %v4916
    %4921 = vrot.lane.b32.xlu0 %v4917, 64
    %v4922 = vpop.permute.xlu0 %4921
    %4923 = vrot.lane.b32.xlu0 %v4918, 64
    %v4924 = vpop.permute.xlu0 %4923
    %v4927 = vmul.f32 %v4890, %v4922
    %v4928 = vmul.f32 %v4892, %v4924
    %v4929 = vmul.f32 %v4927, %v870
    %v4930 = vmul.f32 %v4928, %v871
    %v4931 = vmul.f32 %v4927, %v872
    %v4932 = vmul.f32 %v4928, %v873
    %4935 = vrot.lane.b32.xlu0 %v4931, 64
    %v4936 = vpop.permute.xlu0 %4935
    %4937 = vrot.lane.b32.xlu0 %v4932, 64
    %v4938 = vpop.permute.xlu0 %4937
    %v4941 = vsel %vm1039, %v4929, %v4936
    %v4942 = vsel %vm1039, %v4930, %v4938
    %v4943 = vadd.f32 %v4788, %v4941
    %v4944 = vadd.f32 %v4789, %v4942
    %v4945 = vmax.f32 %v4790, %v4941
    %v4946 = vmax.f32 %v4791, %v4942
    %v4947 = vld [vmem:[#allocation5 + $0xc0] sm:$0xff]
    %v4948 = vld [vmem:[#allocation5 + $0xc8] sm:$0xff]
    %v4949 = vld [vmem:[#allocation5 + $0xd0] sm:$0xff]
    %v4950 = vld [vmem:[#allocation5 + $0xd8] sm:$0xff]
    %4951 = vmatprep.subr.mxu0 %v832
    %4952 = vmatpush1.msra.mxu0 %v831
    %4953 = vmatprep.subr.mxu0 %v834
    %4954 = vmatpush1.msra.mxu0 %v833
    %4955 = vmatprep.subr.mxu0 %v836
    %4956 = vmatpush1.msra.mxu0 %v835
    %4957 = vmatprep.subr.mxu0 %v838
    %4958 = vmatpush1.msra.mxu0 %v837
    %4959 = vmatprep.subr.mxu0 %v840
    %4960 = vmatpush1.msra.mxu0 %v839
    %4961 = vmatprep.subr.mxu0 %v842
    %4962 = vmatpush1.msra.mxu0 %v841
    %4963 = vmatprep.subr.mxu0 %v844
    %4964 = vmatpush1.msra.mxu0 %v843
    %4965 = vmatprep.subr.mxu0 %v846
    %4966 = vmatpush1.msra.mxu0 %v845
    %4967 = vmatprep.subr.mxu0 %v848
    %4968 = vmatpush1.msra.mxu0 %v847
    %4969 = vmatprep.subr.mxu0 %v850
    %4970 = vmatpush1.msra.mxu0 %v849
    %4971 = vmatprep.subr.mxu0 %v852
    %4972 = vmatpush1.msra.mxu0 %v851
    %4973 = vmatprep.subr.mxu0 %v854
    %4974 = vmatpush1.msra.mxu0 %v853
    %4975 = vmatprep.subr.mxu0 %v856
    %4976 = vmatpush1.msra.mxu0 %v855
    %4977 = vmatprep.subr.mxu0 %v858
    %4978 = vmatpush1.msra.mxu0 %v857
    %4979 = vmatprep.subr.mxu0 %v860
    %4980 = vmatpush1.msra.mxu0 %v859
    %4981 = vmatprep.subr.mxu0 %v862
    %4982 = vmatpush1.msra.mxu0 %v861
    %4983 = vmatprep.subr.mxu0 0.0
    %4984 = vmatpush1.msra.mxu0 0.0
    %4985 = vmatprep.subr.mxu0 0.0
    %4986 = vmatpush1.msra.mxu0 0.0
    %4987 = vmatprep.subr.mxu0 0.0
    %4988 = vmatpush1.msra.mxu0 0.0
    %4989 = vmatprep.subr.mxu0 0.0
    %4990 = vmatpush1.msra.mxu0 0.0
    %4991 = vmatprep.subr.mxu0 0.0
    %4992 = vmatpush1.msra.mxu0 0.0
    %4993 = vmatprep.subr.mxu0 0.0
    %4994 = vmatpush1.msra.mxu0 0.0
    %4995 = vmatprep.subr.mxu0 0.0
    %4996 = vmatpush1.msra.mxu0 0.0
    %4997 = vmatprep.subr.mxu0 0.0
    %4998 = vmatpush1.msra.mxu0 0.0
    %4999 = vmatprep.subr.mxu0 0.0
    %5000 = vmatpush1.msra.mxu0 0.0
    %5001 = vmatprep.subr.mxu0 0.0
    %5002 = vmatpush1.msra.mxu0 0.0
    %5003 = vmatprep.subr.mxu0 0.0
    %5004 = vmatpush1.msra.mxu0 0.0
    %5005 = vmatprep.subr.mxu0 0.0
    %5006 = vmatpush1.msra.mxu0 0.0
    %5007 = vmatprep.subr.mxu0 0.0
    %5008 = vmatpush1.msra.mxu0 0.0
    %5009 = vmatprep.subr.mxu0 0.0
    %5010 = vmatpush1.msra.mxu0 0.0
    %5011 = vmatprep.subr.mxu0 0.0
    %5012 = vmatpush1.msra.mxu0 0.0
    %5013 = vmatprep.subr.mxu0 0.0
    %5014 = vmatpush1.msra.mxu0 0.0
    %5015 = vmatprep.mubr.f32.mxu0 0.0
    %5016 = vmatmul.mubr.f32.gmra.mrb[0].mxu0 %v4941
    %v5017 = vpop.f32.mrb[0].mxu0
    %v5018 = vadd.f32 0.0, %v5017
    %v5019 = vpop.f32.mrb[0].mxu0
    %v5020 = vadd.f32 0.0, %v5019
    %5021 = vmatprep.mubr.f32.mxu0 0.0
    %5022 = vmatmul.mubr.f32.gmra.mrb[0].mxu0 %v4942
    %v5023 = vpop.f32.mrb[0].mxu0
    %v5024 = vadd.f32 0.0, %v5023
    %v5025 = vpop.f32.mrb[0].mxu0
    %v5026 = vadd.f32 0.0, %v5025
    %5027 = vdwg.mxu0
    %v5028 = vadd.f32 %v4947, %v5018
    %v5029 = vadd.f32 %v4948, %v5020
    %v5030 = vadd.f32 %v4949, %v5024
    %v5031 = vadd.f32 %v4950, %v5026
    %v5032 = vmul.f32 %v5028, 0.5
    %v5033 = vmul.f32 %v5029, 0.5
    %v5034 = vmul.f32 %v5030, 0.5
    %v5035 = vmul.f32 %v5031, 0.5
    %v5036 = vtanh.pop %v5032
    %v5037 = vtanh.pop %v5033
    %v5038 = vtanh.pop %v5034
    %v5039 = vtanh.pop %v5035
    %v5040 = vmul.f32 %v5036, 0.5
    %v5041 = vmul.f32 %v5037, 0.5
    %v5042 = vmul.f32 %v5038, 0.5
    %v5043 = vmul.f32 %v5039, 0.5
    %v5044 = vadd.f32 %v5040, 0.5
    %v5045 = vadd.f32 %v5041, 0.5
    %v5046 = vadd.f32 %v5042, 0.5
    %v5047 = vadd.f32 %v5043, 0.5
    %v5048 = vtanh.pop %v5029
    %v5049 = vtanh.pop %v5031
    %v5050 = vmul.f32 %v5044, %v4915
    %v5051 = vmul.f32 %v5046, %v4916
    %5054 = vrot.lane.b32.xlu0 %v5048, 64
    %v5055 = vpop.permute.xlu0 %5054
    %5056 = vrot.lane.b32.xlu0 %v5049, 64
    %v5057 = vpop.permute.xlu0 %5056
    %v5060 = vmul.f32 %v5044, %v5055
    %v5061 = vmul.f32 %v5046, %v5057
    %5064 = vrot.lane.b32.xlu0 %v5060, 64
    %v5065 = vpop.permute.xlu0 %5064
    %5066 = vrot.lane.b32.xlu0 %v5061, 64
    %v5067 = vpop.permute.xlu0 %5066
    %v5070 = vadd.f32 %v5050, %v5065
    %v5071 = vadd.f32 %v5051, %v5067
    %v5072 = vtanh.pop %v5070
    %v5073 = vtanh.pop %v5071
    %5076 = vrot.lane.b32.xlu0 %v5072, 64
    %v5077 = vpop.permute.xlu0 %5076
    %5078 = vrot.lane.b32.xlu0 %v5073, 64
    %v5079 = vpop.permute.xlu0 %5078
    %v5082 = vmul.f32 %v5045, %v5077
    %v5083 = vmul.f32 %v5047, %v5079
    %v5084 = vmul.f32 %v5082, %v870
    %v5085 = vmul.f32 %v5083, %v871
    %v5086 = vmul.f32 %v5082, %v872
    %v5087 = vmul.f32 %v5083, %v873
    %5090 = vrot.lane.b32.xlu0 %v5086, 64
    %v5091 = vpop.permute.xlu0 %5090
    %5092 = vrot.lane.b32.xlu0 %v5087, 64
    %v5093 = vpop.permute.xlu0 %5092
    %v5096 = vsel %vm1039, %v5084, %v5091
    %v5097 = vsel %vm1039, %v5085, %v5093
    %v5098 = vadd.f32 %v4943, %v5096
    %v5099 = vadd.f32 %v4944, %v5097
    %v5100 = vmax.f32 %v4945, %v5096
    %v5101 = vmax.f32 %v4946, %v5097
    %v5102 = vld [vmem:[#allocation5 + $0xe0] sm:$0xff]
    %v5103 = vld [vmem:[#allocation5 + $0xe8] sm:$0xff]
    %v5104 = vld [vmem:[#allocation5 + $0xf0] sm:$0xff]
    %v5105 = vld [vmem:[#allocation5 + $0xf8] sm:$0xff]
    %5106 = vmatprep.subr.mxu0 %v832
    %5107 = vmatpush1.msra.mxu0 %v831
    %5108 = vmatprep.subr.mxu0 %v834
    %5109 = vmatpush1.msra.mxu0 %v833
    %5110 = vmatprep.subr.mxu0 %v836
    %5111 = vmatpush1.msra.mxu0 %v835
    %5112 = vmatprep.subr.mxu0 %v838
    %5113 = vmatpush1.msra.mxu0 %v837
    %5114 = vmatprep.subr.mxu0 %v840
    %5115 = vmatpush1.msra.mxu0 %v839
    %5116 = vmatprep.subr.mxu0 %v842
    %5117 = vmatpush1.msra.mxu0 %v841
    %5118 = vmatprep.subr.mxu0 %v844
    %5119 = vmatpush1.msra.mxu0 %v843
    %5120 = vmatprep.subr.mxu0 %v846
    %5121 = vmatpush1.msra.mxu0 %v845
    %5122 = vmatprep.subr.mxu0 %v848
    %5123 = vmatpush1.msra.mxu0 %v847
    %5124 = vmatprep.subr.mxu0 %v850
    %5125 = vmatpush1.msra.mxu0 %v849
    %5126 = vmatprep.subr.mxu0 %v852
    %5127 = vmatpush1.msra.mxu0 %v851
    %5128 = vmatprep.subr.mxu0 %v854
    %5129 = vmatpush1.msra.mxu0 %v853
    %5130 = vmatprep.subr.mxu0 %v856
    %5131 = vmatpush1.msra.mxu0 %v855
    %5132 = vmatprep.subr.mxu0 %v858
    %5133 = vmatpush1.msra.mxu0 %v857
    %5134 = vmatprep.subr.mxu0 %v860
    %5135 = vmatpush1.msra.mxu0 %v859
    %5136 = vmatprep.subr.mxu0 %v862
    %5137 = vmatpush1.msra.mxu0 %v861
    %5138 = vmatprep.subr.mxu0 0.0
    %5139 = vmatpush1.msra.mxu0 0.0
    %5140 = vmatprep.subr.mxu0 0.0
    %5141 = vmatpush1.msra.mxu0 0.0
    %5142 = vmatprep.subr.mxu0 0.0
    %5143 = vmatpush1.msra.mxu0 0.0
    %5144 = vmatprep.subr.mxu0 0.0
    %5145 = vmatpush1.msra.mxu0 0.0
    %5146 = vmatprep.subr.mxu0 0.0
    %5147 = vmatpush1.msra.mxu0 0.0
    %5148 = vmatprep.subr.mxu0 0.0
    %5149 = vmatpush1.msra.mxu0 0.0
    %5150 = vmatprep.subr.mxu0 0.0
    %5151 = vmatpush1.msra.mxu0 0.0
    %5152 = vmatprep.subr.mxu0 0.0
    %5153 = vmatpush1.msra.mxu0 0.0
    %5154 = vmatprep.subr.mxu0 0.0
    %5155 = vmatpush1.msra.mxu0 0.0
    %5156 = vmatprep.subr.mxu0 0.0
    %5157 = vmatpush1.msra.mxu0 0.0
    %5158 = vmatprep.subr.mxu0 0.0
    %5159 = vmatpush1.msra.mxu0 0.0
    %5160 = vmatprep.subr.mxu0 0.0
    %5161 = vmatpush1.msra.mxu0 0.0
    %5162 = vmatprep.subr.mxu0 0.0
    %5163 = vmatpush1.msra.mxu0 0.0
    %5164 = vmatprep.subr.mxu0 0.0
    %5165 = vmatpush1.msra.mxu0 0.0
    %5166 = vmatprep.subr.mxu0 0.0
    %5167 = vmatpush1.msra.mxu0 0.0
    %5168 = vmatprep.subr.mxu0 0.0
    %5169 = vmatpush1.msra.mxu0 0.0
    %5170 = vmatprep.mubr.f32.mxu0 0.0
    %5171 = vmatmul.mubr.f32.gmra.mrb[0].mxu0 %v5096
    %v5172 = vpop.f32.mrb[0].mxu0
    %v5173 = vadd.f32 0.0, %v5172
    %v5174 = vpop.f32.mrb[0].mxu0
    %v5175 = vadd.f32 0.0, %v5174
    %5176 = vmatprep.mubr.f32.mxu0 0.0
    %5177 = vmatmul.mubr.f32.gmra.mrb[0].mxu0 %v5097
    %v5178 = vpop.f32.mrb[0].mxu0
    %v5179 = vadd.f32 0.0, %v5178
    %v5180 = vpop.f32.mrb[0].mxu0
    %v5181 = vadd.f32 0.0, %v5180
    %5182 = vdwg.mxu0
    %v5183 = vadd.f32 %v5102, %v5173
    %v5184 = vadd.f32 %v5103, %v5175
    %v5185 = vadd.f32 %v5104, %v5179
    %v5186 = vadd.f32 %v5105, %v5181
    %v5187 = vmul.f32 %v5183, 0.5
    %v5188 = vmul.f32 %v5184, 0.5
    %v5189 = vmul.f32 %v5185, 0.5
    %v5190 = vmul.f32 %v5186, 0.5
    %v5191 = vtanh.pop %v5187
    %v5192 = vtanh.pop %v5188
    %v5193 = vtanh.pop %v5189
    %v5194 = vtanh.pop %v5190
    %v5195 = vmul.f32 %v5191, 0.5
    %v5196 = vmul.f32 %v5192, 0.5
    %v5197 = vmul.f32 %v5193, 0.5
    %v5198 = vmul.f32 %v5194, 0.5
    %v5199 = vadd.f32 %v5195, 0.5
    %v5200 = vadd.f32 %v5196, 0.5
    %v5201 = vadd.f32 %v5197, 0.5
    %v5202 = vadd.f32 %v5198, 0.5
    %v5203 = vtanh.pop %v5184
    %v5204 = vtanh.pop %v5186
    %v5205 = vmul.f32 %v5199, %v5070
    %v5206 = vmul.f32 %v5201, %v5071
    %5209 = vrot.lane.b32.xlu0 %v5203, 64
    %v5210 = vpop.permute.xlu0 %5209
    %5211 = vrot.lane.b32.xlu0 %v5204, 64
    %v5212 = vpop.permute.xlu0 %5211
    %v5215 = vmul.f32 %v5199, %v5210
    %v5216 = vmul.f32 %v5201, %v5212
    %5219 = vrot.lane.b32.xlu0 %v5215, 64
    %v5220 = vpop.permute.xlu0 %5219
    %5221 = vrot.lane.b32.xlu0 %v5216, 64
    %v5222 = vpop.permute.xlu0 %5221
    %v5225 = vadd.f32 %v5205, %v5220
    %v5226 = vadd.f32 %v5206, %v5222
    %v5227 = vtanh.pop %v5225
    %v5228 = vtanh.pop %v5226
    %5231 = vrot.lane.b32.xlu0 %v5227, 64
    %v5232 = vpop.permute.xlu0 %5231
    %5233 = vrot.lane.b32.xlu0 %v5228, 64
    %v5234 = vpop.permute.xlu0 %5233
    %v5237 = vmul.f32 %v5200, %v5232
    %v5238 = vmul.f32 %v5202, %v5234
    %v5239 = vmul.f32 %v5237, %v870
    %v5240 = vmul.f32 %v5238, %v871
    %v5241 = vmul.f32 %v5237, %v872
    %v5242 = vmul.f32 %v5238, %v873
    %5245 = vrot.lane.b32.xlu0 %v5241, 64
    %v5246 = vpop.permute.xlu0 %5245
    %5247 = vrot.lane.b32.xlu0 %v5242, 64
    %v5248 = vpop.permute.xlu0 %5247
    %v5251 = vsel %vm1039, %v5239, %v5246
    %v5252 = vsel %vm1039, %v5240, %v5248
    %v5253 = vadd.f32 %v5098, %v5251
    %v5254 = vadd.f32 %v5099, %v5252
    %v5255 = vmax.f32 %v5100, %v5251
    %v5256 = vmax.f32 %v5101, %v5252
    %v5257 = vld [vmem:[#allocation5 + $0x100] sm:$0xff]
    %v5258 = vld [vmem:[#allocation5 + $0x108] sm:$0xff]
    %v5259 = vld [vmem:[#allocation5 + $0x110] sm:$0xff]
    %v5260 = vld [vmem:[#allocation5 + $0x118] sm:$0xff]
    %5261 = vmatprep.subr.mxu0 %v832
    %5262 = vmatpush1.msra.mxu0 %v831
    %5263 = vmatprep.subr.mxu0 %v834
    %5264 = vmatpush1.msra.mxu0 %v833
    %5265 = vmatprep.subr.mxu0 %v836
    %5266 = vmatpush1.msra.mxu0 %v835
    %5267 = vmatprep.subr.mxu0 %v838
    %5268 = vmatpush1.msra.mxu0 %v837
    %5269 = vmatprep.subr.mxu0 %v840
    %5270 = vmatpush1.msra.mxu0 %v839
    %5271 = vmatprep.subr.mxu0 %v842
    %5272 = vmatpush1.msra.mxu0 %v841
    %5273 = vmatprep.subr.mxu0 %v844
    %5274 = vmatpush1.msra.mxu0 %v843
    %5275 = vmatprep.subr.mxu0 %v846
    %5276 = vmatpush1.msra.mxu0 %v845
    %5277 = vmatprep.subr.mxu0 %v848
    %5278 = vmatpush1.msra.mxu0 %v847
    %5279 = vmatprep.subr.mxu0 %v850
    %5280 = vmatpush1.msra.mxu0 %v849
    %5281 = vmatprep.subr.mxu0 %v852
    %5282 = vmatpush1.msra.mxu0 %v851
    %5283 = vmatprep.subr.mxu0 %v854
    %5284 = vmatpush1.msra.mxu0 %v853
    %5285 = vmatprep.subr.mxu0 %v856
    %5286 = vmatpush1.msra.mxu0 %v855
    %5287 = vmatprep.subr.mxu0 %v858
    %5288 = vmatpush1.msra.mxu0 %v857
    %5289 = vmatprep.subr.mxu0 %v860
    %5290 = vmatpush1.msra.mxu0 %v859
    %5291 = vmatprep.subr.mxu0 %v862
    %5292 = vmatpush1.msra.mxu0 %v861
    %5293 = vmatprep.subr.mxu0 0.0
    %5294 = vmatpush1.msra.mxu0 0.0
    %5295 = vmatprep.subr.mxu0 0.0
    %5296 = vmatpush1.msra.mxu0 0.0
    %5297 = vmatprep.subr.mxu0 0.0
    %5298 = vmatpush1.msra.mxu0 0.0
    %5299 = vmatprep.subr.mxu0 0.0
    %5300 = vmatpush1.msra.mxu0 0.0
    %5301 = vmatprep.subr.mxu0 0.0
    %5302 = vmatpush1.msra.mxu0 0.0
    %5303 = vmatprep.subr.mxu0 0.0
    %5304 = vmatpush1.msra.mxu0 0.0
    %5305 = vmatprep.subr.mxu0 0.0
    %5306 = vmatpush1.msra.mxu0 0.0
    %5307 = vmatprep.subr.mxu0 0.0
    %5308 = vmatpush1.msra.mxu0 0.0
    %5309 = vmatprep.subr.mxu0 0.0
    %5310 = vmatpush1.msra.mxu0 0.0
    %5311 = vmatprep.subr.mxu0 0.0
    %5312 = vmatpush1.msra.mxu0 0.0
    %5313 = vmatprep.subr.mxu0 0.0
    %5314 = vmatpush1.msra.mxu0 0.0
    %5315 = vmatprep.subr.mxu0 0.0
    %5316 = vmatpush1.msra.mxu0 0.0
    %5317 = vmatprep.subr.mxu0 0.0
    %5318 = vmatpush1.msra.mxu0 0.0
    %5319 = vmatprep.subr.mxu0 0.0
    %5320 = vmatpush1.msra.mxu0 0.0
    %5321 = vmatprep.subr.mxu0 0.0
    %5322 = vmatpush1.msra.mxu0 0.0
    %5323 = vmatprep.subr.mxu0 0.0
    %5324 = vmatpush1.msra.mxu0 0.0
    %5325 = vmatprep.mubr.f32.mxu0 0.0
    %5326 = vmatmul.mubr.f32.gmra.mrb[0].mxu0 %v5251
    %v5327 = vpop.f32.mrb[0].mxu0
    %v5328 = vadd.f32 0.0, %v5327
    %v5329 = vpop.f32.mrb[0].mxu0
    %v5330 = vadd.f32 0.0, %v5329
    %5331 = vmatprep.mubr.f32.mxu0 0.0
    %5332 = vmatmul.mubr.f32.gmra.mrb[0].mxu0 %v5252
    %v5333 = vpop.f32.mrb[0].mxu0
    %v5334 = vadd.f32 0.0, %v5333
    %v5335 = vpop.f32.mrb[0].mxu0
    %v5336 = vadd.f32 0.0, %v5335
    %5337 = vdwg.mxu0
    %v5338 = vadd.f32 %v5257, %v5328
    %v5339 = vadd.f32 %v5258, %v5330
    %v5340 = vadd.f32 %v5259, %v5334
    %v5341 = vadd.f32 %v5260, %v5336
    %v5342 = vmul.f32 %v5338, 0.5
    %v5343 = vmul.f32 %v5339, 0.5
    %v5344 = vmul.f32 %v5340, 0.5
    %v5345 = vmul.f32 %v5341, 0.5
    %v5346 = vtanh.pop %v5342
    %v5347 = vtanh.pop %v5343
    %v5348 = vtanh.pop %v5344
    %v5349 = vtanh.pop %v5345
    %v5350 = vmul.f32 %v5346, 0.5
    %v5351 = vmul.f32 %v5347, 0.5
    %v5352 = vmul.f32 %v5348, 0.5
    %v5353 = vmul.f32 %v5349, 0.5
    %v5354 = vadd.f32 %v5350, 0.5
    %v5355 = vadd.f32 %v5351, 0.5
    %v5356 = vadd.f32 %v5352, 0.5
    %v5357 = vadd.f32 %v5353, 0.5
    %v5358 = vtanh.pop %v5339
    %v5359 = vtanh.pop %v5341
    %v5360 = vmul.f32 %v5354, %v5225
    %v5361 = vmul.f32 %v5356, %v5226
    %5364 = vrot.lane.b32.xlu0 %v5358, 64
    %v5365 = vpop.permute.xlu0 %5364
    %5366 = vrot.lane.b32.xlu0 %v5359, 64
    %v5367 = vpop.permute.xlu0 %5366
    %v5370 = vmul.f32 %v5354, %v5365
    %v5371 = vmul.f32 %v5356, %v5367
    %5374 = vrot.lane.b32.xlu0 %v5370, 64
    %v5375 = vpop.permute.xlu0 %5374
    %5376 = vrot.lane.b32.xlu0 %v5371, 64
    %v5377 = vpop.permute.xlu0 %5376
    %v5380 = vadd.f32 %v5360, %v5375
    %v5381 = vadd.f32 %v5361, %v5377
    %v5382 = vtanh.pop %v5380
    %v5383 = vtanh.pop %v5381
    %5386 = vrot.lane.b32.xlu0 %v5382, 64
    %v5387 = vpop.permute.xlu0 %5386
    %5388 = vrot.lane.b32.xlu0 %v5383, 64
    %v5389 = vpop.permute.xlu0 %5388
    %v5392 = vmul.f32 %v5355, %v5387
    %v5393 = vmul.f32 %v5357, %v5389
    %v5394 = vmul.f32 %v5392, %v870
    %v5395 = vmul.f32 %v5393, %v871
    %v5396 = vmul.f32 %v5392, %v872
    %v5397 = vmul.f32 %v5393, %v873
    %5400 = vrot.lane.b32.xlu0 %v5396, 64
    %v5401 = vpop.permute.xlu0 %5400
    %5402 = vrot.lane.b32.xlu0 %v5397, 64
    %v5403 = vpop.permute.xlu0 %5402
    %v5406 = vsel %vm1039, %v5394, %v5401
    %v5407 = vsel %vm1039, %v5395, %v5403
    %v5408 = vadd.f32 %v5253, %v5406
    %v5409 = vadd.f32 %v5254, %v5407
    %v5410 = vmax.f32 %v5255, %v5406
    %v5411 = vmax.f32 %v5256, %v5407
    %v5412 = vld [vmem:[#allocation5 + $0x120] sm:$0xff]
    %v5413 = vld [vmem:[#allocation5 + $0x128] sm:$0xff]
    %v5414 = vld [vmem:[#allocation5 + $0x130] sm:$0xff]
    %v5415 = vld [vmem:[#allocation5 + $0x138] sm:$0xff]
    %5416 = vmatprep.subr.mxu0 %v832
    %5417 = vmatpush1.msra.mxu0 %v831
    %5418 = vmatprep.subr.mxu0 %v834
    %5419 = vmatpush1.msra.mxu0 %v833
    %5420 = vmatprep.subr.mxu0 %v836
    %5421 = vmatpush1.msra.mxu0 %v835
    %5422 = vmatprep.subr.mxu0 %v838
    %5423 = vmatpush1.msra.mxu0 %v837
    %5424 = vmatprep.subr.mxu0 %v840
    %5425 = vmatpush1.msra.mxu0 %v839
    %5426 = vmatprep.subr.mxu0 %v842
    %5427 = vmatpush1.msra.mxu0 %v841
    %5428 = vmatprep.subr.mxu0 %v844
    %5429 = vmatpush1.msra.mxu0 %v843
    %5430 = vmatprep.subr.mxu0 %v846
    %5431 = vmatpush1.msra.mxu0 %v845
    %5432 = vmatprep.subr.mxu0 %v848
    %5433 = vmatpush1.msra.mxu0 %v847
    %5434 = vmatprep.subr.mxu0 %v850
    %5435 = vmatpush1.msra.mxu0 %v849
    %5436 = vmatprep.subr.mxu0 %v852
    %5437 = vmatpush1.msra.mxu0 %v851
    %5438 = vmatprep.subr.mxu0 %v854
    %5439 = vmatpush1.msra.mxu0 %v853
    %5440 = vmatprep.subr.mxu0 %v856
    %5441 = vmatpush1.msra.mxu0 %v855
    %5442 = vmatprep.subr.mxu0 %v858
    %5443 = vmatpush1.msra.mxu0 %v857
    %5444 = vmatprep.subr.mxu0 %v860
    %5445 = vmatpush1.msra.mxu0 %v859
    %5446 = vmatprep.subr.mxu0 %v862
    %5447 = vmatpush1.msra.mxu0 %v861
    %5448 = vmatprep.subr.mxu0 0.0
    %5449 = vmatpush1.msra.mxu0 0.0
    %5450 = vmatprep.subr.mxu0 0.0
    %5451 = vmatpush1.msra.mxu0 0.0
    %5452 = vmatprep.subr.mxu0 0.0
    %5453 = vmatpush1.msra.mxu0 0.0
    %5454 = vmatprep.subr.mxu0 0.0
    %5455 = vmatpush1.msra.mxu0 0.0
    %5456 = vmatprep.subr.mxu0 0.0
    %5457 = vmatpush1.msra.mxu0 0.0
    %5458 = vmatprep.subr.mxu0 0.0
    %5459 = vmatpush1.msra.mxu0 0.0
    %5460 = vmatprep.subr.mxu0 0.0
    %5461 = vmatpush1.msra.mxu0 0.0
    %5462 = vmatprep.subr.mxu0 0.0
    %5463 = vmatpush1.msra.mxu0 0.0
    %5464 = vmatprep.subr.mxu0 0.0
    %5465 = vmatpush1.msra.mxu0 0.0
    %5466 = vmatprep.subr.mxu0 0.0
    %5467 = vmatpush1.msra.mxu0 0.0
    %5468 = vmatprep.subr.mxu0 0.0
    %5469 = vmatpush1.msra.mxu0 0.0
    %5470 = vmatprep.subr.mxu0 0.0
    %5471 = vmatpush1.msra.mxu0 0.0
    %5472 = vmatprep.subr.mxu0 0.0
    %5473 = vmatpush1.msra.mxu0 0.0
    %5474 = vmatprep.subr.mxu0 0.0
    %5475 = vmatpush1.msra.mxu0 0.0
    %5476 = vmatprep.subr.mxu0 0.0
    %5477 = vmatpush1.msra.mxu0 0.0
    %5478 = vmatprep.subr.mxu0 0.0
    %5479 = vmatpush1.msra.mxu0 0.0
    %5480 = vmatprep.mubr.f32.mxu0 0.0
    %5481 = vmatmul.mubr.f32.gmra.mrb[0].mxu0 %v5406
    %v5482 = vpop.f32.mrb[0].mxu0
    %v5483 = vadd.f32 0.0, %v5482
    %v5484 = vpop.f32.mrb[0].mxu0
    %v5485 = vadd.f32 0.0, %v5484
    %5486 = vmatprep.mubr.f32.mxu0 0.0
    %5487 = vmatmul.mubr.f32.gmra.mrb[0].mxu0 %v5407
    %v5488 = vpop.f32.mrb[0].mxu0
    %v5489 = vadd.f32 0.0, %v5488
    %v5490 = vpop.f32.mrb[0].mxu0
    %v5491 = vadd.f32 0.0, %v5490
    %5492 = vdwg.mxu0
    %v5493 = vadd.f32 %v5412, %v5483
    %v5494 = vadd.f32 %v5413, %v5485
    %v5495 = vadd.f32 %v5414, %v5489
    %v5496 = vadd.f32 %v5415, %v5491
    %v5497 = vmul.f32 %v5493, 0.5
    %v5498 = vmul.f32 %v5494, 0.5
    %v5499 = vmul.f32 %v5495, 0.5
    %v5500 = vmul.f32 %v5496, 0.5
    %v5501 = vtanh.pop %v5497
    %v5502 = vtanh.pop %v5498
    %v5503 = vtanh.pop %v5499
    %v5504 = vtanh.pop %v5500
    %v5505 = vmul.f32 %v5501, 0.5
    %v5506 = vmul.f32 %v5502, 0.5
    %v5507 = vmul.f32 %v5503, 0.5
    %v5508 = vmul.f32 %v5504, 0.5
    %v5509 = vadd.f32 %v5505, 0.5
    %v5510 = vadd.f32 %v5506, 0.5
    %v5511 = vadd.f32 %v5507, 0.5
    %v5512 = vadd.f32 %v5508, 0.5
    %v5513 = vtanh.pop %v5494
    %v5514 = vtanh.pop %v5496
    %v5515 = vmul.f32 %v5509, %v5380
    %v5516 = vmul.f32 %v5511, %v5381
    %5519 = vrot.lane.b32.xlu0 %v5513, 64
    %v5520 = vpop.permute.xlu0 %5519
    %5521 = vrot.lane.b32.xlu0 %v5514, 64
    %v5522 = vpop.permute.xlu0 %5521
    %v5525 = vmul.f32 %v5509, %v5520
    %v5526 = vmul.f32 %v5511, %v5522
    %5529 = vrot.lane.b32.xlu0 %v5525, 64
    %v5530 = vpop.permute.xlu0 %5529
    %5531 = vrot.lane.b32.xlu0 %v5526, 64
    %v5532 = vpop.permute.xlu0 %5531
    %v5535 = vadd.f32 %v5515, %v5530
    %v5536 = vadd.f32 %v5516, %v5532
    %v5537 = vtanh.pop %v5535
    %v5538 = vtanh.pop %v5536
    %5541 = vrot.lane.b32.xlu0 %v5537, 64
    %v5542 = vpop.permute.xlu0 %5541
    %5543 = vrot.lane.b32.xlu0 %v5538, 64
    %v5544 = vpop.permute.xlu0 %5543
    %v5547 = vmul.f32 %v5510, %v5542
    %v5548 = vmul.f32 %v5512, %v5544
    %v5549 = vmul.f32 %v5547, %v870
    %v5550 = vmul.f32 %v5548, %v871
    %v5551 = vmul.f32 %v5547, %v872
    %v5552 = vmul.f32 %v5548, %v873
    %5555 = vrot.lane.b32.xlu0 %v5551, 64
    %v5556 = vpop.permute.xlu0 %5555
    %5557 = vrot.lane.b32.xlu0 %v5552, 64
    %v5558 = vpop.permute.xlu0 %5557
    %v5561 = vsel %vm1039, %v5549, %v5556
    %v5562 = vsel %vm1039, %v5550, %v5558
    %v5563 = vadd.f32 %v5408, %v5561
    %v5564 = vadd.f32 %v5409, %v5562
    %v5565 = vmax.f32 %v5410, %v5561
    %v5566 = vmax.f32 %v5411, %v5562
    %v5567 = vld [vmem:[#allocation5 + $0x140] sm:$0xff]
    %v5568 = vld [vmem:[#allocation5 + $0x148] sm:$0xff]
    %v5569 = vld [vmem:[#allocation5 + $0x150] sm:$0xff]
    %v5570 = vld [vmem:[#allocation5 + $0x158] sm:$0xff]
    %5571 = vmatprep.subr.mxu0 %v832
    %5572 = vmatpush1.msra.mxu0 %v831
    %5573 = vmatprep.subr.mxu0 %v834
    %5574 = vmatpush1.msra.mxu0 %v833
    %5575 = vmatprep.subr.mxu0 %v836
    %5576 = vmatpush1.msra.mxu0 %v835
    %5577 = vmatprep.subr.mxu0 %v838
    %5578 = vmatpush1.msra.mxu0 %v837
    %5579 = vmatprep.subr.mxu0 %v840
    %5580 = vmatpush1.msra.mxu0 %v839
    %5581 = vmatprep.subr.mxu0 %v842
    %5582 = vmatpush1.msra.mxu0 %v841
    %5583 = vmatprep.subr.mxu0 %v844
    %5584 = vmatpush1.msra.mxu0 %v843
    %5585 = vmatprep.subr.mxu0 %v846
    %5586 = vmatpush1.msra.mxu0 %v845
    %5587 = vmatprep.subr.mxu0 %v848
    %5588 = vmatpush1.msra.mxu0 %v847
    %5589 = vmatprep.subr.mxu0 %v850
    %5590 = vmatpush1.msra.mxu0 %v849
    %5591 = vmatprep.subr.mxu0 %v852
    %5592 = vmatpush1.msra.mxu0 %v851
    %5593 = vmatprep.subr.mxu0 %v854
    %5594 = vmatpush1.msra.mxu0 %v853
    %5595 = vmatprep.subr.mxu0 %v856
    %5596 = vmatpush1.msra.mxu0 %v855
    %5597 = vmatprep.subr.mxu0 %v858
    %5598 = vmatpush1.msra.mxu0 %v857
    %5599 = vmatprep.subr.mxu0 %v860
    %5600 = vmatpush1.msra.mxu0 %v859
    %5601 = vmatprep.subr.mxu0 %v862
    %5602 = vmatpush1.msra.mxu0 %v861
    %5603 = vmatprep.subr.mxu0 0.0
    %5604 = vmatpush1.msra.mxu0 0.0
    %5605 = vmatprep.subr.mxu0 0.0
    %5606 = vmatpush1.msra.mxu0 0.0
    %5607 = vmatprep.subr.mxu0 0.0
    %5608 = vmatpush1.msra.mxu0 0.0
    %5609 = vmatprep.subr.mxu0 0.0
    %5610 = vmatpush1.msra.mxu0 0.0
    %5611 = vmatprep.subr.mxu0 0.0
    %5612 = vmatpush1.msra.mxu0 0.0
    %5613 = vmatprep.subr.mxu0 0.0
    %5614 = vmatpush1.msra.mxu0 0.0
    %5615 = vmatprep.subr.mxu0 0.0
    %5616 = vmatpush1.msra.mxu0 0.0
    %5617 = vmatprep.subr.mxu0 0.0
    %5618 = vmatpush1.msra.mxu0 0.0
    %5619 = vmatprep.subr.mxu0 0.0
    %5620 = vmatpush1.msra.mxu0 0.0
    %5621 = vmatprep.subr.mxu0 0.0
    %5622 = vmatpush1.msra.mxu0 0.0
    %5623 = vmatprep.subr.mxu0 0.0
    %5624 = vmatpush1.msra.mxu0 0.0
    %5625 = vmatprep.subr.mxu0 0.0
    %5626 = vmatpush1.msra.mxu0 0.0
    %5627 = vmatprep.subr.mxu0 0.0
    %5628 = vmatpush1.msra.mxu0 0.0
    %5629 = vmatprep.subr.mxu0 0.0
    %5630 = vmatpush1.msra.mxu0 0.0
    %5631 = vmatprep.subr.mxu0 0.0
    %5632 = vmatpush1.msra.mxu0 0.0
    %5633 = vmatprep.subr.mxu0 0.0
    %5634 = vmatpush1.msra.mxu0 0.0
    %5635 = vmatprep.mubr.f32.mxu0 0.0
    %5636 = vmatmul.mubr.f32.gmra.mrb[0].mxu0 %v5561
    %v5637 = vpop.f32.mrb[0].mxu0
    %v5638 = vadd.f32 0.0, %v5637
    %v5639 = vpop.f32.mrb[0].mxu0
    %v5640 = vadd.f32 0.0, %v5639
    %5641 = vmatprep.mubr.f32.mxu0 0.0
    %5642 = vmatmul.mubr.f32.gmra.mrb[0].mxu0 %v5562
    %v5643 = vpop.f32.mrb[0].mxu0
    %v5644 = vadd.f32 0.0, %v5643
    %v5645 = vpop.f32.mrb[0].mxu0
    %v5646 = vadd.f32 0.0, %v5645
    %5647 = vdwg.mxu0
    %v5648 = vadd.f32 %v5567, %v5638
    %v5649 = vadd.f32 %v5568, %v5640
    %v5650 = vadd.f32 %v5569, %v5644
    %v5651 = vadd.f32 %v5570, %v5646
    %v5652 = vmul.f32 %v5648, 0.5
    %v5653 = vmul.f32 %v5649, 0.5
    %v5654 = vmul.f32 %v5650, 0.5
    %v5655 = vmul.f32 %v5651, 0.5
    %v5656 = vtanh.pop %v5652
    %v5657 = vtanh.pop %v5653
    %v5658 = vtanh.pop %v5654
    %v5659 = vtanh.pop %v5655
    %v5660 = vmul.f32 %v5656, 0.5
    %v5661 = vmul.f32 %v5657, 0.5
    %v5662 = vmul.f32 %v5658, 0.5
    %v5663 = vmul.f32 %v5659, 0.5
    %v5664 = vadd.f32 %v5660, 0.5
    %v5665 = vadd.f32 %v5661, 0.5
    %v5666 = vadd.f32 %v5662, 0.5
    %v5667 = vadd.f32 %v5663, 0.5
    %v5668 = vtanh.pop %v5649
    %v5669 = vtanh.pop %v5651
    %v5670 = vmul.f32 %v5664, %v5535
    %v5671 = vmul.f32 %v5666, %v5536
    %5674 = vrot.lane.b32.xlu0 %v5668, 64
    %v5675 = vpop.permute.xlu0 %5674
    %5676 = vrot.lane.b32.xlu0 %v5669, 64
    %v5677 = vpop.permute.xlu0 %5676
    %v5680 = vmul.f32 %v5664, %v5675
    %v5681 = vmul.f32 %v5666, %v5677
    %5684 = vrot.lane.b32.xlu0 %v5680, 64
    %v5685 = vpop.permute.xlu0 %5684
    %5686 = vrot.lane.b32.xlu0 %v5681, 64
    %v5687 = vpop.permute.xlu0 %5686
    %v5690 = vadd.f32 %v5670, %v5685
    %v5691 = vadd.f32 %v5671, %v5687
    %v5692 = vtanh.pop %v5690
    %v5693 = vtanh.pop %v5691
    %5696 = vrot.lane.b32.xlu0 %v5692, 64
    %v5697 = vpop.permute.xlu0 %5696
    %5698 = vrot.lane.b32.xlu0 %v5693, 64
    %v5699 = vpop.permute.xlu0 %5698
    %v5702 = vmul.f32 %v5665, %v5697
    %v5703 = vmul.f32 %v5667, %v5699
    %v5704 = vmul.f32 %v5702, %v870
    %v5705 = vmul.f32 %v5703, %v871
    %v5706 = vmul.f32 %v5702, %v872
    %v5707 = vmul.f32 %v5703, %v873
    %5710 = vrot.lane.b32.xlu0 %v5706, 64
    %v5711 = vpop.permute.xlu0 %5710
    %5712 = vrot.lane.b32.xlu0 %v5707, 64
    %v5713 = vpop.permute.xlu0 %5712
    %v5716 = vsel %vm1039, %v5704, %v5711
    %v5717 = vsel %vm1039, %v5705, %v5713
    %v5718 = vadd.f32 %v5563, %v5716
    %v5719 = vadd.f32 %v5564, %v5717
    %v5720 = vmax.f32 %v5565, %v5716
    %v5721 = vmax.f32 %v5566, %v5717
    %v5722 = vld [vmem:[#allocation5 + $0x160] sm:$0xff]
    %v5723 = vld [vmem:[#allocation5 + $0x168] sm:$0xff]
    %v5724 = vld [vmem:[#allocation5 + $0x170] sm:$0xff]
    %v5725 = vld [vmem:[#allocation5 + $0x178] sm:$0xff]
    %5726 = vmatprep.subr.mxu0 %v832
    %5727 = vmatpush1.msra.mxu0 %v831
    %5728 = vmatprep.subr.mxu0 %v834
    %5729 = vmatpush1.msra.mxu0 %v833
    %5730 = vmatprep.subr.mxu0 %v836
    %5731 = vmatpush1.msra.mxu0 %v835
    %5732 = vmatprep.subr.mxu0 %v838
    %5733 = vmatpush1.msra.mxu0 %v837
    %5734 = vmatprep.subr.mxu0 %v840
    %5735 = vmatpush1.msra.mxu0 %v839
    %5736 = vmatprep.subr.mxu0 %v842
    %5737 = vmatpush1.msra.mxu0 %v841
    %5738 = vmatprep.subr.mxu0 %v844
    %5739 = vmatpush1.msra.mxu0 %v843
    %5740 = vmatprep.subr.mxu0 %v846
    %5741 = vmatpush1.msra.mxu0 %v845
    %5742 = vmatprep.subr.mxu0 %v848
    %5743 = vmatpush1.msra.mxu0 %v847
    %5744 = vmatprep.subr.mxu0 %v850
    %5745 = vmatpush1.msra.mxu0 %v849
    %5746 = vmatprep.subr.mxu0 %v852
    %5747 = vmatpush1.msra.mxu0 %v851
    %5748 = vmatprep.subr.mxu0 %v854
    %5749 = vmatpush1.msra.mxu0 %v853
    %5750 = vmatprep.subr.mxu0 %v856
    %5751 = vmatpush1.msra.mxu0 %v855
    %5752 = vmatprep.subr.mxu0 %v858
    %5753 = vmatpush1.msra.mxu0 %v857
    %5754 = vmatprep.subr.mxu0 %v860
    %5755 = vmatpush1.msra.mxu0 %v859
    %5756 = vmatprep.subr.mxu0 %v862
    %5757 = vmatpush1.msra.mxu0 %v861
    %5758 = vmatprep.subr.mxu0 0.0
    %5759 = vmatpush1.msra.mxu0 0.0
    %5760 = vmatprep.subr.mxu0 0.0
    %5761 = vmatpush1.msra.mxu0 0.0
    %5762 = vmatprep.subr.mxu0 0.0
    %5763 = vmatpush1.msra.mxu0 0.0
    %5764 = vmatprep.subr.mxu0 0.0
    %5765 = vmatpush1.msra.mxu0 0.0
    %5766 = vmatprep.subr.mxu0 0.0
    %5767 = vmatpush1.msra.mxu0 0.0
    %5768 = vmatprep.subr.mxu0 0.0
    %5769 = vmatpush1.msra.mxu0 0.0
    %5770 = vmatprep.subr.mxu0 0.0
    %5771 = vmatpush1.msra.mxu0 0.0
    %5772 = vmatprep.subr.mxu0 0.0
    %5773 = vmatpush1.msra.mxu0 0.0
    %5774 = vmatprep.subr.mxu0 0.0
    %5775 = vmatpush1.msra.mxu0 0.0
    %5776 = vmatprep.subr.mxu0 0.0
    %5777 = vmatpush1.msra.mxu0 0.0
    %5778 = vmatprep.subr.mxu0 0.0
    %5779 = vmatpush1.msra.mxu0 0.0
    %5780 = vmatprep.subr.mxu0 0.0
    %5781 = vmatpush1.msra.mxu0 0.0
    %5782 = vmatprep.subr.mxu0 0.0
    %5783 = vmatpush1.msra.mxu0 0.0
    %5784 = vmatprep.subr.mxu0 0.0
    %5785 = vmatpush1.msra.mxu0 0.0
    %5786 = vmatprep.subr.mxu0 0.0
    %5787 = vmatpush1.msra.mxu0 0.0
    %5788 = vmatprep.subr.mxu0 0.0
    %5789 = vmatpush1.msra.mxu0 0.0
    %5790 = vmatprep.mubr.f32.mxu0 0.0
    %5791 = vmatmul.mubr.f32.gmra.mrb[0].mxu0 %v5716
    %v5792 = vpop.f32.mrb[0].mxu0
    %v5793 = vadd.f32 0.0, %v5792
    %v5794 = vpop.f32.mrb[0].mxu0
    %v5795 = vadd.f32 0.0, %v5794
    %5796 = vmatprep.mubr.f32.mxu0 0.0
    %5797 = vmatmul.mubr.f32.gmra.mrb[0].mxu0 %v5717
    %v5798 = vpop.f32.mrb[0].mxu0
    %v5799 = vadd.f32 0.0, %v5798
    %v5800 = vpop.f32.mrb[0].mxu0
    %v5801 = vadd.f32 0.0, %v5800
    %5802 = vdwg.mxu0
    %v5803 = vadd.f32 %v5722, %v5793
    %v5804 = vadd.f32 %v5723, %v5795
    %v5805 = vadd.f32 %v5724, %v5799
    %v5806 = vadd.f32 %v5725, %v5801
    %v5807 = vmul.f32 %v5803, 0.5
    %v5808 = vmul.f32 %v5804, 0.5
    %v5809 = vmul.f32 %v5805, 0.5
    %v5810 = vmul.f32 %v5806, 0.5
    %v5811 = vtanh.pop %v5807
    %v5812 = vtanh.pop %v5808
    %v5813 = vtanh.pop %v5809
    %v5814 = vtanh.pop %v5810
    %v5815 = vmul.f32 %v5811, 0.5
    %v5816 = vmul.f32 %v5812, 0.5
    %v5817 = vmul.f32 %v5813, 0.5
    %v5818 = vmul.f32 %v5814, 0.5
    %v5819 = vadd.f32 %v5815, 0.5
    %v5820 = vadd.f32 %v5816, 0.5
    %v5821 = vadd.f32 %v5817, 0.5
    %v5822 = vadd.f32 %v5818, 0.5
    %v5823 = vtanh.pop %v5804
    %v5824 = vtanh.pop %v5806
    %v5825 = vmul.f32 %v5819, %v5690
    %v5826 = vmul.f32 %v5821, %v5691
    %5829 = vrot.lane.b32.xlu0 %v5823, 64
    %v5830 = vpop.permute.xlu0 %5829
    %5831 = vrot.lane.b32.xlu0 %v5824, 64
    %v5832 = vpop.permute.xlu0 %5831
    %v5835 = vmul.f32 %v5819, %v5830
    %v5836 = vmul.f32 %v5821, %v5832
    %5839 = vrot.lane.b32.xlu0 %v5835, 64
    %v5840 = vpop.permute.xlu0 %5839
    %5841 = vrot.lane.b32.xlu0 %v5836, 64
    %v5842 = vpop.permute.xlu0 %5841
    %v5845 = vadd.f32 %v5825, %v5840
    %v5846 = vadd.f32 %v5826, %v5842
    %v5847 = vtanh.pop %v5845
    %v5848 = vtanh.pop %v5846
    %5851 = vrot.lane.b32.xlu0 %v5847, 64
    %v5852 = vpop.permute.xlu0 %5851
    %5853 = vrot.lane.b32.xlu0 %v5848, 64
    %v5854 = vpop.permute.xlu0 %5853
    %v5857 = vmul.f32 %v5820, %v5852
    %v5858 = vmul.f32 %v5822, %v5854
    %v5859 = vmul.f32 %v5857, %v870
    %v5860 = vmul.f32 %v5858, %v871
    %v5861 = vmul.f32 %v5857, %v872
    %v5862 = vmul.f32 %v5858, %v873
    %5865 = vrot.lane.b32.xlu0 %v5861, 64
    %v5866 = vpop.permute.xlu0 %5865
    %5867 = vrot.lane.b32.xlu0 %v5862, 64
    %v5868 = vpop.permute.xlu0 %5867
    %v5871 = vsel %vm1039, %v5859, %v5866
    %v5872 = vsel %vm1039, %v5860, %v5868
    %v5873 = vadd.f32 %v5718, %v5871
    %v5874 = vadd.f32 %v5719, %v5872
    %v5875 = vmax.f32 %v5720, %v5871
    %v5876 = vmax.f32 %v5721, %v5872
    %v5877 = vld [vmem:[#allocation5 + $0x180] sm:$0xff]
    %v5878 = vld [vmem:[#allocation5 + $0x188] sm:$0xff]
    %v5879 = vld [vmem:[#allocation5 + $0x190] sm:$0xff]
    %v5880 = vld [vmem:[#allocation5 + $0x198] sm:$0xff]
    %5881 = vmatprep.subr.mxu0 %v832
    %5882 = vmatpush1.msra.mxu0 %v831
    %5883 = vmatprep.subr.mxu0 %v834
    %5884 = vmatpush1.msra.mxu0 %v833
    %5885 = vmatprep.subr.mxu0 %v836
    %5886 = vmatpush1.msra.mxu0 %v835
    %5887 = vmatprep.subr.mxu0 %v838
    %5888 = vmatpush1.msra.mxu0 %v837
    %5889 = vmatprep.subr.mxu0 %v840
    %5890 = vmatpush1.msra.mxu0 %v839
    %5891 = vmatprep.subr.mxu0 %v842
    %5892 = vmatpush1.msra.mxu0 %v841
    %5893 = vmatprep.subr.mxu0 %v844
    %5894 = vmatpush1.msra.mxu0 %v843
    %5895 = vmatprep.subr.mxu0 %v846
    %5896 = vmatpush1.msra.mxu0 %v845
    %5897 = vmatprep.subr.mxu0 %v848
    %5898 = vmatpush1.msra.mxu0 %v847
    %5899 = vmatprep.subr.mxu0 %v850
    %5900 = vmatpush1.msra.mxu0 %v849
    %5901 = vmatprep.subr.mxu0 %v852
    %5902 = vmatpush1.msra.mxu0 %v851
    %5903 = vmatprep.subr.mxu0 %v854
    %5904 = vmatpush1.msra.mxu0 %v853
    %5905 = vmatprep.subr.mxu0 %v856
    %5906 = vmatpush1.msra.mxu0 %v855
    %5907 = vmatprep.subr.mxu0 %v858
    %5908 = vmatpush1.msra.mxu0 %v857
    %5909 = vmatprep.subr.mxu0 %v860
    %5910 = vmatpush1.msra.mxu0 %v859
    %5911 = vmatprep.subr.mxu0 %v862
    %5912 = vmatpush1.msra.mxu0 %v861
    %5913 = vmatprep.subr.mxu0 0.0
    %5914 = vmatpush1.msra.mxu0 0.0
    %5915 = vmatprep.subr.mxu0 0.0
    %5916 = vmatpush1.msra.mxu0 0.0
    %5917 = vmatprep.subr.mxu0 0.0
    %5918 = vmatpush1.msra.mxu0 0.0
    %5919 = vmatprep.subr.mxu0 0.0
    %5920 = vmatpush1.msra.mxu0 0.0
    %5921 = vmatprep.subr.mxu0 0.0
    %5922 = vmatpush1.msra.mxu0 0.0
    %5923 = vmatprep.subr.mxu0 0.0
    %5924 = vmatpush1.msra.mxu0 0.0
    %5925 = vmatprep.subr.mxu0 0.0
    %5926 = vmatpush1.msra.mxu0 0.0
    %5927 = vmatprep.subr.mxu0 0.0
    %5928 = vmatpush1.msra.mxu0 0.0
    %5929 = vmatprep.subr.mxu0 0.0
    %5930 = vmatpush1.msra.mxu0 0.0
    %5931 = vmatprep.subr.mxu0 0.0
    %5932 = vmatpush1.msra.mxu0 0.0
    %5933 = vmatprep.subr.mxu0 0.0
    %5934 = vmatpush1.msra.mxu0 0.0
    %5935 = vmatprep.subr.mxu0 0.0
    %5936 = vmatpush1.msra.mxu0 0.0
    %5937 = vmatprep.subr.mxu0 0.0
    %5938 = vmatpush1.msra.mxu0 0.0
    %5939 = vmatprep.subr.mxu0 0.0
    %5940 = vmatpush1.msra.mxu0 0.0
    %5941 = vmatprep.subr.mxu0 0.0
    %5942 = vmatpush1.msra.mxu0 0.0
    %5943 = vmatprep.subr.mxu0 0.0
    %5944 = vmatpush1.msra.mxu0 0.0
    %5945 = vmatprep.mubr.f32.mxu0 0.0
    %5946 = vmatmul.mubr.f32.gmra.mrb[0].mxu0 %v5871
    %v5947 = vpop.f32.mrb[0].mxu0
    %v5948 = vadd.f32 0.0, %v5947
    %v5949 = vpop.f32.mrb[0].mxu0
    %v5950 = vadd.f32 0.0, %v5949
    %5951 = vmatprep.mubr.f32.mxu0 0.0
    %5952 = vmatmul.mubr.f32.gmra.mrb[0].mxu0 %v5872
    %v5953 = vpop.f32.mrb[0].mxu0
    %v5954 = vadd.f32 0.0, %v5953
    %v5955 = vpop.f32.mrb[0].mxu0
    %v5956 = vadd.f32 0.0, %v5955
    %5957 = vdwg.mxu0
    %v5958 = vadd.f32 %v5877, %v5948
    %v5959 = vadd.f32 %v5878, %v5950
    %v5960 = vadd.f32 %v5879, %v5954
    %v5961 = vadd.f32 %v5880, %v5956
    %v5962 = vmul.f32 %v5958, 0.5
    %v5963 = vmul.f32 %v5959, 0.5
    %v5964 = vmul.f32 %v5960, 0.5
    %v5965 = vmul.f32 %v5961, 0.5
    %v5966 = vtanh.pop %v5962
    %v5967 = vtanh.pop %v5963
    %v5968 = vtanh.pop %v5964
    %v5969 = vtanh.pop %v5965
    %v5970 = vmul.f32 %v5966, 0.5
    %v5971 = vmul.f32 %v5967, 0.5
    %v5972 = vmul.f32 %v5968, 0.5
    %v5973 = vmul.f32 %v5969, 0.5
    %v5974 = vadd.f32 %v5970, 0.5
    %v5975 = vadd.f32 %v5971, 0.5
    %v5976 = vadd.f32 %v5972, 0.5
    %v5977 = vadd.f32 %v5973, 0.5
    %v5978 = vtanh.pop %v5959
    %v5979 = vtanh.pop %v5961
    %v5980 = vmul.f32 %v5974, %v5845
    %v5981 = vmul.f32 %v5976, %v5846
    %5984 = vrot.lane.b32.xlu0 %v5978, 64
    %v5985 = vpop.permute.xlu0 %5984
    %5986 = vrot.lane.b32.xlu0 %v5979, 64
    %v5987 = vpop.permute.xlu0 %5986
    %v5990 = vmul.f32 %v5974, %v5985
    %v5991 = vmul.f32 %v5976, %v5987
    %5994 = vrot.lane.b32.xlu0 %v5990, 64
    %v5995 = vpop.permute.xlu0 %5994
    %5996 = vrot.lane.b32.xlu0 %v5991, 64
    %v5997 = vpop.permute.xlu0 %5996
    %v6000 = vadd.f32 %v5980, %v5995
    %v6001 = vadd.f32 %v5981, %v5997
    %v6002 = vtanh.pop %v6000
    %v6003 = vtanh.pop %v6001
    %6006 = vrot.lane.b32.xlu0 %v6002, 64
    %v6007 = vpop.permute.xlu0 %6006
    %6008 = vrot.lane.b32.xlu0 %v6003, 64
    %v6009 = vpop.permute.xlu0 %6008
    %v6012 = vmul.f32 %v5975, %v6007
    %v6013 = vmul.f32 %v5977, %v6009
    %v6014 = vmul.f32 %v6012, %v870
    %v6015 = vmul.f32 %v6013, %v871
    %v6016 = vmul.f32 %v6012, %v872
    %v6017 = vmul.f32 %v6013, %v873
    %6020 = vrot.lane.b32.xlu0 %v6016, 64
    %v6021 = vpop.permute.xlu0 %6020
    %6022 = vrot.lane.b32.xlu0 %v6017, 64
    %v6023 = vpop.permute.xlu0 %6022
    %v6026 = vsel %vm1039, %v6014, %v6021
    %v6027 = vsel %vm1039, %v6015, %v6023
    %v6028 = vadd.f32 %v5873, %v6026
    %v6029 = vadd.f32 %v5874, %v6027
    %v6030 = vmax.f32 %v5875, %v6026
    %v6031 = vmax.f32 %v5876, %v6027
    %v6032 = vld [vmem:[#allocation5 + $0x1a0] sm:$0xff]
    %v6033 = vld [vmem:[#allocation5 + $0x1a8] sm:$0xff]
    %v6034 = vld [vmem:[#allocation5 + $0x1b0] sm:$0xff]
    %v6035 = vld [vmem:[#allocation5 + $0x1b8] sm:$0xff]
    %6036 = vmatprep.subr.mxu0 %v832
    %6037 = vmatpush1.msra.mxu0 %v831
    %6038 = vmatprep.subr.mxu0 %v834
    %6039 = vmatpush1.msra.mxu0 %v833
    %6040 = vmatprep.subr.mxu0 %v836
    %6041 = vmatpush1.msra.mxu0 %v835
    %6042 = vmatprep.subr.mxu0 %v838
    %6043 = vmatpush1.msra.mxu0 %v837
    %6044 = vmatprep.subr.mxu0 %v840
    %6045 = vmatpush1.msra.mxu0 %v839
    %6046 = vmatprep.subr.mxu0 %v842
    %6047 = vmatpush1.msra.mxu0 %v841
    %6048 = vmatprep.subr.mxu0 %v844
    %6049 = vmatpush1.msra.mxu0 %v843
    %6050 = vmatprep.subr.mxu0 %v846
    %6051 = vmatpush1.msra.mxu0 %v845
    %6052 = vmatprep.subr.mxu0 %v848
    %6053 = vmatpush1.msra.mxu0 %v847
    %6054 = vmatprep.subr.mxu0 %v850
    %6055 = vmatpush1.msra.mxu0 %v849
    %6056 = vmatprep.subr.mxu0 %v852
    %6057 = vmatpush1.msra.mxu0 %v851
    %6058 = vmatprep.subr.mxu0 %v854
    %6059 = vmatpush1.msra.mxu0 %v853
    %6060 = vmatprep.subr.mxu0 %v856
    %6061 = vmatpush1.msra.mxu0 %v855
    %6062 = vmatprep.subr.mxu0 %v858
    %6063 = vmatpush1.msra.mxu0 %v857
    %6064 = vmatprep.subr.mxu0 %v860
    %6065 = vmatpush1.msra.mxu0 %v859
    %6066 = vmatprep.subr.mxu0 %v862
    %6067 = vmatpush1.msra.mxu0 %v861
    %6068 = vmatprep.subr.mxu0 0.0
    %6069 = vmatpush1.msra.mxu0 0.0
    %6070 = vmatprep.subr.mxu0 0.0
    %6071 = vmatpush1.msra.mxu0 0.0
    %6072 = vmatprep.subr.mxu0 0.0
    %6073 = vmatpush1.msra.mxu0 0.0
    %6074 = vmatprep.subr.mxu0 0.0
    %6075 = vmatpush1.msra.mxu0 0.0
    %6076 = vmatprep.subr.mxu0 0.0
    %6077 = vmatpush1.msra.mxu0 0.0
    %6078 = vmatprep.subr.mxu0 0.0
    %6079 = vmatpush1.msra.mxu0 0.0
    %6080 = vmatprep.subr.mxu0 0.0
    %6081 = vmatpush1.msra.mxu0 0.0
    %6082 = vmatprep.subr.mxu0 0.0
    %6083 = vmatpush1.msra.mxu0 0.0
    %6084 = vmatprep.subr.mxu0 0.0
    %6085 = vmatpush1.msra.mxu0 0.0
    %6086 = vmatprep.subr.mxu0 0.0
    %6087 = vmatpush1.msra.mxu0 0.0
    %6088 = vmatprep.subr.mxu0 0.0
    %6089 = vmatpush1.msra.mxu0 0.0
    %6090 = vmatprep.subr.mxu0 0.0
    %6091 = vmatpush1.msra.mxu0 0.0
    %6092 = vmatprep.subr.mxu0 0.0
    %6093 = vmatpush1.msra.mxu0 0.0
    %6094 = vmatprep.subr.mxu0 0.0
    %6095 = vmatpush1.msra.mxu0 0.0
    %6096 = vmatprep.subr.mxu0 0.0
    %6097 = vmatpush1.msra.mxu0 0.0
    %6098 = vmatprep.subr.mxu0 0.0
    %6099 = vmatpush1.msra.mxu0 0.0
    %6100 = vmatprep.mubr.f32.mxu0 0.0
    %6101 = vmatmul.mubr.f32.gmra.mrb[0].mxu0 %v6026
    %v6102 = vpop.f32.mrb[0].mxu0
    %v6103 = vadd.f32 0.0, %v6102
    %v6104 = vpop.f32.mrb[0].mxu0
    %v6105 = vadd.f32 0.0, %v6104
    %6106 = vmatprep.mubr.f32.mxu0 0.0
    %6107 = vmatmul.mubr.f32.gmra.mrb[0].mxu0 %v6027
    %v6108 = vpop.f32.mrb[0].mxu0
    %v6109 = vadd.f32 0.0, %v6108
    %v6110 = vpop.f32.mrb[0].mxu0
    %v6111 = vadd.f32 0.0, %v6110
    %6112 = vdwg.mxu0
    %v6113 = vadd.f32 %v6032, %v6103
    %v6114 = vadd.f32 %v6033, %v6105
    %v6115 = vadd.f32 %v6034, %v6109
    %v6116 = vadd.f32 %v6035, %v6111
    %v6117 = vmul.f32 %v6113, 0.5
    %v6118 = vmul.f32 %v6114, 0.5
    %v6119 = vmul.f32 %v6115, 0.5
    %v6120 = vmul.f32 %v6116, 0.5
    %v6121 = vtanh.pop %v6117
    %v6122 = vtanh.pop %v6118
    %v6123 = vtanh.pop %v6119
    %v6124 = vtanh.pop %v6120
    %v6125 = vmul.f32 %v6121, 0.5
    %v6126 = vmul.f32 %v6122, 0.5
    %v6127 = vmul.f32 %v6123, 0.5
    %v6128 = vmul.f32 %v6124, 0.5
    %v6129 = vadd.f32 %v6125, 0.5
    %v6130 = vadd.f32 %v6126, 0.5
    %v6131 = vadd.f32 %v6127, 0.5
    %v6132 = vadd.f32 %v6128, 0.5
    %v6133 = vtanh.pop %v6114
    %v6134 = vtanh.pop %v6116
    %v6135 = vmul.f32 %v6129, %v6000
    %v6136 = vmul.f32 %v6131, %v6001
    %6139 = vrot.lane.b32.xlu0 %v6133, 64
    %v6140 = vpop.permute.xlu0 %6139
    %6141 = vrot.lane.b32.xlu0 %v6134, 64
    %v6142 = vpop.permute.xlu0 %6141
    %v6145 = vmul.f32 %v6129, %v6140
    %v6146 = vmul.f32 %v6131, %v6142
    %6149 = vrot.lane.b32.xlu0 %v6145, 64
    %v6150 = vpop.permute.xlu0 %6149
    %6151 = vrot.lane.b32.xlu0 %v6146, 64
    %v6152 = vpop.permute.xlu0 %6151
    %v6155 = vadd.f32 %v6135, %v6150
    %v6156 = vadd.f32 %v6136, %v6152
    %v6157 = vtanh.pop %v6155
    %v6158 = vtanh.pop %v6156
    %6161 = vrot.lane.b32.xlu0 %v6157, 64
    %v6162 = vpop.permute.xlu0 %6161
    %6163 = vrot.lane.b32.xlu0 %v6158, 64
    %v6164 = vpop.permute.xlu0 %6163
    %v6167 = vmul.f32 %v6130, %v6162
    %v6168 = vmul.f32 %v6132, %v6164
    %v6169 = vmul.f32 %v6167, %v870
    %v6170 = vmul.f32 %v6168, %v871
    %v6171 = vmul.f32 %v6167, %v872
    %v6172 = vmul.f32 %v6168, %v873
    %6175 = vrot.lane.b32.xlu0 %v6171, 64
    %v6176 = vpop.permute.xlu0 %6175
    %6177 = vrot.lane.b32.xlu0 %v6172, 64
    %v6178 = vpop.permute.xlu0 %6177
    %v6181 = vsel %vm1039, %v6169, %v6176
    %v6182 = vsel %vm1039, %v6170, %v6178
    %v6183 = vadd.f32 %v6028, %v6181
    %v6184 = vadd.f32 %v6029, %v6182
    %v6185 = vmax.f32 %v6030, %v6181
    %v6186 = vmax.f32 %v6031, %v6182
    %v6187 = vld [vmem:[#allocation5 + $0x1c0] sm:$0xff]
    %v6188 = vld [vmem:[#allocation5 + $0x1c8] sm:$0xff]
    %v6189 = vld [vmem:[#allocation5 + $0x1d0] sm:$0xff]
    %v6190 = vld [vmem:[#allocation5 + $0x1d8] sm:$0xff]
    %6191 = vmatprep.subr.mxu0 %v832
    %6192 = vmatpush1.msra.mxu0 %v831
    %6193 = vmatprep.subr.mxu0 %v834
    %6194 = vmatpush1.msra.mxu0 %v833
    %6195 = vmatprep.subr.mxu0 %v836
    %6196 = vmatpush1.msra.mxu0 %v835
    %6197 = vmatprep.subr.mxu0 %v838
    %6198 = vmatpush1.msra.mxu0 %v837
    %6199 = vmatprep.subr.mxu0 %v840
    %6200 = vmatpush1.msra.mxu0 %v839
    %6201 = vmatprep.subr.mxu0 %v842
    %6202 = vmatpush1.msra.mxu0 %v841
    %6203 = vmatprep.subr.mxu0 %v844
    %6204 = vmatpush1.msra.mxu0 %v843
    %6205 = vmatprep.subr.mxu0 %v846
    %6206 = vmatpush1.msra.mxu0 %v845
    %6207 = vmatprep.subr.mxu0 %v848
    %6208 = vmatpush1.msra.mxu0 %v847
    %6209 = vmatprep.subr.mxu0 %v850
    %6210 = vmatpush1.msra.mxu0 %v849
    %6211 = vmatprep.subr.mxu0 %v852
    %6212 = vmatpush1.msra.mxu0 %v851
    %6213 = vmatprep.subr.mxu0 %v854
    %6214 = vmatpush1.msra.mxu0 %v853
    %6215 = vmatprep.subr.mxu0 %v856
    %6216 = vmatpush1.msra.mxu0 %v855
    %6217 = vmatprep.subr.mxu0 %v858
    %6218 = vmatpush1.msra.mxu0 %v857
    %6219 = vmatprep.subr.mxu0 %v860
    %6220 = vmatpush1.msra.mxu0 %v859
    %6221 = vmatprep.subr.mxu0 %v862
    %6222 = vmatpush1.msra.mxu0 %v861
    %6223 = vmatprep.subr.mxu0 0.0
    %6224 = vmatpush1.msra.mxu0 0.0
    %6225 = vmatprep.subr.mxu0 0.0
    %6226 = vmatpush1.msra.mxu0 0.0
    %6227 = vmatprep.subr.mxu0 0.0
    %6228 = vmatpush1.msra.mxu0 0.0
    %6229 = vmatprep.subr.mxu0 0.0
    %6230 = vmatpush1.msra.mxu0 0.0
    %6231 = vmatprep.subr.mxu0 0.0
    %6232 = vmatpush1.msra.mxu0 0.0
    %6233 = vmatprep.subr.mxu0 0.0
    %6234 = vmatpush1.msra.mxu0 0.0
    %6235 = vmatprep.subr.mxu0 0.0
    %6236 = vmatpush1.msra.mxu0 0.0
    %6237 = vmatprep.subr.mxu0 0.0
    %6238 = vmatpush1.msra.mxu0 0.0
    %6239 = vmatprep.subr.mxu0 0.0
    %6240 = vmatpush1.msra.mxu0 0.0
    %6241 = vmatprep.subr.mxu0 0.0
    %6242 = vmatpush1.msra.mxu0 0.0
    %6243 = vmatprep.subr.mxu0 0.0
    %6244 = vmatpush1.msra.mxu0 0.0
    %6245 = vmatprep.subr.mxu0 0.0
    %6246 = vmatpush1.msra.mxu0 0.0
    %6247 = vmatprep.subr.mxu0 0.0
    %6248 = vmatpush1.msra.mxu0 0.0
    %6249 = vmatprep.subr.mxu0 0.0
    %6250 = vmatpush1.msra.mxu0 0.0
    %6251 = vmatprep.subr.mxu0 0.0
    %6252 = vmatpush1.msra.mxu0 0.0
    %6253 = vmatprep.subr.mxu0 0.0
    %6254 = vmatpush1.msra.mxu0 0.0
    %6255 = vmatprep.mubr.f32.mxu0 0.0
    %6256 = vmatmul.mubr.f32.gmra.mrb[0].mxu0 %v6181
    %v6257 = vpop.f32.mrb[0].mxu0
    %v6258 = vadd.f32 0.0, %v6257
    %v6259 = vpop.f32.mrb[0].mxu0
    %v6260 = vadd.f32 0.0, %v6259
    %6261 = vmatprep.mubr.f32.mxu0 0.0
    %6262 = vmatmul.mubr.f32.gmra.mrb[0].mxu0 %v6182
    %v6263 = vpop.f32.mrb[0].mxu0
    %v6264 = vadd.f32 0.0, %v6263
    %v6265 = vpop.f32.mrb[0].mxu0
    %v6266 = vadd.f32 0.0, %v6265
    %6267 = vdwg.mxu0
    %v6268 = vadd.f32 %v6187, %v6258
    %v6269 = vadd.f32 %v6188, %v6260
    %v6270 = vadd.f32 %v6189, %v6264
    %v6271 = vadd.f32 %v6190, %v6266
    %v6272 = vmul.f32 %v6268, 0.5
    %v6273 = vmul.f32 %v6269, 0.5
    %v6274 = vmul.f32 %v6270, 0.5
    %v6275 = vmul.f32 %v6271, 0.5
    %v6276 = vtanh.pop %v6272
    %v6277 = vtanh.pop %v6273
    %v6278 = vtanh.pop %v6274
    %v6279 = vtanh.pop %v6275
    %v6280 = vmul.f32 %v6276, 0.5
    %v6281 = vmul.f32 %v6277, 0.5
    %v6282 = vmul.f32 %v6278, 0.5
    %v6283 = vmul.f32 %v6279, 0.5
    %v6284 = vadd.f32 %v6280, 0.5
    %v6285 = vadd.f32 %v6281, 0.5
    %v6286 = vadd.f32 %v6282, 0.5
    %v6287 = vadd.f32 %v6283, 0.5
    %v6288 = vtanh.pop %v6269
    %v6289 = vtanh.pop %v6271
    %v6290 = vmul.f32 %v6284, %v6155
    %v6291 = vmul.f32 %v6286, %v6156
    %6294 = vrot.lane.b32.xlu0 %v6288, 64
    %v6295 = vpop.permute.xlu0 %6294
    %6296 = vrot.lane.b32.xlu0 %v6289, 64
    %v6297 = vpop.permute.xlu0 %6296
    %v6300 = vmul.f32 %v6284, %v6295
    %v6301 = vmul.f32 %v6286, %v6297
    %6304 = vrot.lane.b32.xlu0 %v6300, 64
    %v6305 = vpop.permute.xlu0 %6304
    %6306 = vrot.lane.b32.xlu0 %v6301, 64
    %v6307 = vpop.permute.xlu0 %6306
    %v6310 = vadd.f32 %v6290, %v6305
    %v6311 = vadd.f32 %v6291, %v6307
    %v6312 = vtanh.pop %v6310
    %v6313 = vtanh.pop %v6311
    %6316 = vrot.lane.b32.xlu0 %v6312, 64
    %v6317 = vpop.permute.xlu0 %6316
    %6318 = vrot.lane.b32.xlu0 %v6313, 64
    %v6319 = vpop.permute.xlu0 %6318
    %v6322 = vmul.f32 %v6285, %v6317
    %v6323 = vmul.f32 %v6287, %v6319
    %v6324 = vmul.f32 %v6322, %v870
    %v6325 = vmul.f32 %v6323, %v871
    %v6326 = vmul.f32 %v6322, %v872
    %v6327 = vmul.f32 %v6323, %v873
    %6330 = vrot.lane.b32.xlu0 %v6326, 64
    %v6331 = vpop.permute.xlu0 %6330
    %6332 = vrot.lane.b32.xlu0 %v6327, 64
    %v6333 = vpop.permute.xlu0 %6332
    %v6336 = vsel %vm1039, %v6324, %v6331
    %v6337 = vsel %vm1039, %v6325, %v6333
    %v6338 = vadd.f32 %v6183, %v6336
    %v6339 = vadd.f32 %v6184, %v6337
    %v6340 = vmax.f32 %v6185, %v6336
    %v6341 = vmax.f32 %v6186, %v6337
    %v6342 = vld [vmem:[#allocation5 + $0x1e0] sm:$0xff]
    %v6343 = vld [vmem:[#allocation5 + $0x1e8] sm:$0xff]
    %v6344 = vld [vmem:[#allocation5 + $0x1f0] sm:$0xff]
    %v6345 = vld [vmem:[#allocation5 + $0x1f8] sm:$0xff]
    %6346 = vmatprep.subr.mxu0 %v832
    %6347 = vmatpush1.msra.mxu0 %v831
    %6348 = vmatprep.subr.mxu0 %v834
    %6349 = vmatpush1.msra.mxu0 %v833
    %6350 = vmatprep.subr.mxu0 %v836
    %6351 = vmatpush1.msra.mxu0 %v835
    %6352 = vmatprep.subr.mxu0 %v838
    %6353 = vmatpush1.msra.mxu0 %v837
    %6354 = vmatprep.subr.mxu0 %v840
    %6355 = vmatpush1.msra.mxu0 %v839
    %6356 = vmatprep.subr.mxu0 %v842
    %6357 = vmatpush1.msra.mxu0 %v841
    %6358 = vmatprep.subr.mxu0 %v844
    %6359 = vmatpush1.msra.mxu0 %v843
    %6360 = vmatprep.subr.mxu0 %v846
    %6361 = vmatpush1.msra.mxu0 %v845
    %6362 = vmatprep.subr.mxu0 %v848
    %6363 = vmatpush1.msra.mxu0 %v847
    %6364 = vmatprep.subr.mxu0 %v850
    %6365 = vmatpush1.msra.mxu0 %v849
    %6366 = vmatprep.subr.mxu0 %v852
    %6367 = vmatpush1.msra.mxu0 %v851
    %6368 = vmatprep.subr.mxu0 %v854
    %6369 = vmatpush1.msra.mxu0 %v853
    %6370 = vmatprep.subr.mxu0 %v856
    %6371 = vmatpush1.msra.mxu0 %v855
    %6372 = vmatprep.subr.mxu0 %v858
    %6373 = vmatpush1.msra.mxu0 %v857
    %6374 = vmatprep.subr.mxu0 %v860
    %6375 = vmatpush1.msra.mxu0 %v859
    %6376 = vmatprep.subr.mxu0 %v862
    %6377 = vmatpush1.msra.mxu0 %v861
    %6378 = vmatprep.subr.mxu0 0.0
    %6379 = vmatpush1.msra.mxu0 0.0
    %6380 = vmatprep.subr.mxu0 0.0
    %6381 = vmatpush1.msra.mxu0 0.0
    %6382 = vmatprep.subr.mxu0 0.0
    %6383 = vmatpush1.msra.mxu0 0.0
    %6384 = vmatprep.subr.mxu0 0.0
    %6385 = vmatpush1.msra.mxu0 0.0
    %6386 = vmatprep.subr.mxu0 0.0
    %6387 = vmatpush1.msra.mxu0 0.0
    %6388 = vmatprep.subr.mxu0 0.0
    %6389 = vmatpush1.msra.mxu0 0.0
    %6390 = vmatprep.subr.mxu0 0.0
    %6391 = vmatpush1.msra.mxu0 0.0
    %6392 = vmatprep.subr.mxu0 0.0
    %6393 = vmatpush1.msra.mxu0 0.0
    %6394 = vmatprep.subr.mxu0 0.0
    %6395 = vmatpush1.msra.mxu0 0.0
    %6396 = vmatprep.subr.mxu0 0.0
    %6397 = vmatpush1.msra.mxu0 0.0
    %6398 = vmatprep.subr.mxu0 0.0
    %6399 = vmatpush1.msra.mxu0 0.0
    %6400 = vmatprep.subr.mxu0 0.0
    %6401 = vmatpush1.msra.mxu0 0.0
    %6402 = vmatprep.subr.mxu0 0.0
    %6403 = vmatpush1.msra.mxu0 0.0
    %6404 = vmatprep.subr.mxu0 0.0
    %6405 = vmatpush1.msra.mxu0 0.0
    %6406 = vmatprep.subr.mxu0 0.0
    %6407 = vmatpush1.msra.mxu0 0.0
    %6408 = vmatprep.subr.mxu0 0.0
    %6409 = vmatpush1.msra.mxu0 0.0
    %6410 = vmatprep.mubr.f32.mxu0 0.0
    %6411 = vmatmul.mubr.f32.gmra.mrb[0].mxu0 %v6336
    %v6412 = vpop.f32.mrb[0].mxu0
    %v6413 = vadd.f32 0.0, %v6412
    %v6414 = vpop.f32.mrb[0].mxu0
    %v6415 = vadd.f32 0.0, %v6414
    %6416 = vmatprep.mubr.f32.mxu0 0.0
    %6417 = vmatmul.mubr.f32.gmra.mrb[0].mxu0 %v6337
    %v6418 = vpop.f32.mrb[0].mxu0
    %v6419 = vadd.f32 0.0, %v6418
    %v6420 = vpop.f32.mrb[0].mxu0
    %v6421 = vadd.f32 0.0, %v6420
    %6422 = vdwg.mxu0
    %v6423 = vadd.f32 %v6342, %v6413
    %v6424 = vadd.f32 %v6343, %v6415
    %v6425 = vadd.f32 %v6344, %v6419
    %v6426 = vadd.f32 %v6345, %v6421
    %v6427 = vmul.f32 %v6423, 0.5
    %v6428 = vmul.f32 %v6424, 0.5
    %v6429 = vmul.f32 %v6425, 0.5
    %v6430 = vmul.f32 %v6426, 0.5
    %v6431 = vtanh.pop %v6427
    %v6432 = vtanh.pop %v6428
    %v6433 = vtanh.pop %v6429
    %v6434 = vtanh.pop %v6430
    %v6435 = vmul.f32 %v6431, 0.5
    %v6436 = vmul.f32 %v6432, 0.5
    %v6437 = vmul.f32 %v6433, 0.5
    %v6438 = vmul.f32 %v6434, 0.5
    %v6439 = vadd.f32 %v6435, 0.5
    %v6440 = vadd.f32 %v6436, 0.5
    %v6441 = vadd.f32 %v6437, 0.5
    %v6442 = vadd.f32 %v6438, 0.5
    %v6443 = vtanh.pop %v6424
    %v6444 = vtanh.pop %v6426
    %v6445 = vmul.f32 %v6439, %v6310
    %v6446 = vmul.f32 %v6441, %v6311
    %6449 = vrot.lane.b32.xlu0 %v6443, 64
    %v6450 = vpop.permute.xlu0 %6449
    %6451 = vrot.lane.b32.xlu0 %v6444, 64
    %v6452 = vpop.permute.xlu0 %6451
    %v6455 = vmul.f32 %v6439, %v6450
    %v6456 = vmul.f32 %v6441, %v6452
    %6459 = vrot.lane.b32.xlu0 %v6455, 64
    %v6460 = vpop.permute.xlu0 %6459
    %6461 = vrot.lane.b32.xlu0 %v6456, 64
    %v6462 = vpop.permute.xlu0 %6461
    %v6465 = vadd.f32 %v6445, %v6460
    %v6466 = vadd.f32 %v6446, %v6462
    %v6467 = vtanh.pop %v6465
    %v6468 = vtanh.pop %v6466
    %6471 = vrot.lane.b32.xlu0 %v6467, 64
    %v6472 = vpop.permute.xlu0 %6471
    %6473 = vrot.lane.b32.xlu0 %v6468, 64
    %v6474 = vpop.permute.xlu0 %6473
    %v6477 = vmul.f32 %v6440, %v6472
    %v6478 = vmul.f32 %v6442, %v6474
    %v6479 = vmul.f32 %v6477, %v870
    %v6480 = vmul.f32 %v6478, %v871
    %v6481 = vmul.f32 %v6477, %v872
    %v6482 = vmul.f32 %v6478, %v873
    %6485 = vrot.lane.b32.xlu0 %v6481, 64
    %v6486 = vpop.permute.xlu0 %6485
    %6487 = vrot.lane.b32.xlu0 %v6482, 64
    %v6488 = vpop.permute.xlu0 %6487
    %v6491 = vsel %vm1039, %v6479, %v6486
    %v6492 = vsel %vm1039, %v6480, %v6488
    %v6493 = vadd.f32 %v6338, %v6491
    %v6494 = vadd.f32 %v6339, %v6492
    %v6495 = vmax.f32 %v6340, %v6491
    %v6496 = vmax.f32 %v6341, %v6492
    %v6497 = vadd.f32 %v6495, %v6496
    %v6498 = vadd.f32 %v6493, %v6494
    %v6499 = vmul.f32 %v6498, 0.0625
    %v6500 = vld [vmem:[#allocation12] sm:$0xff]
    %v6501 = vld [vmem:[#allocation12 + $0x8] sm:$0xff]
    %v6502 = vld [vmem:[#allocation12 + $0x10] sm:$0xff]
    %v6503 = vld [vmem:[#allocation12 + $0x18] sm:$0xff]
    %v6504 = vld [vmem:[#allocation12 + $0x20] sm:$0xff]
    %v6505 = vld [vmem:[#allocation12 + $0x28] sm:$0xff]
    %v6506 = vld [vmem:[#allocation12 + $0x30] sm:$0xff]
    %v6507 = vld [vmem:[#allocation12 + $0x38] sm:$0xff]
    %v6508 = vld [vmem:[#allocation12 + $0x40] sm:$0xff]
    %v6509 = vld [vmem:[#allocation12 + $0x48] sm:$0xff]
    %v6510 = vld [vmem:[#allocation12 + $0x50] sm:$0xff]
    %v6511 = vld [vmem:[#allocation12 + $0x58] sm:$0xff]
    %v6512 = vld [vmem:[#allocation12 + $0x60] sm:$0xff]
    %v6513 = vld [vmem:[#allocation12 + $0x68] sm:$0xff]
    %v6514 = vld [vmem:[#allocation12 + $0x70] sm:$0xff]
    %v6515 = vld [vmem:[#allocation12 + $0x78] sm:$0xff]
    %v6516 = vld [vmem:[#allocation12 + $0x80] sm:$0xff]
    %v6517 = vld [vmem:[#allocation12 + $0x88] sm:$0xff]
    %v6518 = vld [vmem:[#allocation12 + $0x90] sm:$0xff]
    %v6519 = vld [vmem:[#allocation12 + $0x98] sm:$0xff]
    %v6520 = vld [vmem:[#allocation12 + $0xa0] sm:$0xff]
    %v6521 = vld [vmem:[#allocation12 + $0xa8] sm:$0xff]
    %v6522 = vld [vmem:[#allocation12 + $0xb0] sm:$0xff]
    %v6523 = vld [vmem:[#allocation12 + $0xb8] sm:$0xff]
    %v6524 = vld [vmem:[#allocation12 + $0xc0] sm:$0xff]
    %v6525 = vld [vmem:[#allocation12 + $0xc8] sm:$0xff]
    %v6526 = vld [vmem:[#allocation12 + $0xd0] sm:$0xff]
    %v6527 = vld [vmem:[#allocation12 + $0xd8] sm:$0xff]
    %v6528 = vld [vmem:[#allocation12 + $0xe0] sm:$0xff]
    %v6529 = vld [vmem:[#allocation12 + $0xe8] sm:$0xff]
    %v6530 = vld [vmem:[#allocation12 + $0xf0] sm:$0xff]
    %v6531 = vld [vmem:[#allocation12 + $0xf8] sm:$0xff]
    %v6532 = vld [vmem:[%s9] sm:$0x1]
    %v6533 = vlaneseq
    %v6534 = vshrl.u32 %v6533, 7
    %v6535 = vsub.s32 0, %v6534
    %v6536 = vrot.slane %v6532, %v6535
    %6537 = vmatprep.subr.mxu0 0.0
    %6538 = vmatpush1.msra.mxu0 %v6500
    %6539 = vmatprep.subr.mxu0 0.0
    %6540 = vmatpush1.msra.mxu0 %v6501
    %6541 = vmatprep.subr.mxu0 0.0
    %6542 = vmatpush1.msra.mxu0 %v6502
    %6543 = vmatprep.subr.mxu0 0.0
    %6544 = vmatpush1.msra.mxu0 %v6503
    %6545 = vmatprep.subr.mxu0 0.0
    %6546 = vmatpush1.msra.mxu0 %v6504
    %6547 = vmatprep.subr.mxu0 0.0
    %6548 = vmatpush1.msra.mxu0 %v6505
    %6549 = vmatprep.subr.mxu0 0.0
    %6550 = vmatpush1.msra.mxu0 %v6506
    %6551 = vmatprep.subr.mxu0 0.0
    %6552 = vmatpush1.msra.mxu0 %v6507
    %6553 = vmatprep.subr.mxu0 0.0
    %6554 = vmatpush1.msra.mxu0 %v6508
    %6555 = vmatprep.subr.mxu0 0.0
    %6556 = vmatpush1.msra.mxu0 %v6509
    %6557 = vmatprep.subr.mxu0 0.0
    %6558 = vmatpush1.msra.mxu0 %v6510
    %6559 = vmatprep.subr.mxu0 0.0
    %6560 = vmatpush1.msra.mxu0 %v6511
    %6561 = vmatprep.subr.mxu0 0.0
    %6562 = vmatpush1.msra.mxu0 %v6512
    %6563 = vmatprep.subr.mxu0 0.0
    %6564 = vmatpush1.msra.mxu0 %v6513
    %6565 = vmatprep.subr.mxu0 0.0
    %6566 = vmatpush1.msra.mxu0 %v6514
    %6567 = vmatprep.subr.mxu0 0.0
    %6568 = vmatpush1.msra.mxu0 %v6515
    %6569 = vmatprep.subr.mxu0 0.0
    %6570 = vmatpush1.msra.mxu0 %v6516
    %6571 = vmatprep.subr.mxu0 0.0
    %6572 = vmatpush1.msra.mxu0 %v6517
    %6573 = vmatprep.subr.mxu0 0.0
    %6574 = vmatpush1.msra.mxu0 %v6518
    %6575 = vmatprep.subr.mxu0 0.0
    %6576 = vmatpush1.msra.mxu0 %v6519
    %6577 = vmatprep.subr.mxu0 0.0
    %6578 = vmatpush1.msra.mxu0 %v6520
    %6579 = vmatprep.subr.mxu0 0.0
    %6580 = vmatpush1.msra.mxu0 %v6521
    %6581 = vmatprep.subr.mxu0 0.0
    %6582 = vmatpush1.msra.mxu0 %v6522
    %6583 = vmatprep.subr.mxu0 0.0
    %6584 = vmatpush1.msra.mxu0 %v6523
    %6585 = vmatprep.subr.mxu0 0.0
    %6586 = vmatpush1.msra.mxu0 %v6524
    %6587 = vmatprep.subr.mxu0 0.0
    %6588 = vmatpush1.msra.mxu0 %v6525
    %6589 = vmatprep.subr.mxu0 0.0
    %6590 = vmatpush1.msra.mxu0 %v6526
    %6591 = vmatprep.subr.mxu0 0.0
    %6592 = vmatpush1.msra.mxu0 %v6527
    %6593 = vmatprep.subr.mxu0 0.0
    %6594 = vmatpush1.msra.mxu0 %v6528
    %6595 = vmatprep.subr.mxu0 0.0
    %6596 = vmatpush1.msra.mxu0 %v6529
    %6597 = vmatprep.subr.mxu0 0.0
    %6598 = vmatpush1.msra.mxu0 %v6530
    %6599 = vmatprep.subr.mxu0 0.0
    %6600 = vmatpush1.msra.mxu0 %v6531
    %6601 = vmatprep.mubr.f32.mxu0 %v6499
    %6602 = vmatmul.mubr.f32.gmra.mrb[0].mxu0 %v6497
    %v6603 = vpop.f32.mrb[0].mxu0
    %v6604 = vadd.f32 %v6536, %v6603
    %v6605 = vpop.f32.mrb[0].mxu0
    %6606 = vdwg.mxu0
    %v6607 = vmax.f32 %v6604, 0.0
    %v6608 = vld [vmem:[%s7] sm:$0xff]
    %v6609 = vld [vmem:[%s7 + $0x8] sm:$0xff]
    %v6610 = vld [vmem:[%s7 + $0x10] sm:$0xff]
    %v6611 = vld [vmem:[%s7 + $0x18] sm:$0xff]
    %v6612 = vld [vmem:[%s7 + $0x20] sm:$0xff]
    %v6613 = vld [vmem:[%s7 + $0x28] sm:$0xff]
    %v6614 = vld [vmem:[%s7 + $0x30] sm:$0xff]
    %v6615 = vld [vmem:[%s7 + $0x38] sm:$0xff]
    %v6616 = vld [vmem:[%s7 + $0x40] sm:$0xff]
    %v6617 = vld [vmem:[%s7 + $0x48] sm:$0xff]
    %v6618 = vld [vmem:[%s7 + $0x50] sm:$0xff]
    %v6619 = vld [vmem:[%s7 + $0x58] sm:$0xff]
    %v6620 = vld [vmem:[%s7 + $0x60] sm:$0xff]
    %v6621 = vld [vmem:[%s7 + $0x68] sm:$0xff]
    %v6622 = vld [vmem:[%s7 + $0x70] sm:$0xff]
    %v6623 = vld [vmem:[%s7 + $0x78] sm:$0xff]
    %v6624 = vld [vmem:[%s9 + $0x1] sm:$0x1]
    %v6625 = vlaneseq
    %v6626 = vshrl.u32 %v6625, 7
    %v6627 = vsub.s32 0, %v6626
    %v6628 = vrot.slane %v6624, %v6627
    %6629 = vmatprep.subr.mxu0 0.0
    %6630 = vmatpush1.msra.mxu0 %v6608
    %6631 = vmatprep.subr.mxu0 0.0
    %6632 = vmatpush1.msra.mxu0 %v6609
    %6633 = vmatprep.subr.mxu0 0.0
    %6634 = vmatpush1.msra.mxu0 %v6610
    %6635 = vmatprep.subr.mxu0 0.0
    %6636 = vmatpush1.msra.mxu0 %v6611
    %6637 = vmatprep.subr.mxu0 0.0
    %6638 = vmatpush1.msra.mxu0 %v6612
    %6639 = vmatprep.subr.mxu0 0.0
    %6640 = vmatpush1.msra.mxu0 %v6613
    %6641 = vmatprep.subr.mxu0 0.0
    %6642 = vmatpush1.msra.mxu0 %v6614
    %6643 = vmatprep.subr.mxu0 0.0
    %6644 = vmatpush1.msra.mxu0 %v6615
    %6645 = vmatprep.subr.mxu0 0.0
    %6646 = vmatpush1.msra.mxu0 %v6616
    %6647 = vmatprep.subr.mxu0 0.0
    %6648 = vmatpush1.msra.mxu0 %v6617
    %6649 = vmatprep.subr.mxu0 0.0
    %6650 = vmatpush1.msra.mxu0 %v6618
    %6651 = vmatprep.subr.mxu0 0.0
    %6652 = vmatpush1.msra.mxu0 %v6619
    %6653 = vmatprep.subr.mxu0 0.0
    %6654 = vmatpush1.msra.mxu0 %v6620
    %6655 = vmatprep.subr.mxu0 0.0
    %6656 = vmatpush1.msra.mxu0 %v6621
    %6657 = vmatprep.subr.mxu0 0.0
    %6658 = vmatpush1.msra.mxu0 %v6622
    %6659 = vmatprep.subr.mxu0 0.0
    %6660 = vmatpush1.msra.mxu0 %v6623
    %6661 = vmatprep.subr.mxu0 0.0
    %6662 = vmatpush1.msra.mxu0 0.0
    %6663 = vmatprep.subr.mxu0 0.0
    %6664 = vmatpush1.msra.mxu0 0.0
    %6665 = vmatprep.subr.mxu0 0.0
    %6666 = vmatpush1.msra.mxu0 0.0
    %6667 = vmatprep.subr.mxu0 0.0
    %6668 = vmatpush1.msra.mxu0 0.0
    %6669 = vmatprep.subr.mxu0 0.0
    %6670 = vmatpush1.msra.mxu0 0.0
    %6671 = vmatprep.subr.mxu0 0.0
    %6672 = vmatpush1.msra.mxu0 0.0
    %6673 = vmatprep.subr.mxu0 0.0
    %6674 = vmatpush1.msra.mxu0 0.0
    %6675 = vmatprep.subr.mxu0 0.0
    %6676 = vmatpush1.msra.mxu0 0.0
    %6677 = vmatprep.subr.mxu0 0.0
    %6678 = vmatpush1.msra.mxu0 0.0
    %6679 = vmatprep.subr.mxu0 0.0
    %6680 = vmatpush1.msra.mxu0 0.0
    %6681 = vmatprep.subr.mxu0 0.0
    %6682 = vmatpush1.msra.mxu0 0.0
    %6683 = vmatprep.subr.mxu0 0.0
    %6684 = vmatpush1.msra.mxu0 0.0
    %6685 = vmatprep.subr.mxu0 0.0
    %6686 = vmatpush1.msra.mxu0 0.0
    %6687 = vmatprep.subr.mxu0 0.0
    %6688 = vmatpush1.msra.mxu0 0.0
    %6689 = vmatprep.subr.mxu0 0.0
    %6690 = vmatpush1.msra.mxu0 0.0
    %6691 = vmatprep.subr.mxu0 0.0
    %6692 = vmatpush1.msra.mxu0 0.0
    %6693 = vmatprep.mubr.f32.mxu0 0.0
    %6694 = vmatmul.mubr.f32.gmra.mrb[0].mxu0 %v6607
    %v6695 = vpop.f32.mrb[0].mxu0
    %v6696 = vadd.f32 %v6628, %v6695
    %v6697 = vpop.f32.mrb[0].mxu0
    %6698 = vdwg.mxu0
    %v6699 = vmax.f32 %v6696, 0.0
    %v6700 = vld [vmem:[%s8] sm:$0xff]
    %v6701 = vld [vmem:[%s8 + $0x8] sm:$0xff]
    %v6702 = vld [vmem:[%s8 + $0x10] sm:$0xff]
    %v6703 = vld [vmem:[%s8 + $0x18] sm:$0xff]
    %v6704 = vld [vmem:[%s8 + $0x20] sm:$0xff]
    %v6705 = vld [vmem:[%s8 + $0x28] sm:$0xff]
    %v6706 = vld [vmem:[%s8 + $0x30] sm:$0xff]
    %v6707 = vld [vmem:[%s8 + $0x38] sm:$0xff]
    %v6708 = vld [vmem:[%s9 + $0x2] sm:$0x1]
    %v6709 = vlaneseq
    %v6710 = vshrl.u32 %v6709, 7
    %v6711 = vsub.s32 0, %v6710
    %v6712 = vrot.slane %v6708, %v6711
    %v6714 = vsel %vm1039, %v6699, 0
    %6716 = vmatprep.subr.mxu0 0.0
    %6717 = vmatpush1.msra.mxu0 %v6700
    %6718 = vmatprep.subr.mxu0 0.0
    %6719 = vmatpush1.msra.mxu0 %v6701
    %6720 = vmatprep.subr.mxu0 0.0
    %6721 = vmatpush1.msra.mxu0 %v6702
    %6722 = vmatprep.subr.mxu0 0.0
    %6723 = vmatpush1.msra.mxu0 %v6703
    %6724 = vmatprep.subr.mxu0 0.0
    %6725 = vmatpush1.msra.mxu0 %v6704
    %6726 = vmatprep.subr.mxu0 0.0
    %6727 = vmatpush1.msra.mxu0 %v6705
    %6728 = vmatprep.subr.mxu0 0.0
    %6729 = vmatpush1.msra.mxu0 %v6706
    %6730 = vmatprep.subr.mxu0 0.0
    %6731 = vmatpush1.msra.mxu0 %v6707
    %6732 = vmatprep.subr.mxu0 0.0
    %6733 = vmatpush1.msra.mxu0 0.0
    %6734 = vmatprep.subr.mxu0 0.0
    %6735 = vmatpush1.msra.mxu0 0.0
    %6736 = vmatprep.subr.mxu0 0.0
    %6737 = vmatpush1.msra.mxu0 0.0
    %6738 = vmatprep.subr.mxu0 0.0
    %6739 = vmatpush1.msra.mxu0 0.0
    %6740 = vmatprep.subr.mxu0 0.0
    %6741 = vmatpush1.msra.mxu0 0.0
    %6742 = vmatprep.subr.mxu0 0.0
    %6743 = vmatpush1.msra.mxu0 0.0
    %6744 = vmatprep.subr.mxu0 0.0
    %6745 = vmatpush1.msra.mxu0 0.0
    %6746 = vmatprep.subr.mxu0 0.0
    %6747 = vmatpush1.msra.mxu0 0.0
    %6748 = vmatprep.subr.mxu0 0.0
    %6749 = vmatpush1.msra.mxu0 0.0
    %6750 = vmatprep.subr.mxu0 0.0
    %6751 = vmatpush1.msra.mxu0 0.0
    %6752 = vmatprep.subr.mxu0 0.0
    %6753 = vmatpush1.msra.mxu0 0.0
    %6754 = vmatprep.subr.mxu0 0.0
    %6755 = vmatpush1.msra.mxu0 0.0
    %6756 = vmatprep.subr.mxu0 0.0
    %6757 = vmatpush1.msra.mxu0 0.0
    %6758 = vmatprep.subr.mxu0 0.0
    %6759 = vmatpush1.msra.mxu0 0.0
    %6760 = vmatprep.subr.mxu0 0.0
    %6761 = vmatpush1.msra.mxu0 0.0
    %6762 = vmatprep.subr.mxu0 0.0
    %6763 = vmatpush1.msra.mxu0 0.0
    %6764 = vmatprep.subr.mxu0 0.0
    %6765 = vmatpush1.msra.mxu0 0.0
    %6766 = vmatprep.subr.mxu0 0.0
    %6767 = vmatpush1.msra.mxu0 0.0
    %6768 = vmatprep.subr.mxu0 0.0
    %6769 = vmatpush1.msra.mxu0 0.0
    %6770 = vmatprep.subr.mxu0 0.0
    %6771 = vmatpush1.msra.mxu0 0.0
    %6772 = vmatprep.subr.mxu0 0.0
    %6773 = vmatpush1.msra.mxu0 0.0
    %6774 = vmatprep.subr.mxu0 0.0
    %6775 = vmatpush1.msra.mxu0 0.0
    %6776 = vmatprep.subr.mxu0 0.0
    %6777 = vmatpush1.msra.mxu0 0.0
    %6778 = vmatprep.subr.mxu0 0.0
    %6779 = vmatpush1.msra.mxu0 0.0
    %6780 = vmatprep.mubr.f32.mxu0 0.0
    %6781 = vmatmul.mubr.f32.gmra.mrb[0].mxu0 %v6714
    %v6782 = vpop.f32.mrb[0].mxu0
    %v6783 = vadd.f32 %v6712, %v6782
    %v6784 = vpop.f32.mrb[0].mxu0
    %6785 = vdwg.mxu0
    %vm6786 = vcmask 56320
    %6787 = vst.msk [vmem:[#allocation14] sm:$0xff] %vm6786, %v6783
    // Predicated region
    $region58: #{bilstm_forward.1} parent=1 // pred_check
      _
    $region59: #{bilstm_forward.1} parent=1 // pred_check_branch
      %6789 = sbr.rel (0) target = $region61
    $region60: #{bilstm_forward.1} parent=1 // pred_region
      %s6791 = ssub.s32 128, 128
      %6792 = vsyncadd [#allocation8], %s6791
      %s6794 = sshll.u32 [#allocation14], 4
      %s6795 = int_to_ptr.vmem [resolvable:$true] %s6794
      %6797 = dma.vmem_to_hbm [thread:$0]  %s6795, 128, %s10, [#allocation8]
    $region61: #{bilstm_forward.1} parent=1 // pred_fallthru
      _
    // Predicated region
    $region62: #{bilstm_forward.1} parent=1 // pred_check
      _
    $region63: #{bilstm_forward.1} parent=1 // pred_check_branch
      %6799 = sbr.rel (0) target = $region65
    $region64: #{bilstm_forward.1} parent=1 // pred_region
      %6800 = dma.done [#allocation8], 128
    $region65: #{bilstm_forward.1} parent=1 // pred_fallthru
      _
    %6801 = vsyncpa [#allocation7], 1
    %6802 = vsyncpa [#allocation10], 1
    %6803 = vsyncpa [#allocation13], 1
    %6804 = vsyncpa [#allocation8], 1

</llo_original>
